<compile_context>
chip_gen: v6e
topology: v6e:2x2x1
jax: 0.10.0
libtpu: 0.0.40
codegen_flags: <defaults>
</compile_context>

<pallas_src>
import numpy as np
import jax
import jax.numpy as jnp
from jax.experimental import pallas as pl
from jax.experimental.pallas import tpu as pltpu

_PAD_OFF = 8  # interior column offset inside the halo scratch (sublane-aligned stores)


# ---------------------------------------------------------------------------
# Host-side constant matrices (built from static shapes at trace time).
# ---------------------------------------------------------------------------
def _interp_matrix(n_in, n_out):
    """Bilinear 1-D interpolation matrix, align_corners=True (PyTorch)."""
    A = np.zeros((n_out, n_in), dtype=np.float32)
    if n_in == 1:
        A[:, 0] = 1.0
    else:
        for o in range(n_out):
            src = o * (n_in - 1) / (n_out - 1)
            i0 = min(int(np.floor(src)), n_in - 2)
            frac = src - i0
            A[o, i0] += 1.0 - frac
            A[o, i0 + 1] += frac
    return A


def _upsample_matrix(H, W):
    """(H*W, (H//2)*(W//2)) matrix: out_flat = U @ x_flat  (2x bilinear, align_corners)."""
    A_h = _interp_matrix(H // 2, H)          # (H, H//2)
    A_w = _interp_matrix(W // 2, W)          # (W, W//2)
    return np.kron(A_h, A_w).astype(np.float32)


def _pool_select_matrix(H, W):
    """Selection matrix for the column half of 2x2 maxpool.

    Input rows are indexed j = (h//2)*W + w  (row pairs already max-reduced).
    Output rows 0..npool-1 select column 2*ow, rows npool.. select 2*ow+1.
    """
    H2, W2 = H // 2, W // 2
    npool = H2 * W2
    S = np.zeros((2 * npool, H2 * W), dtype=np.float32)
    for oh in range(H2):
        for ow in range(W2):
            k = oh * W2 + ow
            S[k, oh * W + 2 * ow] = 1.0
            S[npool + k, oh * W + 2 * ow + 1] = 1.0
    return S


# ---------------------------------------------------------------------------
# Fused forward kernel: one batch sample per grid step.
# ---------------------------------------------------------------------------
def _unet_fused_kernel(xp_ref, ew1_ref, eb1_ref, ew2_ref, eb2_ref, sel_ref,
                       dw1_ref, db1_ref, dw2_ref, db2_ref, up_ref,
                       out_ref, pad_e_ref, pad_d_ref):
    H = xp_ref.shape[1] - 2
    W = xp_ref.shape[2] - 2
    H2, W2 = H // 2, W // 2
    C = ew1_ref.shape[3]                     # 64
    npool = H2 * W2
    col0 = _PAD_OFF - 1                      # leftmost halo column for tap reads

    # Halo scratch buffers: zero once per step -> borders always read as 0.
    pad_e_ref[...] = jnp.zeros_like(pad_e_ref)
    pad_d_ref[...] = jnp.zeros_like(pad_d_ref)

    def conv3x3_relu(tap, w_ref, b_ref, rows):
        """9 accumulated MXU matmuls over in-VMEM shifted windows + bias + ReLU."""
        cout = w_ref.shape[3]
        acc = jnp.zeros((rows, cout), jnp.float32)
        for dy in range(3):
            for dx in range(3):
                p = tap(dy, dx).astype(jnp.bfloat16)            # (rows, cin)
                acc = acc + jnp.dot(p, w_ref[dy, dx],
                                    preferred_element_type=jnp.float32)
        return jnp.maximum(acc + b_ref[...], 0.0)               # f32 epilogue

    # ---- encoder conv1 (Cin -> 64), input already zero-padded in HBM --------
    tap_x = lambda dy, dx: xp_ref[0, dy:dy + H, dx:dx + W, :].reshape(H * W, -1)
    a1 = conv3x3_relu(tap_x, ew1_ref, eb1_ref, H * W)            # (H*W, 64) f32
    pad_e_ref[1:H + 1, _PAD_OFF:_PAD_OFF + W, :] = a1.reshape(H, W, C)

    # ---- encoder conv2 (64 -> 64) -------------------------------------------
    tap_e = lambda dy, dx: pad_e_ref[dy:dy + H,
                                     col0 + dx:col0 + dx + W, :].reshape(H * W, C)
    a2 = conv3x3_relu(tap_e, ew2_ref, eb2_ref, H * W)            # (H*W, 64) f32

    # ---- 2x2 max-pool, stride 2 ---------------------------------------------
    e = a2.reshape(H2, 2, W, C)                                  # split row pairs
    hm = jnp.maximum(e[:, 0], e[:, 1]).reshape(H2 * W, C)        # H-direction pool
    sel = jnp.dot(sel_ref[...], hm.astype(jnp.bfloat16),
                  preferred_element_type=jnp.float32)            # (2*npool, C)
    pooled = jnp.maximum(sel[:npool], sel[npool:])               # W-direction pool
    pad_d_ref[1:H2 + 1, _PAD_OFF:_PAD_OFF + W2, :] = pooled.reshape(H2, W2, C)

    # ---- decoder conv1 (64 -> 64) -------------------------------------------
    tap_d = lambda dy, dx: pad_d_ref[dy:dy + H2,
                                     col0 + dx:col0 + dx + W2, :].reshape(npool, C)
    d1 = conv3x3_relu(tap_d, dw1_ref, db1_ref, npool)            # (npool, 64) f32
    pad_d_ref[1:H2 + 1, _PAD_OFF:_PAD_OFF + W2, :] = d1.reshape(H2, W2, C)

    # ---- decoder conv2 (64 -> Cout) -----------------------------------------
    d2 = conv3x3_relu(tap_d, dw2_ref, db2_ref, npool)            # (npool, Cout) f32

    # ---- bilinear 2x upsample (align_corners=True): one kron matmul ---------
    out_ref[0, :, :] = jnp.dot(up_ref[...], d2, preferred_element_type=jnp.float32)
    # NOTE: the module defines self.sigmoid but never calls it in forward().


# ---------------------------------------------------------------------------
# Wrapper: layout prep + single pallas_call over the batch.
# ---------------------------------------------------------------------------
@jax.jit
def unet_noskip_forward(x_nchw, params):
    B, Cin, H, W = x_nchw.shape
    assert H % 2 == 0 and W % 2 == 0, "spatial dims must be even for MaxPool2d(2,2)"
    C = 64
    Cout = params['dec_w2'].shape[0]
    H2, W2 = H // 2, W // 2
    npool = H2 * W2

    # NHWC + zero padding for the first conv (tiny; done once in XLA).
    x = jnp.transpose(x_nchw, (0, 2, 3, 1)).astype(jnp.float32)
    xp = jnp.pad(x, ((0, 0), (1, 1), (1, 1), (0, 0)))

    def wt(w):  # (Cout, Cin, 3, 3) -> (3, 3, Cin, Cout), bf16 for the MXU
        return jnp.transpose(w, (2, 3, 1, 0)).astype(jnp.bfloat16)

    ew1, ew2 = wt(params['enc_w1']), wt(params['enc_w2'])
    dw1, dw2 = wt(params['dec_w1']), wt(params['dec_w2'])
    eb1 = params['enc_b1'].reshape(1, C).astype(jnp.float32)
    eb2 = params['enc_b2'].reshape(1, C).astype(jnp.float32)
    db1 = params['dec_b1'].reshape(1, C).astype(jnp.float32)
    db2 = params['dec_b2'].reshape(1, Cout).astype(jnp.float32)

    sel = jnp.asarray(_pool_select_matrix(H, W), jnp.bfloat16)     # (2*npool, H2*W)
    up = jnp.asarray(_upsample_matrix(H, W), jnp.float32)          # (H*W, npool)

    const4 = lambda b: (0, 0, 0, 0)
    const2 = lambda b: (0, 0)

    out_flat = pl.pallas_call(
        _unet_fused_kernel,
        out_shape=jax.ShapeDtypeStruct((B, H * W, Cout), jnp.float32),
        grid=(B,),
        in_specs=[
            pl.BlockSpec((1, H + 2, W + 2, Cin), lambda b: (b, 0, 0, 0)),
            pl.BlockSpec((3, 3, Cin, C), const4),
            pl.BlockSpec((1, C), const2),
            pl.BlockSpec((3, 3, C, C), const4),
            pl.BlockSpec((1, C), const2),
            pl.BlockSpec((2 * npool, H2 * W), const2),
            pl.BlockSpec((3, 3, C, C), const4),
            pl.BlockSpec((1, C), const2),
            pl.BlockSpec((3, 3, C, Cout), const4),
            pl.BlockSpec((1, Cout), const2),
            pl.BlockSpec((H * W, npool), const2),
        ],
        out_specs=pl.BlockSpec((1, H * W, Cout), lambda b: (b, 0, 0)),
        scratch_shapes=[
            pltpu.VMEM((H + 2, W + 16, C), jnp.float32),   # encoder halo buffer
            pltpu.VMEM((H2 + 2, W2 + 16, C), jnp.float32), # decoder halo buffer
        ],
        compiler_params=pltpu.CompilerParams(dimension_semantics=("parallel",)),
    )(xp, ew1, eb1, ew2, eb2, sel, dw1, db1, dw2, db2, up)

    y = out_flat.reshape(B, H, W, Cout)
    return jnp.transpose(y, (0, 3, 1, 2))                         # back to NCHW


# ---------------------------------------------------------------------------
# Deterministic parameter init (PyTorch weight layout (Cout, Cin, 3, 3)).
# ---------------------------------------------------------------------------
def init_params(in_channels, out_channels, key):
    ks = jax.random.split(key, 8)

    def conv_init(kw, kb, cin, cout):
        std = (2.0 / (cin * 9)) ** 0.5
        w = jax.random.normal(kw, (cout, cin, 3, 3), jnp.float32) * std
        b = jax.random.normal(kb, (cout,), jnp.float32) * 0.01
        return w, b

    p = {}
    p['enc_w1'], p['enc_b1'] = conv_init(ks[0], ks[1], in_channels, 64)
    p['enc_w2'], p['enc_b2'] = conv_init(ks[2], ks[3], 64, 64)
    p['dec_w1'], p['dec_b1'] = conv_init(ks[4], ks[5], 64, 64)
    p['dec_w2'], p['dec_b2'] = conv_init(ks[6], ks[7], 64, out_channels)
    return p


if __name__ == "__main__":
    key = jax.random.PRNGKey(0)
    kx, kp = jax.random.split(key)

    B, CIN, COUT, SP = 2, 4, 3, 16
    x = jax.random.normal(kx, (B, CIN, SP, SP), jnp.float32)
    params = init_params(CIN, COUT, kp)

    out = jax.block_until_ready(unet_noskip_forward(x, params))

    assert out.shape == (B, COUT, SP, SP), out.shape
    assert bool(jnp.all(jnp.isfinite(out)))
    print("KERNEL_OK")
</pallas_src>

<mosaic_0001>
module attributes {stable_mosaic.version = 11 : i64} {
  func.func @_unet_fused_kernel(%arg0: i32, %arg1: memref<1x18x18x4xf32, #tpu.memory_space<vmem>>, %arg2: memref<3x3x4x64xbf16, #tpu.memory_space<vmem>>, %arg3: memref<1x64xf32, #tpu.memory_space<vmem>>, %arg4: memref<3x3x64x64xbf16, #tpu.memory_space<vmem>>, %arg5: memref<1x64xf32, #tpu.memory_space<vmem>>, %arg6: memref<128x128xbf16, #tpu.memory_space<vmem>>, %arg7: memref<3x3x64x64xbf16, #tpu.memory_space<vmem>>, %arg8: memref<1x64xf32, #tpu.memory_space<vmem>>, %arg9: memref<3x3x64x3xbf16, #tpu.memory_space<vmem>>, %arg10: memref<1x3xf32, #tpu.memory_space<vmem>>, %arg11: memref<256x64xf32, #tpu.memory_space<vmem>>, %arg12: memref<1x256x3xf32, #tpu.memory_space<vmem>>, %arg13: memref<18x32x64xf32, #tpu.memory_space<vmem>>, %arg14: memref<10x24x64xf32, #tpu.memory_space<vmem>>) attributes {dimension_semantics = [#tpu.dimension_semantics<parallel>], iteration_bounds = array<i64: 2>, scalar_prefetch = 0 : i64, scratch_operands = 2 : i64, tpu.core_type = #tpu.core_type<tc>, window_params = [{transform_indices = @transform_0, window_bounds = array<i64: 1, 18, 18, 4>}, {pipeline_mode = #tpu.pipeline_mode<synchronous>, transform_indices = @transform_1, window_bounds = array<i64: 3, 3, 4, 64>}, {pipeline_mode = #tpu.pipeline_mode<synchronous>, transform_indices = @transform_2, window_bounds = array<i64: 1, 64>}, {pipeline_mode = #tpu.pipeline_mode<synchronous>, transform_indices = @transform_3, window_bounds = array<i64: 3, 3, 64, 64>}, {pipeline_mode = #tpu.pipeline_mode<synchronous>, transform_indices = @transform_4, window_bounds = array<i64: 1, 64>}, {pipeline_mode = #tpu.pipeline_mode<synchronous>, transform_indices = @transform_5, window_bounds = array<i64: 128, 128>}, {pipeline_mode = #tpu.pipeline_mode<synchronous>, transform_indices = @transform_6, window_bounds = array<i64: 3, 3, 64, 64>}, {pipeline_mode = #tpu.pipeline_mode<synchronous>, transform_indices = @transform_7, window_bounds = array<i64: 1, 64>}, {pipeline_mode = #tpu.pipeline_mode<synchronous>, transform_indices = @transform_8, window_bounds = array<i64: 3, 3, 64, 3>}, {pipeline_mode = #tpu.pipeline_mode<synchronous>, transform_indices = @transform_9, window_bounds = array<i64: 1, 3>}, {pipeline_mode = #tpu.pipeline_mode<synchronous>, transform_indices = @transform_10, window_bounds = array<i64: 256, 64>}, {transform_indices = @transform_11, window_bounds = array<i64: 1, 256, 3>}]} {
    %cst = arith.constant 0.000000e+00 : f32
    %0 = vector.broadcast %cst : f32 to vector<18x32x64xf32>
    %c0 = arith.constant 0 : index
    %c0_0 = arith.constant 0 : index
    %c0_1 = arith.constant 0 : index
    %1 = vector.load %arg13[%c0, %c0_0, %c0_1] : memref<18x32x64xf32, #tpu.memory_space<vmem>>, vector<18x32x64xf32>
    tpu.vector_store %arg13[%c0, %c0_0, %c0_1], %0 {strides = array<i32>} : memref<18x32x64xf32, #tpu.memory_space<vmem>>, vector<18x32x64xf32>,
    %cst_2 = arith.constant 0.000000e+00 : f32
    %2 = vector.broadcast %cst_2 : f32 to vector<10x24x64xf32>
    %c0_3 = arith.constant 0 : index
    %c0_4 = arith.constant 0 : index
    %c0_5 = arith.constant 0 : index
    %3 = vector.load %arg14[%c0_3, %c0_4, %c0_5] : memref<10x24x64xf32, #tpu.memory_space<vmem>>, vector<10x24x64xf32>
    tpu.vector_store %arg14[%c0_3, %c0_4, %c0_5], %2 {strides = array<i32>} : memref<10x24x64xf32, #tpu.memory_space<vmem>>, vector<10x24x64xf32>,
    %cst_6 = arith.constant 0.000000e+00 : f32
    %4 = vector.broadcast %cst_6 : f32 to vector<256x64xf32>
    %c0_7 = arith.constant 0 : index
    %c0_8 = arith.constant 0 : index
    %c0_9 = arith.constant 0 : index
    %c0_10 = arith.constant 0 : index
    %5 = vector.load %arg1[%c0_7, %c0_8, %c0_9, %c0_10] : memref<1x18x18x4xf32, #tpu.memory_space<vmem>>, vector<1x16x16x4xf32>
    %6 = vector.shape_cast %5 : vector<1x16x16x4xf32> to vector<16x16x4xf32>
    %7 = vector.shape_cast %6 : vector<16x16x4xf32> to vector<256x4xf32>
    %8 = arith.truncf %7 : vector<256x4xf32> to vector<256x4xbf16>
    %c0_11 = arith.constant 0 : index
    %c0_12 = arith.constant 0 : index
    %c0_13 = arith.constant 0 : index
    %c0_14 = arith.constant 0 : index
    %9 = vector.load %arg2[%c0_11, %c0_12, %c0_13, %c0_14] : memref<3x3x4x64xbf16, #tpu.memory_space<vmem>>, vector<1x1x4x64xbf16>
    %10 = vector.shape_cast %9 : vector<1x1x4x64xbf16> to vector<4x64xbf16>
    %cst_15 = arith.constant dense<0.000000e+00> : vector<256x64xf32>
    %11 = tpu.matmul %8, %10, %cst_15 {dimension_numbers = #tpu.dot_dimension_numbers<[1], [0], [0], [1], [0, 0, 1, 1], [], []>} : vector<256x4xbf16>, vector<4x64xbf16>, vector<256x64xf32> -> vector<256x64xf32>
    %12 = arith.addf %4, %11 : vector<256x64xf32>
    %c0_16 = arith.constant 0 : index
    %c0_17 = arith.constant 0 : index
    %c1 = arith.constant 1 : index
    %c0_18 = arith.constant 0 : index
    %13 = vector.load %arg1[%c0_16, %c0_17, %c1, %c0_18] : memref<1x18x18x4xf32, #tpu.memory_space<vmem>>, vector<1x16x16x4xf32>
    %14 = vector.shape_cast %13 : vector<1x16x16x4xf32> to vector<16x16x4xf32>
    %15 = vector.shape_cast %14 : vector<16x16x4xf32> to vector<256x4xf32>
    %16 = arith.truncf %15 : vector<256x4xf32> to vector<256x4xbf16>
    %c0_19 = arith.constant 0 : index
    %c1_20 = arith.constant 1 : index
    %c0_21 = arith.constant 0 : index
    %c0_22 = arith.constant 0 : index
    %17 = vector.load %arg2[%c0_19, %c1_20, %c0_21, %c0_22] : memref<3x3x4x64xbf16, #tpu.memory_space<vmem>>, vector<1x1x4x64xbf16>
    %18 = vector.shape_cast %17 : vector<1x1x4x64xbf16> to vector<4x64xbf16>
    %cst_23 = arith.constant dense<0.000000e+00> : vector<256x64xf32>
    %19 = tpu.matmul %16, %18, %cst_23 {dimension_numbers = #tpu.dot_dimension_numbers<[1], [0], [0], [1], [0, 0, 1, 1], [], []>} : vector<256x4xbf16>, vector<4x64xbf16>, vector<256x64xf32> -> vector<256x64xf32>
    %20 = arith.addf %12, %19 : vector<256x64xf32>
    %c0_24 = arith.constant 0 : index
    %c0_25 = arith.constant 0 : index
    %c2 = arith.constant 2 : index
    %c0_26 = arith.constant 0 : index
    %21 = vector.load %arg1[%c0_24, %c0_25, %c2, %c0_26] : memref<1x18x18x4xf32, #tpu.memory_space<vmem>>, vector<1x16x16x4xf32>
    %22 = vector.shape_cast %21 : vector<1x16x16x4xf32> to vector<16x16x4xf32>
    %23 = vector.shape_cast %22 : vector<16x16x4xf32> to vector<256x4xf32>
    %24 = arith.truncf %23 : vector<256x4xf32> to vector<256x4xbf16>
    %c0_27 = arith.constant 0 : index
    %c2_28 = arith.constant 2 : index
    %c0_29 = arith.constant 0 : index
    %c0_30 = arith.constant 0 : index
    %25 = vector.load %arg2[%c0_27, %c2_28, %c0_29, %c0_30] : memref<3x3x4x64xbf16, #tpu.memory_space<vmem>>, vector<1x1x4x64xbf16>
    %26 = vector.shape_cast %25 : vector<1x1x4x64xbf16> to vector<4x64xbf16>
    %cst_31 = arith.constant dense<0.000000e+00> : vector<256x64xf32>
    %27 = tpu.matmul %24, %26, %cst_31 {dimension_numbers = #tpu.dot_dimension_numbers<[1], [0], [0], [1], [0, 0, 1, 1], [], []>} : vector<256x4xbf16>, vector<4x64xbf16>, vector<256x64xf32> -> vector<256x64xf32>
    %28 = arith.addf %20, %27 : vector<256x64xf32>
    %c0_32 = arith.constant 0 : index
    %c1_33 = arith.constant 1 : index
    %c0_34 = arith.constant 0 : index
    %c0_35 = arith.constant 0 : index
    %29 = vector.load %arg1[%c0_32, %c1_33, %c0_34, %c0_35] : memref<1x18x18x4xf32, #tpu.memory_space<vmem>>, vector<1x16x16x4xf32>
    %30 = vector.shape_cast %29 : vector<1x16x16x4xf32> to vector<16x16x4xf32>
    %31 = vector.shape_cast %30 : vector<16x16x4xf32> to vector<256x4xf32>
    %32 = arith.truncf %31 : vector<256x4xf32> to vector<256x4xbf16>
    %c1_36 = arith.constant 1 : index
    %c0_37 = arith.constant 0 : index
    %c0_38 = arith.constant 0 : index
    %c0_39 = arith.constant 0 : index
    %33 = vector.load %arg2[%c1_36, %c0_37, %c0_38, %c0_39] : memref<3x3x4x64xbf16, #tpu.memory_space<vmem>>, vector<1x1x4x64xbf16>
    %34 = vector.shape_cast %33 : vector<1x1x4x64xbf16> to vector<4x64xbf16>
    %cst_40 = arith.constant dense<0.000000e+00> : vector<256x64xf32>
    %35 = tpu.matmul %32, %34, %cst_40 {dimension_numbers = #tpu.dot_dimension_numbers<[1], [0], [0], [1], [0, 0, 1, 1], [], []>} : vector<256x4xbf16>, vector<4x64xbf16>, vector<256x64xf32> -> vector<256x64xf32>
    %36 = arith.addf %28, %35 : vector<256x64xf32>
    %c0_41 = arith.constant 0 : index
    %c1_42 = arith.constant 1 : index
    %c1_43 = arith.constant 1 : index
    %c0_44 = arith.constant 0 : index
    %37 = vector.load %arg1[%c0_41, %c1_42, %c1_43, %c0_44] : memref<1x18x18x4xf32, #tpu.memory_space<vmem>>, vector<1x16x16x4xf32>
    %38 = vector.shape_cast %37 : vector<1x16x16x4xf32> to vector<16x16x4xf32>
    %39 = vector.shape_cast %38 : vector<16x16x4xf32> to vector<256x4xf32>
    %40 = arith.truncf %39 : vector<256x4xf32> to vector<256x4xbf16>
    %c1_45 = arith.constant 1 : index
    %c1_46 = arith.constant 1 : index
    %c0_47 = arith.constant 0 : index
    %c0_48 = arith.constant 0 : index
    %41 = vector.load %arg2[%c1_45, %c1_46, %c0_47, %c0_48] : memref<3x3x4x64xbf16, #tpu.memory_space<vmem>>, vector<1x1x4x64xbf16>
    %42 = vector.shape_cast %41 : vector<1x1x4x64xbf16> to vector<4x64xbf16>
    %cst_49 = arith.constant dense<0.000000e+00> : vector<256x64xf32>
    %43 = tpu.matmul %40, %42, %cst_49 {dimension_numbers = #tpu.dot_dimension_numbers<[1], [0], [0], [1], [0, 0, 1, 1], [], []>} : vector<256x4xbf16>, vector<4x64xbf16>, vector<256x64xf32> -> vector<256x64xf32>
    %44 = arith.addf %36, %43 : vector<256x64xf32>
    %c0_50 = arith.constant 0 : index
    %c1_51 = arith.constant 1 : index
    %c2_52 = arith.constant 2 : index
    %c0_53 = arith.constant 0 : index
    %45 = vector.load %arg1[%c0_50, %c1_51, %c2_52, %c0_53] : memref<1x18x18x4xf32, #tpu.memory_space<vmem>>, vector<1x16x16x4xf32>
    %46 = vector.shape_cast %45 : vector<1x16x16x4xf32> to vector<16x16x4xf32>
    %47 = vector.shape_cast %46 : vector<16x16x4xf32> to vector<256x4xf32>
    %48 = arith.truncf %47 : vector<256x4xf32> to vector<256x4xbf16>
    %c1_54 = arith.constant 1 : index
    %c2_55 = arith.constant 2 : index
    %c0_56 = arith.constant 0 : index
    %c0_57 = arith.constant 0 : index
    %49 = vector.load %arg2[%c1_54, %c2_55, %c0_56, %c0_57] : memref<3x3x4x64xbf16, #tpu.memory_space<vmem>>, vector<1x1x4x64xbf16>
    %50 = vector.shape_cast %49 : vector<1x1x4x64xbf16> to vector<4x64xbf16>
    %cst_58 = arith.constant dense<0.000000e+00> : vector<256x64xf32>
    %51 = tpu.matmul %48, %50, %cst_58 {dimension_numbers = #tpu.dot_dimension_numbers<[1], [0], [0], [1], [0, 0, 1, 1], [], []>} : vector<256x4xbf16>, vector<4x64xbf16>, vector<256x64xf32> -> vector<256x64xf32>
    %52 = arith.addf %44, %51 : vector<256x64xf32>
    %c0_59 = arith.constant 0 : index
    %c2_60 = arith.constant 2 : index
    %c0_61 = arith.constant 0 : index
    %c0_62 = arith.constant 0 : index
    %53 = vector.load %arg1[%c0_59, %c2_60, %c0_61, %c0_62] : memref<1x18x18x4xf32, #tpu.memory_space<vmem>>, vector<1x16x16x4xf32>
    %54 = vector.shape_cast %53 : vector<1x16x16x4xf32> to vector<16x16x4xf32>
    %55 = vector.shape_cast %54 : vector<16x16x4xf32> to vector<256x4xf32>
    %56 = arith.truncf %55 : vector<256x4xf32> to vector<256x4xbf16>
    %c2_63 = arith.constant 2 : index
    %c0_64 = arith.constant 0 : index
    %c0_65 = arith.constant 0 : index
    %c0_66 = arith.constant 0 : index
    %57 = vector.load %arg2[%c2_63, %c0_64, %c0_65, %c0_66] : memref<3x3x4x64xbf16, #tpu.memory_space<vmem>>, vector<1x1x4x64xbf16>
    %58 = vector.shape_cast %57 : vector<1x1x4x64xbf16> to vector<4x64xbf16>
    %cst_67 = arith.constant dense<0.000000e+00> : vector<256x64xf32>
    %59 = tpu.matmul %56, %58, %cst_67 {dimension_numbers = #tpu.dot_dimension_numbers<[1], [0], [0], [1], [0, 0, 1, 1], [], []>} : vector<256x4xbf16>, vector<4x64xbf16>, vector<256x64xf32> -> vector<256x64xf32>
    %60 = arith.addf %52, %59 : vector<256x64xf32>
    %c0_68 = arith.constant 0 : index
    %c2_69 = arith.constant 2 : index
    %c1_70 = arith.constant 1 : index
    %c0_71 = arith.constant 0 : index
    %61 = vector.load %arg1[%c0_68, %c2_69, %c1_70, %c0_71] : memref<1x18x18x4xf32, #tpu.memory_space<vmem>>, vector<1x16x16x4xf32>
    %62 = vector.shape_cast %61 : vector<1x16x16x4xf32> to vector<16x16x4xf32>
    %63 = vector.shape_cast %62 : vector<16x16x4xf32> to vector<256x4xf32>
    %64 = arith.truncf %63 : vector<256x4xf32> to vector<256x4xbf16>
    %c2_72 = arith.constant 2 : index
    %c1_73 = arith.constant 1 : index
    %c0_74 = arith.constant 0 : index
    %c0_75 = arith.constant 0 : index
    %65 = vector.load %arg2[%c2_72, %c1_73, %c0_74, %c0_75] : memref<3x3x4x64xbf16, #tpu.memory_space<vmem>>, vector<1x1x4x64xbf16>
    %66 = vector.shape_cast %65 : vector<1x1x4x64xbf16> to vector<4x64xbf16>
    %cst_76 = arith.constant dense<0.000000e+00> : vector<256x64xf32>
    %67 = tpu.matmul %64, %66, %cst_76 {dimension_numbers = #tpu.dot_dimension_numbers<[1], [0], [0], [1], [0, 0, 1, 1], [], []>} : vector<256x4xbf16>, vector<4x64xbf16>, vector<256x64xf32> -> vector<256x64xf32>
    %68 = arith.addf %60, %67 : vector<256x64xf32>
    %c0_77 = arith.constant 0 : index
    %c2_78 = arith.constant 2 : index
    %c2_79 = arith.constant 2 : index
    %c0_80 = arith.constant 0 : index
    %69 = vector.load %arg1[%c0_77, %c2_78, %c2_79, %c0_80] : memref<1x18x18x4xf32, #tpu.memory_space<vmem>>, vector<1x16x16x4xf32>
    %70 = vector.shape_cast %69 : vector<1x16x16x4xf32> to vector<16x16x4xf32>
    %71 = vector.shape_cast %70 : vector<16x16x4xf32> to vector<256x4xf32>
    %72 = arith.truncf %71 : vector<256x4xf32> to vector<256x4xbf16>
    %c2_81 = arith.constant 2 : index
    %c2_82 = arith.constant 2 : index
    %c0_83 = arith.constant 0 : index
    %c0_84 = arith.constant 0 : index
    %73 = vector.load %arg2[%c2_81, %c2_82, %c0_83, %c0_84] : memref<3x3x4x64xbf16, #tpu.memory_space<vmem>>, vector<1x1x4x64xbf16>
    %74 = vector.shape_cast %73 : vector<1x1x4x64xbf16> to vector<4x64xbf16>
    %cst_85 = arith.constant dense<0.000000e+00> : vector<256x64xf32>
    %75 = tpu.matmul %72, %74, %cst_85 {dimension_numbers = #tpu.dot_dimension_numbers<[1], [0], [0], [1], [0, 0, 1, 1], [], []>} : vector<256x4xbf16>, vector<4x64xbf16>, vector<256x64xf32> -> vector<256x64xf32>
    %76 = arith.addf %68, %75 : vector<256x64xf32>
    %c0_86 = arith.constant 0 : index
    %c0_87 = arith.constant 0 : index
    %77 = vector.load %arg3[%c0_86, %c0_87] : memref<1x64xf32, #tpu.memory_space<vmem>>, vector<1x64xf32>
    %78 = vector.broadcast %77 : vector<1x64xf32> to vector<256x64xf32>
    %79 = arith.addf %76, %78 : vector<256x64xf32>
    %cst_88 = arith.constant 0.000000e+00 : f32
    %80 = vector.broadcast %cst_88 : f32 to vector<256x64xf32>
    %81 = arith.maximumf %79, %80 : vector<256x64xf32>
    %82 = vector.shape_cast %81 : vector<256x64xf32> to vector<16x16x64xf32>
    %c1_89 = arith.constant 1 : index
    %c8 = arith.constant 8 : index
    %c0_90 = arith.constant 0 : index
    %83 = vector.load %arg13[%c1_89, %c8, %c0_90] : memref<18x32x64xf32, #tpu.memory_space<vmem>>, vector<16x16x64xf32>
    tpu.vector_store %arg13[%c1_89, %c8, %c0_90], %82 {strides = array<i32>} : memref<18x32x64xf32, #tpu.memory_space<vmem>>, vector<16x16x64xf32>,
    %cst_91 = arith.constant 0.000000e+00 : f32
    %84 = vector.broadcast %cst_91 : f32 to vector<256x64xf32>
    %c0_92 = arith.constant 0 : index
    %c7 = arith.constant 7 : index
    %c0_93 = arith.constant 0 : index
    %85 = vector.load %arg13[%c0_92, %c7, %c0_93] : memref<18x32x64xf32, #tpu.memory_space<vmem>>, vector<16x16x64xf32>
    %86 = vector.shape_cast %85 : vector<16x16x64xf32> to vector<256x64xf32>
    %87 = arith.truncf %86 : vector<256x64xf32> to vector<256x64xbf16>
    %c0_94 = arith.constant 0 : index
    %c0_95 = arith.constant 0 : index
    %c0_96 = arith.constant 0 : index
    %c0_97 = arith.constant 0 : index
    %88 = vector.load %arg4[%c0_94, %c0_95, %c0_96, %c0_97] : memref<3x3x64x64xbf16, #tpu.memory_space<vmem>>, vector<1x1x64x64xbf16>
    %89 = vector.shape_cast %88 : vector<1x1x64x64xbf16> to vector<64x64xbf16>
    %cst_98 = arith.constant dense<0.000000e+00> : vector<256x64xf32>
    %90 = tpu.matmul %87, %89, %cst_98 {dimension_numbers = #tpu.dot_dimension_numbers<[1], [0], [0], [1], [0, 0, 1, 1], [], []>} : vector<256x64xbf16>, vector<64x64xbf16>, vector<256x64xf32> -> vector<256x64xf32>
    %91 = arith.addf %84, %90 : vector<256x64xf32>
    %c0_99 = arith.constant 0 : index
    %c8_100 = arith.constant 8 : index
    %c0_101 = arith.constant 0 : index
    %92 = vector.load %arg13[%c0_99, %c8_100, %c0_101] : memref<18x32x64xf32, #tpu.memory_space<vmem>>, vector<16x16x64xf32>
    %93 = vector.shape_cast %92 : vector<16x16x64xf32> to vector<256x64xf32>
    %94 = arith.truncf %93 : vector<256x64xf32> to vector<256x64xbf16>
    %c0_102 = arith.constant 0 : index
    %c1_103 = arith.constant 1 : index
    %c0_104 = arith.constant 0 : index
    %c0_105 = arith.constant 0 : index
    %95 = vector.load %arg4[%c0_102, %c1_103, %c0_104, %c0_105] : memref<3x3x64x64xbf16, #tpu.memory_space<vmem>>, vector<1x1x64x64xbf16>
    %96 = vector.shape_cast %95 : vector<1x1x64x64xbf16> to vector<64x64xbf16>
    %cst_106 = arith.constant dense<0.000000e+00> : vector<256x64xf32>
    %97 = tpu.matmul %94, %96, %cst_106 {dimension_numbers = #tpu.dot_dimension_numbers<[1], [0], [0], [1], [0, 0, 1, 1], [], []>} : vector<256x64xbf16>, vector<64x64xbf16>, vector<256x64xf32> -> vector<256x64xf32>
    %98 = arith.addf %91, %97 : vector<256x64xf32>
    %c0_107 = arith.constant 0 : index
    %c9 = arith.constant 9 : index
    %c0_108 = arith.constant 0 : index
    %99 = vector.load %arg13[%c0_107, %c9, %c0_108] : memref<18x32x64xf32, #tpu.memory_space<vmem>>, vector<16x16x64xf32>
    %100 = vector.shape_cast %99 : vector<16x16x64xf32> to vector<256x64xf32>
    %101 = arith.truncf %100 : vector<256x64xf32> to vector<256x64xbf16>
    %c0_109 = arith.constant 0 : index
    %c2_110 = arith.constant 2 : index
    %c0_111 = arith.constant 0 : index
    %c0_112 = arith.constant 0 : index
    %102 = vector.load %arg4[%c0_109, %c2_110, %c0_111, %c0_112] : memref<3x3x64x64xbf16, #tpu.memory_space<vmem>>, vector<1x1x64x64xbf16>
    %103 = vector.shape_cast %102 : vector<1x1x64x64xbf16> to vector<64x64xbf16>
    %cst_113 = arith.constant dense<0.000000e+00> : vector<256x64xf32>
    %104 = tpu.matmul %101, %103, %cst_113 {dimension_numbers = #tpu.dot_dimension_numbers<[1], [0], [0], [1], [0, 0, 1, 1], [], []>} : vector<256x64xbf16>, vector<64x64xbf16>, vector<256x64xf32> -> vector<256x64xf32>
    %105 = arith.addf %98, %104 : vector<256x64xf32>
    %c1_114 = arith.constant 1 : index
    %c7_115 = arith.constant 7 : index
    %c0_116 = arith.constant 0 : index
    %106 = vector.load %arg13[%c1_114, %c7_115, %c0_116] : memref<18x32x64xf32, #tpu.memory_space<vmem>>, vector<16x16x64xf32>
    %107 = vector.shape_cast %106 : vector<16x16x64xf32> to vector<256x64xf32>
    %108 = arith.truncf %107 : vector<256x64xf32> to vector<256x64xbf16>
    %c1_117 = arith.constant 1 : index
    %c0_118 = arith.constant 0 : index
    %c0_119 = arith.constant 0 : index
    %c0_120 = arith.constant 0 : index
    %109 = vector.load %arg4[%c1_117, %c0_118, %c0_119, %c0_120] : memref<3x3x64x64xbf16, #tpu.memory_space<vmem>>, vector<1x1x64x64xbf16>
    %110 = vector.shape_cast %109 : vector<1x1x64x64xbf16> to vector<64x64xbf16>
    %cst_121 = arith.constant dense<0.000000e+00> : vector<256x64xf32>
    %111 = tpu.matmul %108, %110, %cst_121 {dimension_numbers = #tpu.dot_dimension_numbers<[1], [0], [0], [1], [0, 0, 1, 1], [], []>} : vector<256x64xbf16>, vector<64x64xbf16>, vector<256x64xf32> -> vector<256x64xf32>
    %112 = arith.addf %105, %111 : vector<256x64xf32>
    %c1_122 = arith.constant 1 : index
    %c8_123 = arith.constant 8 : index
    %c0_124 = arith.constant 0 : index
    %113 = vector.load %arg13[%c1_122, %c8_123, %c0_124] : memref<18x32x64xf32, #tpu.memory_space<vmem>>, vector<16x16x64xf32>
    %114 = vector.shape_cast %113 : vector<16x16x64xf32> to vector<256x64xf32>
    %115 = arith.truncf %114 : vector<256x64xf32> to vector<256x64xbf16>
    %c1_125 = arith.constant 1 : index
    %c1_126 = arith.constant 1 : index
    %c0_127 = arith.constant 0 : index
    %c0_128 = arith.constant 0 : index
    %116 = vector.load %arg4[%c1_125, %c1_126, %c0_127, %c0_128] : memref<3x3x64x64xbf16, #tpu.memory_space<vmem>>, vector<1x1x64x64xbf16>
    %117 = vector.shape_cast %116 : vector<1x1x64x64xbf16> to vector<64x64xbf16>
    %cst_129 = arith.constant dense<0.000000e+00> : vector<256x64xf32>
    %118 = tpu.matmul %115, %117, %cst_129 {dimension_numbers = #tpu.dot_dimension_numbers<[1], [0], [0], [1], [0, 0, 1, 1], [], []>} : vector<256x64xbf16>, vector<64x64xbf16>, vector<256x64xf32> -> vector<256x64xf32>
    %119 = arith.addf %112, %118 : vector<256x64xf32>
    %c1_130 = arith.constant 1 : index
    %c9_131 = arith.constant 9 : index
    %c0_132 = arith.constant 0 : index
    %120 = vector.load %arg13[%c1_130, %c9_131, %c0_132] : memref<18x32x64xf32, #tpu.memory_space<vmem>>, vector<16x16x64xf32>
    %121 = vector.shape_cast %120 : vector<16x16x64xf32> to vector<256x64xf32>
    %122 = arith.truncf %121 : vector<256x64xf32> to vector<256x64xbf16>
    %c1_133 = arith.constant 1 : index
    %c2_134 = arith.constant 2 : index
    %c0_135 = arith.constant 0 : index
    %c0_136 = arith.constant 0 : index
    %123 = vector.load %arg4[%c1_133, %c2_134, %c0_135, %c0_136] : memref<3x3x64x64xbf16, #tpu.memory_space<vmem>>, vector<1x1x64x64xbf16>
    %124 = vector.shape_cast %123 : vector<1x1x64x64xbf16> to vector<64x64xbf16>
    %cst_137 = arith.constant dense<0.000000e+00> : vector<256x64xf32>
    %125 = tpu.matmul %122, %124, %cst_137 {dimension_numbers = #tpu.dot_dimension_numbers<[1], [0], [0], [1], [0, 0, 1, 1], [], []>} : vector<256x64xbf16>, vector<64x64xbf16>, vector<256x64xf32> -> vector<256x64xf32>
    %126 = arith.addf %119, %125 : vector<256x64xf32>
    %c2_138 = arith.constant 2 : index
    %c7_139 = arith.constant 7 : index
    %c0_140 = arith.constant 0 : index
    %127 = vector.load %arg13[%c2_138, %c7_139, %c0_140] : memref<18x32x64xf32, #tpu.memory_space<vmem>>, vector<16x16x64xf32>
    %128 = vector.shape_cast %127 : vector<16x16x64xf32> to vector<256x64xf32>
    %129 = arith.truncf %128 : vector<256x64xf32> to vector<256x64xbf16>
    %c2_141 = arith.constant 2 : index
    %c0_142 = arith.constant 0 : index
    %c0_143 = arith.constant 0 : index
    %c0_144 = arith.constant 0 : index
    %130 = vector.load %arg4[%c2_141, %c0_142, %c0_143, %c0_144] : memref<3x3x64x64xbf16, #tpu.memory_space<vmem>>, vector<1x1x64x64xbf16>
    %131 = vector.shape_cast %130 : vector<1x1x64x64xbf16> to vector<64x64xbf16>
    %cst_145 = arith.constant dense<0.000000e+00> : vector<256x64xf32>
    %132 = tpu.matmul %129, %131, %cst_145 {dimension_numbers = #tpu.dot_dimension_numbers<[1], [0], [0], [1], [0, 0, 1, 1], [], []>} : vector<256x64xbf16>, vector<64x64xbf16>, vector<256x64xf32> -> vector<256x64xf32>
    %133 = arith.addf %126, %132 : vector<256x64xf32>
    %c2_146 = arith.constant 2 : index
    %c8_147 = arith.constant 8 : index
    %c0_148 = arith.constant 0 : index
    %134 = vector.load %arg13[%c2_146, %c8_147, %c0_148] : memref<18x32x64xf32, #tpu.memory_space<vmem>>, vector<16x16x64xf32>
    %135 = vector.shape_cast %134 : vector<16x16x64xf32> to vector<256x64xf32>
    %136 = arith.truncf %135 : vector<256x64xf32> to vector<256x64xbf16>
    %c2_149 = arith.constant 2 : index
    %c1_150 = arith.constant 1 : index
    %c0_151 = arith.constant 0 : index
    %c0_152 = arith.constant 0 : index
    %137 = vector.load %arg4[%c2_149, %c1_150, %c0_151, %c0_152] : memref<3x3x64x64xbf16, #tpu.memory_space<vmem>>, vector<1x1x64x64xbf16>
    %138 = vector.shape_cast %137 : vector<1x1x64x64xbf16> to vector<64x64xbf16>
    %cst_153 = arith.constant dense<0.000000e+00> : vector<256x64xf32>
    %139 = tpu.matmul %136, %138, %cst_153 {dimension_numbers = #tpu.dot_dimension_numbers<[1], [0], [0], [1], [0, 0, 1, 1], [], []>} : vector<256x64xbf16>, vector<64x64xbf16>, vector<256x64xf32> -> vector<256x64xf32>
    %140 = arith.addf %133, %139 : vector<256x64xf32>
    %c2_154 = arith.constant 2 : index
    %c9_155 = arith.constant 9 : index
    %c0_156 = arith.constant 0 : index
    %141 = vector.load %arg13[%c2_154, %c9_155, %c0_156] : memref<18x32x64xf32, #tpu.memory_space<vmem>>, vector<16x16x64xf32>
    %142 = vector.shape_cast %141 : vector<16x16x64xf32> to vector<256x64xf32>
    %143 = arith.truncf %142 : vector<256x64xf32> to vector<256x64xbf16>
    %c2_157 = arith.constant 2 : index
    %c2_158 = arith.constant 2 : index
    %c0_159 = arith.constant 0 : index
    %c0_160 = arith.constant 0 : index
    %144 = vector.load %arg4[%c2_157, %c2_158, %c0_159, %c0_160] : memref<3x3x64x64xbf16, #tpu.memory_space<vmem>>, vector<1x1x64x64xbf16>
    %145 = vector.shape_cast %144 : vector<1x1x64x64xbf16> to vector<64x64xbf16>
    %cst_161 = arith.constant dense<0.000000e+00> : vector<256x64xf32>
    %146 = tpu.matmul %143, %145, %cst_161 {dimension_numbers = #tpu.dot_dimension_numbers<[1], [0], [0], [1], [0, 0, 1, 1], [], []>} : vector<256x64xbf16>, vector<64x64xbf16>, vector<256x64xf32> -> vector<256x64xf32>
    %147 = arith.addf %140, %146 : vector<256x64xf32>
    %c0_162 = arith.constant 0 : index
    %c0_163 = arith.constant 0 : index
    %148 = vector.load %arg5[%c0_162, %c0_163] : memref<1x64xf32, #tpu.memory_space<vmem>>, vector<1x64xf32>
    %149 = vector.broadcast %148 : vector<1x64xf32> to vector<256x64xf32>
    %150 = arith.addf %147, %149 : vector<256x64xf32>
    %cst_164 = arith.constant 0.000000e+00 : f32
    %151 = vector.broadcast %cst_164 : f32 to vector<256x64xf32>
    %152 = arith.maximumf %150, %151 : vector<256x64xf32>
    %153 = vector.shape_cast %152 : vector<256x64xf32> to vector<8x2x16x64xf32>
    %154 = vector.extract_strided_slice %153 {offsets = [0, 0, 0, 0], sizes = [8, 1, 16, 64], strides = [1, 1, 1, 1]} : vector<8x2x16x64xf32> to vector<8x1x16x64xf32>
    %155 = vector.shape_cast %154 : vector<8x1x16x64xf32> to vector<8x16x64xf32>
    %156 = vector.extract_strided_slice %153 {offsets = [0, 1, 0, 0], sizes = [8, 1, 16, 64], strides = [1, 1, 1, 1]} : vector<8x2x16x64xf32> to vector<8x1x16x64xf32>
    %157 = vector.shape_cast %156 : vector<8x1x16x64xf32> to vector<8x16x64xf32>
    %158 = arith.maximumf %155, %157 : vector<8x16x64xf32>
    %159 = vector.shape_cast %158 : vector<8x16x64xf32> to vector<128x64xf32>
    %c0_165 = arith.constant 0 : index
    %c0_166 = arith.constant 0 : index
    %160 = vector.load %arg6[%c0_165, %c0_166] : memref<128x128xbf16, #tpu.memory_space<vmem>>, vector<128x128xbf16>
    %161 = arith.truncf %159 : vector<128x64xf32> to vector<128x64xbf16>
    %cst_167 = arith.constant dense<0.000000e+00> : vector<128x64xf32>
    %162 = tpu.matmul %160, %161, %cst_167 {dimension_numbers = #tpu.dot_dimension_numbers<[1], [0], [0], [1], [0, 0, 1, 1], [], []>} : vector<128x128xbf16>, vector<128x64xbf16>, vector<128x64xf32> -> vector<128x64xf32>
    %163 = vector.extract_strided_slice %162 {offsets = [0, 0], sizes = [64, 64], strides = [1, 1]} : vector<128x64xf32> to vector<64x64xf32>
    %164 = vector.extract_strided_slice %162 {offsets = [64, 0], sizes = [64, 64], strides = [1, 1]} : vector<128x64xf32> to vector<64x64xf32>
    %165 = arith.maximumf %163, %164 : vector<64x64xf32>
    %166 = vector.shape_cast %165 : vector<64x64xf32> to vector<8x8x64xf32>
    %c1_168 = arith.constant 1 : index
    %c8_169 = arith.constant 8 : index
    %c0_170 = arith.constant 0 : index
    %167 = vector.load %arg14[%c1_168, %c8_169, %c0_170] : memref<10x24x64xf32, #tpu.memory_space<vmem>>, vector<8x8x64xf32>
    tpu.vector_store %arg14[%c1_168, %c8_169, %c0_170], %166 {strides = array<i32>} : memref<10x24x64xf32, #tpu.memory_space<vmem>>, vector<8x8x64xf32>,
    %cst_171 = arith.constant 0.000000e+00 : f32
    %168 = vector.broadcast %cst_171 : f32 to vector<64x64xf32>
    %c0_172 = arith.constant 0 : index
    %c7_173 = arith.constant 7 : index
    %c0_174 = arith.constant 0 : index
    %169 = vector.load %arg14[%c0_172, %c7_173, %c0_174] : memref<10x24x64xf32, #tpu.memory_space<vmem>>, vector<8x8x64xf32>
    %170 = vector.shape_cast %169 : vector<8x8x64xf32> to vector<64x64xf32>
    %171 = arith.truncf %170 : vector<64x64xf32> to vector<64x64xbf16>
    %c0_175 = arith.constant 0 : index
    %c0_176 = arith.constant 0 : index
    %c0_177 = arith.constant 0 : index
    %c0_178 = arith.constant 0 : index
    %172 = vector.load %arg7[%c0_175, %c0_176, %c0_177, %c0_178] : memref<3x3x64x64xbf16, #tpu.memory_space<vmem>>, vector<1x1x64x64xbf16>
    %173 = vector.shape_cast %172 : vector<1x1x64x64xbf16> to vector<64x64xbf16>
    %cst_179 = arith.constant dense<0.000000e+00> : vector<64x64xf32>
    %174 = tpu.matmul %171, %173, %cst_179 {dimension_numbers = #tpu.dot_dimension_numbers<[1], [0], [0], [1], [0, 0, 1, 1], [], []>} : vector<64x64xbf16>, vector<64x64xbf16>, vector<64x64xf32> -> vector<64x64xf32>
    %175 = arith.addf %168, %174 : vector<64x64xf32>
    %c0_180 = arith.constant 0 : index
    %c8_181 = arith.constant 8 : index
    %c0_182 = arith.constant 0 : index
    %176 = vector.load %arg14[%c0_180, %c8_181, %c0_182] : memref<10x24x64xf32, #tpu.memory_space<vmem>>, vector<8x8x64xf32>
    %177 = vector.shape_cast %176 : vector<8x8x64xf32> to vector<64x64xf32>
    %178 = arith.truncf %177 : vector<64x64xf32> to vector<64x64xbf16>
    %c0_183 = arith.constant 0 : index
    %c1_184 = arith.constant 1 : index
    %c0_185 = arith.constant 0 : index
    %c0_186 = arith.constant 0 : index
    %179 = vector.load %arg7[%c0_183, %c1_184, %c0_185, %c0_186] : memref<3x3x64x64xbf16, #tpu.memory_space<vmem>>, vector<1x1x64x64xbf16>
    %180 = vector.shape_cast %179 : vector<1x1x64x64xbf16> to vector<64x64xbf16>
    %cst_187 = arith.constant dense<0.000000e+00> : vector<64x64xf32>
    %181 = tpu.matmul %178, %180, %cst_187 {dimension_numbers = #tpu.dot_dimension_numbers<[1], [0], [0], [1], [0, 0, 1, 1], [], []>} : vector<64x64xbf16>, vector<64x64xbf16>, vector<64x64xf32> -> vector<64x64xf32>
    %182 = arith.addf %175, %181 : vector<64x64xf32>
    %c0_188 = arith.constant 0 : index
    %c9_189 = arith.constant 9 : index
    %c0_190 = arith.constant 0 : index
    %183 = vector.load %arg14[%c0_188, %c9_189, %c0_190] : memref<10x24x64xf32, #tpu.memory_space<vmem>>, vector<8x8x64xf32>
    %184 = vector.shape_cast %183 : vector<8x8x64xf32> to vector<64x64xf32>
    %185 = arith.truncf %184 : vector<64x64xf32> to vector<64x64xbf16>
    %c0_191 = arith.constant 0 : index
    %c2_192 = arith.constant 2 : index
    %c0_193 = arith.constant 0 : index
    %c0_194 = arith.constant 0 : index
    %186 = vector.load %arg7[%c0_191, %c2_192, %c0_193, %c0_194] : memref<3x3x64x64xbf16, #tpu.memory_space<vmem>>, vector<1x1x64x64xbf16>
    %187 = vector.shape_cast %186 : vector<1x1x64x64xbf16> to vector<64x64xbf16>
    %cst_195 = arith.constant dense<0.000000e+00> : vector<64x64xf32>
    %188 = tpu.matmul %185, %187, %cst_195 {dimension_numbers = #tpu.dot_dimension_numbers<[1], [0], [0], [1], [0, 0, 1, 1], [], []>} : vector<64x64xbf16>, vector<64x64xbf16>, vector<64x64xf32> -> vector<64x64xf32>
    %189 = arith.addf %182, %188 : vector<64x64xf32>
    %c1_196 = arith.constant 1 : index
    %c7_197 = arith.constant 7 : index
    %c0_198 = arith.constant 0 : index
    %190 = vector.load %arg14[%c1_196, %c7_197, %c0_198] : memref<10x24x64xf32, #tpu.memory_space<vmem>>, vector<8x8x64xf32>
    %191 = vector.shape_cast %190 : vector<8x8x64xf32> to vector<64x64xf32>
    %192 = arith.truncf %191 : vector<64x64xf32> to vector<64x64xbf16>
    %c1_199 = arith.constant 1 : index
    %c0_200 = arith.constant 0 : index
    %c0_201 = arith.constant 0 : index
    %c0_202 = arith.constant 0 : index
    %193 = vector.load %arg7[%c1_199, %c0_200, %c0_201, %c0_202] : memref<3x3x64x64xbf16, #tpu.memory_space<vmem>>, vector<1x1x64x64xbf16>
    %194 = vector.shape_cast %193 : vector<1x1x64x64xbf16> to vector<64x64xbf16>
    %cst_203 = arith.constant dense<0.000000e+00> : vector<64x64xf32>
    %195 = tpu.matmul %192, %194, %cst_203 {dimension_numbers = #tpu.dot_dimension_numbers<[1], [0], [0], [1], [0, 0, 1, 1], [], []>} : vector<64x64xbf16>, vector<64x64xbf16>, vector<64x64xf32> -> vector<64x64xf32>
    %196 = arith.addf %189, %195 : vector<64x64xf32>
    %c1_204 = arith.constant 1 : index
    %c8_205 = arith.constant 8 : index
    %c0_206 = arith.constant 0 : index
    %197 = vector.load %arg14[%c1_204, %c8_205, %c0_206] : memref<10x24x64xf32, #tpu.memory_space<vmem>>, vector<8x8x64xf32>
    %198 = vector.shape_cast %197 : vector<8x8x64xf32> to vector<64x64xf32>
    %199 = arith.truncf %198 : vector<64x64xf32> to vector<64x64xbf16>
    %c1_207 = arith.constant 1 : index
    %c1_208 = arith.constant 1 : index
    %c0_209 = arith.constant 0 : index
    %c0_210 = arith.constant 0 : index
    %200 = vector.load %arg7[%c1_207, %c1_208, %c0_209, %c0_210] : memref<3x3x64x64xbf16, #tpu.memory_space<vmem>>, vector<1x1x64x64xbf16>
    %201 = vector.shape_cast %200 : vector<1x1x64x64xbf16> to vector<64x64xbf16>
    %cst_211 = arith.constant dense<0.000000e+00> : vector<64x64xf32>
    %202 = tpu.matmul %199, %201, %cst_211 {dimension_numbers = #tpu.dot_dimension_numbers<[1], [0], [0], [1], [0, 0, 1, 1], [], []>} : vector<64x64xbf16>, vector<64x64xbf16>, vector<64x64xf32> -> vector<64x64xf32>
    %203 = arith.addf %196, %202 : vector<64x64xf32>
    %c1_212 = arith.constant 1 : index
    %c9_213 = arith.constant 9 : index
    %c0_214 = arith.constant 0 : index
    %204 = vector.load %arg14[%c1_212, %c9_213, %c0_214] : memref<10x24x64xf32, #tpu.memory_space<vmem>>, vector<8x8x64xf32>
    %205 = vector.shape_cast %204 : vector<8x8x64xf32> to vector<64x64xf32>
    %206 = arith.truncf %205 : vector<64x64xf32> to vector<64x64xbf16>
    %c1_215 = arith.constant 1 : index
    %c2_216 = arith.constant 2 : index
    %c0_217 = arith.constant 0 : index
    %c0_218 = arith.constant 0 : index
    %207 = vector.load %arg7[%c1_215, %c2_216, %c0_217, %c0_218] : memref<3x3x64x64xbf16, #tpu.memory_space<vmem>>, vector<1x1x64x64xbf16>
    %208 = vector.shape_cast %207 : vector<1x1x64x64xbf16> to vector<64x64xbf16>
    %cst_219 = arith.constant dense<0.000000e+00> : vector<64x64xf32>
    %209 = tpu.matmul %206, %208, %cst_219 {dimension_numbers = #tpu.dot_dimension_numbers<[1], [0], [0], [1], [0, 0, 1, 1], [], []>} : vector<64x64xbf16>, vector<64x64xbf16>, vector<64x64xf32> -> vector<64x64xf32>
    %210 = arith.addf %203, %209 : vector<64x64xf32>
    %c2_220 = arith.constant 2 : index
    %c7_221 = arith.constant 7 : index
    %c0_222 = arith.constant 0 : index
    %211 = vector.load %arg14[%c2_220, %c7_221, %c0_222] : memref<10x24x64xf32, #tpu.memory_space<vmem>>, vector<8x8x64xf32>
    %212 = vector.shape_cast %211 : vector<8x8x64xf32> to vector<64x64xf32>
    %213 = arith.truncf %212 : vector<64x64xf32> to vector<64x64xbf16>
    %c2_223 = arith.constant 2 : index
    %c0_224 = arith.constant 0 : index
    %c0_225 = arith.constant 0 : index
    %c0_226 = arith.constant 0 : index
    %214 = vector.load %arg7[%c2_223, %c0_224, %c0_225, %c0_226] : memref<3x3x64x64xbf16, #tpu.memory_space<vmem>>, vector<1x1x64x64xbf16>
    %215 = vector.shape_cast %214 : vector<1x1x64x64xbf16> to vector<64x64xbf16>
    %cst_227 = arith.constant dense<0.000000e+00> : vector<64x64xf32>
    %216 = tpu.matmul %213, %215, %cst_227 {dimension_numbers = #tpu.dot_dimension_numbers<[1], [0], [0], [1], [0, 0, 1, 1], [], []>} : vector<64x64xbf16>, vector<64x64xbf16>, vector<64x64xf32> -> vector<64x64xf32>
    %217 = arith.addf %210, %216 : vector<64x64xf32>
    %c2_228 = arith.constant 2 : index
    %c8_229 = arith.constant 8 : index
    %c0_230 = arith.constant 0 : index
    %218 = vector.load %arg14[%c2_228, %c8_229, %c0_230] : memref<10x24x64xf32, #tpu.memory_space<vmem>>, vector<8x8x64xf32>
    %219 = vector.shape_cast %218 : vector<8x8x64xf32> to vector<64x64xf32>
    %220 = arith.truncf %219 : vector<64x64xf32> to vector<64x64xbf16>
    %c2_231 = arith.constant 2 : index
    %c1_232 = arith.constant 1 : index
    %c0_233 = arith.constant 0 : index
    %c0_234 = arith.constant 0 : index
    %221 = vector.load %arg7[%c2_231, %c1_232, %c0_233, %c0_234] : memref<3x3x64x64xbf16, #tpu.memory_space<vmem>>, vector<1x1x64x64xbf16>
    %222 = vector.shape_cast %221 : vector<1x1x64x64xbf16> to vector<64x64xbf16>
    %cst_235 = arith.constant dense<0.000000e+00> : vector<64x64xf32>
    %223 = tpu.matmul %220, %222, %cst_235 {dimension_numbers = #tpu.dot_dimension_numbers<[1], [0], [0], [1], [0, 0, 1, 1], [], []>} : vector<64x64xbf16>, vector<64x64xbf16>, vector<64x64xf32> -> vector<64x64xf32>
    %224 = arith.addf %217, %223 : vector<64x64xf32>
    %c2_236 = arith.constant 2 : index
    %c9_237 = arith.constant 9 : index
    %c0_238 = arith.constant 0 : index
    %225 = vector.load %arg14[%c2_236, %c9_237, %c0_238] : memref<10x24x64xf32, #tpu.memory_space<vmem>>, vector<8x8x64xf32>
    %226 = vector.shape_cast %225 : vector<8x8x64xf32> to vector<64x64xf32>
    %227 = arith.truncf %226 : vector<64x64xf32> to vector<64x64xbf16>
    %c2_239 = arith.constant 2 : index
    %c2_240 = arith.constant 2 : index
    %c0_241 = arith.constant 0 : index
    %c0_242 = arith.constant 0 : index
    %228 = vector.load %arg7[%c2_239, %c2_240, %c0_241, %c0_242] : memref<3x3x64x64xbf16, #tpu.memory_space<vmem>>, vector<1x1x64x64xbf16>
    %229 = vector.shape_cast %228 : vector<1x1x64x64xbf16> to vector<64x64xbf16>
    %cst_243 = arith.constant dense<0.000000e+00> : vector<64x64xf32>
    %230 = tpu.matmul %227, %229, %cst_243 {dimension_numbers = #tpu.dot_dimension_numbers<[1], [0], [0], [1], [0, 0, 1, 1], [], []>} : vector<64x64xbf16>, vector<64x64xbf16>, vector<64x64xf32> -> vector<64x64xf32>
    %231 = arith.addf %224, %230 : vector<64x64xf32>
    %c0_244 = arith.constant 0 : index
    %c0_245 = arith.constant 0 : index
    %232 = vector.load %arg8[%c0_244, %c0_245] : memref<1x64xf32, #tpu.memory_space<vmem>>, vector<1x64xf32>
    %233 = vector.broadcast %232 : vector<1x64xf32> to vector<64x64xf32>
    %234 = arith.addf %231, %233 : vector<64x64xf32>
    %cst_246 = arith.constant 0.000000e+00 : f32
    %235 = vector.broadcast %cst_246 : f32 to vector<64x64xf32>
    %236 = arith.maximumf %234, %235 : vector<64x64xf32>
    %237 = vector.shape_cast %236 : vector<64x64xf32> to vector<8x8x64xf32>
    %c1_247 = arith.constant 1 : index
    %c8_248 = arith.constant 8 : index
    %c0_249 = arith.constant 0 : index
    %238 = vector.load %arg14[%c1_247, %c8_248, %c0_249] : memref<10x24x64xf32, #tpu.memory_space<vmem>>, vector<8x8x64xf32>
    tpu.vector_store %arg14[%c1_247, %c8_248, %c0_249], %237 {strides = array<i32>} : memref<10x24x64xf32, #tpu.memory_space<vmem>>, vector<8x8x64xf32>,
    %cst_250 = arith.constant 0.000000e+00 : f32
    %239 = vector.broadcast %cst_250 : f32 to vector<64x3xf32>
    %c0_251 = arith.constant 0 : index
    %c7_252 = arith.constant 7 : index
    %c0_253 = arith.constant 0 : index
    %240 = vector.load %arg14[%c0_251, %c7_252, %c0_253] : memref<10x24x64xf32, #tpu.memory_space<vmem>>, vector<8x8x64xf32>
    %241 = vector.shape_cast %240 : vector<8x8x64xf32> to vector<64x64xf32>
    %242 = arith.truncf %241 : vector<64x64xf32> to vector<64x64xbf16>
    %c0_254 = arith.constant 0 : index
    %c0_255 = arith.constant 0 : index
    %c0_256 = arith.constant 0 : index
    %c0_257 = arith.constant 0 : index
    %243 = vector.load %arg9[%c0_254, %c0_255, %c0_256, %c0_257] : memref<3x3x64x3xbf16, #tpu.memory_space<vmem>>, vector<1x1x64x3xbf16>
    %244 = vector.shape_cast %243 : vector<1x1x64x3xbf16> to vector<64x3xbf16>
    %cst_258 = arith.constant dense<0.000000e+00> : vector<64x3xf32>
    %245 = tpu.matmul %242, %244, %cst_258 {dimension_numbers = #tpu.dot_dimension_numbers<[1], [0], [0], [1], [0, 0, 1, 1], [], []>} : vector<64x64xbf16>, vector<64x3xbf16>, vector<64x3xf32> -> vector<64x3xf32>
    %246 = arith.addf %239, %245 : vector<64x3xf32>
    %c0_259 = arith.constant 0 : index
    %c8_260 = arith.constant 8 : index
    %c0_261 = arith.constant 0 : index
    %247 = vector.load %arg14[%c0_259, %c8_260, %c0_261] : memref<10x24x64xf32, #tpu.memory_space<vmem>>, vector<8x8x64xf32>
    %248 = vector.shape_cast %247 : vector<8x8x64xf32> to vector<64x64xf32>
    %249 = arith.truncf %248 : vector<64x64xf32> to vector<64x64xbf16>
    %c0_262 = arith.constant 0 : index
    %c1_263 = arith.constant 1 : index
    %c0_264 = arith.constant 0 : index
    %c0_265 = arith.constant 0 : index
    %250 = vector.load %arg9[%c0_262, %c1_263, %c0_264, %c0_265] : memref<3x3x64x3xbf16, #tpu.memory_space<vmem>>, vector<1x1x64x3xbf16>
    %251 = vector.shape_cast %250 : vector<1x1x64x3xbf16> to vector<64x3xbf16>
    %cst_266 = arith.constant dense<0.000000e+00> : vector<64x3xf32>
    %252 = tpu.matmul %249, %251, %cst_266 {dimension_numbers = #tpu.dot_dimension_numbers<[1], [0], [0], [1], [0, 0, 1, 1], [], []>} : vector<64x64xbf16>, vector<64x3xbf16>, vector<64x3xf32> -> vector<64x3xf32>
    %253 = arith.addf %246, %252 : vector<64x3xf32>
    %c0_267 = arith.constant 0 : index
    %c9_268 = arith.constant 9 : index
    %c0_269 = arith.constant 0 : index
    %254 = vector.load %arg14[%c0_267, %c9_268, %c0_269] : memref<10x24x64xf32, #tpu.memory_space<vmem>>, vector<8x8x64xf32>
    %255 = vector.shape_cast %254 : vector<8x8x64xf32> to vector<64x64xf32>
    %256 = arith.truncf %255 : vector<64x64xf32> to vector<64x64xbf16>
    %c0_270 = arith.constant 0 : index
    %c2_271 = arith.constant 2 : index
    %c0_272 = arith.constant 0 : index
    %c0_273 = arith.constant 0 : index
    %257 = vector.load %arg9[%c0_270, %c2_271, %c0_272, %c0_273] : memref<3x3x64x3xbf16, #tpu.memory_space<vmem>>, vector<1x1x64x3xbf16>
    %258 = vector.shape_cast %257 : vector<1x1x64x3xbf16> to vector<64x3xbf16>
    %cst_274 = arith.constant dense<0.000000e+00> : vector<64x3xf32>
    %259 = tpu.matmul %256, %258, %cst_274 {dimension_numbers = #tpu.dot_dimension_numbers<[1], [0], [0], [1], [0, 0, 1, 1], [], []>} : vector<64x64xbf16>, vector<64x3xbf16>, vector<64x3xf32> -> vector<64x3xf32>
    %260 = arith.addf %253, %259 : vector<64x3xf32>
    %c1_275 = arith.constant 1 : index
    %c7_276 = arith.constant 7 : index
    %c0_277 = arith.constant 0 : index
    %261 = vector.load %arg14[%c1_275, %c7_276, %c0_277] : memref<10x24x64xf32, #tpu.memory_space<vmem>>, vector<8x8x64xf32>
    %262 = vector.shape_cast %261 : vector<8x8x64xf32> to vector<64x64xf32>
    %263 = arith.truncf %262 : vector<64x64xf32> to vector<64x64xbf16>
    %c1_278 = arith.constant 1 : index
    %c0_279 = arith.constant 0 : index
    %c0_280 = arith.constant 0 : index
    %c0_281 = arith.constant 0 : index
    %264 = vector.load %arg9[%c1_278, %c0_279, %c0_280, %c0_281] : memref<3x3x64x3xbf16, #tpu.memory_space<vmem>>, vector<1x1x64x3xbf16>
    %265 = vector.shape_cast %264 : vector<1x1x64x3xbf16> to vector<64x3xbf16>
    %cst_282 = arith.constant dense<0.000000e+00> : vector<64x3xf32>
    %266 = tpu.matmul %263, %265, %cst_282 {dimension_numbers = #tpu.dot_dimension_numbers<[1], [0], [0], [1], [0, 0, 1, 1], [], []>} : vector<64x64xbf16>, vector<64x3xbf16>, vector<64x3xf32> -> vector<64x3xf32>
    %267 = arith.addf %260, %266 : vector<64x3xf32>
    %c1_283 = arith.constant 1 : index
    %c8_284 = arith.constant 8 : index
    %c0_285 = arith.constant 0 : index
    %268 = vector.load %arg14[%c1_283, %c8_284, %c0_285] : memref<10x24x64xf32, #tpu.memory_space<vmem>>, vector<8x8x64xf32>
    %269 = vector.shape_cast %268 : vector<8x8x64xf32> to vector<64x64xf32>
    %270 = arith.truncf %269 : vector<64x64xf32> to vector<64x64xbf16>
    %c1_286 = arith.constant 1 : index
    %c1_287 = arith.constant 1 : index
    %c0_288 = arith.constant 0 : index
    %c0_289 = arith.constant 0 : index
    %271 = vector.load %arg9[%c1_286, %c1_287, %c0_288, %c0_289] : memref<3x3x64x3xbf16, #tpu.memory_space<vmem>>, vector<1x1x64x3xbf16>
    %272 = vector.shape_cast %271 : vector<1x1x64x3xbf16> to vector<64x3xbf16>
    %cst_290 = arith.constant dense<0.000000e+00> : vector<64x3xf32>
    %273 = tpu.matmul %270, %272, %cst_290 {dimension_numbers = #tpu.dot_dimension_numbers<[1], [0], [0], [1], [0, 0, 1, 1], [], []>} : vector<64x64xbf16>, vector<64x3xbf16>, vector<64x3xf32> -> vector<64x3xf32>
    %274 = arith.addf %267, %273 : vector<64x3xf32>
    %c1_291 = arith.constant 1 : index
    %c9_292 = arith.constant 9 : index
    %c0_293 = arith.constant 0 : index
    %275 = vector.load %arg14[%c1_291, %c9_292, %c0_293] : memref<10x24x64xf32, #tpu.memory_space<vmem>>, vector<8x8x64xf32>
    %276 = vector.shape_cast %275 : vector<8x8x64xf32> to vector<64x64xf32>
    %277 = arith.truncf %276 : vector<64x64xf32> to vector<64x64xbf16>
    %c1_294 = arith.constant 1 : index
    %c2_295 = arith.constant 2 : index
    %c0_296 = arith.constant 0 : index
    %c0_297 = arith.constant 0 : index
    %278 = vector.load %arg9[%c1_294, %c2_295, %c0_296, %c0_297] : memref<3x3x64x3xbf16, #tpu.memory_space<vmem>>, vector<1x1x64x3xbf16>
    %279 = vector.shape_cast %278 : vector<1x1x64x3xbf16> to vector<64x3xbf16>
    %cst_298 = arith.constant dense<0.000000e+00> : vector<64x3xf32>
    %280 = tpu.matmul %277, %279, %cst_298 {dimension_numbers = #tpu.dot_dimension_numbers<[1], [0], [0], [1], [0, 0, 1, 1], [], []>} : vector<64x64xbf16>, vector<64x3xbf16>, vector<64x3xf32> -> vector<64x3xf32>
    %281 = arith.addf %274, %280 : vector<64x3xf32>
    %c2_299 = arith.constant 2 : index
    %c7_300 = arith.constant 7 : index
    %c0_301 = arith.constant 0 : index
    %282 = vector.load %arg14[%c2_299, %c7_300, %c0_301] : memref<10x24x64xf32, #tpu.memory_space<vmem>>, vector<8x8x64xf32>
    %283 = vector.shape_cast %282 : vector<8x8x64xf32> to vector<64x64xf32>
    %284 = arith.truncf %283 : vector<64x64xf32> to vector<64x64xbf16>
    %c2_302 = arith.constant 2 : index
    %c0_303 = arith.constant 0 : index
    %c0_304 = arith.constant 0 : index
    %c0_305 = arith.constant 0 : index
    %285 = vector.load %arg9[%c2_302, %c0_303, %c0_304, %c0_305] : memref<3x3x64x3xbf16, #tpu.memory_space<vmem>>, vector<1x1x64x3xbf16>
    %286 = vector.shape_cast %285 : vector<1x1x64x3xbf16> to vector<64x3xbf16>
    %cst_306 = arith.constant dense<0.000000e+00> : vector<64x3xf32>
    %287 = tpu.matmul %284, %286, %cst_306 {dimension_numbers = #tpu.dot_dimension_numbers<[1], [0], [0], [1], [0, 0, 1, 1], [], []>} : vector<64x64xbf16>, vector<64x3xbf16>, vector<64x3xf32> -> vector<64x3xf32>
    %288 = arith.addf %281, %287 : vector<64x3xf32>
    %c2_307 = arith.constant 2 : index
    %c8_308 = arith.constant 8 : index
    %c0_309 = arith.constant 0 : index
    %289 = vector.load %arg14[%c2_307, %c8_308, %c0_309] : memref<10x24x64xf32, #tpu.memory_space<vmem>>, vector<8x8x64xf32>
    %290 = vector.shape_cast %289 : vector<8x8x64xf32> to vector<64x64xf32>
    %291 = arith.truncf %290 : vector<64x64xf32> to vector<64x64xbf16>
    %c2_310 = arith.constant 2 : index
    %c1_311 = arith.constant 1 : index
    %c0_312 = arith.constant 0 : index
    %c0_313 = arith.constant 0 : index
    %292 = vector.load %arg9[%c2_310, %c1_311, %c0_312, %c0_313] : memref<3x3x64x3xbf16, #tpu.memory_space<vmem>>, vector<1x1x64x3xbf16>
    %293 = vector.shape_cast %292 : vector<1x1x64x3xbf16> to vector<64x3xbf16>
    %cst_314 = arith.constant dense<0.000000e+00> : vector<64x3xf32>
    %294 = tpu.matmul %291, %293, %cst_314 {dimension_numbers = #tpu.dot_dimension_numbers<[1], [0], [0], [1], [0, 0, 1, 1], [], []>} : vector<64x64xbf16>, vector<64x3xbf16>, vector<64x3xf32> -> vector<64x3xf32>
    %295 = arith.addf %288, %294 : vector<64x3xf32>
    %c2_315 = arith.constant 2 : index
    %c9_316 = arith.constant 9 : index
    %c0_317 = arith.constant 0 : index
    %296 = vector.load %arg14[%c2_315, %c9_316, %c0_317] : memref<10x24x64xf32, #tpu.memory_space<vmem>>, vector<8x8x64xf32>
    %297 = vector.shape_cast %296 : vector<8x8x64xf32> to vector<64x64xf32>
    %298 = arith.truncf %297 : vector<64x64xf32> to vector<64x64xbf16>
    %c2_318 = arith.constant 2 : index
    %c2_319 = arith.constant 2 : index
    %c0_320 = arith.constant 0 : index
    %c0_321 = arith.constant 0 : index
    %299 = vector.load %arg9[%c2_318, %c2_319, %c0_320, %c0_321] : memref<3x3x64x3xbf16, #tpu.memory_space<vmem>>, vector<1x1x64x3xbf16>
    %300 = vector.shape_cast %299 : vector<1x1x64x3xbf16> to vector<64x3xbf16>
    %cst_322 = arith.constant dense<0.000000e+00> : vector<64x3xf32>
    %301 = tpu.matmul %298, %300, %cst_322 {dimension_numbers = #tpu.dot_dimension_numbers<[1], [0], [0], [1], [0, 0, 1, 1], [], []>} : vector<64x64xbf16>, vector<64x3xbf16>, vector<64x3xf32> -> vector<64x3xf32>
    %302 = arith.addf %295, %301 : vector<64x3xf32>
    %c0_323 = arith.constant 0 : index
    %c0_324 = arith.constant 0 : index
    %303 = vector.load %arg10[%c0_323, %c0_324] : memref<1x3xf32, #tpu.memory_space<vmem>>, vector<1x3xf32>
    %304 = vector.broadcast %303 : vector<1x3xf32> to vector<64x3xf32>
    %305 = arith.addf %302, %304 : vector<64x3xf32>
    %cst_325 = arith.constant 0.000000e+00 : f32
    %306 = vector.broadcast %cst_325 : f32 to vector<64x3xf32>
    %307 = arith.maximumf %305, %306 : vector<64x3xf32>
    %c0_326 = arith.constant 0 : index
    %c0_327 = arith.constant 0 : index
    %308 = vector.load %arg11[%c0_326, %c0_327] : memref<256x64xf32, #tpu.memory_space<vmem>>, vector<256x64xf32>
    %cst_328 = arith.constant dense<0.000000e+00> : vector<256x3xf32>
    %309 = tpu.matmul %308, %307, %cst_328 {dimension_numbers = #tpu.dot_dimension_numbers<[1], [0], [0], [1], [0, 0, 1, 1], [], []>} : vector<256x64xf32>, vector<64x3xf32>, vector<256x3xf32> -> vector<256x3xf32>
    %c0_329 = arith.constant 0 : index
    %c0_330 = arith.constant 0 : index
    %c0_331 = arith.constant 0 : index
    %310 = vector.load %arg12[%c0_329, %c0_330, %c0_331] : memref<1x256x3xf32, #tpu.memory_space<vmem>>, vector<1x256x3xf32>
    %311 = vector.shape_cast %310 : vector<1x256x3xf32> to vector<256x3xf32>
    %312 = vector.shape_cast %309 : vector<256x3xf32> to vector<1x256x3xf32>
    tpu.vector_store %arg12[%c0_329, %c0_330, %c0_331], %312 {strides = array<i32>} : memref<1x256x3xf32, #tpu.memory_space<vmem>>, vector<1x256x3xf32>,
    return
  }
  func.func @transform_0(%arg0: i32) -> (i32, i32, i32, i32) {
    %c0_i32 = arith.constant 0 : i32
    %c0_i32_0 = arith.constant 0 : i32
    %c0_i32_1 = arith.constant 0 : i32
    %c0_i32_2 = arith.constant 0 : i32
    return %arg0, %c0_i32, %c0_i32_0, %c0_i32_1 : i32, i32, i32, i32
  }
  func.func @transform_1(%arg0: i32) -> (i32, i32, i32, i32) {
    %c0_i32 = arith.constant 0 : i32
    %c0_i32_0 = arith.constant 0 : i32
    %c0_i32_1 = arith.constant 0 : i32
    %c0_i32_2 = arith.constant 0 : i32
    %c0_i32_3 = arith.constant 0 : i32
    return %c0_i32, %c0_i32_0, %c0_i32_1, %c0_i32_2 : i32, i32, i32, i32
  }
  func.func @transform_2(%arg0: i32) -> (i32, i32) {
    %c0_i32 = arith.constant 0 : i32
    %c0_i32_0 = arith.constant 0 : i32
    %c0_i32_1 = arith.constant 0 : i32
    return %c0_i32, %c0_i32_0 : i32, i32
  }
  func.func @transform_3(%arg0: i32) -> (i32, i32, i32, i32) {
    %c0_i32 = arith.constant 0 : i32
    %c0_i32_0 = arith.constant 0 : i32
    %c0_i32_1 = arith.constant 0 : i32
    %c0_i32_2 = arith.constant 0 : i32
    %c0_i32_3 = arith.constant 0 : i32
    return %c0_i32, %c0_i32_0, %c0_i32_1, %c0_i32_2 : i32, i32, i32, i32
  }
  func.func @transform_4(%arg0: i32) -> (i32, i32) {
    %c0_i32 = arith.constant 0 : i32
    %c0_i32_0 = arith.constant 0 : i32
    %c0_i32_1 = arith.constant 0 : i32
    return %c0_i32, %c0_i32_0 : i32, i32
  }
  func.func @transform_5(%arg0: i32) -> (i32, i32) {
    %c0_i32 = arith.constant 0 : i32
    %c0_i32_0 = arith.constant 0 : i32
    %c0_i32_1 = arith.constant 0 : i32
    return %c0_i32, %c0_i32_0 : i32, i32
  }
  func.func @transform_6(%arg0: i32) -> (i32, i32, i32, i32) {
    %c0_i32 = arith.constant 0 : i32
    %c0_i32_0 = arith.constant 0 : i32
    %c0_i32_1 = arith.constant 0 : i32
    %c0_i32_2 = arith.constant 0 : i32
    %c0_i32_3 = arith.constant 0 : i32
    return %c0_i32, %c0_i32_0, %c0_i32_1, %c0_i32_2 : i32, i32, i32, i32
  }
  func.func @transform_7(%arg0: i32) -> (i32, i32) {
    %c0_i32 = arith.constant 0 : i32
    %c0_i32_0 = arith.constant 0 : i32
    %c0_i32_1 = arith.constant 0 : i32
    return %c0_i32, %c0_i32_0 : i32, i32
  }
  func.func @transform_8(%arg0: i32) -> (i32, i32, i32, i32) {
    %c0_i32 = arith.constant 0 : i32
    %c0_i32_0 = arith.constant 0 : i32
    %c0_i32_1 = arith.constant 0 : i32
    %c0_i32_2 = arith.constant 0 : i32
    %c0_i32_3 = arith.constant 0 : i32
    return %c0_i32, %c0_i32_0, %c0_i32_1, %c0_i32_2 : i32, i32, i32, i32
  }
  func.func @transform_9(%arg0: i32) -> (i32, i32) {
    %c0_i32 = arith.constant 0 : i32
    %c0_i32_0 = arith.constant 0 : i32
    %c0_i32_1 = arith.constant 0 : i32
    return %c0_i32, %c0_i32_0 : i32, i32
  }
  func.func @transform_10(%arg0: i32) -> (i32, i32) {
    %c0_i32 = arith.constant 0 : i32
    %c0_i32_0 = arith.constant 0 : i32
    %c0_i32_1 = arith.constant 0 : i32
    return %c0_i32, %c0_i32_0 : i32, i32
  }
  func.func @transform_11(%arg0: i32) -> (i32, i32, i32) {
    %c0_i32 = arith.constant 0 : i32
    %c0_i32_0 = arith.constant 0 : i32
    %c0_i32_1 = arith.constant 0 : i32
    return %arg0, %c0_i32, %c0_i32_0 : i32, i32, i32
  }
}

</mosaic_0001>

<llo_original>
// kernel: unet_noskip_forward.1
$region0: #{unet_noskip_forward.1}
  #allocation0 [shape = 'u32[]', space=smem, size = 0x4, offset = 0x4, fixed_abs, tag = 'smem constant byte address 0x4 - core index']
  #allocation1 [shape = 'u32[144,128]{1,0:T(1,128)}', space=vmem, size = 0x12000, scoped, tag = 'internal scratch']
  #allocation2 [shape = 'f32[18,32,64]{2,1,0:T(8,128)}', space=vmem, size = 0x48000, scoped, tag = 'scratch operand']
  #allocation3 [shape = 'f32[10,24,64]{2,1,0:T(8,128)}', space=vmem, size = 0x1e000, scoped, tag = 'scratch operand']
  %s0 = inlined_call_operand.vmem [shape: f32[2,18,18,4], index: 0, kind: input, shape index: {}]
  %s1 = inlined_call_operand.vmem [shape: bf16[3,3,4,64], index: 1, kind: input, shape index: {}]
  %s2 = inlined_call_operand.vmem [shape: f32[1,64], index: 2, kind: input, shape index: {}]
  %s3 = inlined_call_operand.vmem [shape: bf16[3,3,64,64], index: 3, kind: input, shape index: {}]
  %s4 = inlined_call_operand.vmem [shape: f32[1,64], index: 4, kind: input, shape index: {}]
  %s5 = inlined_call_operand.vmem [shape: bf16[128,128], index: 5, kind: input, shape index: {}]
  %s6 = inlined_call_operand.vmem [shape: bf16[3,3,64,64], index: 6, kind: input, shape index: {}]
  %s7 = inlined_call_operand.vmem [shape: f32[1,64], index: 7, kind: input, shape index: {}]
  %s8 = inlined_call_operand.vmem [shape: bf16[3,3,64,3], index: 8, kind: input, shape index: {}]
  %s9 = inlined_call_operand.vmem [shape: f32[1,3], index: 9, kind: input, shape index: {}]
  %s10 = inlined_call_operand.vmem [shape: f32[256,64], index: 10, kind: input, shape index: {}]
  %s11 = inlined_call_operand.vmem [shape: f32[2,256,3], index: 11, kind: output, shape index: {}]
  %s12 = sld [smem:[#allocation0]]
  $region77: #{unet_noskip_forward.1} parent=0
    _
  %s14 = ssub.s32 1, %s12
  %s15 = scalar_select 0, %s14, %s12
  loop: start=0, step=1, limit=4
  $region2: #{unet_noskip_forward.1} parent=0 // loop_pre_header
    _
  $region3: #{unet_noskip_forward.1} parent=0 // loop_header
    %s17 = sphi 0, %s21
    %p18 = scmp.ge.s32.totalorder %s17, 4
    %s27 = sphi 0, %s29
    %s30 = sphi 0, %s27
    %s31 = sphi 0, %s30
    %s47 = sphi 0, %s31
    %s51 = sphi 0, %s51
    %s53 = sphi 0, %s51
    %s54 = sphi 0, %s53
    %s68 = sphi 0, %s54
    %s72 = sphi 0, %s72
    %s74 = sphi 0, %s72
    %s75 = sphi 0, %s74
    %s89 = sphi 0, %s75
    %s93 = sphi 0, %s93
    %s95 = sphi 0, %s93
    %s96 = sphi 0, %s95
    %s110 = sphi 0, %s96
    %s114 = sphi 0, %s114
    %s116 = sphi 0, %s114
    %s117 = sphi 0, %s116
    %s131 = sphi 0, %s117
    %s135 = sphi 0, %s135
    %s137 = sphi 0, %s135
    %s138 = sphi 0, %s137
    %s152 = sphi 0, %s138
    %s156 = sphi 0, %s156
    %s158 = sphi 0, %s156
    %s159 = sphi 0, %s158
    %s173 = sphi 0, %s159
    %s177 = sphi 0, %s177
    %s179 = sphi 0, %s177
    %s180 = sphi 0, %s179
    %s194 = sphi 0, %s180
    %s198 = sphi 0, %s198
    %s200 = sphi 0, %s198
    %s201 = sphi 0, %s200
    %s215 = sphi 0, %s201
    %s219 = sphi 0, %s219
    %s221 = sphi 0, %s219
    %s222 = sphi 0, %s221
    %s236 = sphi 0, %s222
    %s240 = sphi 0, %s240
    %s242 = sphi 0, %s240
    %s243 = sphi 0, %s242
    %s257 = sphi 0, %s243
    %s263 = sphi 0, %s265
    %s266 = sphi 0, %s263
    %s267 = sphi 0, %s266
    %s283 = sphi 0, %s267
  $region4: #{unet_noskip_forward.1} parent=0 // loop_header_branch
    %20 = sbr.rel (%p18) target = $region8
  $region5: #{unet_noskip_forward.1} parent=0 // loop_body
    %s22 = ssub.s32 %s17, 1
    %s23 = ssub.s32 %s17, 2
    %s24 = sadd.s32 %s17, 1
    %s25 = ssub.s32 %s17, %s24
    %p26 = scmp.eq.s32.totalorder %s25, 0
    %s28 = sadd.s32 %s27, 1
    %s29 = scalar_select %p26, %s27, %s28
    %p32 = pneg %p26
    %p33 = scmp.eq.s32.totalorder %s17, 1
    %p34 = por %p32, %p33
    %p35 = scmp.ne.s32.totalorder %s27, %s30
    %p36 = scmp.eq.s32.totalorder %s17, 0
    %p37 = por %p35, %p36
    %p38 = scmp.ne.s32.totalorder %s27, %s30
    %p39 = scmp.eq.s32.totalorder %s22, 1
    %p40 = por %p38, %p39
    %p41 = scmp.ne.s32.totalorder %s30, %s31
    %p42 = scmp.eq.s32.totalorder %s22, 0
    %p43 = por %p41, %p42
    %p44 = scmp.ne.s32.totalorder %s30, %s31
    %p45 = scmp.eq.s32.totalorder %s23, 1
    %p46 = por %p44, %p45
    %p48 = scmp.ne.s32.totalorder %s31, %s47
    %p49 = scmp.eq.s32.totalorder %s23, 0
    %p50 = por %p48, %p49
    %s52 = sadd.s32 %s51, 1
    %p55 = scmp.eq.s32.totalorder %s17, 1
    %p56 = scmp.ne.s32.totalorder %s51, %s53
    %p57 = scmp.eq.s32.totalorder %s17, 0
    %p58 = por %p56, %p57
    %p59 = scmp.ne.s32.totalorder %s51, %s53
    %p60 = scmp.eq.s32.totalorder %s22, 1
    %p61 = por %p59, %p60
    %p62 = scmp.ne.s32.totalorder %s53, %s54
    %p63 = scmp.eq.s32.totalorder %s22, 0
    %p64 = por %p62, %p63
    %p65 = scmp.ne.s32.totalorder %s53, %s54
    %p66 = scmp.eq.s32.totalorder %s23, 1
    %p67 = por %p65, %p66
    %p69 = scmp.ne.s32.totalorder %s54, %s68
    %p70 = scmp.eq.s32.totalorder %s23, 0
    %p71 = por %p69, %p70
    %s73 = sadd.s32 %s72, 1
    %p76 = scmp.eq.s32.totalorder %s17, 1
    %p77 = scmp.ne.s32.totalorder %s72, %s74
    %p78 = scmp.eq.s32.totalorder %s17, 0
    %p79 = por %p77, %p78
    %p80 = scmp.ne.s32.totalorder %s72, %s74
    %p81 = scmp.eq.s32.totalorder %s22, 1
    %p82 = por %p80, %p81
    %p83 = scmp.ne.s32.totalorder %s74, %s75
    %p84 = scmp.eq.s32.totalorder %s22, 0
    %p85 = por %p83, %p84
    %p86 = scmp.ne.s32.totalorder %s74, %s75
    %p87 = scmp.eq.s32.totalorder %s23, 1
    %p88 = por %p86, %p87
    %p90 = scmp.ne.s32.totalorder %s75, %s89
    %p91 = scmp.eq.s32.totalorder %s23, 0
    %p92 = por %p90, %p91
    %s94 = sadd.s32 %s93, 1
    %p97 = scmp.eq.s32.totalorder %s17, 1
    %p98 = scmp.ne.s32.totalorder %s93, %s95
    %p99 = scmp.eq.s32.totalorder %s17, 0
    %p100 = por %p98, %p99
    %p101 = scmp.ne.s32.totalorder %s93, %s95
    %p102 = scmp.eq.s32.totalorder %s22, 1
    %p103 = por %p101, %p102
    %p104 = scmp.ne.s32.totalorder %s95, %s96
    %p105 = scmp.eq.s32.totalorder %s22, 0
    %p106 = por %p104, %p105
    %p107 = scmp.ne.s32.totalorder %s95, %s96
    %p108 = scmp.eq.s32.totalorder %s23, 1
    %p109 = por %p107, %p108
    %p111 = scmp.ne.s32.totalorder %s96, %s110
    %p112 = scmp.eq.s32.totalorder %s23, 0
    %p113 = por %p111, %p112
    %s115 = sadd.s32 %s114, 1
    %p118 = scmp.eq.s32.totalorder %s17, 1
    %p119 = scmp.ne.s32.totalorder %s114, %s116
    %p120 = scmp.eq.s32.totalorder %s17, 0
    %p121 = por %p119, %p120
    %p122 = scmp.ne.s32.totalorder %s114, %s116
    %p123 = scmp.eq.s32.totalorder %s22, 1
    %p124 = por %p122, %p123
    %p125 = scmp.ne.s32.totalorder %s116, %s117
    %p126 = scmp.eq.s32.totalorder %s22, 0
    %p127 = por %p125, %p126
    %p128 = scmp.ne.s32.totalorder %s116, %s117
    %p129 = scmp.eq.s32.totalorder %s23, 1
    %p130 = por %p128, %p129
    %p132 = scmp.ne.s32.totalorder %s117, %s131
    %p133 = scmp.eq.s32.totalorder %s23, 0
    %p134 = por %p132, %p133
    %s136 = sadd.s32 %s135, 1
    %p139 = scmp.eq.s32.totalorder %s17, 1
    %p140 = scmp.ne.s32.totalorder %s135, %s137
    %p141 = scmp.eq.s32.totalorder %s17, 0
    %p142 = por %p140, %p141
    %p143 = scmp.ne.s32.totalorder %s135, %s137
    %p144 = scmp.eq.s32.totalorder %s22, 1
    %p145 = por %p143, %p144
    %p146 = scmp.ne.s32.totalorder %s137, %s138
    %p147 = scmp.eq.s32.totalorder %s22, 0
    %p148 = por %p146, %p147
    %p149 = scmp.ne.s32.totalorder %s137, %s138
    %p150 = scmp.eq.s32.totalorder %s23, 1
    %p151 = por %p149, %p150
    %p153 = scmp.ne.s32.totalorder %s138, %s152
    %p154 = scmp.eq.s32.totalorder %s23, 0
    %p155 = por %p153, %p154
    %s157 = sadd.s32 %s156, 1
    %p160 = scmp.eq.s32.totalorder %s17, 1
    %p161 = scmp.ne.s32.totalorder %s156, %s158
    %p162 = scmp.eq.s32.totalorder %s17, 0
    %p163 = por %p161, %p162
    %p164 = scmp.ne.s32.totalorder %s156, %s158
    %p165 = scmp.eq.s32.totalorder %s22, 1
    %p166 = por %p164, %p165
    %p167 = scmp.ne.s32.totalorder %s158, %s159
    %p168 = scmp.eq.s32.totalorder %s22, 0
    %p169 = por %p167, %p168
    %p170 = scmp.ne.s32.totalorder %s158, %s159
    %p171 = scmp.eq.s32.totalorder %s23, 1
    %p172 = por %p170, %p171
    %p174 = scmp.ne.s32.totalorder %s159, %s173
    %p175 = scmp.eq.s32.totalorder %s23, 0
    %p176 = por %p174, %p175
    %s178 = sadd.s32 %s177, 1
    %p181 = scmp.eq.s32.totalorder %s17, 1
    %p182 = scmp.ne.s32.totalorder %s177, %s179
    %p183 = scmp.eq.s32.totalorder %s17, 0
    %p184 = por %p182, %p183
    %p185 = scmp.ne.s32.totalorder %s177, %s179
    %p186 = scmp.eq.s32.totalorder %s22, 1
    %p187 = por %p185, %p186
    %p188 = scmp.ne.s32.totalorder %s179, %s180
    %p189 = scmp.eq.s32.totalorder %s22, 0
    %p190 = por %p188, %p189
    %p191 = scmp.ne.s32.totalorder %s179, %s180
    %p192 = scmp.eq.s32.totalorder %s23, 1
    %p193 = por %p191, %p192
    %p195 = scmp.ne.s32.totalorder %s180, %s194
    %p196 = scmp.eq.s32.totalorder %s23, 0
    %p197 = por %p195, %p196
    %s199 = sadd.s32 %s198, 1
    %p202 = scmp.eq.s32.totalorder %s17, 1
    %p203 = scmp.ne.s32.totalorder %s198, %s200
    %p204 = scmp.eq.s32.totalorder %s17, 0
    %p205 = por %p203, %p204
    %p206 = scmp.ne.s32.totalorder %s198, %s200
    %p207 = scmp.eq.s32.totalorder %s22, 1
    %p208 = por %p206, %p207
    %p209 = scmp.ne.s32.totalorder %s200, %s201
    %p210 = scmp.eq.s32.totalorder %s22, 0
    %p211 = por %p209, %p210
    %p212 = scmp.ne.s32.totalorder %s200, %s201
    %p213 = scmp.eq.s32.totalorder %s23, 1
    %p214 = por %p212, %p213
    %p216 = scmp.ne.s32.totalorder %s201, %s215
    %p217 = scmp.eq.s32.totalorder %s23, 0
    %p218 = por %p216, %p217
    %s220 = sadd.s32 %s219, 1
    %p223 = scmp.eq.s32.totalorder %s17, 1
    %p224 = scmp.ne.s32.totalorder %s219, %s221
    %p225 = scmp.eq.s32.totalorder %s17, 0
    %p226 = por %p224, %p225
    %p227 = scmp.ne.s32.totalorder %s219, %s221
    %p228 = scmp.eq.s32.totalorder %s22, 1
    %p229 = por %p227, %p228
    %p230 = scmp.ne.s32.totalorder %s221, %s222
    %p231 = scmp.eq.s32.totalorder %s22, 0
    %p232 = por %p230, %p231
    %p233 = scmp.ne.s32.totalorder %s221, %s222
    %p234 = scmp.eq.s32.totalorder %s23, 1
    %p235 = por %p233, %p234
    %p237 = scmp.ne.s32.totalorder %s222, %s236
    %p238 = scmp.eq.s32.totalorder %s23, 0
    %p239 = por %p237, %p238
    %s241 = sadd.s32 %s240, 1
    %p244 = scmp.eq.s32.totalorder %s17, 1
    %p245 = scmp.ne.s32.totalorder %s240, %s242
    %p246 = scmp.eq.s32.totalorder %s17, 0
    %p247 = por %p245, %p246
    %p248 = scmp.ne.s32.totalorder %s240, %s242
    %p249 = scmp.eq.s32.totalorder %s22, 1
    %p250 = por %p248, %p249
    %p251 = scmp.ne.s32.totalorder %s242, %s243
    %p252 = scmp.eq.s32.totalorder %s22, 0
    %p253 = por %p251, %p252
    %p254 = scmp.ne.s32.totalorder %s242, %s243
    %p255 = scmp.eq.s32.totalorder %s23, 1
    %p256 = por %p254, %p255
    %p258 = scmp.ne.s32.totalorder %s243, %s257
    %p259 = scmp.eq.s32.totalorder %s23, 0
    %p260 = por %p258, %p259
    %s261 = ssub.s32 %s17, %s24
    %p262 = scmp.eq.s32.totalorder %s261, 0
    %s264 = sadd.s32 %s263, 1
    %s265 = scalar_select %p262, %s263, %s264
    %p268 = pneg %p262
    %p269 = scmp.eq.s32.totalorder %s17, 1
    %p270 = por %p268, %p269
    %p271 = scmp.ne.s32.totalorder %s263, %s266
    %p272 = scmp.eq.s32.totalorder %s17, 0
    %p273 = por %p271, %p272
    %p274 = scmp.ne.s32.totalorder %s263, %s266
    %p275 = scmp.eq.s32.totalorder %s22, 1
    %p276 = por %p274, %p275
    %p277 = scmp.ne.s32.totalorder %s266, %s267
    %p278 = scmp.eq.s32.totalorder %s22, 0
    %p279 = por %p277, %p278
    %p280 = scmp.ne.s32.totalorder %s266, %s267
    %p281 = scmp.eq.s32.totalorder %s23, 1
    %p282 = por %p280, %p281
    %p284 = scmp.ne.s32.totalorder %s267, %s283
    %p285 = scmp.eq.s32.totalorder %s23, 0
    %p286 = por %p284, %p285
    %p287 = scmp.le.s32.totalorder 1, %s17
    %p288 = scmp.lt.s32.totalorder %s17, 3
    %p289 = pnand %p287, %p288
    %p290 = pneg %p289
    // Predicated region
    $region9: #{unet_noskip_forward.1} parent=5 // pred_check
      _
    $region10: #{unet_noskip_forward.1} parent=5 // pred_check_branch
      %292 = sbr.rel (%p289) target = $region12
    $region11: #{unet_noskip_forward.1} parent=5 // pred_region
      %s293 = ssub.s32 %s17, 1
      // Predicated region
      $region13: #{unet_noskip_forward.1} parent=11 // pred_check
        %p294 = pneg %p64
      $region14: #{unet_noskip_forward.1} parent=11 // pred_check_branch
        %296 = sbr.rel (%p294) target = $region16
      $region15: #{unet_noskip_forward.1} parent=11 // pred_region
        _
      $region16: #{unet_noskip_forward.1} parent=11 // pred_fallthru
        _
      // Predicated region
      $region17: #{unet_noskip_forward.1} parent=11 // pred_check
        %p297 = pneg %p85
      $region18: #{unet_noskip_forward.1} parent=11 // pred_check_branch
        %299 = sbr.rel (%p297) target = $region20
      $region19: #{unet_noskip_forward.1} parent=11 // pred_region
        _
      $region20: #{unet_noskip_forward.1} parent=11 // pred_fallthru
        _
      // Predicated region
      $region21: #{unet_noskip_forward.1} parent=11 // pred_check
        %p300 = pneg %p106
      $region22: #{unet_noskip_forward.1} parent=11 // pred_check_branch
        %302 = sbr.rel (%p300) target = $region24
      $region23: #{unet_noskip_forward.1} parent=11 // pred_region
        _
      $region24: #{unet_noskip_forward.1} parent=11 // pred_fallthru
        _
      // Predicated region
      $region25: #{unet_noskip_forward.1} parent=11 // pred_check
        %p303 = pneg %p127
      $region26: #{unet_noskip_forward.1} parent=11 // pred_check_branch
        %305 = sbr.rel (%p303) target = $region28
      $region27: #{unet_noskip_forward.1} parent=11 // pred_region
        _
      $region28: #{unet_noskip_forward.1} parent=11 // pred_fallthru
        _
      // Predicated region
      $region29: #{unet_noskip_forward.1} parent=11 // pred_check
        %p306 = pneg %p148
      $region30: #{unet_noskip_forward.1} parent=11 // pred_check_branch
        %308 = sbr.rel (%p306) target = $region32
      $region31: #{unet_noskip_forward.1} parent=11 // pred_region
        _
      $region32: #{unet_noskip_forward.1} parent=11 // pred_fallthru
        _
      // Predicated region
      $region33: #{unet_noskip_forward.1} parent=11 // pred_check
        %p309 = pneg %p169
      $region34: #{unet_noskip_forward.1} parent=11 // pred_check_branch
        %311 = sbr.rel (%p309) target = $region36
      $region35: #{unet_noskip_forward.1} parent=11 // pred_region
        _
      $region36: #{unet_noskip_forward.1} parent=11 // pred_fallthru
        _
      // Predicated region
      $region37: #{unet_noskip_forward.1} parent=11 // pred_check
        %p312 = pneg %p190
      $region38: #{unet_noskip_forward.1} parent=11 // pred_check_branch
        %314 = sbr.rel (%p312) target = $region40
      $region39: #{unet_noskip_forward.1} parent=11 // pred_region
        _
      $region40: #{unet_noskip_forward.1} parent=11 // pred_fallthru
        _
      // Predicated region
      $region41: #{unet_noskip_forward.1} parent=11 // pred_check
        %p315 = pneg %p211
      $region42: #{unet_noskip_forward.1} parent=11 // pred_check_branch
        %317 = sbr.rel (%p315) target = $region44
      $region43: #{unet_noskip_forward.1} parent=11 // pred_region
        _
      $region44: #{unet_noskip_forward.1} parent=11 // pred_fallthru
        _
      // Predicated region
      $region45: #{unet_noskip_forward.1} parent=11 // pred_check
        %p318 = pneg %p232
      $region46: #{unet_noskip_forward.1} parent=11 // pred_check_branch
        %320 = sbr.rel (%p318) target = $region48
      $region47: #{unet_noskip_forward.1} parent=11 // pred_region
        _
      $region48: #{unet_noskip_forward.1} parent=11 // pred_fallthru
        _
      // Predicated region
      $region49: #{unet_noskip_forward.1} parent=11 // pred_check
        %p321 = pneg %p253
      $region50: #{unet_noskip_forward.1} parent=11 // pred_check_branch
        %323 = sbr.rel (%p321) target = $region52
      $region51: #{unet_noskip_forward.1} parent=11 // pred_region
        _
      $region52: #{unet_noskip_forward.1} parent=11 // pred_fallthru
        _
    $region12: #{unet_noskip_forward.1} parent=5 // pred_fallthru
      _
    %p324 = scmp.lt.s32.totalorder %s17, 2
    // Predicated region
    $region53: #{unet_noskip_forward.1} parent=5 // pred_check
      %p325 = pneg %p324
    $region54: #{unet_noskip_forward.1} parent=5 // pred_check_branch
      %327 = sbr.rel (%p325) target = $region56
    $region55: #{unet_noskip_forward.1} parent=5 // pred_region
      // Predicated region
      $region57: #{unet_noskip_forward.1} parent=55 // pred_check
        %p328 = pneg %p37
      $region58: #{unet_noskip_forward.1} parent=55 // pred_check_branch
        %330 = sbr.rel (%p328) target = $region60
      $region59: #{unet_noskip_forward.1} parent=55 // pred_region
        %p331 = scmp.lt.s32.totalorder %s17, 1
        %s332 = scalar_select %p331, %s17, 1
        %s333 = smul.addr %s332, 54
        %s334 = smul.addr %s333, 8
        %s335 = scalar_lea.vmem %s0, %s334
      $region60: #{unet_noskip_forward.1} parent=55 // pred_fallthru
        _
    $region56: #{unet_noskip_forward.1} parent=5 // pred_fallthru
      _
    %p336 = scmp.le.s32.totalorder 1, %s17
    %p337 = scmp.lt.s32.totalorder %s17, 3
    %p338 = pnand %p336, %p337
    %p339 = pneg %p338
    // Predicated region
    $region61: #{unet_noskip_forward.1} parent=5 // pred_check
      _
    $region62: #{unet_noskip_forward.1} parent=5 // pred_check_branch
      %341 = sbr.rel (%p338) target = $region64
    $region63: #{unet_noskip_forward.1} parent=5 // pred_region
      %s342 = ssub.s32 %s17, 1
      %p343 = scmp.lt.s32.totalorder %s22, 1
      %s344 = scalar_select %p343, %s22, 1
      %s345 = smul.addr %s344, 54
      %s346 = smul.addr %s345, 8
      %s347 = scalar_lea.vmem %s0, %s346
      %p348 = pneg %p43
      %p349 = pneg %p40
      %p350 = pneg %p64
      %p351 = pneg %p61
      %p352 = pneg %p85
      %p353 = pneg %p82
      %p354 = pneg %p106
      %p355 = pneg %p103
      %p356 = pneg %p127
      %p357 = pneg %p124
      %p358 = pneg %p148
      %p359 = pneg %p145
      %p360 = pneg %p169
      %p361 = pneg %p166
      %p362 = pneg %p190
      %p363 = pneg %p187
      %p364 = pneg %p211
      %p365 = pneg %p208
      %p366 = pneg %p232
      %p367 = pneg %p229
      %p368 = pneg %p253
      %p369 = pneg %p250
      %p370 = pneg %p279
      %p371 = pneg %p276
      %p372 = scmp.lt.s32.totalorder %s22, 1
      %s373 = scalar_select %p372, %s22, 1
      %s374 = smul.addr %s373, 32
      %s375 = smul.addr %s374, 8
      %s376 = scalar_lea.vmem %s11, %s375
      %p377 = scmp.lt.s32.totalorder %s22, 1
      %s378 = scalar_select %p377, %s22, 1
      %s379 = smul.addr %s378, 54
      %s380 = smul.addr %s379, 8
      %s381 = scalar_lea.vmem %s0, %s380
      %p382 = scmp.lt.s32.totalorder %s22, 1
      %s383 = scalar_select %p382, %s22, 1
      %s384 = smul.addr %s383, 32
      %s385 = smul.addr %s384, 8
      %s386 = scalar_lea.vmem %s11, %s385
      %vm388 = vcmask 523264
      %389 = vst.msk [vmem:[#allocation2] sm:$0xff] %vm388, 0.0
      %390 = vst.msk [vmem:[#allocation2 + $0x8] sm:$0xff] %vm388, 0.0
      %391 = vst.msk [vmem:[#allocation2 + $0x10] sm:$0xff] %vm388, 0.0
      %392 = vst.msk [vmem:[#allocation2 + $0x18] sm:$0xff] %vm388, 0.0
      %393 = vst.msk [vmem:[#allocation2 + $0x20] sm:$0xff] %vm388, 0.0
      %394 = vst.msk [vmem:[#allocation2 + $0x28] sm:$0xff] %vm388, 0.0
      %395 = vst.msk [vmem:[#allocation2 + $0x30] sm:$0xff] %vm388, 0.0
      %396 = vst.msk [vmem:[#allocation2 + $0x38] sm:$0xff] %vm388, 0.0
      %397 = vst.msk [vmem:[#allocation2 + $0x40] sm:$0xff] %vm388, 0.0
      %398 = vst.msk [vmem:[#allocation2 + $0x48] sm:$0xff] %vm388, 0.0
      %399 = vst.msk [vmem:[#allocation2 + $0x50] sm:$0xff] %vm388, 0.0
      %400 = vst.msk [vmem:[#allocation2 + $0x58] sm:$0xff] %vm388, 0.0
      %401 = vst.msk [vmem:[#allocation2 + $0x60] sm:$0xff] %vm388, 0.0
      %402 = vst.msk [vmem:[#allocation2 + $0x68] sm:$0xff] %vm388, 0.0
      %403 = vst.msk [vmem:[#allocation2 + $0x70] sm:$0xff] %vm388, 0.0
      %404 = vst.msk [vmem:[#allocation2 + $0x78] sm:$0xff] %vm388, 0.0
      %405 = vst.msk [vmem:[#allocation2 + $0x80] sm:$0xff] %vm388, 0.0
      %406 = vst.msk [vmem:[#allocation2 + $0x88] sm:$0xff] %vm388, 0.0
      %407 = vst.msk [vmem:[#allocation2 + $0x90] sm:$0xff] %vm388, 0.0
      %408 = vst.msk [vmem:[#allocation2 + $0x98] sm:$0xff] %vm388, 0.0
      %409 = vst.msk [vmem:[#allocation2 + $0xa0] sm:$0xff] %vm388, 0.0
      %410 = vst.msk [vmem:[#allocation2 + $0xa8] sm:$0xff] %vm388, 0.0
      %411 = vst.msk [vmem:[#allocation2 + $0xb0] sm:$0xff] %vm388, 0.0
      %412 = vst.msk [vmem:[#allocation2 + $0xb8] sm:$0xff] %vm388, 0.0
      %413 = vst.msk [vmem:[#allocation2 + $0xc0] sm:$0xff] %vm388, 0.0
      %414 = vst.msk [vmem:[#allocation2 + $0xc8] sm:$0xff] %vm388, 0.0
      %415 = vst.msk [vmem:[#allocation2 + $0xd0] sm:$0xff] %vm388, 0.0
      %416 = vst.msk [vmem:[#allocation2 + $0xd8] sm:$0xff] %vm388, 0.0
      %417 = vst.msk [vmem:[#allocation2 + $0xe0] sm:$0xff] %vm388, 0.0
      %418 = vst.msk [vmem:[#allocation2 + $0xe8] sm:$0xff] %vm388, 0.0
      %419 = vst.msk [vmem:[#allocation2 + $0xf0] sm:$0xff] %vm388, 0.0
      %420 = vst.msk [vmem:[#allocation2 + $0xf8] sm:$0xff] %vm388, 0.0
      %421 = vst.msk [vmem:[#allocation2 + $0x100] sm:$0xff] %vm388, 0.0
      %422 = vst.msk [vmem:[#allocation2 + $0x108] sm:$0xff] %vm388, 0.0
      %423 = vst.msk [vmem:[#allocation2 + $0x110] sm:$0xff] %vm388, 0.0
      %424 = vst.msk [vmem:[#allocation2 + $0x118] sm:$0xff] %vm388, 0.0
      %425 = vst.msk [vmem:[#allocation2 + $0x120] sm:$0xff] %vm388, 0.0
      %426 = vst.msk [vmem:[#allocation2 + $0x128] sm:$0xff] %vm388, 0.0
      %427 = vst.msk [vmem:[#allocation2 + $0x130] sm:$0xff] %vm388, 0.0
      %428 = vst.msk [vmem:[#allocation2 + $0x138] sm:$0xff] %vm388, 0.0
      %429 = vst.msk [vmem:[#allocation2 + $0x140] sm:$0xff] %vm388, 0.0
      %430 = vst.msk [vmem:[#allocation2 + $0x148] sm:$0xff] %vm388, 0.0
      %431 = vst.msk [vmem:[#allocation2 + $0x150] sm:$0xff] %vm388, 0.0
      %432 = vst.msk [vmem:[#allocation2 + $0x158] sm:$0xff] %vm388, 0.0
      %433 = vst.msk [vmem:[#allocation2 + $0x160] sm:$0xff] %vm388, 0.0
      %434 = vst.msk [vmem:[#allocation2 + $0x168] sm:$0xff] %vm388, 0.0
      %435 = vst.msk [vmem:[#allocation2 + $0x170] sm:$0xff] %vm388, 0.0
      %436 = vst.msk [vmem:[#allocation2 + $0x178] sm:$0xff] %vm388, 0.0
      %437 = vst.msk [vmem:[#allocation2 + $0x180] sm:$0xff] %vm388, 0.0
      %438 = vst.msk [vmem:[#allocation2 + $0x188] sm:$0xff] %vm388, 0.0
      %439 = vst.msk [vmem:[#allocation2 + $0x190] sm:$0xff] %vm388, 0.0
      %440 = vst.msk [vmem:[#allocation2 + $0x198] sm:$0xff] %vm388, 0.0
      %441 = vst.msk [vmem:[#allocation2 + $0x1a0] sm:$0xff] %vm388, 0.0
      %442 = vst.msk [vmem:[#allocation2 + $0x1a8] sm:$0xff] %vm388, 0.0
      %443 = vst.msk [vmem:[#allocation2 + $0x1b0] sm:$0xff] %vm388, 0.0
      %444 = vst.msk [vmem:[#allocation2 + $0x1b8] sm:$0xff] %vm388, 0.0
      %445 = vst.msk [vmem:[#allocation2 + $0x1c0] sm:$0xff] %vm388, 0.0
      %446 = vst.msk [vmem:[#allocation2 + $0x1c8] sm:$0xff] %vm388, 0.0
      %447 = vst.msk [vmem:[#allocation2 + $0x1d0] sm:$0xff] %vm388, 0.0
      %448 = vst.msk [vmem:[#allocation2 + $0x1d8] sm:$0xff] %vm388, 0.0
      %449 = vst.msk [vmem:[#allocation2 + $0x1e0] sm:$0xff] %vm388, 0.0
      %450 = vst.msk [vmem:[#allocation2 + $0x1e8] sm:$0xff] %vm388, 0.0
      %451 = vst.msk [vmem:[#allocation2 + $0x1f0] sm:$0xff] %vm388, 0.0
      %452 = vst.msk [vmem:[#allocation2 + $0x1f8] sm:$0xff] %vm388, 0.0
      %453 = vst.msk [vmem:[#allocation2 + $0x200] sm:$0xff] %vm388, 0.0
      %454 = vst.msk [vmem:[#allocation2 + $0x208] sm:$0xff] %vm388, 0.0
      %455 = vst.msk [vmem:[#allocation2 + $0x210] sm:$0xff] %vm388, 0.0
      %456 = vst.msk [vmem:[#allocation2 + $0x218] sm:$0xff] %vm388, 0.0
      %457 = vst.msk [vmem:[#allocation2 + $0x220] sm:$0xff] %vm388, 0.0
      %458 = vst.msk [vmem:[#allocation2 + $0x228] sm:$0xff] %vm388, 0.0
      %459 = vst.msk [vmem:[#allocation2 + $0x230] sm:$0xff] %vm388, 0.0
      %460 = vst.msk [vmem:[#allocation2 + $0x238] sm:$0xff] %vm388, 0.0
      %461 = vst.msk [vmem:[#allocation3] sm:$0xff] %vm388, 0.0
      %462 = vst.msk [vmem:[#allocation3 + $0x8] sm:$0xff] %vm388, 0.0
      %463 = vst.msk [vmem:[#allocation3 + $0x10] sm:$0xff] %vm388, 0.0
      %464 = vst.msk [vmem:[#allocation3 + $0x18] sm:$0xff] %vm388, 0.0
      %465 = vst.msk [vmem:[#allocation3 + $0x20] sm:$0xff] %vm388, 0.0
      %466 = vst.msk [vmem:[#allocation3 + $0x28] sm:$0xff] %vm388, 0.0
      %467 = vst.msk [vmem:[#allocation3 + $0x30] sm:$0xff] %vm388, 0.0
      %468 = vst.msk [vmem:[#allocation3 + $0x38] sm:$0xff] %vm388, 0.0
      %469 = vst.msk [vmem:[#allocation3 + $0x40] sm:$0xff] %vm388, 0.0
      %470 = vst.msk [vmem:[#allocation3 + $0x48] sm:$0xff] %vm388, 0.0
      %471 = vst.msk [vmem:[#allocation3 + $0x50] sm:$0xff] %vm388, 0.0
      %472 = vst.msk [vmem:[#allocation3 + $0x58] sm:$0xff] %vm388, 0.0
      %473 = vst.msk [vmem:[#allocation3 + $0x60] sm:$0xff] %vm388, 0.0
      %474 = vst.msk [vmem:[#allocation3 + $0x68] sm:$0xff] %vm388, 0.0
      %475 = vst.msk [vmem:[#allocation3 + $0x70] sm:$0xff] %vm388, 0.0
      %476 = vst.msk [vmem:[#allocation3 + $0x78] sm:$0xff] %vm388, 0.0
      %477 = vst.msk [vmem:[#allocation3 + $0x80] sm:$0xff] %vm388, 0.0
      %478 = vst.msk [vmem:[#allocation3 + $0x88] sm:$0xff] %vm388, 0.0
      %479 = vst.msk [vmem:[#allocation3 + $0x90] sm:$0xff] %vm388, 0.0
      %480 = vst.msk [vmem:[#allocation3 + $0x98] sm:$0xff] %vm388, 0.0
      %481 = vst.msk [vmem:[#allocation3 + $0xa0] sm:$0xff] %vm388, 0.0
      %482 = vst.msk [vmem:[#allocation3 + $0xa8] sm:$0xff] %vm388, 0.0
      %483 = vst.msk [vmem:[#allocation3 + $0xb0] sm:$0xff] %vm388, 0.0
      %484 = vst.msk [vmem:[#allocation3 + $0xb8] sm:$0xff] %vm388, 0.0
      %485 = vst.msk [vmem:[#allocation3 + $0xc0] sm:$0xff] %vm388, 0.0
      %486 = vst.msk [vmem:[#allocation3 + $0xc8] sm:$0xff] %vm388, 0.0
      %487 = vst.msk [vmem:[#allocation3 + $0xd0] sm:$0xff] %vm388, 0.0
      %488 = vst.msk [vmem:[#allocation3 + $0xd8] sm:$0xff] %vm388, 0.0
      %489 = vst.msk [vmem:[#allocation3 + $0xe0] sm:$0xff] %vm388, 0.0
      %490 = vst.msk [vmem:[#allocation3 + $0xe8] sm:$0xff] %vm388, 0.0
      %v491 = vld [vmem:[%s381] sm:$0xff]
      %v492 = vld [vmem:[%s381 + $0x8] sm:$0xff]
      %v493 = vld [vmem:[%s381 + $0x18] sm:$0xff]
      %v494 = vld [vmem:[%s381 + $0x20] sm:$0xff]
      %v495 = vld [vmem:[%s381 + $0x30] sm:$0xff]
      %v496 = vld [vmem:[%s381 + $0x38] sm:$0xff]
      %v497 = vld [vmem:[%s381 + $0x48] sm:$0xff]
      %v498 = vld [vmem:[%s381 + $0x50] sm:$0xff]
      %v499 = vld [vmem:[%s381 + $0x60] sm:$0xff]
      %v500 = vld [vmem:[%s381 + $0x68] sm:$0xff]
      %v501 = vld [vmem:[%s381 + $0x78] sm:$0xff]
      %v502 = vld [vmem:[%s381 + $0x80] sm:$0xff]
      %v503 = vld [vmem:[%s381 + $0x90] sm:$0xff]
      %v504 = vld [vmem:[%s381 + $0x98] sm:$0xff]
      %v505 = vld [vmem:[%s381 + $0xa8] sm:$0xff]
      %v506 = vld [vmem:[%s381 + $0xb0] sm:$0xff]
      %v507 = vld [vmem:[%s381 + $0xc0] sm:$0xff]
      %v508 = vld [vmem:[%s381 + $0xc8] sm:$0xff]
      %v509 = vld [vmem:[%s381 + $0xd8] sm:$0xff]
      %v510 = vld [vmem:[%s381 + $0xe0] sm:$0xff]
      %v511 = vld [vmem:[%s381 + $0xf0] sm:$0xff]
      %v512 = vld [vmem:[%s381 + $0xf8] sm:$0xff]
      %v513 = vld [vmem:[%s381 + $0x108] sm:$0xff]
      %v514 = vld [vmem:[%s381 + $0x110] sm:$0xff]
      %v515 = vld [vmem:[%s381 + $0x120] sm:$0xff]
      %v516 = vld [vmem:[%s381 + $0x128] sm:$0xff]
      %v517 = vld [vmem:[%s381 + $0x138] sm:$0xff]
      %v518 = vld [vmem:[%s381 + $0x140] sm:$0xff]
      %v519 = vld [vmem:[%s381 + $0x150] sm:$0xff]
      %v520 = vld [vmem:[%s381 + $0x158] sm:$0xff]
      %v521 = vld [vmem:[%s381 + $0x168] sm:$0xff]
      %v522 = vld [vmem:[%s381 + $0x170] sm:$0xff]
      %v523 = vpack.c.bf16 %v492, %v491
      %v524 = vpack.c.bf16 %v494, %v493
      %v525 = vpack.c.bf16 %v496, %v495
      %v526 = vpack.c.bf16 %v498, %v497
      %v527 = vpack.c.bf16 %v500, %v499
      %v528 = vpack.c.bf16 %v502, %v501
      %v529 = vpack.c.bf16 %v504, %v503
      %v530 = vpack.c.bf16 %v506, %v505
      %v531 = vpack.c.bf16 %v508, %v507
      %v532 = vpack.c.bf16 %v510, %v509
      %v533 = vpack.c.bf16 %v512, %v511
      %v534 = vpack.c.bf16 %v514, %v513
      %v535 = vpack.c.bf16 %v516, %v515
      %v536 = vpack.c.bf16 %v518, %v517
      %v537 = vpack.c.bf16 %v520, %v519
      %v538 = vpack.c.bf16 %v522, %v521
      %v539 = vld [vmem:[%s1] sm:$0x3]
      %v540 = vld [vmem:[%s381 + $0x1] sm:$0xff]
      %v541 = vld [vmem:[%s381 + $0x9] sm:$0xff]
      %v542 = vld [vmem:[%s381 + $0x19] sm:$0xff]
      %v543 = vld [vmem:[%s381 + $0x21] sm:$0xff]
      %v544 = vld [vmem:[%s381 + $0x31] sm:$0xff]
      %v545 = vld [vmem:[%s381 + $0x39] sm:$0xff]
      %v546 = vld [vmem:[%s381 + $0x49] sm:$0xff]
      %v547 = vld [vmem:[%s381 + $0x51] sm:$0xff]
      %v548 = vld [vmem:[%s381 + $0x61] sm:$0xff]
      %v549 = vld [vmem:[%s381 + $0x69] sm:$0xff]
      %v550 = vld [vmem:[%s381 + $0x79] sm:$0xff]
      %v551 = vld [vmem:[%s381 + $0x81] sm:$0xff]
      %v552 = vld [vmem:[%s381 + $0x91] sm:$0xff]
      %v553 = vld [vmem:[%s381 + $0x99] sm:$0xff]
      %v554 = vld [vmem:[%s381 + $0xa9] sm:$0xff]
      %v555 = vld [vmem:[%s381 + $0xb1] sm:$0xff]
      %v556 = vld [vmem:[%s381 + $0xc1] sm:$0xff]
      %v557 = vld [vmem:[%s381 + $0xc9] sm:$0xff]
      %v558 = vld [vmem:[%s381 + $0xd9] sm:$0xff]
      %v559 = vld [vmem:[%s381 + $0xe1] sm:$0xff]
      %v560 = vld [vmem:[%s381 + $0xf1] sm:$0xff]
      %v561 = vld [vmem:[%s381 + $0xf9] sm:$0xff]
      %v562 = vld [vmem:[%s381 + $0x109] sm:$0xff]
      %v563 = vld [vmem:[%s381 + $0x111] sm:$0xff]
      %v564 = vld [vmem:[%s381 + $0x121] sm:$0xff]
      %v565 = vld [vmem:[%s381 + $0x129] sm:$0xff]
      %v566 = vld [vmem:[%s381 + $0x139] sm:$0xff]
      %v567 = vld [vmem:[%s381 + $0x141] sm:$0xff]
      %v568 = vld [vmem:[%s381 + $0x151] sm:$0xff]
      %v569 = vld [vmem:[%s381 + $0x159] sm:$0xff]
      %v570 = vld [vmem:[%s381 + $0x169] sm:$0xff]
      %v571 = vld [vmem:[%s381 + $0x171] sm:$0xff]
      %v572 = vpack.c.bf16 %v541, %v540
      %v573 = vpack.c.bf16 %v543, %v542
      %v574 = vpack.c.bf16 %v545, %v544
      %v575 = vpack.c.bf16 %v547, %v546
      %v576 = vpack.c.bf16 %v549, %v548
      %v577 = vpack.c.bf16 %v551, %v550
      %v578 = vpack.c.bf16 %v553, %v552
      %v579 = vpack.c.bf16 %v555, %v554
      %v580 = vpack.c.bf16 %v557, %v556
      %v581 = vpack.c.bf16 %v559, %v558
      %v582 = vpack.c.bf16 %v561, %v560
      %v583 = vpack.c.bf16 %v563, %v562
      %v584 = vpack.c.bf16 %v565, %v564
      %v585 = vpack.c.bf16 %v567, %v566
      %v586 = vpack.c.bf16 %v569, %v568
      %v587 = vpack.c.bf16 %v571, %v570
      %s588 = scalar_lea.vmem %s1, 2
      %v589 = vld [vmem:[%s588] sm:$0x3]
      %vm590 = vcmask 31744
      %v592 = vsel %vm590, %v572, 0
      %v595 = vsel %vm590, %v573, 0
      %v598 = vsel %vm590, %v574, 0
      %v601 = vsel %vm590, %v575, 0
      %v604 = vsel %vm590, %v576, 0
      %v607 = vsel %vm590, %v577, 0
      %v610 = vsel %vm590, %v578, 0
      %v613 = vsel %vm590, %v579, 0
      %v616 = vsel %vm590, %v580, 0
      %v619 = vsel %vm590, %v581, 0
      %v622 = vsel %vm590, %v582, 0
      %v625 = vsel %vm590, %v583, 0
      %v628 = vsel %vm590, %v584, 0
      %v631 = vsel %vm590, %v585, 0
      %v634 = vsel %vm590, %v586, 0
      %v637 = vsel %vm590, %v587, 0
      %vm639 = vcmask 1041408
      %v641 = vsel %vm639, %v589, 0
      %643 = vmatprep.subr.bf16.mxu0 0
      %644 = vmatpush1.bf16.msra.mxu0 0
      %645 = vmatprep.subr.bf16.mxu0 0
      %646 = vmatpush1.bf16.msra.mxu0 0
      %647 = vmatprep.subr.bf16.mxu0 0
      %648 = vmatpush1.bf16.msra.mxu0 0
      %649 = vmatprep.subr.bf16.mxu0 0
      %650 = vmatpush1.bf16.msra.mxu0 0
      %651 = vmatprep.subr.bf16.mxu0 0
      %652 = vmatpush1.bf16.msra.mxu0 0
      %653 = vmatprep.subr.bf16.mxu0 0
      %654 = vmatpush1.bf16.msra.mxu0 0
      %655 = vmatprep.subr.bf16.mxu0 0
      %656 = vmatpush1.bf16.msra.mxu0 0
      %657 = vmatprep.subr.bf16.mxu0 0
      %658 = vmatpush1.bf16.msra.mxu0 %v641
      %659 = vmatprep.subr.bf16.mxu0 0
      %660 = vmatpush2.bf16.msra.mxu0 0
      %661 = vmatprep.subr.bf16.mxu0 0
      %662 = vmatpush2.bf16.msra.mxu0 0
      %663 = vmatprep.subr.bf16.mxu0 0
      %664 = vmatpush2.bf16.msra.mxu0 0
      %665 = vmatprep.subr.bf16.mxu0 0
      %666 = vmatpush2.bf16.msra.mxu0 0
      %667 = vmatprep.subr.bf16.mxu0 0
      %668 = vmatpush2.bf16.msra.mxu0 0
      %669 = vmatprep.subr.bf16.mxu0 0
      %670 = vmatpush2.bf16.msra.mxu0 0
      %671 = vmatprep.subr.bf16.mxu0 0
      %672 = vmatpush2.bf16.msra.mxu0 0
      %673 = vmatprep.subr.bf16.mxu0 0
      %674 = vmatpush2.bf16.msra.mxu0 0
      %675 = vmatprep.mubr.bf16.mxu0 0
      %676 = vmatmul.mubr.bf16.gmra.mxu0 %v592
      %v677 = vpop.f32.mrf.mxu0
      %v678 = vadd.f32 0.0, %v677
      %v679 = vpop.f32.mrf.mxu0
      %v680 = vpop.f32.mrf.mxu0
      %v681 = vadd.f32 0.0, %v680
      %v682 = vpop.f32.mrf.mxu0
      %683 = vmatprep.mubr.bf16.mxu0 0
      %684 = vmatmul.mubr.bf16.gmra.mxu0 %v595
      %v685 = vpop.f32.mrf.mxu0
      %v686 = vadd.f32 0.0, %v685
      %v687 = vpop.f32.mrf.mxu0
      %v688 = vpop.f32.mrf.mxu0
      %v689 = vadd.f32 0.0, %v688
      %v690 = vpop.f32.mrf.mxu0
      %691 = vmatprep.mubr.bf16.mxu0 0
      %692 = vmatmul.mubr.bf16.gmra.mxu0 %v598
      %v693 = vpop.f32.mrf.mxu0
      %v694 = vadd.f32 0.0, %v693
      %v695 = vpop.f32.mrf.mxu0
      %v696 = vpop.f32.mrf.mxu0
      %v697 = vadd.f32 0.0, %v696
      %v698 = vpop.f32.mrf.mxu0
      %699 = vmatprep.mubr.bf16.mxu0 0
      %700 = vmatmul.mubr.bf16.gmra.mxu0 %v601
      %v701 = vpop.f32.mrf.mxu0
      %v702 = vadd.f32 0.0, %v701
      %v703 = vpop.f32.mrf.mxu0
      %v704 = vpop.f32.mrf.mxu0
      %v705 = vadd.f32 0.0, %v704
      %v706 = vpop.f32.mrf.mxu0
      %707 = vmatprep.mubr.bf16.mxu0 0
      %708 = vmatmul.mubr.bf16.gmra.mxu0 %v604
      %v709 = vpop.f32.mrf.mxu0
      %v710 = vadd.f32 0.0, %v709
      %v711 = vpop.f32.mrf.mxu0
      %v712 = vpop.f32.mrf.mxu0
      %v713 = vadd.f32 0.0, %v712
      %v714 = vpop.f32.mrf.mxu0
      %715 = vmatprep.mubr.bf16.mxu0 0
      %716 = vmatmul.mubr.bf16.gmra.mxu0 %v607
      %v717 = vpop.f32.mrf.mxu0
      %v718 = vadd.f32 0.0, %v717
      %v719 = vpop.f32.mrf.mxu0
      %v720 = vpop.f32.mrf.mxu0
      %v721 = vadd.f32 0.0, %v720
      %v722 = vpop.f32.mrf.mxu0
      %723 = vmatprep.mubr.bf16.mxu0 0
      %724 = vmatmul.mubr.bf16.gmra.mxu0 %v610
      %v725 = vpop.f32.mrf.mxu0
      %v726 = vadd.f32 0.0, %v725
      %v727 = vpop.f32.mrf.mxu0
      %v728 = vpop.f32.mrf.mxu0
      %v729 = vadd.f32 0.0, %v728
      %v730 = vpop.f32.mrf.mxu0
      %731 = vmatprep.mubr.bf16.mxu0 0
      %732 = vmatmul.mubr.bf16.gmra.mxu0 %v613
      %v733 = vpop.f32.mrf.mxu0
      %v734 = vadd.f32 0.0, %v733
      %v735 = vpop.f32.mrf.mxu0
      %v736 = vpop.f32.mrf.mxu0
      %v737 = vadd.f32 0.0, %v736
      %v738 = vpop.f32.mrf.mxu0
      %739 = vmatprep.mubr.bf16.mxu0 0
      %740 = vmatmul.mubr.bf16.gmra.mxu0 %v616
      %v741 = vpop.f32.mrf.mxu0
      %v742 = vadd.f32 0.0, %v741
      %v743 = vpop.f32.mrf.mxu0
      %v744 = vpop.f32.mrf.mxu0
      %v745 = vadd.f32 0.0, %v744
      %v746 = vpop.f32.mrf.mxu0
      %747 = vmatprep.mubr.bf16.mxu0 0
      %748 = vmatmul.mubr.bf16.gmra.mxu0 %v619
      %v749 = vpop.f32.mrf.mxu0
      %v750 = vadd.f32 0.0, %v749
      %v751 = vpop.f32.mrf.mxu0
      %v752 = vpop.f32.mrf.mxu0
      %v753 = vadd.f32 0.0, %v752
      %v754 = vpop.f32.mrf.mxu0
      %755 = vmatprep.mubr.bf16.mxu0 0
      %756 = vmatmul.mubr.bf16.gmra.mxu0 %v622
      %v757 = vpop.f32.mrf.mxu0
      %v758 = vadd.f32 0.0, %v757
      %v759 = vpop.f32.mrf.mxu0
      %v760 = vpop.f32.mrf.mxu0
      %v761 = vadd.f32 0.0, %v760
      %v762 = vpop.f32.mrf.mxu0
      %763 = vmatprep.mubr.bf16.mxu0 0
      %764 = vmatmul.mubr.bf16.gmra.mxu0 %v625
      %v765 = vpop.f32.mrf.mxu0
      %v766 = vadd.f32 0.0, %v765
      %v767 = vpop.f32.mrf.mxu0
      %v768 = vpop.f32.mrf.mxu0
      %v769 = vadd.f32 0.0, %v768
      %v770 = vpop.f32.mrf.mxu0
      %771 = vmatprep.mubr.bf16.mxu0 0
      %772 = vmatmul.mubr.bf16.gmra.mxu0 %v628
      %v773 = vpop.f32.mrf.mxu0
      %v774 = vadd.f32 0.0, %v773
      %v775 = vpop.f32.mrf.mxu0
      %v776 = vpop.f32.mrf.mxu0
      %v777 = vadd.f32 0.0, %v776
      %v778 = vpop.f32.mrf.mxu0
      %779 = vmatprep.mubr.bf16.mxu0 0
      %780 = vmatmul.mubr.bf16.gmra.mxu0 %v631
      %v781 = vpop.f32.mrf.mxu0
      %v782 = vadd.f32 0.0, %v781
      %v783 = vpop.f32.mrf.mxu0
      %v784 = vpop.f32.mrf.mxu0
      %v785 = vadd.f32 0.0, %v784
      %v786 = vpop.f32.mrf.mxu0
      %787 = vmatprep.mubr.bf16.mxu0 0
      %788 = vmatmul.mubr.bf16.gmra.mxu0 %v634
      %v789 = vpop.f32.mrf.mxu0
      %v790 = vadd.f32 0.0, %v789
      %v791 = vpop.f32.mrf.mxu0
      %v792 = vpop.f32.mrf.mxu0
      %v793 = vadd.f32 0.0, %v792
      %v794 = vpop.f32.mrf.mxu0
      %795 = vmatprep.mubr.bf16.mxu0 0
      %796 = vmatmul.mubr.bf16.gmra.mxu0 %v637
      %v797 = vpop.f32.mrf.mxu0
      %v798 = vadd.f32 0.0, %v797
      %v799 = vpop.f32.mrf.mxu0
      %v800 = vpop.f32.mrf.mxu0
      %v801 = vadd.f32 0.0, %v800
      %v802 = vpop.f32.mrf.mxu0
      %803 = vdwg.mxu0
      %v805 = vsel %vm590, %v523, 0
      %v808 = vsel %vm590, %v524, 0
      %v811 = vsel %vm590, %v525, 0
      %v814 = vsel %vm590, %v526, 0
      %v817 = vsel %vm590, %v527, 0
      %v820 = vsel %vm590, %v528, 0
      %v823 = vsel %vm590, %v529, 0
      %v826 = vsel %vm590, %v530, 0
      %v829 = vsel %vm590, %v531, 0
      %v832 = vsel %vm590, %v532, 0
      %v835 = vsel %vm590, %v533, 0
      %v838 = vsel %vm590, %v534, 0
      %v841 = vsel %vm590, %v535, 0
      %v844 = vsel %vm590, %v536, 0
      %v847 = vsel %vm590, %v537, 0
      %v850 = vsel %vm590, %v538, 0
      %v853 = vsel %vm639, %v539, 0
      %855 = vmatprep.subr.bf16.mxu0 0
      %856 = vmatpush1.bf16.msra.mxu0 0
      %857 = vmatprep.subr.bf16.mxu0 0
      %858 = vmatpush1.bf16.msra.mxu0 0
      %859 = vmatprep.subr.bf16.mxu0 0
      %860 = vmatpush1.bf16.msra.mxu0 0
      %861 = vmatprep.subr.bf16.mxu0 0
      %862 = vmatpush1.bf16.msra.mxu0 0
      %863 = vmatprep.subr.bf16.mxu0 0
      %864 = vmatpush1.bf16.msra.mxu0 0
      %865 = vmatprep.subr.bf16.mxu0 0
      %866 = vmatpush1.bf16.msra.mxu0 0
      %867 = vmatprep.subr.bf16.mxu0 0
      %868 = vmatpush1.bf16.msra.mxu0 0
      %869 = vmatprep.subr.bf16.mxu0 0
      %870 = vmatpush1.bf16.msra.mxu0 %v853
      %871 = vmatprep.subr.bf16.mxu0 0
      %872 = vmatpush2.bf16.msra.mxu0 0
      %873 = vmatprep.subr.bf16.mxu0 0
      %874 = vmatpush2.bf16.msra.mxu0 0
      %875 = vmatprep.subr.bf16.mxu0 0
      %876 = vmatpush2.bf16.msra.mxu0 0
      %877 = vmatprep.subr.bf16.mxu0 0
      %878 = vmatpush2.bf16.msra.mxu0 0
      %879 = vmatprep.subr.bf16.mxu0 0
      %880 = vmatpush2.bf16.msra.mxu0 0
      %881 = vmatprep.subr.bf16.mxu0 0
      %882 = vmatpush2.bf16.msra.mxu0 0
      %883 = vmatprep.subr.bf16.mxu0 0
      %884 = vmatpush2.bf16.msra.mxu0 0
      %885 = vmatprep.subr.bf16.mxu0 0
      %886 = vmatpush2.bf16.msra.mxu0 0
      %887 = vmatprep.mubr.bf16.mxu0 0
      %888 = vmatmul.mubr.bf16.gmra.mxu0 %v805
      %v889 = vpop.f32.mrf.mxu0
      %v890 = vadd.f32 %v678, %v889
      %v891 = vpop.f32.mrf.mxu0
      %v892 = vpop.f32.mrf.mxu0
      %v893 = vadd.f32 %v681, %v892
      %v894 = vpop.f32.mrf.mxu0
      %895 = vmatprep.mubr.bf16.mxu0 0
      %896 = vmatmul.mubr.bf16.gmra.mxu0 %v808
      %v897 = vpop.f32.mrf.mxu0
      %v898 = vadd.f32 %v686, %v897
      %v899 = vpop.f32.mrf.mxu0
      %v900 = vpop.f32.mrf.mxu0
      %v901 = vadd.f32 %v689, %v900
      %v902 = vpop.f32.mrf.mxu0
      %903 = vmatprep.mubr.bf16.mxu0 0
      %904 = vmatmul.mubr.bf16.gmra.mxu0 %v811
      %v905 = vpop.f32.mrf.mxu0
      %v906 = vadd.f32 %v694, %v905
      %v907 = vpop.f32.mrf.mxu0
      %v908 = vpop.f32.mrf.mxu0
      %v909 = vadd.f32 %v697, %v908
      %v910 = vpop.f32.mrf.mxu0
      %911 = vmatprep.mubr.bf16.mxu0 0
      %912 = vmatmul.mubr.bf16.gmra.mxu0 %v814
      %v913 = vpop.f32.mrf.mxu0
      %v914 = vadd.f32 %v702, %v913
      %v915 = vpop.f32.mrf.mxu0
      %v916 = vpop.f32.mrf.mxu0
      %v917 = vadd.f32 %v705, %v916
      %v918 = vpop.f32.mrf.mxu0
      %919 = vmatprep.mubr.bf16.mxu0 0
      %920 = vmatmul.mubr.bf16.gmra.mxu0 %v817
      %v921 = vpop.f32.mrf.mxu0
      %v922 = vadd.f32 %v710, %v921
      %v923 = vpop.f32.mrf.mxu0
      %v924 = vpop.f32.mrf.mxu0
      %v925 = vadd.f32 %v713, %v924
      %v926 = vpop.f32.mrf.mxu0
      %927 = vmatprep.mubr.bf16.mxu0 0
      %928 = vmatmul.mubr.bf16.gmra.mxu0 %v820
      %v929 = vpop.f32.mrf.mxu0
      %v930 = vadd.f32 %v718, %v929
      %v931 = vpop.f32.mrf.mxu0
      %v932 = vpop.f32.mrf.mxu0
      %v933 = vadd.f32 %v721, %v932
      %v934 = vpop.f32.mrf.mxu0
      %935 = vmatprep.mubr.bf16.mxu0 0
      %936 = vmatmul.mubr.bf16.gmra.mxu0 %v823
      %v937 = vpop.f32.mrf.mxu0
      %v938 = vadd.f32 %v726, %v937
      %v939 = vpop.f32.mrf.mxu0
      %v940 = vpop.f32.mrf.mxu0
      %v941 = vadd.f32 %v729, %v940
      %v942 = vpop.f32.mrf.mxu0
      %943 = vmatprep.mubr.bf16.mxu0 0
      %944 = vmatmul.mubr.bf16.gmra.mxu0 %v826
      %v945 = vpop.f32.mrf.mxu0
      %v946 = vadd.f32 %v734, %v945
      %v947 = vpop.f32.mrf.mxu0
      %v948 = vpop.f32.mrf.mxu0
      %v949 = vadd.f32 %v737, %v948
      %v950 = vpop.f32.mrf.mxu0
      %951 = vmatprep.mubr.bf16.mxu0 0
      %952 = vmatmul.mubr.bf16.gmra.mxu0 %v829
      %v953 = vpop.f32.mrf.mxu0
      %v954 = vadd.f32 %v742, %v953
      %v955 = vpop.f32.mrf.mxu0
      %v956 = vpop.f32.mrf.mxu0
      %v957 = vadd.f32 %v745, %v956
      %v958 = vpop.f32.mrf.mxu0
      %959 = vmatprep.mubr.bf16.mxu0 0
      %960 = vmatmul.mubr.bf16.gmra.mxu0 %v832
      %v961 = vpop.f32.mrf.mxu0
      %v962 = vadd.f32 %v750, %v961
      %v963 = vpop.f32.mrf.mxu0
      %v964 = vpop.f32.mrf.mxu0
      %v965 = vadd.f32 %v753, %v964
      %v966 = vpop.f32.mrf.mxu0
      %967 = vmatprep.mubr.bf16.mxu0 0
      %968 = vmatmul.mubr.bf16.gmra.mxu0 %v835
      %v969 = vpop.f32.mrf.mxu0
      %v970 = vadd.f32 %v758, %v969
      %v971 = vpop.f32.mrf.mxu0
      %v972 = vpop.f32.mrf.mxu0
      %v973 = vadd.f32 %v761, %v972
      %v974 = vpop.f32.mrf.mxu0
      %975 = vmatprep.mubr.bf16.mxu0 0
      %976 = vmatmul.mubr.bf16.gmra.mxu0 %v838
      %v977 = vpop.f32.mrf.mxu0
      %v978 = vadd.f32 %v766, %v977
      %v979 = vpop.f32.mrf.mxu0
      %v980 = vpop.f32.mrf.mxu0
      %v981 = vadd.f32 %v769, %v980
      %v982 = vpop.f32.mrf.mxu0
      %983 = vmatprep.mubr.bf16.mxu0 0
      %984 = vmatmul.mubr.bf16.gmra.mxu0 %v841
      %v985 = vpop.f32.mrf.mxu0
      %v986 = vadd.f32 %v774, %v985
      %v987 = vpop.f32.mrf.mxu0
      %v988 = vpop.f32.mrf.mxu0
      %v989 = vadd.f32 %v777, %v988
      %v990 = vpop.f32.mrf.mxu0
      %991 = vmatprep.mubr.bf16.mxu0 0
      %992 = vmatmul.mubr.bf16.gmra.mxu0 %v844
      %v993 = vpop.f32.mrf.mxu0
      %v994 = vadd.f32 %v782, %v993
      %v995 = vpop.f32.mrf.mxu0
      %v996 = vpop.f32.mrf.mxu0
      %v997 = vadd.f32 %v785, %v996
      %v998 = vpop.f32.mrf.mxu0
      %999 = vmatprep.mubr.bf16.mxu0 0
      %1000 = vmatmul.mubr.bf16.gmra.mxu0 %v847
      %v1001 = vpop.f32.mrf.mxu0
      %v1002 = vadd.f32 %v790, %v1001
      %v1003 = vpop.f32.mrf.mxu0
      %v1004 = vpop.f32.mrf.mxu0
      %v1005 = vadd.f32 %v793, %v1004
      %v1006 = vpop.f32.mrf.mxu0
      %1007 = vmatprep.mubr.bf16.mxu0 0
      %1008 = vmatmul.mubr.bf16.gmra.mxu0 %v850
      %v1009 = vpop.f32.mrf.mxu0
      %v1010 = vadd.f32 %v798, %v1009
      %v1011 = vpop.f32.mrf.mxu0
      %v1012 = vpop.f32.mrf.mxu0
      %v1013 = vadd.f32 %v801, %v1012
      %v1014 = vpop.f32.mrf.mxu0
      %1015 = vdwg.mxu0
      %v1016 = vld [vmem:[%s381 + $0x2] sm:$0xff]
      %v1017 = vld [vmem:[%s381 + $0xa] sm:$0xff]
      %v1018 = vld [vmem:[%s381 + $0x1a] sm:$0xff]
      %v1019 = vld [vmem:[%s381 + $0x22] sm:$0xff]
      %v1020 = vld [vmem:[%s381 + $0x32] sm:$0xff]
      %v1021 = vld [vmem:[%s381 + $0x3a] sm:$0xff]
      %v1022 = vld [vmem:[%s381 + $0x4a] sm:$0xff]
      %v1023 = vld [vmem:[%s381 + $0x52] sm:$0xff]
      %v1024 = vld [vmem:[%s381 + $0x62] sm:$0xff]
      %v1025 = vld [vmem:[%s381 + $0x6a] sm:$0xff]
      %v1026 = vld [vmem:[%s381 + $0x7a] sm:$0xff]
      %v1027 = vld [vmem:[%s381 + $0x82] sm:$0xff]
      %v1028 = vld [vmem:[%s381 + $0x92] sm:$0xff]
      %v1029 = vld [vmem:[%s381 + $0x9a] sm:$0xff]
      %v1030 = vld [vmem:[%s381 + $0xaa] sm:$0xff]
      %v1031 = vld [vmem:[%s381 + $0xb2] sm:$0xff]
      %v1032 = vld [vmem:[%s381 + $0xc2] sm:$0xff]
      %v1033 = vld [vmem:[%s381 + $0xca] sm:$0xff]
      %v1034 = vld [vmem:[%s381 + $0xda] sm:$0xff]
      %v1035 = vld [vmem:[%s381 + $0xe2] sm:$0xff]
      %v1036 = vld [vmem:[%s381 + $0xf2] sm:$0xff]
      %v1037 = vld [vmem:[%s381 + $0xfa] sm:$0xff]
      %v1038 = vld [vmem:[%s381 + $0x10a] sm:$0xff]
      %v1039 = vld [vmem:[%s381 + $0x112] sm:$0xff]
      %v1040 = vld [vmem:[%s381 + $0x122] sm:$0xff]
      %v1041 = vld [vmem:[%s381 + $0x12a] sm:$0xff]
      %v1042 = vld [vmem:[%s381 + $0x13a] sm:$0xff]
      %v1043 = vld [vmem:[%s381 + $0x142] sm:$0xff]
      %v1044 = vld [vmem:[%s381 + $0x152] sm:$0xff]
      %v1045 = vld [vmem:[%s381 + $0x15a] sm:$0xff]
      %v1046 = vld [vmem:[%s381 + $0x16a] sm:$0xff]
      %v1047 = vld [vmem:[%s381 + $0x172] sm:$0xff]
      %v1048 = vpack.c.bf16 %v1017, %v1016
      %v1049 = vpack.c.bf16 %v1019, %v1018
      %v1050 = vpack.c.bf16 %v1021, %v1020
      %v1051 = vpack.c.bf16 %v1023, %v1022
      %v1052 = vpack.c.bf16 %v1025, %v1024
      %v1053 = vpack.c.bf16 %v1027, %v1026
      %v1054 = vpack.c.bf16 %v1029, %v1028
      %v1055 = vpack.c.bf16 %v1031, %v1030
      %v1056 = vpack.c.bf16 %v1033, %v1032
      %v1057 = vpack.c.bf16 %v1035, %v1034
      %v1058 = vpack.c.bf16 %v1037, %v1036
      %v1059 = vpack.c.bf16 %v1039, %v1038
      %v1060 = vpack.c.bf16 %v1041, %v1040
      %v1061 = vpack.c.bf16 %v1043, %v1042
      %v1062 = vpack.c.bf16 %v1045, %v1044
      %v1063 = vpack.c.bf16 %v1047, %v1046
      %s1064 = scalar_lea.vmem %s1, 4
      %v1065 = vld [vmem:[%s1064] sm:$0x3]
      %v1067 = vsel %vm590, %v1048, 0
      %v1070 = vsel %vm590, %v1049, 0
      %v1073 = vsel %vm590, %v1050, 0
      %v1076 = vsel %vm590, %v1051, 0
      %v1079 = vsel %vm590, %v1052, 0
      %v1082 = vsel %vm590, %v1053, 0
      %v1085 = vsel %vm590, %v1054, 0
      %v1088 = vsel %vm590, %v1055, 0
      %v1091 = vsel %vm590, %v1056, 0
      %v1094 = vsel %vm590, %v1057, 0
      %v1097 = vsel %vm590, %v1058, 0
      %v1100 = vsel %vm590, %v1059, 0
      %v1103 = vsel %vm590, %v1060, 0
      %v1106 = vsel %vm590, %v1061, 0
      %v1109 = vsel %vm590, %v1062, 0
      %v1112 = vsel %vm590, %v1063, 0
      %v1115 = vsel %vm639, %v1065, 0
      %1117 = vmatprep.subr.bf16.mxu0 0
      %1118 = vmatpush1.bf16.msra.mxu0 0
      %1119 = vmatprep.subr.bf16.mxu0 0
      %1120 = vmatpush1.bf16.msra.mxu0 0
      %1121 = vmatprep.subr.bf16.mxu0 0
      %1122 = vmatpush1.bf16.msra.mxu0 0
      %1123 = vmatprep.subr.bf16.mxu0 0
      %1124 = vmatpush1.bf16.msra.mxu0 0
      %1125 = vmatprep.subr.bf16.mxu0 0
      %1126 = vmatpush1.bf16.msra.mxu0 0
      %1127 = vmatprep.subr.bf16.mxu0 0
      %1128 = vmatpush1.bf16.msra.mxu0 0
      %1129 = vmatprep.subr.bf16.mxu0 0
      %1130 = vmatpush1.bf16.msra.mxu0 0
      %1131 = vmatprep.subr.bf16.mxu0 0
      %1132 = vmatpush1.bf16.msra.mxu0 %v1115
      %1133 = vmatprep.subr.bf16.mxu0 0
      %1134 = vmatpush2.bf16.msra.mxu0 0
      %1135 = vmatprep.subr.bf16.mxu0 0
      %1136 = vmatpush2.bf16.msra.mxu0 0
      %1137 = vmatprep.subr.bf16.mxu0 0
      %1138 = vmatpush2.bf16.msra.mxu0 0
      %1139 = vmatprep.subr.bf16.mxu0 0
      %1140 = vmatpush2.bf16.msra.mxu0 0
      %1141 = vmatprep.subr.bf16.mxu0 0
      %1142 = vmatpush2.bf16.msra.mxu0 0
      %1143 = vmatprep.subr.bf16.mxu0 0
      %1144 = vmatpush2.bf16.msra.mxu0 0
      %1145 = vmatprep.subr.bf16.mxu0 0
      %1146 = vmatpush2.bf16.msra.mxu0 0
      %1147 = vmatprep.subr.bf16.mxu0 0
      %1148 = vmatpush2.bf16.msra.mxu0 0
      %1149 = vmatprep.mubr.bf16.mxu0 0
      %1150 = vmatmul.mubr.bf16.gmra.mxu0 %v1067
      %v1151 = vpop.f32.mrf.mxu0
      %v1152 = vadd.f32 0.0, %v1151
      %v1153 = vpop.f32.mrf.mxu0
      %v1154 = vpop.f32.mrf.mxu0
      %v1155 = vadd.f32 0.0, %v1154
      %v1156 = vpop.f32.mrf.mxu0
      %1157 = vmatprep.mubr.bf16.mxu0 0
      %1158 = vmatmul.mubr.bf16.gmra.mxu0 %v1070
      %v1159 = vpop.f32.mrf.mxu0
      %v1160 = vadd.f32 0.0, %v1159
      %v1161 = vpop.f32.mrf.mxu0
      %v1162 = vpop.f32.mrf.mxu0
      %v1163 = vadd.f32 0.0, %v1162
      %v1164 = vpop.f32.mrf.mxu0
      %1165 = vmatprep.mubr.bf16.mxu0 0
      %1166 = vmatmul.mubr.bf16.gmra.mxu0 %v1073
      %v1167 = vpop.f32.mrf.mxu0
      %v1168 = vadd.f32 0.0, %v1167
      %v1169 = vpop.f32.mrf.mxu0
      %v1170 = vpop.f32.mrf.mxu0
      %v1171 = vadd.f32 0.0, %v1170
      %v1172 = vpop.f32.mrf.mxu0
      %1173 = vmatprep.mubr.bf16.mxu0 0
      %1174 = vmatmul.mubr.bf16.gmra.mxu0 %v1076
      %v1175 = vpop.f32.mrf.mxu0
      %v1176 = vadd.f32 0.0, %v1175
      %v1177 = vpop.f32.mrf.mxu0
      %v1178 = vpop.f32.mrf.mxu0
      %v1179 = vadd.f32 0.0, %v1178
      %v1180 = vpop.f32.mrf.mxu0
      %1181 = vmatprep.mubr.bf16.mxu0 0
      %1182 = vmatmul.mubr.bf16.gmra.mxu0 %v1079
      %v1183 = vpop.f32.mrf.mxu0
      %v1184 = vadd.f32 0.0, %v1183
      %v1185 = vpop.f32.mrf.mxu0
      %v1186 = vpop.f32.mrf.mxu0
      %v1187 = vadd.f32 0.0, %v1186
      %v1188 = vpop.f32.mrf.mxu0
      %1189 = vmatprep.mubr.bf16.mxu0 0
      %1190 = vmatmul.mubr.bf16.gmra.mxu0 %v1082
      %v1191 = vpop.f32.mrf.mxu0
      %v1192 = vadd.f32 0.0, %v1191
      %v1193 = vpop.f32.mrf.mxu0
      %v1194 = vpop.f32.mrf.mxu0
      %v1195 = vadd.f32 0.0, %v1194
      %v1196 = vpop.f32.mrf.mxu0
      %1197 = vmatprep.mubr.bf16.mxu0 0
      %1198 = vmatmul.mubr.bf16.gmra.mxu0 %v1085
      %v1199 = vpop.f32.mrf.mxu0
      %v1200 = vadd.f32 0.0, %v1199
      %v1201 = vpop.f32.mrf.mxu0
      %v1202 = vpop.f32.mrf.mxu0
      %v1203 = vadd.f32 0.0, %v1202
      %v1204 = vpop.f32.mrf.mxu0
      %1205 = vmatprep.mubr.bf16.mxu0 0
      %1206 = vmatmul.mubr.bf16.gmra.mxu0 %v1088
      %v1207 = vpop.f32.mrf.mxu0
      %v1208 = vadd.f32 0.0, %v1207
      %v1209 = vpop.f32.mrf.mxu0
      %v1210 = vpop.f32.mrf.mxu0
      %v1211 = vadd.f32 0.0, %v1210
      %v1212 = vpop.f32.mrf.mxu0
      %1213 = vmatprep.mubr.bf16.mxu0 0
      %1214 = vmatmul.mubr.bf16.gmra.mxu0 %v1091
      %v1215 = vpop.f32.mrf.mxu0
      %v1216 = vadd.f32 0.0, %v1215
      %v1217 = vpop.f32.mrf.mxu0
      %v1218 = vpop.f32.mrf.mxu0
      %v1219 = vadd.f32 0.0, %v1218
      %v1220 = vpop.f32.mrf.mxu0
      %1221 = vmatprep.mubr.bf16.mxu0 0
      %1222 = vmatmul.mubr.bf16.gmra.mxu0 %v1094
      %v1223 = vpop.f32.mrf.mxu0
      %v1224 = vadd.f32 0.0, %v1223
      %v1225 = vpop.f32.mrf.mxu0
      %v1226 = vpop.f32.mrf.mxu0
      %v1227 = vadd.f32 0.0, %v1226
      %v1228 = vpop.f32.mrf.mxu0
      %1229 = vmatprep.mubr.bf16.mxu0 0
      %1230 = vmatmul.mubr.bf16.gmra.mxu0 %v1097
      %v1231 = vpop.f32.mrf.mxu0
      %v1232 = vadd.f32 0.0, %v1231
      %v1233 = vpop.f32.mrf.mxu0
      %v1234 = vpop.f32.mrf.mxu0
      %v1235 = vadd.f32 0.0, %v1234
      %v1236 = vpop.f32.mrf.mxu0
      %1237 = vmatprep.mubr.bf16.mxu0 0
      %1238 = vmatmul.mubr.bf16.gmra.mxu0 %v1100
      %v1239 = vpop.f32.mrf.mxu0
      %v1240 = vadd.f32 0.0, %v1239
      %v1241 = vpop.f32.mrf.mxu0
      %v1242 = vpop.f32.mrf.mxu0
      %v1243 = vadd.f32 0.0, %v1242
      %v1244 = vpop.f32.mrf.mxu0
      %1245 = vmatprep.mubr.bf16.mxu0 0
      %1246 = vmatmul.mubr.bf16.gmra.mxu0 %v1103
      %v1247 = vpop.f32.mrf.mxu0
      %v1248 = vadd.f32 0.0, %v1247
      %v1249 = vpop.f32.mrf.mxu0
      %v1250 = vpop.f32.mrf.mxu0
      %v1251 = vadd.f32 0.0, %v1250
      %v1252 = vpop.f32.mrf.mxu0
      %1253 = vmatprep.mubr.bf16.mxu0 0
      %1254 = vmatmul.mubr.bf16.gmra.mxu0 %v1106
      %v1255 = vpop.f32.mrf.mxu0
      %v1256 = vadd.f32 0.0, %v1255
      %v1257 = vpop.f32.mrf.mxu0
      %v1258 = vpop.f32.mrf.mxu0
      %v1259 = vadd.f32 0.0, %v1258
      %v1260 = vpop.f32.mrf.mxu0
      %1261 = vmatprep.mubr.bf16.mxu0 0
      %1262 = vmatmul.mubr.bf16.gmra.mxu0 %v1109
      %v1263 = vpop.f32.mrf.mxu0
      %v1264 = vadd.f32 0.0, %v1263
      %v1265 = vpop.f32.mrf.mxu0
      %v1266 = vpop.f32.mrf.mxu0
      %v1267 = vadd.f32 0.0, %v1266
      %v1268 = vpop.f32.mrf.mxu0
      %1269 = vmatprep.mubr.bf16.mxu0 0
      %1270 = vmatmul.mubr.bf16.gmra.mxu0 %v1112
      %v1271 = vpop.f32.mrf.mxu0
      %v1272 = vadd.f32 0.0, %v1271
      %v1273 = vpop.f32.mrf.mxu0
      %v1274 = vpop.f32.mrf.mxu0
      %v1275 = vadd.f32 0.0, %v1274
      %v1276 = vpop.f32.mrf.mxu0
      %1277 = vdwg.mxu0
      %v1278 = vadd.f32 %v890, %v1152
      %v1279 = vadd.f32 %v893, %v1155
      %v1280 = vadd.f32 %v898, %v1160
      %v1281 = vadd.f32 %v901, %v1163
      %v1282 = vadd.f32 %v906, %v1168
      %v1283 = vadd.f32 %v909, %v1171
      %v1284 = vadd.f32 %v914, %v1176
      %v1285 = vadd.f32 %v917, %v1179
      %v1286 = vadd.f32 %v922, %v1184
      %v1287 = vadd.f32 %v925, %v1187
      %v1288 = vadd.f32 %v930, %v1192
      %v1289 = vadd.f32 %v933, %v1195
      %v1290 = vadd.f32 %v938, %v1200
      %v1291 = vadd.f32 %v941, %v1203
      %v1292 = vadd.f32 %v946, %v1208
      %v1293 = vadd.f32 %v949, %v1211
      %v1294 = vadd.f32 %v954, %v1216
      %v1295 = vadd.f32 %v957, %v1219
      %v1296 = vadd.f32 %v962, %v1224
      %v1297 = vadd.f32 %v965, %v1227
      %v1298 = vadd.f32 %v970, %v1232
      %v1299 = vadd.f32 %v973, %v1235
      %v1300 = vadd.f32 %v978, %v1240
      %v1301 = vadd.f32 %v981, %v1243
      %v1302 = vadd.f32 %v986, %v1248
      %v1303 = vadd.f32 %v989, %v1251
      %v1304 = vadd.f32 %v994, %v1256
      %v1305 = vadd.f32 %v997, %v1259
      %v1306 = vadd.f32 %v1002, %v1264
      %v1307 = vadd.f32 %v1005, %v1267
      %v1308 = vadd.f32 %v1010, %v1272
      %v1309 = vadd.f32 %v1013, %v1275
      %s1310 = scalar_lea.vmem %s381, 24
      %v1311 = vld [vmem:[%s1310] sm:$0xff]
      %v1312 = vld [vmem:[%s1310 + $0x8] sm:$0xff]
      %v1313 = vld [vmem:[%s1310 + $0x18] sm:$0xff]
      %v1314 = vld [vmem:[%s1310 + $0x20] sm:$0xff]
      %v1315 = vld [vmem:[%s1310 + $0x30] sm:$0xff]
      %v1316 = vld [vmem:[%s1310 + $0x38] sm:$0xff]
      %v1317 = vld [vmem:[%s1310 + $0x48] sm:$0xff]
      %v1318 = vld [vmem:[%s1310 + $0x50] sm:$0xff]
      %v1319 = vld [vmem:[%s1310 + $0x60] sm:$0xff]
      %v1320 = vld [vmem:[%s1310 + $0x68] sm:$0xff]
      %v1321 = vld [vmem:[%s1310 + $0x78] sm:$0xff]
      %v1322 = vld [vmem:[%s1310 + $0x80] sm:$0xff]
      %v1323 = vld [vmem:[%s1310 + $0x90] sm:$0xff]
      %v1324 = vld [vmem:[%s1310 + $0x98] sm:$0xff]
      %v1325 = vld [vmem:[%s1310 + $0xa8] sm:$0xff]
      %v1326 = vld [vmem:[%s1310 + $0xb0] sm:$0xff]
      %v1327 = vld [vmem:[%s1310 + $0xc0] sm:$0xff]
      %v1328 = vld [vmem:[%s1310 + $0xc8] sm:$0xff]
      %v1329 = vld [vmem:[%s1310 + $0xd8] sm:$0xff]
      %v1330 = vld [vmem:[%s1310 + $0xe0] sm:$0xff]
      %v1331 = vld [vmem:[%s1310 + $0xf0] sm:$0xff]
      %v1332 = vld [vmem:[%s1310 + $0xf8] sm:$0xff]
      %v1333 = vld [vmem:[%s1310 + $0x108] sm:$0xff]
      %v1334 = vld [vmem:[%s1310 + $0x110] sm:$0xff]
      %v1335 = vld [vmem:[%s1310 + $0x120] sm:$0xff]
      %v1336 = vld [vmem:[%s1310 + $0x128] sm:$0xff]
      %v1337 = vld [vmem:[%s1310 + $0x138] sm:$0xff]
      %v1338 = vld [vmem:[%s1310 + $0x140] sm:$0xff]
      %v1339 = vld [vmem:[%s1310 + $0x150] sm:$0xff]
      %v1340 = vld [vmem:[%s1310 + $0x158] sm:$0xff]
      %v1341 = vld [vmem:[%s1310 + $0x168] sm:$0xff]
      %v1342 = vld [vmem:[%s1310 + $0x170] sm:$0xff]
      %v1343 = vpack.c.bf16 %v1312, %v1311
      %v1344 = vpack.c.bf16 %v1314, %v1313
      %v1345 = vpack.c.bf16 %v1316, %v1315
      %v1346 = vpack.c.bf16 %v1318, %v1317
      %v1347 = vpack.c.bf16 %v1320, %v1319
      %v1348 = vpack.c.bf16 %v1322, %v1321
      %v1349 = vpack.c.bf16 %v1324, %v1323
      %v1350 = vpack.c.bf16 %v1326, %v1325
      %v1351 = vpack.c.bf16 %v1328, %v1327
      %v1352 = vpack.c.bf16 %v1330, %v1329
      %v1353 = vpack.c.bf16 %v1332, %v1331
      %v1354 = vpack.c.bf16 %v1334, %v1333
      %v1355 = vpack.c.bf16 %v1336, %v1335
      %v1356 = vpack.c.bf16 %v1338, %v1337
      %v1357 = vpack.c.bf16 %v1340, %v1339
      %v1358 = vpack.c.bf16 %v1342, %v1341
      %s1359 = scalar_lea.vmem %s1, 6
      %v1360 = vld [vmem:[%s1359] sm:$0x3]
      %v1362 = vsel %vm590, %v1343, 0
      %v1365 = vsel %vm590, %v1344, 0
      %v1368 = vsel %vm590, %v1345, 0
      %v1371 = vsel %vm590, %v1346, 0
      %v1374 = vsel %vm590, %v1347, 0
      %v1377 = vsel %vm590, %v1348, 0
      %v1380 = vsel %vm590, %v1349, 0
      %v1383 = vsel %vm590, %v1350, 0
      %v1386 = vsel %vm590, %v1351, 0
      %v1389 = vsel %vm590, %v1352, 0
      %v1392 = vsel %vm590, %v1353, 0
      %v1395 = vsel %vm590, %v1354, 0
      %v1398 = vsel %vm590, %v1355, 0
      %v1401 = vsel %vm590, %v1356, 0
      %v1404 = vsel %vm590, %v1357, 0
      %v1407 = vsel %vm590, %v1358, 0
      %v1410 = vsel %vm639, %v1360, 0
      %1412 = vmatprep.subr.bf16.mxu0 0
      %1413 = vmatpush1.bf16.msra.mxu0 0
      %1414 = vmatprep.subr.bf16.mxu0 0
      %1415 = vmatpush1.bf16.msra.mxu0 0
      %1416 = vmatprep.subr.bf16.mxu0 0
      %1417 = vmatpush1.bf16.msra.mxu0 0
      %1418 = vmatprep.subr.bf16.mxu0 0
      %1419 = vmatpush1.bf16.msra.mxu0 0
      %1420 = vmatprep.subr.bf16.mxu0 0
      %1421 = vmatpush1.bf16.msra.mxu0 0
      %1422 = vmatprep.subr.bf16.mxu0 0
      %1423 = vmatpush1.bf16.msra.mxu0 0
      %1424 = vmatprep.subr.bf16.mxu0 0
      %1425 = vmatpush1.bf16.msra.mxu0 0
      %1426 = vmatprep.subr.bf16.mxu0 0
      %1427 = vmatpush1.bf16.msra.mxu0 %v1410
      %1428 = vmatprep.subr.bf16.mxu0 0
      %1429 = vmatpush2.bf16.msra.mxu0 0
      %1430 = vmatprep.subr.bf16.mxu0 0
      %1431 = vmatpush2.bf16.msra.mxu0 0
      %1432 = vmatprep.subr.bf16.mxu0 0
      %1433 = vmatpush2.bf16.msra.mxu0 0
      %1434 = vmatprep.subr.bf16.mxu0 0
      %1435 = vmatpush2.bf16.msra.mxu0 0
      %1436 = vmatprep.subr.bf16.mxu0 0
      %1437 = vmatpush2.bf16.msra.mxu0 0
      %1438 = vmatprep.subr.bf16.mxu0 0
      %1439 = vmatpush2.bf16.msra.mxu0 0
      %1440 = vmatprep.subr.bf16.mxu0 0
      %1441 = vmatpush2.bf16.msra.mxu0 0
      %1442 = vmatprep.subr.bf16.mxu0 0
      %1443 = vmatpush2.bf16.msra.mxu0 0
      %1444 = vmatprep.mubr.bf16.mxu0 0
      %1445 = vmatmul.mubr.bf16.gmra.mxu0 %v1362
      %v1446 = vpop.f32.mrf.mxu0
      %v1447 = vadd.f32 0.0, %v1446
      %v1448 = vpop.f32.mrf.mxu0
      %v1449 = vpop.f32.mrf.mxu0
      %v1450 = vadd.f32 0.0, %v1449
      %v1451 = vpop.f32.mrf.mxu0
      %1452 = vmatprep.mubr.bf16.mxu0 0
      %1453 = vmatmul.mubr.bf16.gmra.mxu0 %v1365
      %v1454 = vpop.f32.mrf.mxu0
      %v1455 = vadd.f32 0.0, %v1454
      %v1456 = vpop.f32.mrf.mxu0
      %v1457 = vpop.f32.mrf.mxu0
      %v1458 = vadd.f32 0.0, %v1457
      %v1459 = vpop.f32.mrf.mxu0
      %1460 = vmatprep.mubr.bf16.mxu0 0
      %1461 = vmatmul.mubr.bf16.gmra.mxu0 %v1368
      %v1462 = vpop.f32.mrf.mxu0
      %v1463 = vadd.f32 0.0, %v1462
      %v1464 = vpop.f32.mrf.mxu0
      %v1465 = vpop.f32.mrf.mxu0
      %v1466 = vadd.f32 0.0, %v1465
      %v1467 = vpop.f32.mrf.mxu0
      %1468 = vmatprep.mubr.bf16.mxu0 0
      %1469 = vmatmul.mubr.bf16.gmra.mxu0 %v1371
      %v1470 = vpop.f32.mrf.mxu0
      %v1471 = vadd.f32 0.0, %v1470
      %v1472 = vpop.f32.mrf.mxu0
      %v1473 = vpop.f32.mrf.mxu0
      %v1474 = vadd.f32 0.0, %v1473
      %v1475 = vpop.f32.mrf.mxu0
      %1476 = vmatprep.mubr.bf16.mxu0 0
      %1477 = vmatmul.mubr.bf16.gmra.mxu0 %v1374
      %v1478 = vpop.f32.mrf.mxu0
      %v1479 = vadd.f32 0.0, %v1478
      %v1480 = vpop.f32.mrf.mxu0
      %v1481 = vpop.f32.mrf.mxu0
      %v1482 = vadd.f32 0.0, %v1481
      %v1483 = vpop.f32.mrf.mxu0
      %1484 = vmatprep.mubr.bf16.mxu0 0
      %1485 = vmatmul.mubr.bf16.gmra.mxu0 %v1377
      %v1486 = vpop.f32.mrf.mxu0
      %v1487 = vadd.f32 0.0, %v1486
      %v1488 = vpop.f32.mrf.mxu0
      %v1489 = vpop.f32.mrf.mxu0
      %v1490 = vadd.f32 0.0, %v1489
      %v1491 = vpop.f32.mrf.mxu0
      %1492 = vmatprep.mubr.bf16.mxu0 0
      %1493 = vmatmul.mubr.bf16.gmra.mxu0 %v1380
      %v1494 = vpop.f32.mrf.mxu0
      %v1495 = vadd.f32 0.0, %v1494
      %v1496 = vpop.f32.mrf.mxu0
      %v1497 = vpop.f32.mrf.mxu0
      %v1498 = vadd.f32 0.0, %v1497
      %v1499 = vpop.f32.mrf.mxu0
      %1500 = vmatprep.mubr.bf16.mxu0 0
      %1501 = vmatmul.mubr.bf16.gmra.mxu0 %v1383
      %v1502 = vpop.f32.mrf.mxu0
      %v1503 = vadd.f32 0.0, %v1502
      %v1504 = vpop.f32.mrf.mxu0
      %v1505 = vpop.f32.mrf.mxu0
      %v1506 = vadd.f32 0.0, %v1505
      %v1507 = vpop.f32.mrf.mxu0
      %1508 = vmatprep.mubr.bf16.mxu0 0
      %1509 = vmatmul.mubr.bf16.gmra.mxu0 %v1386
      %v1510 = vpop.f32.mrf.mxu0
      %v1511 = vadd.f32 0.0, %v1510
      %v1512 = vpop.f32.mrf.mxu0
      %v1513 = vpop.f32.mrf.mxu0
      %v1514 = vadd.f32 0.0, %v1513
      %v1515 = vpop.f32.mrf.mxu0
      %1516 = vmatprep.mubr.bf16.mxu0 0
      %1517 = vmatmul.mubr.bf16.gmra.mxu0 %v1389
      %v1518 = vpop.f32.mrf.mxu0
      %v1519 = vadd.f32 0.0, %v1518
      %v1520 = vpop.f32.mrf.mxu0
      %v1521 = vpop.f32.mrf.mxu0
      %v1522 = vadd.f32 0.0, %v1521
      %v1523 = vpop.f32.mrf.mxu0
      %1524 = vmatprep.mubr.bf16.mxu0 0
      %1525 = vmatmul.mubr.bf16.gmra.mxu0 %v1392
      %v1526 = vpop.f32.mrf.mxu0
      %v1527 = vadd.f32 0.0, %v1526
      %v1528 = vpop.f32.mrf.mxu0
      %v1529 = vpop.f32.mrf.mxu0
      %v1530 = vadd.f32 0.0, %v1529
      %v1531 = vpop.f32.mrf.mxu0
      %1532 = vmatprep.mubr.bf16.mxu0 0
      %1533 = vmatmul.mubr.bf16.gmra.mxu0 %v1395
      %v1534 = vpop.f32.mrf.mxu0
      %v1535 = vadd.f32 0.0, %v1534
      %v1536 = vpop.f32.mrf.mxu0
      %v1537 = vpop.f32.mrf.mxu0
      %v1538 = vadd.f32 0.0, %v1537
      %v1539 = vpop.f32.mrf.mxu0
      %1540 = vmatprep.mubr.bf16.mxu0 0
      %1541 = vmatmul.mubr.bf16.gmra.mxu0 %v1398
      %v1542 = vpop.f32.mrf.mxu0
      %v1543 = vadd.f32 0.0, %v1542
      %v1544 = vpop.f32.mrf.mxu0
      %v1545 = vpop.f32.mrf.mxu0
      %v1546 = vadd.f32 0.0, %v1545
      %v1547 = vpop.f32.mrf.mxu0
      %1548 = vmatprep.mubr.bf16.mxu0 0
      %1549 = vmatmul.mubr.bf16.gmra.mxu0 %v1401
      %v1550 = vpop.f32.mrf.mxu0
      %v1551 = vadd.f32 0.0, %v1550
      %v1552 = vpop.f32.mrf.mxu0
      %v1553 = vpop.f32.mrf.mxu0
      %v1554 = vadd.f32 0.0, %v1553
      %v1555 = vpop.f32.mrf.mxu0
      %1556 = vmatprep.mubr.bf16.mxu0 0
      %1557 = vmatmul.mubr.bf16.gmra.mxu0 %v1404
      %v1558 = vpop.f32.mrf.mxu0
      %v1559 = vadd.f32 0.0, %v1558
      %v1560 = vpop.f32.mrf.mxu0
      %v1561 = vpop.f32.mrf.mxu0
      %v1562 = vadd.f32 0.0, %v1561
      %v1563 = vpop.f32.mrf.mxu0
      %1564 = vmatprep.mubr.bf16.mxu0 0
      %1565 = vmatmul.mubr.bf16.gmra.mxu0 %v1407
      %v1566 = vpop.f32.mrf.mxu0
      %v1567 = vadd.f32 0.0, %v1566
      %v1568 = vpop.f32.mrf.mxu0
      %v1569 = vpop.f32.mrf.mxu0
      %v1570 = vadd.f32 0.0, %v1569
      %v1571 = vpop.f32.mrf.mxu0
      %1572 = vdwg.mxu0
      %v1573 = vadd.f32 %v1278, %v1447
      %v1574 = vadd.f32 %v1279, %v1450
      %v1575 = vadd.f32 %v1280, %v1455
      %v1576 = vadd.f32 %v1281, %v1458
      %v1577 = vadd.f32 %v1282, %v1463
      %v1578 = vadd.f32 %v1283, %v1466
      %v1579 = vadd.f32 %v1284, %v1471
      %v1580 = vadd.f32 %v1285, %v1474
      %v1581 = vadd.f32 %v1286, %v1479
      %v1582 = vadd.f32 %v1287, %v1482
      %v1583 = vadd.f32 %v1288, %v1487
      %v1584 = vadd.f32 %v1289, %v1490
      %v1585 = vadd.f32 %v1290, %v1495
      %v1586 = vadd.f32 %v1291, %v1498
      %v1587 = vadd.f32 %v1292, %v1503
      %v1588 = vadd.f32 %v1293, %v1506
      %v1589 = vadd.f32 %v1294, %v1511
      %v1590 = vadd.f32 %v1295, %v1514
      %v1591 = vadd.f32 %v1296, %v1519
      %v1592 = vadd.f32 %v1297, %v1522
      %v1593 = vadd.f32 %v1298, %v1527
      %v1594 = vadd.f32 %v1299, %v1530
      %v1595 = vadd.f32 %v1300, %v1535
      %v1596 = vadd.f32 %v1301, %v1538
      %v1597 = vadd.f32 %v1302, %v1543
      %v1598 = vadd.f32 %v1303, %v1546
      %v1599 = vadd.f32 %v1304, %v1551
      %v1600 = vadd.f32 %v1305, %v1554
      %v1601 = vadd.f32 %v1306, %v1559
      %v1602 = vadd.f32 %v1307, %v1562
      %v1603 = vadd.f32 %v1308, %v1567
      %v1604 = vadd.f32 %v1309, %v1570
      %v1605 = vld [vmem:[%s1310 + $0x1] sm:$0xff]
      %v1606 = vld [vmem:[%s1310 + $0x9] sm:$0xff]
      %v1607 = vld [vmem:[%s1310 + $0x19] sm:$0xff]
      %v1608 = vld [vmem:[%s1310 + $0x21] sm:$0xff]
      %v1609 = vld [vmem:[%s1310 + $0x31] sm:$0xff]
      %v1610 = vld [vmem:[%s1310 + $0x39] sm:$0xff]
      %v1611 = vld [vmem:[%s1310 + $0x49] sm:$0xff]
      %v1612 = vld [vmem:[%s1310 + $0x51] sm:$0xff]
      %v1613 = vld [vmem:[%s1310 + $0x61] sm:$0xff]
      %v1614 = vld [vmem:[%s1310 + $0x69] sm:$0xff]
      %v1615 = vld [vmem:[%s1310 + $0x79] sm:$0xff]
      %v1616 = vld [vmem:[%s1310 + $0x81] sm:$0xff]
      %v1617 = vld [vmem:[%s1310 + $0x91] sm:$0xff]
      %v1618 = vld [vmem:[%s1310 + $0x99] sm:$0xff]
      %v1619 = vld [vmem:[%s1310 + $0xa9] sm:$0xff]
      %v1620 = vld [vmem:[%s1310 + $0xb1] sm:$0xff]
      %v1621 = vld [vmem:[%s1310 + $0xc1] sm:$0xff]
      %v1622 = vld [vmem:[%s1310 + $0xc9] sm:$0xff]
      %v1623 = vld [vmem:[%s1310 + $0xd9] sm:$0xff]
      %v1624 = vld [vmem:[%s1310 + $0xe1] sm:$0xff]
      %v1625 = vld [vmem:[%s1310 + $0xf1] sm:$0xff]
      %v1626 = vld [vmem:[%s1310 + $0xf9] sm:$0xff]
      %v1627 = vld [vmem:[%s1310 + $0x109] sm:$0xff]
      %v1628 = vld [vmem:[%s1310 + $0x111] sm:$0xff]
      %v1629 = vld [vmem:[%s1310 + $0x121] sm:$0xff]
      %v1630 = vld [vmem:[%s1310 + $0x129] sm:$0xff]
      %v1631 = vld [vmem:[%s1310 + $0x139] sm:$0xff]
      %v1632 = vld [vmem:[%s1310 + $0x141] sm:$0xff]
      %v1633 = vld [vmem:[%s1310 + $0x151] sm:$0xff]
      %v1634 = vld [vmem:[%s1310 + $0x159] sm:$0xff]
      %v1635 = vld [vmem:[%s1310 + $0x169] sm:$0xff]
      %v1636 = vld [vmem:[%s1310 + $0x171] sm:$0xff]
      %v1637 = vpack.c.bf16 %v1606, %v1605
      %v1638 = vpack.c.bf16 %v1608, %v1607
      %v1639 = vpack.c.bf16 %v1610, %v1609
      %v1640 = vpack.c.bf16 %v1612, %v1611
      %v1641 = vpack.c.bf16 %v1614, %v1613
      %v1642 = vpack.c.bf16 %v1616, %v1615
      %v1643 = vpack.c.bf16 %v1618, %v1617
      %v1644 = vpack.c.bf16 %v1620, %v1619
      %v1645 = vpack.c.bf16 %v1622, %v1621
      %v1646 = vpack.c.bf16 %v1624, %v1623
      %v1647 = vpack.c.bf16 %v1626, %v1625
      %v1648 = vpack.c.bf16 %v1628, %v1627
      %v1649 = vpack.c.bf16 %v1630, %v1629
      %v1650 = vpack.c.bf16 %v1632, %v1631
      %v1651 = vpack.c.bf16 %v1634, %v1633
      %v1652 = vpack.c.bf16 %v1636, %v1635
      %s1653 = scalar_lea.vmem %s1, 8
      %v1654 = vld [vmem:[%s1653] sm:$0x3]
      %v1656 = vsel %vm590, %v1637, 0
      %v1659 = vsel %vm590, %v1638, 0
      %v1662 = vsel %vm590, %v1639, 0
      %v1665 = vsel %vm590, %v1640, 0
      %v1668 = vsel %vm590, %v1641, 0
      %v1671 = vsel %vm590, %v1642, 0
      %v1674 = vsel %vm590, %v1643, 0
      %v1677 = vsel %vm590, %v1644, 0
      %v1680 = vsel %vm590, %v1645, 0
      %v1683 = vsel %vm590, %v1646, 0
      %v1686 = vsel %vm590, %v1647, 0
      %v1689 = vsel %vm590, %v1648, 0
      %v1692 = vsel %vm590, %v1649, 0
      %v1695 = vsel %vm590, %v1650, 0
      %v1698 = vsel %vm590, %v1651, 0
      %v1701 = vsel %vm590, %v1652, 0
      %v1704 = vsel %vm639, %v1654, 0
      %1706 = vmatprep.subr.bf16.mxu0 0
      %1707 = vmatpush1.bf16.msra.mxu0 0
      %1708 = vmatprep.subr.bf16.mxu0 0
      %1709 = vmatpush1.bf16.msra.mxu0 0
      %1710 = vmatprep.subr.bf16.mxu0 0
      %1711 = vmatpush1.bf16.msra.mxu0 0
      %1712 = vmatprep.subr.bf16.mxu0 0
      %1713 = vmatpush1.bf16.msra.mxu0 0
      %1714 = vmatprep.subr.bf16.mxu0 0
      %1715 = vmatpush1.bf16.msra.mxu0 0
      %1716 = vmatprep.subr.bf16.mxu0 0
      %1717 = vmatpush1.bf16.msra.mxu0 0
      %1718 = vmatprep.subr.bf16.mxu0 0
      %1719 = vmatpush1.bf16.msra.mxu0 0
      %1720 = vmatprep.subr.bf16.mxu0 0
      %1721 = vmatpush1.bf16.msra.mxu0 %v1704
      %1722 = vmatprep.subr.bf16.mxu0 0
      %1723 = vmatpush2.bf16.msra.mxu0 0
      %1724 = vmatprep.subr.bf16.mxu0 0
      %1725 = vmatpush2.bf16.msra.mxu0 0
      %1726 = vmatprep.subr.bf16.mxu0 0
      %1727 = vmatpush2.bf16.msra.mxu0 0
      %1728 = vmatprep.subr.bf16.mxu0 0
      %1729 = vmatpush2.bf16.msra.mxu0 0
      %1730 = vmatprep.subr.bf16.mxu0 0
      %1731 = vmatpush2.bf16.msra.mxu0 0
      %1732 = vmatprep.subr.bf16.mxu0 0
      %1733 = vmatpush2.bf16.msra.mxu0 0
      %1734 = vmatprep.subr.bf16.mxu0 0
      %1735 = vmatpush2.bf16.msra.mxu0 0
      %1736 = vmatprep.subr.bf16.mxu0 0
      %1737 = vmatpush2.bf16.msra.mxu0 0
      %1738 = vmatprep.mubr.bf16.mxu0 0
      %1739 = vmatmul.mubr.bf16.gmra.mxu0 %v1656
      %v1740 = vpop.f32.mrf.mxu0
      %v1741 = vadd.f32 0.0, %v1740
      %v1742 = vpop.f32.mrf.mxu0
      %v1743 = vpop.f32.mrf.mxu0
      %v1744 = vadd.f32 0.0, %v1743
      %v1745 = vpop.f32.mrf.mxu0
      %1746 = vmatprep.mubr.bf16.mxu0 0
      %1747 = vmatmul.mubr.bf16.gmra.mxu0 %v1659
      %v1748 = vpop.f32.mrf.mxu0
      %v1749 = vadd.f32 0.0, %v1748
      %v1750 = vpop.f32.mrf.mxu0
      %v1751 = vpop.f32.mrf.mxu0
      %v1752 = vadd.f32 0.0, %v1751
      %v1753 = vpop.f32.mrf.mxu0
      %1754 = vmatprep.mubr.bf16.mxu0 0
      %1755 = vmatmul.mubr.bf16.gmra.mxu0 %v1662
      %v1756 = vpop.f32.mrf.mxu0
      %v1757 = vadd.f32 0.0, %v1756
      %v1758 = vpop.f32.mrf.mxu0
      %v1759 = vpop.f32.mrf.mxu0
      %v1760 = vadd.f32 0.0, %v1759
      %v1761 = vpop.f32.mrf.mxu0
      %1762 = vmatprep.mubr.bf16.mxu0 0
      %1763 = vmatmul.mubr.bf16.gmra.mxu0 %v1665
      %v1764 = vpop.f32.mrf.mxu0
      %v1765 = vadd.f32 0.0, %v1764
      %v1766 = vpop.f32.mrf.mxu0
      %v1767 = vpop.f32.mrf.mxu0
      %v1768 = vadd.f32 0.0, %v1767
      %v1769 = vpop.f32.mrf.mxu0
      %1770 = vmatprep.mubr.bf16.mxu0 0
      %1771 = vmatmul.mubr.bf16.gmra.mxu0 %v1668
      %v1772 = vpop.f32.mrf.mxu0
      %v1773 = vadd.f32 0.0, %v1772
      %v1774 = vpop.f32.mrf.mxu0
      %v1775 = vpop.f32.mrf.mxu0
      %v1776 = vadd.f32 0.0, %v1775
      %v1777 = vpop.f32.mrf.mxu0
      %1778 = vmatprep.mubr.bf16.mxu0 0
      %1779 = vmatmul.mubr.bf16.gmra.mxu0 %v1671
      %v1780 = vpop.f32.mrf.mxu0
      %v1781 = vadd.f32 0.0, %v1780
      %v1782 = vpop.f32.mrf.mxu0
      %v1783 = vpop.f32.mrf.mxu0
      %v1784 = vadd.f32 0.0, %v1783
      %v1785 = vpop.f32.mrf.mxu0
      %1786 = vmatprep.mubr.bf16.mxu0 0
      %1787 = vmatmul.mubr.bf16.gmra.mxu0 %v1674
      %v1788 = vpop.f32.mrf.mxu0
      %v1789 = vadd.f32 0.0, %v1788
      %v1790 = vpop.f32.mrf.mxu0
      %v1791 = vpop.f32.mrf.mxu0
      %v1792 = vadd.f32 0.0, %v1791
      %v1793 = vpop.f32.mrf.mxu0
      %1794 = vmatprep.mubr.bf16.mxu0 0
      %1795 = vmatmul.mubr.bf16.gmra.mxu0 %v1677
      %v1796 = vpop.f32.mrf.mxu0
      %v1797 = vadd.f32 0.0, %v1796
      %v1798 = vpop.f32.mrf.mxu0
      %v1799 = vpop.f32.mrf.mxu0
      %v1800 = vadd.f32 0.0, %v1799
      %v1801 = vpop.f32.mrf.mxu0
      %1802 = vmatprep.mubr.bf16.mxu0 0
      %1803 = vmatmul.mubr.bf16.gmra.mxu0 %v1680
      %v1804 = vpop.f32.mrf.mxu0
      %v1805 = vadd.f32 0.0, %v1804
      %v1806 = vpop.f32.mrf.mxu0
      %v1807 = vpop.f32.mrf.mxu0
      %v1808 = vadd.f32 0.0, %v1807
      %v1809 = vpop.f32.mrf.mxu0
      %1810 = vmatprep.mubr.bf16.mxu0 0
      %1811 = vmatmul.mubr.bf16.gmra.mxu0 %v1683
      %v1812 = vpop.f32.mrf.mxu0
      %v1813 = vadd.f32 0.0, %v1812
      %v1814 = vpop.f32.mrf.mxu0
      %v1815 = vpop.f32.mrf.mxu0
      %v1816 = vadd.f32 0.0, %v1815
      %v1817 = vpop.f32.mrf.mxu0
      %1818 = vmatprep.mubr.bf16.mxu0 0
      %1819 = vmatmul.mubr.bf16.gmra.mxu0 %v1686
      %v1820 = vpop.f32.mrf.mxu0
      %v1821 = vadd.f32 0.0, %v1820
      %v1822 = vpop.f32.mrf.mxu0
      %v1823 = vpop.f32.mrf.mxu0
      %v1824 = vadd.f32 0.0, %v1823
      %v1825 = vpop.f32.mrf.mxu0
      %1826 = vmatprep.mubr.bf16.mxu0 0
      %1827 = vmatmul.mubr.bf16.gmra.mxu0 %v1689
      %v1828 = vpop.f32.mrf.mxu0
      %v1829 = vadd.f32 0.0, %v1828
      %v1830 = vpop.f32.mrf.mxu0
      %v1831 = vpop.f32.mrf.mxu0
      %v1832 = vadd.f32 0.0, %v1831
      %v1833 = vpop.f32.mrf.mxu0
      %1834 = vmatprep.mubr.bf16.mxu0 0
      %1835 = vmatmul.mubr.bf16.gmra.mxu0 %v1692
      %v1836 = vpop.f32.mrf.mxu0
      %v1837 = vadd.f32 0.0, %v1836
      %v1838 = vpop.f32.mrf.mxu0
      %v1839 = vpop.f32.mrf.mxu0
      %v1840 = vadd.f32 0.0, %v1839
      %v1841 = vpop.f32.mrf.mxu0
      %1842 = vmatprep.mubr.bf16.mxu0 0
      %1843 = vmatmul.mubr.bf16.gmra.mxu0 %v1695
      %v1844 = vpop.f32.mrf.mxu0
      %v1845 = vadd.f32 0.0, %v1844
      %v1846 = vpop.f32.mrf.mxu0
      %v1847 = vpop.f32.mrf.mxu0
      %v1848 = vadd.f32 0.0, %v1847
      %v1849 = vpop.f32.mrf.mxu0
      %1850 = vmatprep.mubr.bf16.mxu0 0
      %1851 = vmatmul.mubr.bf16.gmra.mxu0 %v1698
      %v1852 = vpop.f32.mrf.mxu0
      %v1853 = vadd.f32 0.0, %v1852
      %v1854 = vpop.f32.mrf.mxu0
      %v1855 = vpop.f32.mrf.mxu0
      %v1856 = vadd.f32 0.0, %v1855
      %v1857 = vpop.f32.mrf.mxu0
      %1858 = vmatprep.mubr.bf16.mxu0 0
      %1859 = vmatmul.mubr.bf16.gmra.mxu0 %v1701
      %v1860 = vpop.f32.mrf.mxu0
      %v1861 = vadd.f32 0.0, %v1860
      %v1862 = vpop.f32.mrf.mxu0
      %v1863 = vpop.f32.mrf.mxu0
      %v1864 = vadd.f32 0.0, %v1863
      %v1865 = vpop.f32.mrf.mxu0
      %1866 = vdwg.mxu0
      %v1867 = vadd.f32 %v1573, %v1741
      %v1868 = vadd.f32 %v1574, %v1744
      %v1869 = vadd.f32 %v1575, %v1749
      %v1870 = vadd.f32 %v1576, %v1752
      %v1871 = vadd.f32 %v1577, %v1757
      %v1872 = vadd.f32 %v1578, %v1760
      %v1873 = vadd.f32 %v1579, %v1765
      %v1874 = vadd.f32 %v1580, %v1768
      %v1875 = vadd.f32 %v1581, %v1773
      %v1876 = vadd.f32 %v1582, %v1776
      %v1877 = vadd.f32 %v1583, %v1781
      %v1878 = vadd.f32 %v1584, %v1784
      %v1879 = vadd.f32 %v1585, %v1789
      %v1880 = vadd.f32 %v1586, %v1792
      %v1881 = vadd.f32 %v1587, %v1797
      %v1882 = vadd.f32 %v1588, %v1800
      %v1883 = vadd.f32 %v1589, %v1805
      %v1884 = vadd.f32 %v1590, %v1808
      %v1885 = vadd.f32 %v1591, %v1813
      %v1886 = vadd.f32 %v1592, %v1816
      %v1887 = vadd.f32 %v1593, %v1821
      %v1888 = vadd.f32 %v1594, %v1824
      %v1889 = vadd.f32 %v1595, %v1829
      %v1890 = vadd.f32 %v1596, %v1832
      %v1891 = vadd.f32 %v1597, %v1837
      %v1892 = vadd.f32 %v1598, %v1840
      %v1893 = vadd.f32 %v1599, %v1845
      %v1894 = vadd.f32 %v1600, %v1848
      %v1895 = vadd.f32 %v1601, %v1853
      %v1896 = vadd.f32 %v1602, %v1856
      %v1897 = vadd.f32 %v1603, %v1861
      %v1898 = vadd.f32 %v1604, %v1864
      %v1899 = vld [vmem:[%s1310 + $0x2] sm:$0xff]
      %v1900 = vld [vmem:[%s1310 + $0xa] sm:$0xff]
      %v1901 = vld [vmem:[%s1310 + $0x1a] sm:$0xff]
      %v1902 = vld [vmem:[%s1310 + $0x22] sm:$0xff]
      %v1903 = vld [vmem:[%s1310 + $0x32] sm:$0xff]
      %v1904 = vld [vmem:[%s1310 + $0x3a] sm:$0xff]
      %v1905 = vld [vmem:[%s1310 + $0x4a] sm:$0xff]
      %v1906 = vld [vmem:[%s1310 + $0x52] sm:$0xff]
      %v1907 = vld [vmem:[%s1310 + $0x62] sm:$0xff]
      %v1908 = vld [vmem:[%s1310 + $0x6a] sm:$0xff]
      %v1909 = vld [vmem:[%s1310 + $0x7a] sm:$0xff]
      %v1910 = vld [vmem:[%s1310 + $0x82] sm:$0xff]
      %v1911 = vld [vmem:[%s1310 + $0x92] sm:$0xff]
      %v1912 = vld [vmem:[%s1310 + $0x9a] sm:$0xff]
      %v1913 = vld [vmem:[%s1310 + $0xaa] sm:$0xff]
      %v1914 = vld [vmem:[%s1310 + $0xb2] sm:$0xff]
      %v1915 = vld [vmem:[%s1310 + $0xc2] sm:$0xff]
      %v1916 = vld [vmem:[%s1310 + $0xca] sm:$0xff]
      %v1917 = vld [vmem:[%s1310 + $0xda] sm:$0xff]
      %v1918 = vld [vmem:[%s1310 + $0xe2] sm:$0xff]
      %v1919 = vld [vmem:[%s1310 + $0xf2] sm:$0xff]
      %v1920 = vld [vmem:[%s1310 + $0xfa] sm:$0xff]
      %v1921 = vld [vmem:[%s1310 + $0x10a] sm:$0xff]
      %v1922 = vld [vmem:[%s1310 + $0x112] sm:$0xff]
      %v1923 = vld [vmem:[%s1310 + $0x122] sm:$0xff]
      %v1924 = vld [vmem:[%s1310 + $0x12a] sm:$0xff]
      %v1925 = vld [vmem:[%s1310 + $0x13a] sm:$0xff]
      %v1926 = vld [vmem:[%s1310 + $0x142] sm:$0xff]
      %v1927 = vld [vmem:[%s1310 + $0x152] sm:$0xff]
      %v1928 = vld [vmem:[%s1310 + $0x15a] sm:$0xff]
      %v1929 = vld [vmem:[%s1310 + $0x16a] sm:$0xff]
      %v1930 = vld [vmem:[%s1310 + $0x172] sm:$0xff]
      %v1931 = vpack.c.bf16 %v1900, %v1899
      %v1932 = vpack.c.bf16 %v1902, %v1901
      %v1933 = vpack.c.bf16 %v1904, %v1903
      %v1934 = vpack.c.bf16 %v1906, %v1905
      %v1935 = vpack.c.bf16 %v1908, %v1907
      %v1936 = vpack.c.bf16 %v1910, %v1909
      %v1937 = vpack.c.bf16 %v1912, %v1911
      %v1938 = vpack.c.bf16 %v1914, %v1913
      %v1939 = vpack.c.bf16 %v1916, %v1915
      %v1940 = vpack.c.bf16 %v1918, %v1917
      %v1941 = vpack.c.bf16 %v1920, %v1919
      %v1942 = vpack.c.bf16 %v1922, %v1921
      %v1943 = vpack.c.bf16 %v1924, %v1923
      %v1944 = vpack.c.bf16 %v1926, %v1925
      %v1945 = vpack.c.bf16 %v1928, %v1927
      %v1946 = vpack.c.bf16 %v1930, %v1929
      %s1947 = scalar_lea.vmem %s1, 10
      %v1948 = vld [vmem:[%s1947] sm:$0x3]
      %v1950 = vsel %vm590, %v1931, 0
      %v1953 = vsel %vm590, %v1932, 0
      %v1956 = vsel %vm590, %v1933, 0
      %v1959 = vsel %vm590, %v1934, 0
      %v1962 = vsel %vm590, %v1935, 0
      %v1965 = vsel %vm590, %v1936, 0
      %v1968 = vsel %vm590, %v1937, 0
      %v1971 = vsel %vm590, %v1938, 0
      %v1974 = vsel %vm590, %v1939, 0
      %v1977 = vsel %vm590, %v1940, 0
      %v1980 = vsel %vm590, %v1941, 0
      %v1983 = vsel %vm590, %v1942, 0
      %v1986 = vsel %vm590, %v1943, 0
      %v1989 = vsel %vm590, %v1944, 0
      %v1992 = vsel %vm590, %v1945, 0
      %v1995 = vsel %vm590, %v1946, 0
      %v1998 = vsel %vm639, %v1948, 0
      %2000 = vmatprep.subr.bf16.mxu0 0
      %2001 = vmatpush1.bf16.msra.mxu0 0
      %2002 = vmatprep.subr.bf16.mxu0 0
      %2003 = vmatpush1.bf16.msra.mxu0 0
      %2004 = vmatprep.subr.bf16.mxu0 0
      %2005 = vmatpush1.bf16.msra.mxu0 0
      %2006 = vmatprep.subr.bf16.mxu0 0
      %2007 = vmatpush1.bf16.msra.mxu0 0
      %2008 = vmatprep.subr.bf16.mxu0 0
      %2009 = vmatpush1.bf16.msra.mxu0 0
      %2010 = vmatprep.subr.bf16.mxu0 0
      %2011 = vmatpush1.bf16.msra.mxu0 0
      %2012 = vmatprep.subr.bf16.mxu0 0
      %2013 = vmatpush1.bf16.msra.mxu0 0
      %2014 = vmatprep.subr.bf16.mxu0 0
      %2015 = vmatpush1.bf16.msra.mxu0 %v1998
      %2016 = vmatprep.subr.bf16.mxu0 0
      %2017 = vmatpush2.bf16.msra.mxu0 0
      %2018 = vmatprep.subr.bf16.mxu0 0
      %2019 = vmatpush2.bf16.msra.mxu0 0
      %2020 = vmatprep.subr.bf16.mxu0 0
      %2021 = vmatpush2.bf16.msra.mxu0 0
      %2022 = vmatprep.subr.bf16.mxu0 0
      %2023 = vmatpush2.bf16.msra.mxu0 0
      %2024 = vmatprep.subr.bf16.mxu0 0
      %2025 = vmatpush2.bf16.msra.mxu0 0
      %2026 = vmatprep.subr.bf16.mxu0 0
      %2027 = vmatpush2.bf16.msra.mxu0 0
      %2028 = vmatprep.subr.bf16.mxu0 0
      %2029 = vmatpush2.bf16.msra.mxu0 0
      %2030 = vmatprep.subr.bf16.mxu0 0
      %2031 = vmatpush2.bf16.msra.mxu0 0
      %2032 = vmatprep.mubr.bf16.mxu0 0
      %2033 = vmatmul.mubr.bf16.gmra.mxu0 %v1950
      %v2034 = vpop.f32.mrf.mxu0
      %v2035 = vadd.f32 0.0, %v2034
      %v2036 = vpop.f32.mrf.mxu0
      %v2037 = vpop.f32.mrf.mxu0
      %v2038 = vadd.f32 0.0, %v2037
      %v2039 = vpop.f32.mrf.mxu0
      %2040 = vmatprep.mubr.bf16.mxu0 0
      %2041 = vmatmul.mubr.bf16.gmra.mxu0 %v1953
      %v2042 = vpop.f32.mrf.mxu0
      %v2043 = vadd.f32 0.0, %v2042
      %v2044 = vpop.f32.mrf.mxu0
      %v2045 = vpop.f32.mrf.mxu0
      %v2046 = vadd.f32 0.0, %v2045
      %v2047 = vpop.f32.mrf.mxu0
      %2048 = vmatprep.mubr.bf16.mxu0 0
      %2049 = vmatmul.mubr.bf16.gmra.mxu0 %v1956
      %v2050 = vpop.f32.mrf.mxu0
      %v2051 = vadd.f32 0.0, %v2050
      %v2052 = vpop.f32.mrf.mxu0
      %v2053 = vpop.f32.mrf.mxu0
      %v2054 = vadd.f32 0.0, %v2053
      %v2055 = vpop.f32.mrf.mxu0
      %2056 = vmatprep.mubr.bf16.mxu0 0
      %2057 = vmatmul.mubr.bf16.gmra.mxu0 %v1959
      %v2058 = vpop.f32.mrf.mxu0
      %v2059 = vadd.f32 0.0, %v2058
      %v2060 = vpop.f32.mrf.mxu0
      %v2061 = vpop.f32.mrf.mxu0
      %v2062 = vadd.f32 0.0, %v2061
      %v2063 = vpop.f32.mrf.mxu0
      %2064 = vmatprep.mubr.bf16.mxu0 0
      %2065 = vmatmul.mubr.bf16.gmra.mxu0 %v1962
      %v2066 = vpop.f32.mrf.mxu0
      %v2067 = vadd.f32 0.0, %v2066
      %v2068 = vpop.f32.mrf.mxu0
      %v2069 = vpop.f32.mrf.mxu0
      %v2070 = vadd.f32 0.0, %v2069
      %v2071 = vpop.f32.mrf.mxu0
      %2072 = vmatprep.mubr.bf16.mxu0 0
      %2073 = vmatmul.mubr.bf16.gmra.mxu0 %v1965
      %v2074 = vpop.f32.mrf.mxu0
      %v2075 = vadd.f32 0.0, %v2074
      %v2076 = vpop.f32.mrf.mxu0
      %v2077 = vpop.f32.mrf.mxu0
      %v2078 = vadd.f32 0.0, %v2077
      %v2079 = vpop.f32.mrf.mxu0
      %2080 = vmatprep.mubr.bf16.mxu0 0
      %2081 = vmatmul.mubr.bf16.gmra.mxu0 %v1968
      %v2082 = vpop.f32.mrf.mxu0
      %v2083 = vadd.f32 0.0, %v2082
      %v2084 = vpop.f32.mrf.mxu0
      %v2085 = vpop.f32.mrf.mxu0
      %v2086 = vadd.f32 0.0, %v2085
      %v2087 = vpop.f32.mrf.mxu0
      %2088 = vmatprep.mubr.bf16.mxu0 0
      %2089 = vmatmul.mubr.bf16.gmra.mxu0 %v1971
      %v2090 = vpop.f32.mrf.mxu0
      %v2091 = vadd.f32 0.0, %v2090
      %v2092 = vpop.f32.mrf.mxu0
      %v2093 = vpop.f32.mrf.mxu0
      %v2094 = vadd.f32 0.0, %v2093
      %v2095 = vpop.f32.mrf.mxu0
      %2096 = vmatprep.mubr.bf16.mxu0 0
      %2097 = vmatmul.mubr.bf16.gmra.mxu0 %v1974
      %v2098 = vpop.f32.mrf.mxu0
      %v2099 = vadd.f32 0.0, %v2098
      %v2100 = vpop.f32.mrf.mxu0
      %v2101 = vpop.f32.mrf.mxu0
      %v2102 = vadd.f32 0.0, %v2101
      %v2103 = vpop.f32.mrf.mxu0
      %2104 = vmatprep.mubr.bf16.mxu0 0
      %2105 = vmatmul.mubr.bf16.gmra.mxu0 %v1977
      %v2106 = vpop.f32.mrf.mxu0
      %v2107 = vadd.f32 0.0, %v2106
      %v2108 = vpop.f32.mrf.mxu0
      %v2109 = vpop.f32.mrf.mxu0
      %v2110 = vadd.f32 0.0, %v2109
      %v2111 = vpop.f32.mrf.mxu0
      %2112 = vmatprep.mubr.bf16.mxu0 0
      %2113 = vmatmul.mubr.bf16.gmra.mxu0 %v1980
      %v2114 = vpop.f32.mrf.mxu0
      %v2115 = vadd.f32 0.0, %v2114
      %v2116 = vpop.f32.mrf.mxu0
      %v2117 = vpop.f32.mrf.mxu0
      %v2118 = vadd.f32 0.0, %v2117
      %v2119 = vpop.f32.mrf.mxu0
      %2120 = vmatprep.mubr.bf16.mxu0 0
      %2121 = vmatmul.mubr.bf16.gmra.mxu0 %v1983
      %v2122 = vpop.f32.mrf.mxu0
      %v2123 = vadd.f32 0.0, %v2122
      %v2124 = vpop.f32.mrf.mxu0
      %v2125 = vpop.f32.mrf.mxu0
      %v2126 = vadd.f32 0.0, %v2125
      %v2127 = vpop.f32.mrf.mxu0
      %2128 = vmatprep.mubr.bf16.mxu0 0
      %2129 = vmatmul.mubr.bf16.gmra.mxu0 %v1986
      %v2130 = vpop.f32.mrf.mxu0
      %v2131 = vadd.f32 0.0, %v2130
      %v2132 = vpop.f32.mrf.mxu0
      %v2133 = vpop.f32.mrf.mxu0
      %v2134 = vadd.f32 0.0, %v2133
      %v2135 = vpop.f32.mrf.mxu0
      %2136 = vmatprep.mubr.bf16.mxu0 0
      %2137 = vmatmul.mubr.bf16.gmra.mxu0 %v1989
      %v2138 = vpop.f32.mrf.mxu0
      %v2139 = vadd.f32 0.0, %v2138
      %v2140 = vpop.f32.mrf.mxu0
      %v2141 = vpop.f32.mrf.mxu0
      %v2142 = vadd.f32 0.0, %v2141
      %v2143 = vpop.f32.mrf.mxu0
      %2144 = vmatprep.mubr.bf16.mxu0 0
      %2145 = vmatmul.mubr.bf16.gmra.mxu0 %v1992
      %v2146 = vpop.f32.mrf.mxu0
      %v2147 = vadd.f32 0.0, %v2146
      %v2148 = vpop.f32.mrf.mxu0
      %v2149 = vpop.f32.mrf.mxu0
      %v2150 = vadd.f32 0.0, %v2149
      %v2151 = vpop.f32.mrf.mxu0
      %2152 = vmatprep.mubr.bf16.mxu0 0
      %2153 = vmatmul.mubr.bf16.gmra.mxu0 %v1995
      %v2154 = vpop.f32.mrf.mxu0
      %v2155 = vadd.f32 0.0, %v2154
      %v2156 = vpop.f32.mrf.mxu0
      %v2157 = vpop.f32.mrf.mxu0
      %v2158 = vadd.f32 0.0, %v2157
      %v2159 = vpop.f32.mrf.mxu0
      %2160 = vdwg.mxu0
      %v2161 = vadd.f32 %v1867, %v2035
      %v2162 = vadd.f32 %v1868, %v2038
      %v2163 = vadd.f32 %v1869, %v2043
      %v2164 = vadd.f32 %v1870, %v2046
      %v2165 = vadd.f32 %v1871, %v2051
      %v2166 = vadd.f32 %v1872, %v2054
      %v2167 = vadd.f32 %v1873, %v2059
      %v2168 = vadd.f32 %v1874, %v2062
      %v2169 = vadd.f32 %v1875, %v2067
      %v2170 = vadd.f32 %v1876, %v2070
      %v2171 = vadd.f32 %v1877, %v2075
      %v2172 = vadd.f32 %v1878, %v2078
      %v2173 = vadd.f32 %v1879, %v2083
      %v2174 = vadd.f32 %v1880, %v2086
      %v2175 = vadd.f32 %v1881, %v2091
      %v2176 = vadd.f32 %v1882, %v2094
      %v2177 = vadd.f32 %v1883, %v2099
      %v2178 = vadd.f32 %v1884, %v2102
      %v2179 = vadd.f32 %v1885, %v2107
      %v2180 = vadd.f32 %v1886, %v2110
      %v2181 = vadd.f32 %v1887, %v2115
      %v2182 = vadd.f32 %v1888, %v2118
      %v2183 = vadd.f32 %v1889, %v2123
      %v2184 = vadd.f32 %v1890, %v2126
      %v2185 = vadd.f32 %v1891, %v2131
      %v2186 = vadd.f32 %v1892, %v2134
      %v2187 = vadd.f32 %v1893, %v2139
      %v2188 = vadd.f32 %v1894, %v2142
      %v2189 = vadd.f32 %v1895, %v2147
      %v2190 = vadd.f32 %v1896, %v2150
      %v2191 = vadd.f32 %v1897, %v2155
      %v2192 = vadd.f32 %v1898, %v2158
      %s2193 = scalar_lea.vmem %s381, 48
      %v2194 = vld [vmem:[%s2193] sm:$0xff]
      %v2195 = vld [vmem:[%s2193 + $0x8] sm:$0xff]
      %v2196 = vld [vmem:[%s2193 + $0x18] sm:$0xff]
      %v2197 = vld [vmem:[%s2193 + $0x20] sm:$0xff]
      %v2198 = vld [vmem:[%s2193 + $0x30] sm:$0xff]
      %v2199 = vld [vmem:[%s2193 + $0x38] sm:$0xff]
      %v2200 = vld [vmem:[%s2193 + $0x48] sm:$0xff]
      %v2201 = vld [vmem:[%s2193 + $0x50] sm:$0xff]
      %v2202 = vld [vmem:[%s2193 + $0x60] sm:$0xff]
      %v2203 = vld [vmem:[%s2193 + $0x68] sm:$0xff]
      %v2204 = vld [vmem:[%s2193 + $0x78] sm:$0xff]
      %v2205 = vld [vmem:[%s2193 + $0x80] sm:$0xff]
      %v2206 = vld [vmem:[%s2193 + $0x90] sm:$0xff]
      %v2207 = vld [vmem:[%s2193 + $0x98] sm:$0xff]
      %v2208 = vld [vmem:[%s2193 + $0xa8] sm:$0xff]
      %v2209 = vld [vmem:[%s2193 + $0xb0] sm:$0xff]
      %v2210 = vld [vmem:[%s2193 + $0xc0] sm:$0xff]
      %v2211 = vld [vmem:[%s2193 + $0xc8] sm:$0xff]
      %v2212 = vld [vmem:[%s2193 + $0xd8] sm:$0xff]
      %v2213 = vld [vmem:[%s2193 + $0xe0] sm:$0xff]
      %v2214 = vld [vmem:[%s2193 + $0xf0] sm:$0xff]
      %v2215 = vld [vmem:[%s2193 + $0xf8] sm:$0xff]
      %v2216 = vld [vmem:[%s2193 + $0x108] sm:$0xff]
      %v2217 = vld [vmem:[%s2193 + $0x110] sm:$0xff]
      %v2218 = vld [vmem:[%s2193 + $0x120] sm:$0xff]
      %v2219 = vld [vmem:[%s2193 + $0x128] sm:$0xff]
      %v2220 = vld [vmem:[%s2193 + $0x138] sm:$0xff]
      %v2221 = vld [vmem:[%s2193 + $0x140] sm:$0xff]
      %v2222 = vld [vmem:[%s2193 + $0x150] sm:$0xff]
      %v2223 = vld [vmem:[%s2193 + $0x158] sm:$0xff]
      %v2224 = vld [vmem:[%s2193 + $0x168] sm:$0xff]
      %v2225 = vld [vmem:[%s2193 + $0x170] sm:$0xff]
      %v2226 = vpack.c.bf16 %v2195, %v2194
      %v2227 = vpack.c.bf16 %v2197, %v2196
      %v2228 = vpack.c.bf16 %v2199, %v2198
      %v2229 = vpack.c.bf16 %v2201, %v2200
      %v2230 = vpack.c.bf16 %v2203, %v2202
      %v2231 = vpack.c.bf16 %v2205, %v2204
      %v2232 = vpack.c.bf16 %v2207, %v2206
      %v2233 = vpack.c.bf16 %v2209, %v2208
      %v2234 = vpack.c.bf16 %v2211, %v2210
      %v2235 = vpack.c.bf16 %v2213, %v2212
      %v2236 = vpack.c.bf16 %v2215, %v2214
      %v2237 = vpack.c.bf16 %v2217, %v2216
      %v2238 = vpack.c.bf16 %v2219, %v2218
      %v2239 = vpack.c.bf16 %v2221, %v2220
      %v2240 = vpack.c.bf16 %v2223, %v2222
      %v2241 = vpack.c.bf16 %v2225, %v2224
      %s2242 = scalar_lea.vmem %s1, 12
      %v2243 = vld [vmem:[%s2242] sm:$0x3]
      %v2245 = vsel %vm590, %v2226, 0
      %v2248 = vsel %vm590, %v2227, 0
      %v2251 = vsel %vm590, %v2228, 0
      %v2254 = vsel %vm590, %v2229, 0
      %v2257 = vsel %vm590, %v2230, 0
      %v2260 = vsel %vm590, %v2231, 0
      %v2263 = vsel %vm590, %v2232, 0
      %v2266 = vsel %vm590, %v2233, 0
      %v2269 = vsel %vm590, %v2234, 0
      %v2272 = vsel %vm590, %v2235, 0
      %v2275 = vsel %vm590, %v2236, 0
      %v2278 = vsel %vm590, %v2237, 0
      %v2281 = vsel %vm590, %v2238, 0
      %v2284 = vsel %vm590, %v2239, 0
      %v2287 = vsel %vm590, %v2240, 0
      %v2290 = vsel %vm590, %v2241, 0
      %v2293 = vsel %vm639, %v2243, 0
      %2295 = vmatprep.subr.bf16.mxu0 0
      %2296 = vmatpush1.bf16.msra.mxu0 0
      %2297 = vmatprep.subr.bf16.mxu0 0
      %2298 = vmatpush1.bf16.msra.mxu0 0
      %2299 = vmatprep.subr.bf16.mxu0 0
      %2300 = vmatpush1.bf16.msra.mxu0 0
      %2301 = vmatprep.subr.bf16.mxu0 0
      %2302 = vmatpush1.bf16.msra.mxu0 0
      %2303 = vmatprep.subr.bf16.mxu0 0
      %2304 = vmatpush1.bf16.msra.mxu0 0
      %2305 = vmatprep.subr.bf16.mxu0 0
      %2306 = vmatpush1.bf16.msra.mxu0 0
      %2307 = vmatprep.subr.bf16.mxu0 0
      %2308 = vmatpush1.bf16.msra.mxu0 0
      %2309 = vmatprep.subr.bf16.mxu0 0
      %2310 = vmatpush1.bf16.msra.mxu0 %v2293
      %2311 = vmatprep.subr.bf16.mxu0 0
      %2312 = vmatpush2.bf16.msra.mxu0 0
      %2313 = vmatprep.subr.bf16.mxu0 0
      %2314 = vmatpush2.bf16.msra.mxu0 0
      %2315 = vmatprep.subr.bf16.mxu0 0
      %2316 = vmatpush2.bf16.msra.mxu0 0
      %2317 = vmatprep.subr.bf16.mxu0 0
      %2318 = vmatpush2.bf16.msra.mxu0 0
      %2319 = vmatprep.subr.bf16.mxu0 0
      %2320 = vmatpush2.bf16.msra.mxu0 0
      %2321 = vmatprep.subr.bf16.mxu0 0
      %2322 = vmatpush2.bf16.msra.mxu0 0
      %2323 = vmatprep.subr.bf16.mxu0 0
      %2324 = vmatpush2.bf16.msra.mxu0 0
      %2325 = vmatprep.subr.bf16.mxu0 0
      %2326 = vmatpush2.bf16.msra.mxu0 0
      %2327 = vmatprep.mubr.bf16.mxu0 0
      %2328 = vmatmul.mubr.bf16.gmra.mxu0 %v2245
      %v2329 = vpop.f32.mrf.mxu0
      %v2330 = vadd.f32 0.0, %v2329
      %v2331 = vpop.f32.mrf.mxu0
      %v2332 = vpop.f32.mrf.mxu0
      %v2333 = vadd.f32 0.0, %v2332
      %v2334 = vpop.f32.mrf.mxu0
      %2335 = vmatprep.mubr.bf16.mxu0 0
      %2336 = vmatmul.mubr.bf16.gmra.mxu0 %v2248
      %v2337 = vpop.f32.mrf.mxu0
      %v2338 = vadd.f32 0.0, %v2337
      %v2339 = vpop.f32.mrf.mxu0
      %v2340 = vpop.f32.mrf.mxu0
      %v2341 = vadd.f32 0.0, %v2340
      %v2342 = vpop.f32.mrf.mxu0
      %2343 = vmatprep.mubr.bf16.mxu0 0
      %2344 = vmatmul.mubr.bf16.gmra.mxu0 %v2251
      %v2345 = vpop.f32.mrf.mxu0
      %v2346 = vadd.f32 0.0, %v2345
      %v2347 = vpop.f32.mrf.mxu0
      %v2348 = vpop.f32.mrf.mxu0
      %v2349 = vadd.f32 0.0, %v2348
      %v2350 = vpop.f32.mrf.mxu0
      %2351 = vmatprep.mubr.bf16.mxu0 0
      %2352 = vmatmul.mubr.bf16.gmra.mxu0 %v2254
      %v2353 = vpop.f32.mrf.mxu0
      %v2354 = vadd.f32 0.0, %v2353
      %v2355 = vpop.f32.mrf.mxu0
      %v2356 = vpop.f32.mrf.mxu0
      %v2357 = vadd.f32 0.0, %v2356
      %v2358 = vpop.f32.mrf.mxu0
      %2359 = vmatprep.mubr.bf16.mxu0 0
      %2360 = vmatmul.mubr.bf16.gmra.mxu0 %v2257
      %v2361 = vpop.f32.mrf.mxu0
      %v2362 = vadd.f32 0.0, %v2361
      %v2363 = vpop.f32.mrf.mxu0
      %v2364 = vpop.f32.mrf.mxu0
      %v2365 = vadd.f32 0.0, %v2364
      %v2366 = vpop.f32.mrf.mxu0
      %2367 = vmatprep.mubr.bf16.mxu0 0
      %2368 = vmatmul.mubr.bf16.gmra.mxu0 %v2260
      %v2369 = vpop.f32.mrf.mxu0
      %v2370 = vadd.f32 0.0, %v2369
      %v2371 = vpop.f32.mrf.mxu0
      %v2372 = vpop.f32.mrf.mxu0
      %v2373 = vadd.f32 0.0, %v2372
      %v2374 = vpop.f32.mrf.mxu0
      %2375 = vmatprep.mubr.bf16.mxu0 0
      %2376 = vmatmul.mubr.bf16.gmra.mxu0 %v2263
      %v2377 = vpop.f32.mrf.mxu0
      %v2378 = vadd.f32 0.0, %v2377
      %v2379 = vpop.f32.mrf.mxu0
      %v2380 = vpop.f32.mrf.mxu0
      %v2381 = vadd.f32 0.0, %v2380
      %v2382 = vpop.f32.mrf.mxu0
      %2383 = vmatprep.mubr.bf16.mxu0 0
      %2384 = vmatmul.mubr.bf16.gmra.mxu0 %v2266
      %v2385 = vpop.f32.mrf.mxu0
      %v2386 = vadd.f32 0.0, %v2385
      %v2387 = vpop.f32.mrf.mxu0
      %v2388 = vpop.f32.mrf.mxu0
      %v2389 = vadd.f32 0.0, %v2388
      %v2390 = vpop.f32.mrf.mxu0
      %2391 = vmatprep.mubr.bf16.mxu0 0
      %2392 = vmatmul.mubr.bf16.gmra.mxu0 %v2269
      %v2393 = vpop.f32.mrf.mxu0
      %v2394 = vadd.f32 0.0, %v2393
      %v2395 = vpop.f32.mrf.mxu0
      %v2396 = vpop.f32.mrf.mxu0
      %v2397 = vadd.f32 0.0, %v2396
      %v2398 = vpop.f32.mrf.mxu0
      %2399 = vmatprep.mubr.bf16.mxu0 0
      %2400 = vmatmul.mubr.bf16.gmra.mxu0 %v2272
      %v2401 = vpop.f32.mrf.mxu0
      %v2402 = vadd.f32 0.0, %v2401
      %v2403 = vpop.f32.mrf.mxu0
      %v2404 = vpop.f32.mrf.mxu0
      %v2405 = vadd.f32 0.0, %v2404
      %v2406 = vpop.f32.mrf.mxu0
      %2407 = vmatprep.mubr.bf16.mxu0 0
      %2408 = vmatmul.mubr.bf16.gmra.mxu0 %v2275
      %v2409 = vpop.f32.mrf.mxu0
      %v2410 = vadd.f32 0.0, %v2409
      %v2411 = vpop.f32.mrf.mxu0
      %v2412 = vpop.f32.mrf.mxu0
      %v2413 = vadd.f32 0.0, %v2412
      %v2414 = vpop.f32.mrf.mxu0
      %2415 = vmatprep.mubr.bf16.mxu0 0
      %2416 = vmatmul.mubr.bf16.gmra.mxu0 %v2278
      %v2417 = vpop.f32.mrf.mxu0
      %v2418 = vadd.f32 0.0, %v2417
      %v2419 = vpop.f32.mrf.mxu0
      %v2420 = vpop.f32.mrf.mxu0
      %v2421 = vadd.f32 0.0, %v2420
      %v2422 = vpop.f32.mrf.mxu0
      %2423 = vmatprep.mubr.bf16.mxu0 0
      %2424 = vmatmul.mubr.bf16.gmra.mxu0 %v2281
      %v2425 = vpop.f32.mrf.mxu0
      %v2426 = vadd.f32 0.0, %v2425
      %v2427 = vpop.f32.mrf.mxu0
      %v2428 = vpop.f32.mrf.mxu0
      %v2429 = vadd.f32 0.0, %v2428
      %v2430 = vpop.f32.mrf.mxu0
      %2431 = vmatprep.mubr.bf16.mxu0 0
      %2432 = vmatmul.mubr.bf16.gmra.mxu0 %v2284
      %v2433 = vpop.f32.mrf.mxu0
      %v2434 = vadd.f32 0.0, %v2433
      %v2435 = vpop.f32.mrf.mxu0
      %v2436 = vpop.f32.mrf.mxu0
      %v2437 = vadd.f32 0.0, %v2436
      %v2438 = vpop.f32.mrf.mxu0
      %2439 = vmatprep.mubr.bf16.mxu0 0
      %2440 = vmatmul.mubr.bf16.gmra.mxu0 %v2287
      %v2441 = vpop.f32.mrf.mxu0
      %v2442 = vadd.f32 0.0, %v2441
      %v2443 = vpop.f32.mrf.mxu0
      %v2444 = vpop.f32.mrf.mxu0
      %v2445 = vadd.f32 0.0, %v2444
      %v2446 = vpop.f32.mrf.mxu0
      %2447 = vmatprep.mubr.bf16.mxu0 0
      %2448 = vmatmul.mubr.bf16.gmra.mxu0 %v2290
      %v2449 = vpop.f32.mrf.mxu0
      %v2450 = vadd.f32 0.0, %v2449
      %v2451 = vpop.f32.mrf.mxu0
      %v2452 = vpop.f32.mrf.mxu0
      %v2453 = vadd.f32 0.0, %v2452
      %v2454 = vpop.f32.mrf.mxu0
      %2455 = vdwg.mxu0
      %v2456 = vadd.f32 %v2161, %v2330
      %v2457 = vadd.f32 %v2162, %v2333
      %v2458 = vadd.f32 %v2163, %v2338
      %v2459 = vadd.f32 %v2164, %v2341
      %v2460 = vadd.f32 %v2165, %v2346
      %v2461 = vadd.f32 %v2166, %v2349
      %v2462 = vadd.f32 %v2167, %v2354
      %v2463 = vadd.f32 %v2168, %v2357
      %v2464 = vadd.f32 %v2169, %v2362
      %v2465 = vadd.f32 %v2170, %v2365
      %v2466 = vadd.f32 %v2171, %v2370
      %v2467 = vadd.f32 %v2172, %v2373
      %v2468 = vadd.f32 %v2173, %v2378
      %v2469 = vadd.f32 %v2174, %v2381
      %v2470 = vadd.f32 %v2175, %v2386
      %v2471 = vadd.f32 %v2176, %v2389
      %v2472 = vadd.f32 %v2177, %v2394
      %v2473 = vadd.f32 %v2178, %v2397
      %v2474 = vadd.f32 %v2179, %v2402
      %v2475 = vadd.f32 %v2180, %v2405
      %v2476 = vadd.f32 %v2181, %v2410
      %v2477 = vadd.f32 %v2182, %v2413
      %v2478 = vadd.f32 %v2183, %v2418
      %v2479 = vadd.f32 %v2184, %v2421
      %v2480 = vadd.f32 %v2185, %v2426
      %v2481 = vadd.f32 %v2186, %v2429
      %v2482 = vadd.f32 %v2187, %v2434
      %v2483 = vadd.f32 %v2188, %v2437
      %v2484 = vadd.f32 %v2189, %v2442
      %v2485 = vadd.f32 %v2190, %v2445
      %v2486 = vadd.f32 %v2191, %v2450
      %v2487 = vadd.f32 %v2192, %v2453
      %v2488 = vld [vmem:[%s2193 + $0x1] sm:$0xff]
      %v2489 = vld [vmem:[%s2193 + $0x9] sm:$0xff]
      %v2490 = vld [vmem:[%s2193 + $0x19] sm:$0xff]
      %v2491 = vld [vmem:[%s2193 + $0x21] sm:$0xff]
      %v2492 = vld [vmem:[%s2193 + $0x31] sm:$0xff]
      %v2493 = vld [vmem:[%s2193 + $0x39] sm:$0xff]
      %v2494 = vld [vmem:[%s2193 + $0x49] sm:$0xff]
      %v2495 = vld [vmem:[%s2193 + $0x51] sm:$0xff]
      %v2496 = vld [vmem:[%s2193 + $0x61] sm:$0xff]
      %v2497 = vld [vmem:[%s2193 + $0x69] sm:$0xff]
      %v2498 = vld [vmem:[%s2193 + $0x79] sm:$0xff]
      %v2499 = vld [vmem:[%s2193 + $0x81] sm:$0xff]
      %v2500 = vld [vmem:[%s2193 + $0x91] sm:$0xff]
      %v2501 = vld [vmem:[%s2193 + $0x99] sm:$0xff]
      %v2502 = vld [vmem:[%s2193 + $0xa9] sm:$0xff]
      %v2503 = vld [vmem:[%s2193 + $0xb1] sm:$0xff]
      %v2504 = vld [vmem:[%s2193 + $0xc1] sm:$0xff]
      %v2505 = vld [vmem:[%s2193 + $0xc9] sm:$0xff]
      %v2506 = vld [vmem:[%s2193 + $0xd9] sm:$0xff]
      %v2507 = vld [vmem:[%s2193 + $0xe1] sm:$0xff]
      %v2508 = vld [vmem:[%s2193 + $0xf1] sm:$0xff]
      %v2509 = vld [vmem:[%s2193 + $0xf9] sm:$0xff]
      %v2510 = vld [vmem:[%s2193 + $0x109] sm:$0xff]
      %v2511 = vld [vmem:[%s2193 + $0x111] sm:$0xff]
      %v2512 = vld [vmem:[%s2193 + $0x121] sm:$0xff]
      %v2513 = vld [vmem:[%s2193 + $0x129] sm:$0xff]
      %v2514 = vld [vmem:[%s2193 + $0x139] sm:$0xff]
      %v2515 = vld [vmem:[%s2193 + $0x141] sm:$0xff]
      %v2516 = vld [vmem:[%s2193 + $0x151] sm:$0xff]
      %v2517 = vld [vmem:[%s2193 + $0x159] sm:$0xff]
      %v2518 = vld [vmem:[%s2193 + $0x169] sm:$0xff]
      %v2519 = vld [vmem:[%s2193 + $0x171] sm:$0xff]
      %v2520 = vpack.c.bf16 %v2489, %v2488
      %v2521 = vpack.c.bf16 %v2491, %v2490
      %v2522 = vpack.c.bf16 %v2493, %v2492
      %v2523 = vpack.c.bf16 %v2495, %v2494
      %v2524 = vpack.c.bf16 %v2497, %v2496
      %v2525 = vpack.c.bf16 %v2499, %v2498
      %v2526 = vpack.c.bf16 %v2501, %v2500
      %v2527 = vpack.c.bf16 %v2503, %v2502
      %v2528 = vpack.c.bf16 %v2505, %v2504
      %v2529 = vpack.c.bf16 %v2507, %v2506
      %v2530 = vpack.c.bf16 %v2509, %v2508
      %v2531 = vpack.c.bf16 %v2511, %v2510
      %v2532 = vpack.c.bf16 %v2513, %v2512
      %v2533 = vpack.c.bf16 %v2515, %v2514
      %v2534 = vpack.c.bf16 %v2517, %v2516
      %v2535 = vpack.c.bf16 %v2519, %v2518
      %s2536 = scalar_lea.vmem %s1, 14
      %v2537 = vld [vmem:[%s2536] sm:$0x3]
      %v2539 = vsel %vm590, %v2520, 0
      %v2542 = vsel %vm590, %v2521, 0
      %v2545 = vsel %vm590, %v2522, 0
      %v2548 = vsel %vm590, %v2523, 0
      %v2551 = vsel %vm590, %v2524, 0
      %v2554 = vsel %vm590, %v2525, 0
      %v2557 = vsel %vm590, %v2526, 0
      %v2560 = vsel %vm590, %v2527, 0
      %v2563 = vsel %vm590, %v2528, 0
      %v2566 = vsel %vm590, %v2529, 0
      %v2569 = vsel %vm590, %v2530, 0
      %v2572 = vsel %vm590, %v2531, 0
      %v2575 = vsel %vm590, %v2532, 0
      %v2578 = vsel %vm590, %v2533, 0
      %v2581 = vsel %vm590, %v2534, 0
      %v2584 = vsel %vm590, %v2535, 0
      %v2587 = vsel %vm639, %v2537, 0
      %2589 = vmatprep.subr.bf16.mxu0 0
      %2590 = vmatpush1.bf16.msra.mxu0 0
      %2591 = vmatprep.subr.bf16.mxu0 0
      %2592 = vmatpush1.bf16.msra.mxu0 0
      %2593 = vmatprep.subr.bf16.mxu0 0
      %2594 = vmatpush1.bf16.msra.mxu0 0
      %2595 = vmatprep.subr.bf16.mxu0 0
      %2596 = vmatpush1.bf16.msra.mxu0 0
      %2597 = vmatprep.subr.bf16.mxu0 0
      %2598 = vmatpush1.bf16.msra.mxu0 0
      %2599 = vmatprep.subr.bf16.mxu0 0
      %2600 = vmatpush1.bf16.msra.mxu0 0
      %2601 = vmatprep.subr.bf16.mxu0 0
      %2602 = vmatpush1.bf16.msra.mxu0 0
      %2603 = vmatprep.subr.bf16.mxu0 0
      %2604 = vmatpush1.bf16.msra.mxu0 %v2587
      %2605 = vmatprep.subr.bf16.mxu0 0
      %2606 = vmatpush2.bf16.msra.mxu0 0
      %2607 = vmatprep.subr.bf16.mxu0 0
      %2608 = vmatpush2.bf16.msra.mxu0 0
      %2609 = vmatprep.subr.bf16.mxu0 0
      %2610 = vmatpush2.bf16.msra.mxu0 0
      %2611 = vmatprep.subr.bf16.mxu0 0
      %2612 = vmatpush2.bf16.msra.mxu0 0
      %2613 = vmatprep.subr.bf16.mxu0 0
      %2614 = vmatpush2.bf16.msra.mxu0 0
      %2615 = vmatprep.subr.bf16.mxu0 0
      %2616 = vmatpush2.bf16.msra.mxu0 0
      %2617 = vmatprep.subr.bf16.mxu0 0
      %2618 = vmatpush2.bf16.msra.mxu0 0
      %2619 = vmatprep.subr.bf16.mxu0 0
      %2620 = vmatpush2.bf16.msra.mxu0 0
      %2621 = vmatprep.mubr.bf16.mxu0 0
      %2622 = vmatmul.mubr.bf16.gmra.mxu0 %v2539
      %v2623 = vpop.f32.mrf.mxu0
      %v2624 = vadd.f32 0.0, %v2623
      %v2625 = vpop.f32.mrf.mxu0
      %v2626 = vpop.f32.mrf.mxu0
      %v2627 = vadd.f32 0.0, %v2626
      %v2628 = vpop.f32.mrf.mxu0
      %2629 = vmatprep.mubr.bf16.mxu0 0
      %2630 = vmatmul.mubr.bf16.gmra.mxu0 %v2542
      %v2631 = vpop.f32.mrf.mxu0
      %v2632 = vadd.f32 0.0, %v2631
      %v2633 = vpop.f32.mrf.mxu0
      %v2634 = vpop.f32.mrf.mxu0
      %v2635 = vadd.f32 0.0, %v2634
      %v2636 = vpop.f32.mrf.mxu0
      %2637 = vmatprep.mubr.bf16.mxu0 0
      %2638 = vmatmul.mubr.bf16.gmra.mxu0 %v2545
      %v2639 = vpop.f32.mrf.mxu0
      %v2640 = vadd.f32 0.0, %v2639
      %v2641 = vpop.f32.mrf.mxu0
      %v2642 = vpop.f32.mrf.mxu0
      %v2643 = vadd.f32 0.0, %v2642
      %v2644 = vpop.f32.mrf.mxu0
      %2645 = vmatprep.mubr.bf16.mxu0 0
      %2646 = vmatmul.mubr.bf16.gmra.mxu0 %v2548
      %v2647 = vpop.f32.mrf.mxu0
      %v2648 = vadd.f32 0.0, %v2647
      %v2649 = vpop.f32.mrf.mxu0
      %v2650 = vpop.f32.mrf.mxu0
      %v2651 = vadd.f32 0.0, %v2650
      %v2652 = vpop.f32.mrf.mxu0
      %2653 = vmatprep.mubr.bf16.mxu0 0
      %2654 = vmatmul.mubr.bf16.gmra.mxu0 %v2551
      %v2655 = vpop.f32.mrf.mxu0
      %v2656 = vadd.f32 0.0, %v2655
      %v2657 = vpop.f32.mrf.mxu0
      %v2658 = vpop.f32.mrf.mxu0
      %v2659 = vadd.f32 0.0, %v2658
      %v2660 = vpop.f32.mrf.mxu0
      %2661 = vmatprep.mubr.bf16.mxu0 0
      %2662 = vmatmul.mubr.bf16.gmra.mxu0 %v2554
      %v2663 = vpop.f32.mrf.mxu0
      %v2664 = vadd.f32 0.0, %v2663
      %v2665 = vpop.f32.mrf.mxu0
      %v2666 = vpop.f32.mrf.mxu0
      %v2667 = vadd.f32 0.0, %v2666
      %v2668 = vpop.f32.mrf.mxu0
      %2669 = vmatprep.mubr.bf16.mxu0 0
      %2670 = vmatmul.mubr.bf16.gmra.mxu0 %v2557
      %v2671 = vpop.f32.mrf.mxu0
      %v2672 = vadd.f32 0.0, %v2671
      %v2673 = vpop.f32.mrf.mxu0
      %v2674 = vpop.f32.mrf.mxu0
      %v2675 = vadd.f32 0.0, %v2674
      %v2676 = vpop.f32.mrf.mxu0
      %2677 = vmatprep.mubr.bf16.mxu0 0
      %2678 = vmatmul.mubr.bf16.gmra.mxu0 %v2560
      %v2679 = vpop.f32.mrf.mxu0
      %v2680 = vadd.f32 0.0, %v2679
      %v2681 = vpop.f32.mrf.mxu0
      %v2682 = vpop.f32.mrf.mxu0
      %v2683 = vadd.f32 0.0, %v2682
      %v2684 = vpop.f32.mrf.mxu0
      %2685 = vmatprep.mubr.bf16.mxu0 0
      %2686 = vmatmul.mubr.bf16.gmra.mxu0 %v2563
      %v2687 = vpop.f32.mrf.mxu0
      %v2688 = vadd.f32 0.0, %v2687
      %v2689 = vpop.f32.mrf.mxu0
      %v2690 = vpop.f32.mrf.mxu0
      %v2691 = vadd.f32 0.0, %v2690
      %v2692 = vpop.f32.mrf.mxu0
      %2693 = vmatprep.mubr.bf16.mxu0 0
      %2694 = vmatmul.mubr.bf16.gmra.mxu0 %v2566
      %v2695 = vpop.f32.mrf.mxu0
      %v2696 = vadd.f32 0.0, %v2695
      %v2697 = vpop.f32.mrf.mxu0
      %v2698 = vpop.f32.mrf.mxu0
      %v2699 = vadd.f32 0.0, %v2698
      %v2700 = vpop.f32.mrf.mxu0
      %2701 = vmatprep.mubr.bf16.mxu0 0
      %2702 = vmatmul.mubr.bf16.gmra.mxu0 %v2569
      %v2703 = vpop.f32.mrf.mxu0
      %v2704 = vadd.f32 0.0, %v2703
      %v2705 = vpop.f32.mrf.mxu0
      %v2706 = vpop.f32.mrf.mxu0
      %v2707 = vadd.f32 0.0, %v2706
      %v2708 = vpop.f32.mrf.mxu0
      %2709 = vmatprep.mubr.bf16.mxu0 0
      %2710 = vmatmul.mubr.bf16.gmra.mxu0 %v2572
      %v2711 = vpop.f32.mrf.mxu0
      %v2712 = vadd.f32 0.0, %v2711
      %v2713 = vpop.f32.mrf.mxu0
      %v2714 = vpop.f32.mrf.mxu0
      %v2715 = vadd.f32 0.0, %v2714
      %v2716 = vpop.f32.mrf.mxu0
      %2717 = vmatprep.mubr.bf16.mxu0 0
      %2718 = vmatmul.mubr.bf16.gmra.mxu0 %v2575
      %v2719 = vpop.f32.mrf.mxu0
      %v2720 = vadd.f32 0.0, %v2719
      %v2721 = vpop.f32.mrf.mxu0
      %v2722 = vpop.f32.mrf.mxu0
      %v2723 = vadd.f32 0.0, %v2722
      %v2724 = vpop.f32.mrf.mxu0
      %2725 = vmatprep.mubr.bf16.mxu0 0
      %2726 = vmatmul.mubr.bf16.gmra.mxu0 %v2578
      %v2727 = vpop.f32.mrf.mxu0
      %v2728 = vadd.f32 0.0, %v2727
      %v2729 = vpop.f32.mrf.mxu0
      %v2730 = vpop.f32.mrf.mxu0
      %v2731 = vadd.f32 0.0, %v2730
      %v2732 = vpop.f32.mrf.mxu0
      %2733 = vmatprep.mubr.bf16.mxu0 0
      %2734 = vmatmul.mubr.bf16.gmra.mxu0 %v2581
      %v2735 = vpop.f32.mrf.mxu0
      %v2736 = vadd.f32 0.0, %v2735
      %v2737 = vpop.f32.mrf.mxu0
      %v2738 = vpop.f32.mrf.mxu0
      %v2739 = vadd.f32 0.0, %v2738
      %v2740 = vpop.f32.mrf.mxu0
      %2741 = vmatprep.mubr.bf16.mxu0 0
      %2742 = vmatmul.mubr.bf16.gmra.mxu0 %v2584
      %v2743 = vpop.f32.mrf.mxu0
      %v2744 = vadd.f32 0.0, %v2743
      %v2745 = vpop.f32.mrf.mxu0
      %v2746 = vpop.f32.mrf.mxu0
      %v2747 = vadd.f32 0.0, %v2746
      %v2748 = vpop.f32.mrf.mxu0
      %2749 = vdwg.mxu0
      %v2750 = vadd.f32 %v2456, %v2624
      %v2751 = vadd.f32 %v2457, %v2627
      %v2752 = vadd.f32 %v2458, %v2632
      %v2753 = vadd.f32 %v2459, %v2635
      %v2754 = vadd.f32 %v2460, %v2640
      %v2755 = vadd.f32 %v2461, %v2643
      %v2756 = vadd.f32 %v2462, %v2648
      %v2757 = vadd.f32 %v2463, %v2651
      %v2758 = vadd.f32 %v2464, %v2656
      %v2759 = vadd.f32 %v2465, %v2659
      %v2760 = vadd.f32 %v2466, %v2664
      %v2761 = vadd.f32 %v2467, %v2667
      %v2762 = vadd.f32 %v2468, %v2672
      %v2763 = vadd.f32 %v2469, %v2675
      %v2764 = vadd.f32 %v2470, %v2680
      %v2765 = vadd.f32 %v2471, %v2683
      %v2766 = vadd.f32 %v2472, %v2688
      %v2767 = vadd.f32 %v2473, %v2691
      %v2768 = vadd.f32 %v2474, %v2696
      %v2769 = vadd.f32 %v2475, %v2699
      %v2770 = vadd.f32 %v2476, %v2704
      %v2771 = vadd.f32 %v2477, %v2707
      %v2772 = vadd.f32 %v2478, %v2712
      %v2773 = vadd.f32 %v2479, %v2715
      %v2774 = vadd.f32 %v2480, %v2720
      %v2775 = vadd.f32 %v2481, %v2723
      %v2776 = vadd.f32 %v2482, %v2728
      %v2777 = vadd.f32 %v2483, %v2731
      %v2778 = vadd.f32 %v2484, %v2736
      %v2779 = vadd.f32 %v2485, %v2739
      %v2780 = vadd.f32 %v2486, %v2744
      %v2781 = vadd.f32 %v2487, %v2747
      %v2782 = vld [vmem:[%s2193 + $0x2] sm:$0xff]
      %v2783 = vld [vmem:[%s2193 + $0xa] sm:$0xff]
      %v2784 = vld [vmem:[%s2193 + $0x1a] sm:$0xff]
      %v2785 = vld [vmem:[%s2193 + $0x22] sm:$0xff]
      %v2786 = vld [vmem:[%s2193 + $0x32] sm:$0xff]
      %v2787 = vld [vmem:[%s2193 + $0x3a] sm:$0xff]
      %v2788 = vld [vmem:[%s2193 + $0x4a] sm:$0xff]
      %v2789 = vld [vmem:[%s2193 + $0x52] sm:$0xff]
      %v2790 = vld [vmem:[%s2193 + $0x62] sm:$0xff]
      %v2791 = vld [vmem:[%s2193 + $0x6a] sm:$0xff]
      %v2792 = vld [vmem:[%s2193 + $0x7a] sm:$0xff]
      %v2793 = vld [vmem:[%s2193 + $0x82] sm:$0xff]
      %v2794 = vld [vmem:[%s2193 + $0x92] sm:$0xff]
      %v2795 = vld [vmem:[%s2193 + $0x9a] sm:$0xff]
      %v2796 = vld [vmem:[%s2193 + $0xaa] sm:$0xff]
      %v2797 = vld [vmem:[%s2193 + $0xb2] sm:$0xff]
      %v2798 = vld [vmem:[%s2193 + $0xc2] sm:$0xff]
      %v2799 = vld [vmem:[%s2193 + $0xca] sm:$0xff]
      %v2800 = vld [vmem:[%s2193 + $0xda] sm:$0xff]
      %v2801 = vld [vmem:[%s2193 + $0xe2] sm:$0xff]
      %v2802 = vld [vmem:[%s2193 + $0xf2] sm:$0xff]
      %v2803 = vld [vmem:[%s2193 + $0xfa] sm:$0xff]
      %v2804 = vld [vmem:[%s2193 + $0x10a] sm:$0xff]
      %v2805 = vld [vmem:[%s2193 + $0x112] sm:$0xff]
      %v2806 = vld [vmem:[%s2193 + $0x122] sm:$0xff]
      %v2807 = vld [vmem:[%s2193 + $0x12a] sm:$0xff]
      %v2808 = vld [vmem:[%s2193 + $0x13a] sm:$0xff]
      %v2809 = vld [vmem:[%s2193 + $0x142] sm:$0xff]
      %v2810 = vld [vmem:[%s2193 + $0x152] sm:$0xff]
      %v2811 = vld [vmem:[%s2193 + $0x15a] sm:$0xff]
      %v2812 = vld [vmem:[%s2193 + $0x16a] sm:$0xff]
      %v2813 = vld [vmem:[%s2193 + $0x172] sm:$0xff]
      %v2814 = vpack.c.bf16 %v2783, %v2782
      %v2815 = vpack.c.bf16 %v2785, %v2784
      %v2816 = vpack.c.bf16 %v2787, %v2786
      %v2817 = vpack.c.bf16 %v2789, %v2788
      %v2818 = vpack.c.bf16 %v2791, %v2790
      %v2819 = vpack.c.bf16 %v2793, %v2792
      %v2820 = vpack.c.bf16 %v2795, %v2794
      %v2821 = vpack.c.bf16 %v2797, %v2796
      %v2822 = vpack.c.bf16 %v2799, %v2798
      %v2823 = vpack.c.bf16 %v2801, %v2800
      %v2824 = vpack.c.bf16 %v2803, %v2802
      %v2825 = vpack.c.bf16 %v2805, %v2804
      %v2826 = vpack.c.bf16 %v2807, %v2806
      %v2827 = vpack.c.bf16 %v2809, %v2808
      %v2828 = vpack.c.bf16 %v2811, %v2810
      %v2829 = vpack.c.bf16 %v2813, %v2812
      %s2830 = scalar_lea.vmem %s1, 16
      %v2831 = vld [vmem:[%s2830] sm:$0x3]
      %v2833 = vsel %vm590, %v2814, 0
      %v2836 = vsel %vm590, %v2815, 0
      %v2839 = vsel %vm590, %v2816, 0
      %v2842 = vsel %vm590, %v2817, 0
      %v2845 = vsel %vm590, %v2818, 0
      %v2848 = vsel %vm590, %v2819, 0
      %v2851 = vsel %vm590, %v2820, 0
      %v2854 = vsel %vm590, %v2821, 0
      %v2857 = vsel %vm590, %v2822, 0
      %v2860 = vsel %vm590, %v2823, 0
      %v2863 = vsel %vm590, %v2824, 0
      %v2866 = vsel %vm590, %v2825, 0
      %v2869 = vsel %vm590, %v2826, 0
      %v2872 = vsel %vm590, %v2827, 0
      %v2875 = vsel %vm590, %v2828, 0
      %v2878 = vsel %vm590, %v2829, 0
      %v2881 = vsel %vm639, %v2831, 0
      %2883 = vmatprep.subr.bf16.mxu0 0
      %2884 = vmatpush1.bf16.msra.mxu0 0
      %2885 = vmatprep.subr.bf16.mxu0 0
      %2886 = vmatpush1.bf16.msra.mxu0 0
      %2887 = vmatprep.subr.bf16.mxu0 0
      %2888 = vmatpush1.bf16.msra.mxu0 0
      %2889 = vmatprep.subr.bf16.mxu0 0
      %2890 = vmatpush1.bf16.msra.mxu0 0
      %2891 = vmatprep.subr.bf16.mxu0 0
      %2892 = vmatpush1.bf16.msra.mxu0 0
      %2893 = vmatprep.subr.bf16.mxu0 0
      %2894 = vmatpush1.bf16.msra.mxu0 0
      %2895 = vmatprep.subr.bf16.mxu0 0
      %2896 = vmatpush1.bf16.msra.mxu0 0
      %2897 = vmatprep.subr.bf16.mxu0 0
      %2898 = vmatpush1.bf16.msra.mxu0 %v2881
      %2899 = vmatprep.subr.bf16.mxu0 0
      %2900 = vmatpush2.bf16.msra.mxu0 0
      %2901 = vmatprep.subr.bf16.mxu0 0
      %2902 = vmatpush2.bf16.msra.mxu0 0
      %2903 = vmatprep.subr.bf16.mxu0 0
      %2904 = vmatpush2.bf16.msra.mxu0 0
      %2905 = vmatprep.subr.bf16.mxu0 0
      %2906 = vmatpush2.bf16.msra.mxu0 0
      %2907 = vmatprep.subr.bf16.mxu0 0
      %2908 = vmatpush2.bf16.msra.mxu0 0
      %2909 = vmatprep.subr.bf16.mxu0 0
      %2910 = vmatpush2.bf16.msra.mxu0 0
      %2911 = vmatprep.subr.bf16.mxu0 0
      %2912 = vmatpush2.bf16.msra.mxu0 0
      %2913 = vmatprep.subr.bf16.mxu0 0
      %2914 = vmatpush2.bf16.msra.mxu0 0
      %2915 = vmatprep.mubr.bf16.mxu0 0
      %2916 = vmatmul.mubr.bf16.gmra.mxu0 %v2833
      %v2917 = vpop.f32.mrf.mxu0
      %v2918 = vadd.f32 0.0, %v2917
      %v2919 = vpop.f32.mrf.mxu0
      %v2920 = vpop.f32.mrf.mxu0
      %v2921 = vadd.f32 0.0, %v2920
      %v2922 = vpop.f32.mrf.mxu0
      %2923 = vmatprep.mubr.bf16.mxu0 0
      %2924 = vmatmul.mubr.bf16.gmra.mxu0 %v2836
      %v2925 = vpop.f32.mrf.mxu0
      %v2926 = vadd.f32 0.0, %v2925
      %v2927 = vpop.f32.mrf.mxu0
      %v2928 = vpop.f32.mrf.mxu0
      %v2929 = vadd.f32 0.0, %v2928
      %v2930 = vpop.f32.mrf.mxu0
      %2931 = vmatprep.mubr.bf16.mxu0 0
      %2932 = vmatmul.mubr.bf16.gmra.mxu0 %v2839
      %v2933 = vpop.f32.mrf.mxu0
      %v2934 = vadd.f32 0.0, %v2933
      %v2935 = vpop.f32.mrf.mxu0
      %v2936 = vpop.f32.mrf.mxu0
      %v2937 = vadd.f32 0.0, %v2936
      %v2938 = vpop.f32.mrf.mxu0
      %2939 = vmatprep.mubr.bf16.mxu0 0
      %2940 = vmatmul.mubr.bf16.gmra.mxu0 %v2842
      %v2941 = vpop.f32.mrf.mxu0
      %v2942 = vadd.f32 0.0, %v2941
      %v2943 = vpop.f32.mrf.mxu0
      %v2944 = vpop.f32.mrf.mxu0
      %v2945 = vadd.f32 0.0, %v2944
      %v2946 = vpop.f32.mrf.mxu0
      %2947 = vmatprep.mubr.bf16.mxu0 0
      %2948 = vmatmul.mubr.bf16.gmra.mxu0 %v2845
      %v2949 = vpop.f32.mrf.mxu0
      %v2950 = vadd.f32 0.0, %v2949
      %v2951 = vpop.f32.mrf.mxu0
      %v2952 = vpop.f32.mrf.mxu0
      %v2953 = vadd.f32 0.0, %v2952
      %v2954 = vpop.f32.mrf.mxu0
      %2955 = vmatprep.mubr.bf16.mxu0 0
      %2956 = vmatmul.mubr.bf16.gmra.mxu0 %v2848
      %v2957 = vpop.f32.mrf.mxu0
      %v2958 = vadd.f32 0.0, %v2957
      %v2959 = vpop.f32.mrf.mxu0
      %v2960 = vpop.f32.mrf.mxu0
      %v2961 = vadd.f32 0.0, %v2960
      %v2962 = vpop.f32.mrf.mxu0
      %2963 = vmatprep.mubr.bf16.mxu0 0
      %2964 = vmatmul.mubr.bf16.gmra.mxu0 %v2851
      %v2965 = vpop.f32.mrf.mxu0
      %v2966 = vadd.f32 0.0, %v2965
      %v2967 = vpop.f32.mrf.mxu0
      %v2968 = vpop.f32.mrf.mxu0
      %v2969 = vadd.f32 0.0, %v2968
      %v2970 = vpop.f32.mrf.mxu0
      %2971 = vmatprep.mubr.bf16.mxu0 0
      %2972 = vmatmul.mubr.bf16.gmra.mxu0 %v2854
      %v2973 = vpop.f32.mrf.mxu0
      %v2974 = vadd.f32 0.0, %v2973
      %v2975 = vpop.f32.mrf.mxu0
      %v2976 = vpop.f32.mrf.mxu0
      %v2977 = vadd.f32 0.0, %v2976
      %v2978 = vpop.f32.mrf.mxu0
      %2979 = vmatprep.mubr.bf16.mxu0 0
      %2980 = vmatmul.mubr.bf16.gmra.mxu0 %v2857
      %v2981 = vpop.f32.mrf.mxu0
      %v2982 = vadd.f32 0.0, %v2981
      %v2983 = vpop.f32.mrf.mxu0
      %v2984 = vpop.f32.mrf.mxu0
      %v2985 = vadd.f32 0.0, %v2984
      %v2986 = vpop.f32.mrf.mxu0
      %2987 = vmatprep.mubr.bf16.mxu0 0
      %2988 = vmatmul.mubr.bf16.gmra.mxu0 %v2860
      %v2989 = vpop.f32.mrf.mxu0
      %v2990 = vadd.f32 0.0, %v2989
      %v2991 = vpop.f32.mrf.mxu0
      %v2992 = vpop.f32.mrf.mxu0
      %v2993 = vadd.f32 0.0, %v2992
      %v2994 = vpop.f32.mrf.mxu0
      %2995 = vmatprep.mubr.bf16.mxu0 0
      %2996 = vmatmul.mubr.bf16.gmra.mxu0 %v2863
      %v2997 = vpop.f32.mrf.mxu0
      %v2998 = vadd.f32 0.0, %v2997
      %v2999 = vpop.f32.mrf.mxu0
      %v3000 = vpop.f32.mrf.mxu0
      %v3001 = vadd.f32 0.0, %v3000
      %v3002 = vpop.f32.mrf.mxu0
      %3003 = vmatprep.mubr.bf16.mxu0 0
      %3004 = vmatmul.mubr.bf16.gmra.mxu0 %v2866
      %v3005 = vpop.f32.mrf.mxu0
      %v3006 = vadd.f32 0.0, %v3005
      %v3007 = vpop.f32.mrf.mxu0
      %v3008 = vpop.f32.mrf.mxu0
      %v3009 = vadd.f32 0.0, %v3008
      %v3010 = vpop.f32.mrf.mxu0
      %3011 = vmatprep.mubr.bf16.mxu0 0
      %3012 = vmatmul.mubr.bf16.gmra.mxu0 %v2869
      %v3013 = vpop.f32.mrf.mxu0
      %v3014 = vadd.f32 0.0, %v3013
      %v3015 = vpop.f32.mrf.mxu0
      %v3016 = vpop.f32.mrf.mxu0
      %v3017 = vadd.f32 0.0, %v3016
      %v3018 = vpop.f32.mrf.mxu0
      %3019 = vmatprep.mubr.bf16.mxu0 0
      %3020 = vmatmul.mubr.bf16.gmra.mxu0 %v2872
      %v3021 = vpop.f32.mrf.mxu0
      %v3022 = vadd.f32 0.0, %v3021
      %v3023 = vpop.f32.mrf.mxu0
      %v3024 = vpop.f32.mrf.mxu0
      %v3025 = vadd.f32 0.0, %v3024
      %v3026 = vpop.f32.mrf.mxu0
      %3027 = vmatprep.mubr.bf16.mxu0 0
      %3028 = vmatmul.mubr.bf16.gmra.mxu0 %v2875
      %v3029 = vpop.f32.mrf.mxu0
      %v3030 = vadd.f32 0.0, %v3029
      %v3031 = vpop.f32.mrf.mxu0
      %v3032 = vpop.f32.mrf.mxu0
      %v3033 = vadd.f32 0.0, %v3032
      %v3034 = vpop.f32.mrf.mxu0
      %3035 = vmatprep.mubr.bf16.mxu0 0
      %3036 = vmatmul.mubr.bf16.gmra.mxu0 %v2878
      %v3037 = vpop.f32.mrf.mxu0
      %v3038 = vadd.f32 0.0, %v3037
      %v3039 = vpop.f32.mrf.mxu0
      %v3040 = vpop.f32.mrf.mxu0
      %v3041 = vadd.f32 0.0, %v3040
      %v3042 = vpop.f32.mrf.mxu0
      %3043 = vdwg.mxu0
      %v3044 = vadd.f32 %v2750, %v2918
      %v3045 = vadd.f32 %v2751, %v2921
      %v3046 = vadd.f32 %v2752, %v2926
      %v3047 = vadd.f32 %v2753, %v2929
      %v3048 = vadd.f32 %v2754, %v2934
      %v3049 = vadd.f32 %v2755, %v2937
      %v3050 = vadd.f32 %v2756, %v2942
      %v3051 = vadd.f32 %v2757, %v2945
      %v3052 = vadd.f32 %v2758, %v2950
      %v3053 = vadd.f32 %v2759, %v2953
      %v3054 = vadd.f32 %v2760, %v2958
      %v3055 = vadd.f32 %v2761, %v2961
      %v3056 = vadd.f32 %v2762, %v2966
      %v3057 = vadd.f32 %v2763, %v2969
      %v3058 = vadd.f32 %v2764, %v2974
      %v3059 = vadd.f32 %v2765, %v2977
      %v3060 = vadd.f32 %v2766, %v2982
      %v3061 = vadd.f32 %v2767, %v2985
      %v3062 = vadd.f32 %v2768, %v2990
      %v3063 = vadd.f32 %v2769, %v2993
      %v3064 = vadd.f32 %v2770, %v2998
      %v3065 = vadd.f32 %v2771, %v3001
      %v3066 = vadd.f32 %v2772, %v3006
      %v3067 = vadd.f32 %v2773, %v3009
      %v3068 = vadd.f32 %v2774, %v3014
      %v3069 = vadd.f32 %v2775, %v3017
      %v3070 = vadd.f32 %v2776, %v3022
      %v3071 = vadd.f32 %v2777, %v3025
      %v3072 = vadd.f32 %v2778, %v3030
      %v3073 = vadd.f32 %v2779, %v3033
      %v3074 = vadd.f32 %v2780, %v3038
      %v3075 = vadd.f32 %v2781, %v3041
      %v3076 = vld [vmem:[%s2] sm:$0x1]
      %v3078 = vlaneseq
      %v3079 = vshrl.u32 %v3078, 7
      %v3080 = vsub.s32 0, %v3079
      %v3081 = vrot.slane %v3076, %v3080
      %v3083 = vadd.f32 %v3044, %v3081
      %v3084 = vadd.f32 %v3045, %v3081
      %v3085 = vadd.f32 %v3046, %v3081
      %v3086 = vadd.f32 %v3047, %v3081
      %v3087 = vadd.f32 %v3048, %v3081
      %v3088 = vadd.f32 %v3049, %v3081
      %v3089 = vadd.f32 %v3050, %v3081
      %v3090 = vadd.f32 %v3051, %v3081
      %v3091 = vadd.f32 %v3052, %v3081
      %v3092 = vadd.f32 %v3053, %v3081
      %v3093 = vadd.f32 %v3054, %v3081
      %v3094 = vadd.f32 %v3055, %v3081
      %v3095 = vadd.f32 %v3056, %v3081
      %v3096 = vadd.f32 %v3057, %v3081
      %v3097 = vadd.f32 %v3058, %v3081
      %v3098 = vadd.f32 %v3059, %v3081
      %v3099 = vadd.f32 %v3060, %v3081
      %v3100 = vadd.f32 %v3061, %v3081
      %v3101 = vadd.f32 %v3062, %v3081
      %v3102 = vadd.f32 %v3063, %v3081
      %v3103 = vadd.f32 %v3064, %v3081
      %v3104 = vadd.f32 %v3065, %v3081
      %v3105 = vadd.f32 %v3066, %v3081
      %v3106 = vadd.f32 %v3067, %v3081
      %v3107 = vadd.f32 %v3068, %v3081
      %v3108 = vadd.f32 %v3069, %v3081
      %v3109 = vadd.f32 %v3070, %v3081
      %v3110 = vadd.f32 %v3071, %v3081
      %v3111 = vadd.f32 %v3072, %v3081
      %v3112 = vadd.f32 %v3073, %v3081
      %v3113 = vadd.f32 %v3074, %v3081
      %v3114 = vadd.f32 %v3075, %v3081
      %v3115 = vmax.f32 %v3083, 0.0
      %v3116 = vmax.f32 %v3084, 0.0
      %v3117 = vmax.f32 %v3085, 0.0
      %v3118 = vmax.f32 %v3086, 0.0
      %v3119 = vmax.f32 %v3087, 0.0
      %v3120 = vmax.f32 %v3088, 0.0
      %v3121 = vmax.f32 %v3089, 0.0
      %v3122 = vmax.f32 %v3090, 0.0
      %v3123 = vmax.f32 %v3091, 0.0
      %v3124 = vmax.f32 %v3092, 0.0
      %v3125 = vmax.f32 %v3093, 0.0
      %v3126 = vmax.f32 %v3094, 0.0
      %v3127 = vmax.f32 %v3095, 0.0
      %v3128 = vmax.f32 %v3096, 0.0
      %v3129 = vmax.f32 %v3097, 0.0
      %v3130 = vmax.f32 %v3098, 0.0
      %v3131 = vmax.f32 %v3099, 0.0
      %v3132 = vmax.f32 %v3100, 0.0
      %v3133 = vmax.f32 %v3101, 0.0
      %v3134 = vmax.f32 %v3102, 0.0
      %v3135 = vmax.f32 %v3103, 0.0
      %v3136 = vmax.f32 %v3104, 0.0
      %v3137 = vmax.f32 %v3105, 0.0
      %v3138 = vmax.f32 %v3106, 0.0
      %v3139 = vmax.f32 %v3107, 0.0
      %v3140 = vmax.f32 %v3108, 0.0
      %v3141 = vmax.f32 %v3109, 0.0
      %v3142 = vmax.f32 %v3110, 0.0
      %v3143 = vmax.f32 %v3111, 0.0
      %v3144 = vmax.f32 %v3112, 0.0
      %v3145 = vmax.f32 %v3113, 0.0
      %v3146 = vmax.f32 %v3114, 0.0
      %s3147 = scalar_lea.vmem [#allocation2], 32
      %3148 = vst.msk [vmem:[%s3147 + $0x8] sm:$0xff] %vm388, %v3115
      %3149 = vst.msk [vmem:[%s3147 + $0x10] sm:$0xff] %vm388, %v3116
      %3150 = vst.msk [vmem:[%s3147 + $0x28] sm:$0xff] %vm388, %v3117
      %3151 = vst.msk [vmem:[%s3147 + $0x30] sm:$0xff] %vm388, %v3118
      %3152 = vst.msk [vmem:[%s3147 + $0x48] sm:$0xff] %vm388, %v3119
      %3153 = vst.msk [vmem:[%s3147 + $0x50] sm:$0xff] %vm388, %v3120
      %3154 = vst.msk [vmem:[%s3147 + $0x68] sm:$0xff] %vm388, %v3121
      %3155 = vst.msk [vmem:[%s3147 + $0x70] sm:$0xff] %vm388, %v3122
      %3156 = vst.msk [vmem:[%s3147 + $0x88] sm:$0xff] %vm388, %v3123
      %3157 = vst.msk [vmem:[%s3147 + $0x90] sm:$0xff] %vm388, %v3124
      %3158 = vst.msk [vmem:[%s3147 + $0xa8] sm:$0xff] %vm388, %v3125
      %3159 = vst.msk [vmem:[%s3147 + $0xb0] sm:$0xff] %vm388, %v3126
      %3160 = vst.msk [vmem:[%s3147 + $0xc8] sm:$0xff] %vm388, %v3127
      %3161 = vst.msk [vmem:[%s3147 + $0xd0] sm:$0xff] %vm388, %v3128
      %3162 = vst.msk [vmem:[%s3147 + $0xe8] sm:$0xff] %vm388, %v3129
      %3163 = vst.msk [vmem:[%s3147 + $0xf0] sm:$0xff] %vm388, %v3130
      %3164 = vst.msk [vmem:[%s3147 + $0x108] sm:$0xff] %vm388, %v3131
      %3165 = vst.msk [vmem:[%s3147 + $0x110] sm:$0xff] %vm388, %v3132
      %3166 = vst.msk [vmem:[%s3147 + $0x128] sm:$0xff] %vm388, %v3133
      %3167 = vst.msk [vmem:[%s3147 + $0x130] sm:$0xff] %vm388, %v3134
      %3168 = vst.msk [vmem:[%s3147 + $0x148] sm:$0xff] %vm388, %v3135
      %3169 = vst.msk [vmem:[%s3147 + $0x150] sm:$0xff] %vm388, %v3136
      %3170 = vst.msk [vmem:[%s3147 + $0x168] sm:$0xff] %vm388, %v3137
      %3171 = vst.msk [vmem:[%s3147 + $0x170] sm:$0xff] %vm388, %v3138
      %3172 = vst.msk [vmem:[%s3147 + $0x188] sm:$0xff] %vm388, %v3139
      %3173 = vst.msk [vmem:[%s3147 + $0x190] sm:$0xff] %vm388, %v3140
      %3174 = vst.msk [vmem:[%s3147 + $0x1a8] sm:$0xff] %vm388, %v3141
      %3175 = vst.msk [vmem:[%s3147 + $0x1b0] sm:$0xff] %vm388, %v3142
      %3176 = vst.msk [vmem:[%s3147 + $0x1c8] sm:$0xff] %vm388, %v3143
      %3177 = vst.msk [vmem:[%s3147 + $0x1d0] sm:$0xff] %vm388, %v3144
      %3178 = vst.msk [vmem:[%s3147 + $0x1e8] sm:$0xff] %vm388, %v3145
      %3179 = vst.msk [vmem:[%s3147 + $0x1f0] sm:$0xff] %vm388, %v3146
      %v3180 = vld [vmem:[#allocation2 + $0x7] sm:$0xff]
      %v3181 = vld [vmem:[#allocation2 + $0xf] sm:$0xff]
      %v3182 = vld [vmem:[#allocation2 + $0x27] sm:$0xff]
      %v3183 = vld [vmem:[#allocation2 + $0x2f] sm:$0xff]
      %v3184 = vld [vmem:[#allocation2 + $0x47] sm:$0xff]
      %v3185 = vld [vmem:[#allocation2 + $0x4f] sm:$0xff]
      %v3186 = vld [vmem:[#allocation2 + $0x67] sm:$0xff]
      %v3187 = vld [vmem:[#allocation2 + $0x6f] sm:$0xff]
      %v3188 = vld [vmem:[#allocation2 + $0x87] sm:$0xff]
      %v3189 = vld [vmem:[#allocation2 + $0x8f] sm:$0xff]
      %v3190 = vld [vmem:[#allocation2 + $0xa7] sm:$0xff]
      %v3191 = vld [vmem:[#allocation2 + $0xaf] sm:$0xff]
      %v3192 = vld [vmem:[#allocation2 + $0xc7] sm:$0xff]
      %v3193 = vld [vmem:[#allocation2 + $0xcf] sm:$0xff]
      %v3194 = vld [vmem:[#allocation2 + $0xe7] sm:$0xff]
      %v3195 = vld [vmem:[#allocation2 + $0xef] sm:$0xff]
      %v3196 = vld [vmem:[#allocation2 + $0x107] sm:$0xff]
      %v3197 = vld [vmem:[#allocation2 + $0x10f] sm:$0xff]
      %v3198 = vld [vmem:[#allocation2 + $0x127] sm:$0xff]
      %v3199 = vld [vmem:[#allocation2 + $0x12f] sm:$0xff]
      %v3200 = vld [vmem:[#allocation2 + $0x147] sm:$0xff]
      %v3201 = vld [vmem:[#allocation2 + $0x14f] sm:$0xff]
      %v3202 = vld [vmem:[#allocation2 + $0x167] sm:$0xff]
      %v3203 = vld [vmem:[#allocation2 + $0x16f] sm:$0xff]
      %v3204 = vld [vmem:[#allocation2 + $0x187] sm:$0xff]
      %v3205 = vld [vmem:[#allocation2 + $0x18f] sm:$0xff]
      %v3206 = vld [vmem:[#allocation2 + $0x1a7] sm:$0xff]
      %v3207 = vld [vmem:[#allocation2 + $0x1af] sm:$0xff]
      %v3208 = vld [vmem:[#allocation2 + $0x1c7] sm:$0xff]
      %v3209 = vld [vmem:[#allocation2 + $0x1cf] sm:$0xff]
      %v3210 = vld [vmem:[#allocation2 + $0x1e7] sm:$0xff]
      %v3211 = vld [vmem:[#allocation2 + $0x1ef] sm:$0xff]
      %v3212 = vpack.c.bf16 %v3181, %v3180
      %v3213 = vpack.c.bf16 %v3183, %v3182
      %v3214 = vpack.c.bf16 %v3185, %v3184
      %v3215 = vpack.c.bf16 %v3187, %v3186
      %v3216 = vpack.c.bf16 %v3189, %v3188
      %v3217 = vpack.c.bf16 %v3191, %v3190
      %v3218 = vpack.c.bf16 %v3193, %v3192
      %v3219 = vpack.c.bf16 %v3195, %v3194
      %v3220 = vpack.c.bf16 %v3197, %v3196
      %v3221 = vpack.c.bf16 %v3199, %v3198
      %v3222 = vpack.c.bf16 %v3201, %v3200
      %v3223 = vpack.c.bf16 %v3203, %v3202
      %v3224 = vpack.c.bf16 %v3205, %v3204
      %v3225 = vpack.c.bf16 %v3207, %v3206
      %v3226 = vpack.c.bf16 %v3209, %v3208
      %v3227 = vpack.c.bf16 %v3211, %v3210
      %v3228 = vld [vmem:[%s3] sm:$0xf]
      %v3229 = vld [vmem:[%s3 + $0x4] sm:$0xf]
      %v3230 = vld [vmem:[%s3 + $0x8] sm:$0xf]
      %v3231 = vld [vmem:[%s3 + $0xc] sm:$0xf]
      %v3232 = vld [vmem:[%s3 + $0x10] sm:$0xf]
      %v3233 = vld [vmem:[%s3 + $0x14] sm:$0xf]
      %v3234 = vld [vmem:[%s3 + $0x18] sm:$0xf]
      %v3235 = vld [vmem:[%s3 + $0x1c] sm:$0xf]
      %v3236 = vld [vmem:[#allocation2 + $0x8] sm:$0xff]
      %v3237 = vld [vmem:[#allocation2 + $0x10] sm:$0xff]
      %v3238 = vld [vmem:[#allocation2 + $0x28] sm:$0xff]
      %v3239 = vld [vmem:[#allocation2 + $0x30] sm:$0xff]
      %v3240 = vld [vmem:[#allocation2 + $0x48] sm:$0xff]
      %v3241 = vld [vmem:[#allocation2 + $0x50] sm:$0xff]
      %v3242 = vld [vmem:[#allocation2 + $0x68] sm:$0xff]
      %v3243 = vld [vmem:[#allocation2 + $0x70] sm:$0xff]
      %v3244 = vld [vmem:[#allocation2 + $0x88] sm:$0xff]
      %v3245 = vld [vmem:[#allocation2 + $0x90] sm:$0xff]
      %v3246 = vld [vmem:[#allocation2 + $0xa8] sm:$0xff]
      %v3247 = vld [vmem:[#allocation2 + $0xb0] sm:$0xff]
      %v3248 = vld [vmem:[#allocation2 + $0xc8] sm:$0xff]
      %v3249 = vld [vmem:[#allocation2 + $0xd0] sm:$0xff]
      %v3250 = vld [vmem:[#allocation2 + $0xe8] sm:$0xff]
      %v3251 = vld [vmem:[#allocation2 + $0xf0] sm:$0xff]
      %v3252 = vld [vmem:[#allocation2 + $0x108] sm:$0xff]
      %v3253 = vld [vmem:[#allocation2 + $0x110] sm:$0xff]
      %v3254 = vld [vmem:[#allocation2 + $0x128] sm:$0xff]
      %v3255 = vld [vmem:[#allocation2 + $0x130] sm:$0xff]
      %v3256 = vld [vmem:[#allocation2 + $0x148] sm:$0xff]
      %v3257 = vld [vmem:[#allocation2 + $0x150] sm:$0xff]
      %v3258 = vld [vmem:[#allocation2 + $0x168] sm:$0xff]
      %v3259 = vld [vmem:[#allocation2 + $0x170] sm:$0xff]
      %v3260 = vld [vmem:[#allocation2 + $0x188] sm:$0xff]
      %v3261 = vld [vmem:[#allocation2 + $0x190] sm:$0xff]
      %v3262 = vld [vmem:[#allocation2 + $0x1a8] sm:$0xff]
      %v3263 = vld [vmem:[#allocation2 + $0x1b0] sm:$0xff]
      %v3264 = vld [vmem:[#allocation2 + $0x1c8] sm:$0xff]
      %v3265 = vld [vmem:[#allocation2 + $0x1d0] sm:$0xff]
      %v3266 = vld [vmem:[#allocation2 + $0x1e8] sm:$0xff]
      %v3267 = vld [vmem:[#allocation2 + $0x1f0] sm:$0xff]
      %v3268 = vpack.c.bf16 %v3237, %v3236
      %v3269 = vpack.c.bf16 %v3239, %v3238
      %v3270 = vpack.c.bf16 %v3241, %v3240
      %v3271 = vpack.c.bf16 %v3243, %v3242
      %v3272 = vpack.c.bf16 %v3245, %v3244
      %v3273 = vpack.c.bf16 %v3247, %v3246
      %v3274 = vpack.c.bf16 %v3249, %v3248
      %v3275 = vpack.c.bf16 %v3251, %v3250
      %v3276 = vpack.c.bf16 %v3253, %v3252
      %v3277 = vpack.c.bf16 %v3255, %v3254
      %v3278 = vpack.c.bf16 %v3257, %v3256
      %v3279 = vpack.c.bf16 %v3259, %v3258
      %v3280 = vpack.c.bf16 %v3261, %v3260
      %v3281 = vpack.c.bf16 %v3263, %v3262
      %v3282 = vpack.c.bf16 %v3265, %v3264
      %v3283 = vpack.c.bf16 %v3267, %v3266
      %s3284 = scalar_lea.vmem %s3, 32
      %v3285 = vld [vmem:[%s3284] sm:$0xf]
      %v3286 = vld [vmem:[%s3284 + $0x4] sm:$0xf]
      %v3287 = vld [vmem:[%s3284 + $0x8] sm:$0xf]
      %v3288 = vld [vmem:[%s3284 + $0xc] sm:$0xf]
      %v3289 = vld [vmem:[%s3284 + $0x10] sm:$0xf]
      %v3290 = vld [vmem:[%s3284 + $0x14] sm:$0xf]
      %v3291 = vld [vmem:[%s3284 + $0x18] sm:$0xf]
      %v3292 = vld [vmem:[%s3284 + $0x1c] sm:$0xf]
      %v3301 = vunpack.c.l.b16 %v3285
      %v3302 = vunpack.c.l.b16 %v3286
      %v3303 = vunpack.c.l.b16 %v3287
      %v3304 = vunpack.c.l.b16 %v3288
      %v3305 = vunpack.c.l.b16 %v3289
      %v3306 = vunpack.c.l.b16 %v3290
      %v3307 = vunpack.c.l.b16 %v3291
      %v3308 = vunpack.c.l.b16 %v3292
      %v3309 = vpack.c.b16 %v3302, %v3301
      %v3310 = vpack.c.b16 %v3304, %v3303
      %v3311 = vpack.c.b16 %v3306, %v3305
      %v3312 = vpack.c.b16 %v3308, %v3307
      %v3318 = vsel %vm388, %v3268, 0
      %v3321 = vsel %vm388, %v3269, 0
      %v3324 = vsel %vm388, %v3270, 0
      %v3327 = vsel %vm388, %v3271, 0
      %v3330 = vsel %vm388, %v3272, 0
      %v3333 = vsel %vm388, %v3273, 0
      %v3336 = vsel %vm388, %v3274, 0
      %v3339 = vsel %vm388, %v3275, 0
      %v3342 = vsel %vm388, %v3276, 0
      %v3345 = vsel %vm388, %v3277, 0
      %v3348 = vsel %vm388, %v3278, 0
      %v3351 = vsel %vm388, %v3279, 0
      %v3354 = vsel %vm388, %v3280, 0
      %v3357 = vsel %vm388, %v3281, 0
      %v3360 = vsel %vm388, %v3282, 0
      %v3363 = vsel %vm388, %v3283, 0
      %3365 = vmatprep.subr.bf16.mxu0 0
      %3366 = vmatpush1.bf16.msra.mxu0 0
      %3367 = vmatprep.subr.bf16.mxu0 0
      %3368 = vmatpush1.bf16.msra.mxu0 0
      %3369 = vmatprep.subr.bf16.mxu0 0
      %3370 = vmatpush1.bf16.msra.mxu0 0
      %3371 = vmatprep.subr.bf16.mxu0 0
      %3372 = vmatpush1.bf16.msra.mxu0 0
      %3373 = vmatprep.subr.bf16.mxu0 0
      %3374 = vmatpush1.bf16.msra.mxu0 %v3312
      %3375 = vmatprep.subr.bf16.mxu0 0
      %3376 = vmatpush1.bf16.msra.mxu0 %v3311
      %3377 = vmatprep.subr.bf16.mxu0 0
      %3378 = vmatpush1.bf16.msra.mxu0 %v3310
      %3379 = vmatprep.subr.bf16.mxu0 0
      %3380 = vmatpush1.bf16.msra.mxu0 %v3309
      %3381 = vmatprep.subr.bf16.mxu0 0
      %3382 = vmatpush2.bf16.msra.mxu0 0
      %3383 = vmatprep.subr.bf16.mxu0 0
      %3384 = vmatpush2.bf16.msra.mxu0 0
      %3385 = vmatprep.subr.bf16.mxu0 0
      %3386 = vmatpush2.bf16.msra.mxu0 0
      %3387 = vmatprep.subr.bf16.mxu0 0
      %3388 = vmatpush2.bf16.msra.mxu0 0
      %3389 = vmatprep.subr.bf16.mxu0 0
      %3390 = vmatpush2.bf16.msra.mxu0 0
      %3391 = vmatprep.subr.bf16.mxu0 0
      %3392 = vmatpush2.bf16.msra.mxu0 0
      %3393 = vmatprep.subr.bf16.mxu0 0
      %3394 = vmatpush2.bf16.msra.mxu0 0
      %3395 = vmatprep.subr.bf16.mxu0 0
      %3396 = vmatpush2.bf16.msra.mxu0 0
      %3397 = vmatprep.mubr.bf16.mxu0 0
      %3398 = vmatmul.mubr.bf16.gmra.mxu0 %v3318
      %v3399 = vpop.f32.mrf.mxu0
      %v3400 = vadd.f32 0.0, %v3399
      %v3401 = vpop.f32.mrf.mxu0
      %v3402 = vpop.f32.mrf.mxu0
      %v3403 = vadd.f32 0.0, %v3402
      %v3404 = vpop.f32.mrf.mxu0
      %3405 = vmatprep.mubr.bf16.mxu0 0
      %3406 = vmatmul.mubr.bf16.gmra.mxu0 %v3321
      %v3407 = vpop.f32.mrf.mxu0
      %v3408 = vadd.f32 0.0, %v3407
      %v3409 = vpop.f32.mrf.mxu0
      %v3410 = vpop.f32.mrf.mxu0
      %v3411 = vadd.f32 0.0, %v3410
      %v3412 = vpop.f32.mrf.mxu0
      %3413 = vmatprep.mubr.bf16.mxu0 0
      %3414 = vmatmul.mubr.bf16.gmra.mxu0 %v3324
      %v3415 = vpop.f32.mrf.mxu0
      %v3416 = vadd.f32 0.0, %v3415
      %v3417 = vpop.f32.mrf.mxu0
      %v3418 = vpop.f32.mrf.mxu0
      %v3419 = vadd.f32 0.0, %v3418
      %v3420 = vpop.f32.mrf.mxu0
      %3421 = vmatprep.mubr.bf16.mxu0 0
      %3422 = vmatmul.mubr.bf16.gmra.mxu0 %v3327
      %v3423 = vpop.f32.mrf.mxu0
      %v3424 = vadd.f32 0.0, %v3423
      %v3425 = vpop.f32.mrf.mxu0
      %v3426 = vpop.f32.mrf.mxu0
      %v3427 = vadd.f32 0.0, %v3426
      %v3428 = vpop.f32.mrf.mxu0
      %3429 = vmatprep.mubr.bf16.mxu0 0
      %3430 = vmatmul.mubr.bf16.gmra.mxu0 %v3330
      %v3431 = vpop.f32.mrf.mxu0
      %v3432 = vadd.f32 0.0, %v3431
      %v3433 = vpop.f32.mrf.mxu0
      %v3434 = vpop.f32.mrf.mxu0
      %v3435 = vadd.f32 0.0, %v3434
      %v3436 = vpop.f32.mrf.mxu0
      %3437 = vmatprep.mubr.bf16.mxu0 0
      %3438 = vmatmul.mubr.bf16.gmra.mxu0 %v3333
      %v3439 = vpop.f32.mrf.mxu0
      %v3440 = vadd.f32 0.0, %v3439
      %v3441 = vpop.f32.mrf.mxu0
      %v3442 = vpop.f32.mrf.mxu0
      %v3443 = vadd.f32 0.0, %v3442
      %v3444 = vpop.f32.mrf.mxu0
      %3445 = vmatprep.mubr.bf16.mxu0 0
      %3446 = vmatmul.mubr.bf16.gmra.mxu0 %v3336
      %v3447 = vpop.f32.mrf.mxu0
      %v3448 = vadd.f32 0.0, %v3447
      %v3449 = vpop.f32.mrf.mxu0
      %v3450 = vpop.f32.mrf.mxu0
      %v3451 = vadd.f32 0.0, %v3450
      %v3452 = vpop.f32.mrf.mxu0
      %3453 = vmatprep.mubr.bf16.mxu0 0
      %3454 = vmatmul.mubr.bf16.gmra.mxu0 %v3339
      %v3455 = vpop.f32.mrf.mxu0
      %v3456 = vadd.f32 0.0, %v3455
      %v3457 = vpop.f32.mrf.mxu0
      %v3458 = vpop.f32.mrf.mxu0
      %v3459 = vadd.f32 0.0, %v3458
      %v3460 = vpop.f32.mrf.mxu0
      %3461 = vmatprep.mubr.bf16.mxu0 0
      %3462 = vmatmul.mubr.bf16.gmra.mxu0 %v3342
      %v3463 = vpop.f32.mrf.mxu0
      %v3464 = vadd.f32 0.0, %v3463
      %v3465 = vpop.f32.mrf.mxu0
      %v3466 = vpop.f32.mrf.mxu0
      %v3467 = vadd.f32 0.0, %v3466
      %v3468 = vpop.f32.mrf.mxu0
      %3469 = vmatprep.mubr.bf16.mxu0 0
      %3470 = vmatmul.mubr.bf16.gmra.mxu0 %v3345
      %v3471 = vpop.f32.mrf.mxu0
      %v3472 = vadd.f32 0.0, %v3471
      %v3473 = vpop.f32.mrf.mxu0
      %v3474 = vpop.f32.mrf.mxu0
      %v3475 = vadd.f32 0.0, %v3474
      %v3476 = vpop.f32.mrf.mxu0
      %3477 = vmatprep.mubr.bf16.mxu0 0
      %3478 = vmatmul.mubr.bf16.gmra.mxu0 %v3348
      %v3479 = vpop.f32.mrf.mxu0
      %v3480 = vadd.f32 0.0, %v3479
      %v3481 = vpop.f32.mrf.mxu0
      %v3482 = vpop.f32.mrf.mxu0
      %v3483 = vadd.f32 0.0, %v3482
      %v3484 = vpop.f32.mrf.mxu0
      %3485 = vmatprep.mubr.bf16.mxu0 0
      %3486 = vmatmul.mubr.bf16.gmra.mxu0 %v3351
      %v3487 = vpop.f32.mrf.mxu0
      %v3488 = vadd.f32 0.0, %v3487
      %v3489 = vpop.f32.mrf.mxu0
      %v3490 = vpop.f32.mrf.mxu0
      %v3491 = vadd.f32 0.0, %v3490
      %v3492 = vpop.f32.mrf.mxu0
      %3493 = vmatprep.mubr.bf16.mxu0 0
      %3494 = vmatmul.mubr.bf16.gmra.mxu0 %v3354
      %v3495 = vpop.f32.mrf.mxu0
      %v3496 = vadd.f32 0.0, %v3495
      %v3497 = vpop.f32.mrf.mxu0
      %v3498 = vpop.f32.mrf.mxu0
      %v3499 = vadd.f32 0.0, %v3498
      %v3500 = vpop.f32.mrf.mxu0
      %3501 = vmatprep.mubr.bf16.mxu0 0
      %3502 = vmatmul.mubr.bf16.gmra.mxu0 %v3357
      %v3503 = vpop.f32.mrf.mxu0
      %v3504 = vadd.f32 0.0, %v3503
      %v3505 = vpop.f32.mrf.mxu0
      %v3506 = vpop.f32.mrf.mxu0
      %v3507 = vadd.f32 0.0, %v3506
      %v3508 = vpop.f32.mrf.mxu0
      %3509 = vmatprep.mubr.bf16.mxu0 0
      %3510 = vmatmul.mubr.bf16.gmra.mxu0 %v3360
      %v3511 = vpop.f32.mrf.mxu0
      %v3512 = vadd.f32 0.0, %v3511
      %v3513 = vpop.f32.mrf.mxu0
      %v3514 = vpop.f32.mrf.mxu0
      %v3515 = vadd.f32 0.0, %v3514
      %v3516 = vpop.f32.mrf.mxu0
      %3517 = vmatprep.mubr.bf16.mxu0 0
      %3518 = vmatmul.mubr.bf16.gmra.mxu0 %v3363
      %v3519 = vpop.f32.mrf.mxu0
      %v3520 = vadd.f32 0.0, %v3519
      %v3521 = vpop.f32.mrf.mxu0
      %v3522 = vpop.f32.mrf.mxu0
      %v3523 = vadd.f32 0.0, %v3522
      %v3524 = vpop.f32.mrf.mxu0
      %3525 = vdwg.mxu0
      %v3534 = vunpack.c.l.b16 %v3228
      %v3535 = vunpack.c.l.b16 %v3229
      %v3536 = vunpack.c.l.b16 %v3230
      %v3537 = vunpack.c.l.b16 %v3231
      %v3538 = vunpack.c.l.b16 %v3232
      %v3539 = vunpack.c.l.b16 %v3233
      %v3540 = vunpack.c.l.b16 %v3234
      %v3541 = vunpack.c.l.b16 %v3235
      %v3542 = vpack.c.b16 %v3535, %v3534
      %v3543 = vpack.c.b16 %v3537, %v3536
      %v3544 = vpack.c.b16 %v3539, %v3538
      %v3545 = vpack.c.b16 %v3541, %v3540
      %v3551 = vsel %vm388, %v3212, 0
      %v3554 = vsel %vm388, %v3213, 0
      %v3557 = vsel %vm388, %v3214, 0
      %v3560 = vsel %vm388, %v3215, 0
      %v3563 = vsel %vm388, %v3216, 0
      %v3566 = vsel %vm388, %v3217, 0
      %v3569 = vsel %vm388, %v3218, 0
      %v3572 = vsel %vm388, %v3219, 0
      %v3575 = vsel %vm388, %v3220, 0
      %v3578 = vsel %vm388, %v3221, 0
      %v3581 = vsel %vm388, %v3222, 0
      %v3584 = vsel %vm388, %v3223, 0
      %v3587 = vsel %vm388, %v3224, 0
      %v3590 = vsel %vm388, %v3225, 0
      %v3593 = vsel %vm388, %v3226, 0
      %v3596 = vsel %vm388, %v3227, 0
      %3598 = vmatprep.subr.bf16.mxu0 0
      %3599 = vmatpush1.bf16.msra.mxu0 0
      %3600 = vmatprep.subr.bf16.mxu0 0
      %3601 = vmatpush1.bf16.msra.mxu0 0
      %3602 = vmatprep.subr.bf16.mxu0 0
      %3603 = vmatpush1.bf16.msra.mxu0 0
      %3604 = vmatprep.subr.bf16.mxu0 0
      %3605 = vmatpush1.bf16.msra.mxu0 0
      %3606 = vmatprep.subr.bf16.mxu0 0
      %3607 = vmatpush1.bf16.msra.mxu0 %v3545
      %3608 = vmatprep.subr.bf16.mxu0 0
      %3609 = vmatpush1.bf16.msra.mxu0 %v3544
      %3610 = vmatprep.subr.bf16.mxu0 0
      %3611 = vmatpush1.bf16.msra.mxu0 %v3543
      %3612 = vmatprep.subr.bf16.mxu0 0
      %3613 = vmatpush1.bf16.msra.mxu0 %v3542
      %3614 = vmatprep.subr.bf16.mxu0 0
      %3615 = vmatpush2.bf16.msra.mxu0 0
      %3616 = vmatprep.subr.bf16.mxu0 0
      %3617 = vmatpush2.bf16.msra.mxu0 0
      %3618 = vmatprep.subr.bf16.mxu0 0
      %3619 = vmatpush2.bf16.msra.mxu0 0
      %3620 = vmatprep.subr.bf16.mxu0 0
      %3621 = vmatpush2.bf16.msra.mxu0 0
      %3622 = vmatprep.subr.bf16.mxu0 0
      %3623 = vmatpush2.bf16.msra.mxu0 0
      %3624 = vmatprep.subr.bf16.mxu0 0
      %3625 = vmatpush2.bf16.msra.mxu0 0
      %3626 = vmatprep.subr.bf16.mxu0 0
      %3627 = vmatpush2.bf16.msra.mxu0 0
      %3628 = vmatprep.subr.bf16.mxu0 0
      %3629 = vmatpush2.bf16.msra.mxu0 0
      %3630 = vmatprep.mubr.bf16.mxu0 0
      %3631 = vmatmul.mubr.bf16.gmra.mxu0 %v3551
      %v3632 = vpop.f32.mrf.mxu0
      %v3633 = vadd.f32 %v3400, %v3632
      %v3634 = vpop.f32.mrf.mxu0
      %v3635 = vpop.f32.mrf.mxu0
      %v3636 = vadd.f32 %v3403, %v3635
      %v3637 = vpop.f32.mrf.mxu0
      %3638 = vmatprep.mubr.bf16.mxu0 0
      %3639 = vmatmul.mubr.bf16.gmra.mxu0 %v3554
      %v3640 = vpop.f32.mrf.mxu0
      %v3641 = vadd.f32 %v3408, %v3640
      %v3642 = vpop.f32.mrf.mxu0
      %v3643 = vpop.f32.mrf.mxu0
      %v3644 = vadd.f32 %v3411, %v3643
      %v3645 = vpop.f32.mrf.mxu0
      %3646 = vmatprep.mubr.bf16.mxu0 0
      %3647 = vmatmul.mubr.bf16.gmra.mxu0 %v3557
      %v3648 = vpop.f32.mrf.mxu0
      %v3649 = vadd.f32 %v3416, %v3648
      %v3650 = vpop.f32.mrf.mxu0
      %v3651 = vpop.f32.mrf.mxu0
      %v3652 = vadd.f32 %v3419, %v3651
      %v3653 = vpop.f32.mrf.mxu0
      %3654 = vmatprep.mubr.bf16.mxu0 0
      %3655 = vmatmul.mubr.bf16.gmra.mxu0 %v3560
      %v3656 = vpop.f32.mrf.mxu0
      %v3657 = vadd.f32 %v3424, %v3656
      %v3658 = vpop.f32.mrf.mxu0
      %v3659 = vpop.f32.mrf.mxu0
      %v3660 = vadd.f32 %v3427, %v3659
      %v3661 = vpop.f32.mrf.mxu0
      %3662 = vmatprep.mubr.bf16.mxu0 0
      %3663 = vmatmul.mubr.bf16.gmra.mxu0 %v3563
      %v3664 = vpop.f32.mrf.mxu0
      %v3665 = vadd.f32 %v3432, %v3664
      %v3666 = vpop.f32.mrf.mxu0
      %v3667 = vpop.f32.mrf.mxu0
      %v3668 = vadd.f32 %v3435, %v3667
      %v3669 = vpop.f32.mrf.mxu0
      %3670 = vmatprep.mubr.bf16.mxu0 0
      %3671 = vmatmul.mubr.bf16.gmra.mxu0 %v3566
      %v3672 = vpop.f32.mrf.mxu0
      %v3673 = vadd.f32 %v3440, %v3672
      %v3674 = vpop.f32.mrf.mxu0
      %v3675 = vpop.f32.mrf.mxu0
      %v3676 = vadd.f32 %v3443, %v3675
      %v3677 = vpop.f32.mrf.mxu0
      %3678 = vmatprep.mubr.bf16.mxu0 0
      %3679 = vmatmul.mubr.bf16.gmra.mxu0 %v3569
      %v3680 = vpop.f32.mrf.mxu0
      %v3681 = vadd.f32 %v3448, %v3680
      %v3682 = vpop.f32.mrf.mxu0
      %v3683 = vpop.f32.mrf.mxu0
      %v3684 = vadd.f32 %v3451, %v3683
      %v3685 = vpop.f32.mrf.mxu0
      %3686 = vmatprep.mubr.bf16.mxu0 0
      %3687 = vmatmul.mubr.bf16.gmra.mxu0 %v3572
      %v3688 = vpop.f32.mrf.mxu0
      %v3689 = vadd.f32 %v3456, %v3688
      %v3690 = vpop.f32.mrf.mxu0
      %v3691 = vpop.f32.mrf.mxu0
      %v3692 = vadd.f32 %v3459, %v3691
      %v3693 = vpop.f32.mrf.mxu0
      %3694 = vmatprep.mubr.bf16.mxu0 0
      %3695 = vmatmul.mubr.bf16.gmra.mxu0 %v3575
      %v3696 = vpop.f32.mrf.mxu0
      %v3697 = vadd.f32 %v3464, %v3696
      %v3698 = vpop.f32.mrf.mxu0
      %v3699 = vpop.f32.mrf.mxu0
      %v3700 = vadd.f32 %v3467, %v3699
      %v3701 = vpop.f32.mrf.mxu0
      %3702 = vmatprep.mubr.bf16.mxu0 0
      %3703 = vmatmul.mubr.bf16.gmra.mxu0 %v3578
      %v3704 = vpop.f32.mrf.mxu0
      %v3705 = vadd.f32 %v3472, %v3704
      %v3706 = vpop.f32.mrf.mxu0
      %v3707 = vpop.f32.mrf.mxu0
      %v3708 = vadd.f32 %v3475, %v3707
      %v3709 = vpop.f32.mrf.mxu0
      %3710 = vmatprep.mubr.bf16.mxu0 0
      %3711 = vmatmul.mubr.bf16.gmra.mxu0 %v3581
      %v3712 = vpop.f32.mrf.mxu0
      %v3713 = vadd.f32 %v3480, %v3712
      %v3714 = vpop.f32.mrf.mxu0
      %v3715 = vpop.f32.mrf.mxu0
      %v3716 = vadd.f32 %v3483, %v3715
      %v3717 = vpop.f32.mrf.mxu0
      %3718 = vmatprep.mubr.bf16.mxu0 0
      %3719 = vmatmul.mubr.bf16.gmra.mxu0 %v3584
      %v3720 = vpop.f32.mrf.mxu0
      %v3721 = vadd.f32 %v3488, %v3720
      %v3722 = vpop.f32.mrf.mxu0
      %v3723 = vpop.f32.mrf.mxu0
      %v3724 = vadd.f32 %v3491, %v3723
      %v3725 = vpop.f32.mrf.mxu0
      %3726 = vmatprep.mubr.bf16.mxu0 0
      %3727 = vmatmul.mubr.bf16.gmra.mxu0 %v3587
      %v3728 = vpop.f32.mrf.mxu0
      %v3729 = vadd.f32 %v3496, %v3728
      %v3730 = vpop.f32.mrf.mxu0
      %v3731 = vpop.f32.mrf.mxu0
      %v3732 = vadd.f32 %v3499, %v3731
      %v3733 = vpop.f32.mrf.mxu0
      %3734 = vmatprep.mubr.bf16.mxu0 0
      %3735 = vmatmul.mubr.bf16.gmra.mxu0 %v3590
      %v3736 = vpop.f32.mrf.mxu0
      %v3737 = vadd.f32 %v3504, %v3736
      %v3738 = vpop.f32.mrf.mxu0
      %v3739 = vpop.f32.mrf.mxu0
      %v3740 = vadd.f32 %v3507, %v3739
      %v3741 = vpop.f32.mrf.mxu0
      %3742 = vmatprep.mubr.bf16.mxu0 0
      %3743 = vmatmul.mubr.bf16.gmra.mxu0 %v3593
      %v3744 = vpop.f32.mrf.mxu0
      %v3745 = vadd.f32 %v3512, %v3744
      %v3746 = vpop.f32.mrf.mxu0
      %v3747 = vpop.f32.mrf.mxu0
      %v3748 = vadd.f32 %v3515, %v3747
      %v3749 = vpop.f32.mrf.mxu0
      %3750 = vmatprep.mubr.bf16.mxu0 0
      %3751 = vmatmul.mubr.bf16.gmra.mxu0 %v3596
      %v3752 = vpop.f32.mrf.mxu0
      %v3753 = vadd.f32 %v3520, %v3752
      %v3754 = vpop.f32.mrf.mxu0
      %v3755 = vpop.f32.mrf.mxu0
      %v3756 = vadd.f32 %v3523, %v3755
      %v3757 = vpop.f32.mrf.mxu0
      %3758 = vdwg.mxu0
      %v3759 = vld [vmem:[#allocation2 + $0x9] sm:$0xff]
      %v3760 = vld [vmem:[#allocation2 + $0x11] sm:$0xff]
      %v3761 = vld [vmem:[#allocation2 + $0x29] sm:$0xff]
      %v3762 = vld [vmem:[#allocation2 + $0x31] sm:$0xff]
      %v3763 = vld [vmem:[#allocation2 + $0x49] sm:$0xff]
      %v3764 = vld [vmem:[#allocation2 + $0x51] sm:$0xff]
      %v3765 = vld [vmem:[#allocation2 + $0x69] sm:$0xff]
      %v3766 = vld [vmem:[#allocation2 + $0x71] sm:$0xff]
      %v3767 = vld [vmem:[#allocation2 + $0x89] sm:$0xff]
      %v3768 = vld [vmem:[#allocation2 + $0x91] sm:$0xff]
      %v3769 = vld [vmem:[#allocation2 + $0xa9] sm:$0xff]
      %v3770 = vld [vmem:[#allocation2 + $0xb1] sm:$0xff]
      %v3771 = vld [vmem:[#allocation2 + $0xc9] sm:$0xff]
      %v3772 = vld [vmem:[#allocation2 + $0xd1] sm:$0xff]
      %v3773 = vld [vmem:[#allocation2 + $0xe9] sm:$0xff]
      %v3774 = vld [vmem:[#allocation2 + $0xf1] sm:$0xff]
      %v3775 = vld [vmem:[#allocation2 + $0x109] sm:$0xff]
      %v3776 = vld [vmem:[#allocation2 + $0x111] sm:$0xff]
      %v3777 = vld [vmem:[#allocation2 + $0x129] sm:$0xff]
      %v3778 = vld [vmem:[#allocation2 + $0x131] sm:$0xff]
      %v3779 = vld [vmem:[#allocation2 + $0x149] sm:$0xff]
      %v3780 = vld [vmem:[#allocation2 + $0x151] sm:$0xff]
      %v3781 = vld [vmem:[#allocation2 + $0x169] sm:$0xff]
      %v3782 = vld [vmem:[#allocation2 + $0x171] sm:$0xff]
      %v3783 = vld [vmem:[#allocation2 + $0x189] sm:$0xff]
      %v3784 = vld [vmem:[#allocation2 + $0x191] sm:$0xff]
      %v3785 = vld [vmem:[#allocation2 + $0x1a9] sm:$0xff]
      %v3786 = vld [vmem:[#allocation2 + $0x1b1] sm:$0xff]
      %v3787 = vld [vmem:[#allocation2 + $0x1c9] sm:$0xff]
      %v3788 = vld [vmem:[#allocation2 + $0x1d1] sm:$0xff]
      %v3789 = vld [vmem:[#allocation2 + $0x1e9] sm:$0xff]
      %v3790 = vld [vmem:[#allocation2 + $0x1f1] sm:$0xff]
      %v3791 = vpack.c.bf16 %v3760, %v3759
      %v3792 = vpack.c.bf16 %v3762, %v3761
      %v3793 = vpack.c.bf16 %v3764, %v3763
      %v3794 = vpack.c.bf16 %v3766, %v3765
      %v3795 = vpack.c.bf16 %v3768, %v3767
      %v3796 = vpack.c.bf16 %v3770, %v3769
      %v3797 = vpack.c.bf16 %v3772, %v3771
      %v3798 = vpack.c.bf16 %v3774, %v3773
      %v3799 = vpack.c.bf16 %v3776, %v3775
      %v3800 = vpack.c.bf16 %v3778, %v3777
      %v3801 = vpack.c.bf16 %v3780, %v3779
      %v3802 = vpack.c.bf16 %v3782, %v3781
      %v3803 = vpack.c.bf16 %v3784, %v3783
      %v3804 = vpack.c.bf16 %v3786, %v3785
      %v3805 = vpack.c.bf16 %v3788, %v3787
      %v3806 = vpack.c.bf16 %v3790, %v3789
      %s3807 = scalar_lea.vmem %s3, 64
      %v3808 = vld [vmem:[%s3807] sm:$0xf]
      %v3809 = vld [vmem:[%s3807 + $0x4] sm:$0xf]
      %v3810 = vld [vmem:[%s3807 + $0x8] sm:$0xf]
      %v3811 = vld [vmem:[%s3807 + $0xc] sm:$0xf]
      %v3812 = vld [vmem:[%s3807 + $0x10] sm:$0xf]
      %v3813 = vld [vmem:[%s3807 + $0x14] sm:$0xf]
      %v3814 = vld [vmem:[%s3807 + $0x18] sm:$0xf]
      %v3815 = vld [vmem:[%s3807 + $0x1c] sm:$0xf]
      %v3824 = vunpack.c.l.b16 %v3808
      %v3825 = vunpack.c.l.b16 %v3809
      %v3826 = vunpack.c.l.b16 %v3810
      %v3827 = vunpack.c.l.b16 %v3811
      %v3828 = vunpack.c.l.b16 %v3812
      %v3829 = vunpack.c.l.b16 %v3813
      %v3830 = vunpack.c.l.b16 %v3814
      %v3831 = vunpack.c.l.b16 %v3815
      %v3832 = vpack.c.b16 %v3825, %v3824
      %v3833 = vpack.c.b16 %v3827, %v3826
      %v3834 = vpack.c.b16 %v3829, %v3828
      %v3835 = vpack.c.b16 %v3831, %v3830
      %v3841 = vsel %vm388, %v3791, 0
      %v3844 = vsel %vm388, %v3792, 0
      %v3847 = vsel %vm388, %v3793, 0
      %v3850 = vsel %vm388, %v3794, 0
      %v3853 = vsel %vm388, %v3795, 0
      %v3856 = vsel %vm388, %v3796, 0
      %v3859 = vsel %vm388, %v3797, 0
      %v3862 = vsel %vm388, %v3798, 0
      %v3865 = vsel %vm388, %v3799, 0
      %v3868 = vsel %vm388, %v3800, 0
      %v3871 = vsel %vm388, %v3801, 0
      %v3874 = vsel %vm388, %v3802, 0
      %v3877 = vsel %vm388, %v3803, 0
      %v3880 = vsel %vm388, %v3804, 0
      %v3883 = vsel %vm388, %v3805, 0
      %v3886 = vsel %vm388, %v3806, 0
      %3888 = vmatprep.subr.bf16.mxu0 0
      %3889 = vmatpush1.bf16.msra.mxu0 0
      %3890 = vmatprep.subr.bf16.mxu0 0
      %3891 = vmatpush1.bf16.msra.mxu0 0
      %3892 = vmatprep.subr.bf16.mxu0 0
      %3893 = vmatpush1.bf16.msra.mxu0 0
      %3894 = vmatprep.subr.bf16.mxu0 0
      %3895 = vmatpush1.bf16.msra.mxu0 0
      %3896 = vmatprep.subr.bf16.mxu0 0
      %3897 = vmatpush1.bf16.msra.mxu0 %v3835
      %3898 = vmatprep.subr.bf16.mxu0 0
      %3899 = vmatpush1.bf16.msra.mxu0 %v3834
      %3900 = vmatprep.subr.bf16.mxu0 0
      %3901 = vmatpush1.bf16.msra.mxu0 %v3833
      %3902 = vmatprep.subr.bf16.mxu0 0
      %3903 = vmatpush1.bf16.msra.mxu0 %v3832
      %3904 = vmatprep.subr.bf16.mxu0 0
      %3905 = vmatpush2.bf16.msra.mxu0 0
      %3906 = vmatprep.subr.bf16.mxu0 0
      %3907 = vmatpush2.bf16.msra.mxu0 0
      %3908 = vmatprep.subr.bf16.mxu0 0
      %3909 = vmatpush2.bf16.msra.mxu0 0
      %3910 = vmatprep.subr.bf16.mxu0 0
      %3911 = vmatpush2.bf16.msra.mxu0 0
      %3912 = vmatprep.subr.bf16.mxu0 0
      %3913 = vmatpush2.bf16.msra.mxu0 0
      %3914 = vmatprep.subr.bf16.mxu0 0
      %3915 = vmatpush2.bf16.msra.mxu0 0
      %3916 = vmatprep.subr.bf16.mxu0 0
      %3917 = vmatpush2.bf16.msra.mxu0 0
      %3918 = vmatprep.subr.bf16.mxu0 0
      %3919 = vmatpush2.bf16.msra.mxu0 0
      %3920 = vmatprep.mubr.bf16.mxu0 0
      %3921 = vmatmul.mubr.bf16.gmra.mxu0 %v3841
      %v3922 = vpop.f32.mrf.mxu0
      %v3923 = vadd.f32 0.0, %v3922
      %v3924 = vpop.f32.mrf.mxu0
      %v3925 = vpop.f32.mrf.mxu0
      %v3926 = vadd.f32 0.0, %v3925
      %v3927 = vpop.f32.mrf.mxu0
      %3928 = vmatprep.mubr.bf16.mxu0 0
      %3929 = vmatmul.mubr.bf16.gmra.mxu0 %v3844
      %v3930 = vpop.f32.mrf.mxu0
      %v3931 = vadd.f32 0.0, %v3930
      %v3932 = vpop.f32.mrf.mxu0
      %v3933 = vpop.f32.mrf.mxu0
      %v3934 = vadd.f32 0.0, %v3933
      %v3935 = vpop.f32.mrf.mxu0
      %3936 = vmatprep.mubr.bf16.mxu0 0
      %3937 = vmatmul.mubr.bf16.gmra.mxu0 %v3847
      %v3938 = vpop.f32.mrf.mxu0
      %v3939 = vadd.f32 0.0, %v3938
      %v3940 = vpop.f32.mrf.mxu0
      %v3941 = vpop.f32.mrf.mxu0
      %v3942 = vadd.f32 0.0, %v3941
      %v3943 = vpop.f32.mrf.mxu0
      %3944 = vmatprep.mubr.bf16.mxu0 0
      %3945 = vmatmul.mubr.bf16.gmra.mxu0 %v3850
      %v3946 = vpop.f32.mrf.mxu0
      %v3947 = vadd.f32 0.0, %v3946
      %v3948 = vpop.f32.mrf.mxu0
      %v3949 = vpop.f32.mrf.mxu0
      %v3950 = vadd.f32 0.0, %v3949
      %v3951 = vpop.f32.mrf.mxu0
      %3952 = vmatprep.mubr.bf16.mxu0 0
      %3953 = vmatmul.mubr.bf16.gmra.mxu0 %v3853
      %v3954 = vpop.f32.mrf.mxu0
      %v3955 = vadd.f32 0.0, %v3954
      %v3956 = vpop.f32.mrf.mxu0
      %v3957 = vpop.f32.mrf.mxu0
      %v3958 = vadd.f32 0.0, %v3957
      %v3959 = vpop.f32.mrf.mxu0
      %3960 = vmatprep.mubr.bf16.mxu0 0
      %3961 = vmatmul.mubr.bf16.gmra.mxu0 %v3856
      %v3962 = vpop.f32.mrf.mxu0
      %v3963 = vadd.f32 0.0, %v3962
      %v3964 = vpop.f32.mrf.mxu0
      %v3965 = vpop.f32.mrf.mxu0
      %v3966 = vadd.f32 0.0, %v3965
      %v3967 = vpop.f32.mrf.mxu0
      %3968 = vmatprep.mubr.bf16.mxu0 0
      %3969 = vmatmul.mubr.bf16.gmra.mxu0 %v3859
      %v3970 = vpop.f32.mrf.mxu0
      %v3971 = vadd.f32 0.0, %v3970
      %v3972 = vpop.f32.mrf.mxu0
      %v3973 = vpop.f32.mrf.mxu0
      %v3974 = vadd.f32 0.0, %v3973
      %v3975 = vpop.f32.mrf.mxu0
      %3976 = vmatprep.mubr.bf16.mxu0 0
      %3977 = vmatmul.mubr.bf16.gmra.mxu0 %v3862
      %v3978 = vpop.f32.mrf.mxu0
      %v3979 = vadd.f32 0.0, %v3978
      %v3980 = vpop.f32.mrf.mxu0
      %v3981 = vpop.f32.mrf.mxu0
      %v3982 = vadd.f32 0.0, %v3981
      %v3983 = vpop.f32.mrf.mxu0
      %3984 = vmatprep.mubr.bf16.mxu0 0
      %3985 = vmatmul.mubr.bf16.gmra.mxu0 %v3865
      %v3986 = vpop.f32.mrf.mxu0
      %v3987 = vadd.f32 0.0, %v3986
      %v3988 = vpop.f32.mrf.mxu0
      %v3989 = vpop.f32.mrf.mxu0
      %v3990 = vadd.f32 0.0, %v3989
      %v3991 = vpop.f32.mrf.mxu0
      %3992 = vmatprep.mubr.bf16.mxu0 0
      %3993 = vmatmul.mubr.bf16.gmra.mxu0 %v3868
      %v3994 = vpop.f32.mrf.mxu0
      %v3995 = vadd.f32 0.0, %v3994
      %v3996 = vpop.f32.mrf.mxu0
      %v3997 = vpop.f32.mrf.mxu0
      %v3998 = vadd.f32 0.0, %v3997
      %v3999 = vpop.f32.mrf.mxu0
      %4000 = vmatprep.mubr.bf16.mxu0 0
      %4001 = vmatmul.mubr.bf16.gmra.mxu0 %v3871
      %v4002 = vpop.f32.mrf.mxu0
      %v4003 = vadd.f32 0.0, %v4002
      %v4004 = vpop.f32.mrf.mxu0
      %v4005 = vpop.f32.mrf.mxu0
      %v4006 = vadd.f32 0.0, %v4005
      %v4007 = vpop.f32.mrf.mxu0
      %4008 = vmatprep.mubr.bf16.mxu0 0
      %4009 = vmatmul.mubr.bf16.gmra.mxu0 %v3874
      %v4010 = vpop.f32.mrf.mxu0
      %v4011 = vadd.f32 0.0, %v4010
      %v4012 = vpop.f32.mrf.mxu0
      %v4013 = vpop.f32.mrf.mxu0
      %v4014 = vadd.f32 0.0, %v4013
      %v4015 = vpop.f32.mrf.mxu0
      %4016 = vmatprep.mubr.bf16.mxu0 0
      %4017 = vmatmul.mubr.bf16.gmra.mxu0 %v3877
      %v4018 = vpop.f32.mrf.mxu0
      %v4019 = vadd.f32 0.0, %v4018
      %v4020 = vpop.f32.mrf.mxu0
      %v4021 = vpop.f32.mrf.mxu0
      %v4022 = vadd.f32 0.0, %v4021
      %v4023 = vpop.f32.mrf.mxu0
      %4024 = vmatprep.mubr.bf16.mxu0 0
      %4025 = vmatmul.mubr.bf16.gmra.mxu0 %v3880
      %v4026 = vpop.f32.mrf.mxu0
      %v4027 = vadd.f32 0.0, %v4026
      %v4028 = vpop.f32.mrf.mxu0
      %v4029 = vpop.f32.mrf.mxu0
      %v4030 = vadd.f32 0.0, %v4029
      %v4031 = vpop.f32.mrf.mxu0
      %4032 = vmatprep.mubr.bf16.mxu0 0
      %4033 = vmatmul.mubr.bf16.gmra.mxu0 %v3883
      %v4034 = vpop.f32.mrf.mxu0
      %v4035 = vadd.f32 0.0, %v4034
      %v4036 = vpop.f32.mrf.mxu0
      %v4037 = vpop.f32.mrf.mxu0
      %v4038 = vadd.f32 0.0, %v4037
      %v4039 = vpop.f32.mrf.mxu0
      %4040 = vmatprep.mubr.bf16.mxu0 0
      %4041 = vmatmul.mubr.bf16.gmra.mxu0 %v3886
      %v4042 = vpop.f32.mrf.mxu0
      %v4043 = vadd.f32 0.0, %v4042
      %v4044 = vpop.f32.mrf.mxu0
      %v4045 = vpop.f32.mrf.mxu0
      %v4046 = vadd.f32 0.0, %v4045
      %v4047 = vpop.f32.mrf.mxu0
      %4048 = vdwg.mxu0
      %v4049 = vadd.f32 %v3633, %v3923
      %v4050 = vadd.f32 %v3636, %v3926
      %v4051 = vadd.f32 %v3641, %v3931
      %v4052 = vadd.f32 %v3644, %v3934
      %v4053 = vadd.f32 %v3649, %v3939
      %v4054 = vadd.f32 %v3652, %v3942
      %v4055 = vadd.f32 %v3657, %v3947
      %v4056 = vadd.f32 %v3660, %v3950
      %v4057 = vadd.f32 %v3665, %v3955
      %v4058 = vadd.f32 %v3668, %v3958
      %v4059 = vadd.f32 %v3673, %v3963
      %v4060 = vadd.f32 %v3676, %v3966
      %v4061 = vadd.f32 %v3681, %v3971
      %v4062 = vadd.f32 %v3684, %v3974
      %v4063 = vadd.f32 %v3689, %v3979
      %v4064 = vadd.f32 %v3692, %v3982
      %v4065 = vadd.f32 %v3697, %v3987
      %v4066 = vadd.f32 %v3700, %v3990
      %v4067 = vadd.f32 %v3705, %v3995
      %v4068 = vadd.f32 %v3708, %v3998
      %v4069 = vadd.f32 %v3713, %v4003
      %v4070 = vadd.f32 %v3716, %v4006
      %v4071 = vadd.f32 %v3721, %v4011
      %v4072 = vadd.f32 %v3724, %v4014
      %v4073 = vadd.f32 %v3729, %v4019
      %v4074 = vadd.f32 %v3732, %v4022
      %v4075 = vadd.f32 %v3737, %v4027
      %v4076 = vadd.f32 %v3740, %v4030
      %v4077 = vadd.f32 %v3745, %v4035
      %v4078 = vadd.f32 %v3748, %v4038
      %v4079 = vadd.f32 %v3753, %v4043
      %v4080 = vadd.f32 %v3756, %v4046
      %v4081 = vld [vmem:[%s3147 + $0x7] sm:$0xff]
      %v4082 = vld [vmem:[%s3147 + $0xf] sm:$0xff]
      %v4083 = vld [vmem:[%s3147 + $0x27] sm:$0xff]
      %v4084 = vld [vmem:[%s3147 + $0x2f] sm:$0xff]
      %v4085 = vld [vmem:[%s3147 + $0x47] sm:$0xff]
      %v4086 = vld [vmem:[%s3147 + $0x4f] sm:$0xff]
      %v4087 = vld [vmem:[%s3147 + $0x67] sm:$0xff]
      %v4088 = vld [vmem:[%s3147 + $0x6f] sm:$0xff]
      %v4089 = vld [vmem:[%s3147 + $0x87] sm:$0xff]
      %v4090 = vld [vmem:[%s3147 + $0x8f] sm:$0xff]
      %v4091 = vld [vmem:[%s3147 + $0xa7] sm:$0xff]
      %v4092 = vld [vmem:[%s3147 + $0xaf] sm:$0xff]
      %v4093 = vld [vmem:[%s3147 + $0xc7] sm:$0xff]
      %v4094 = vld [vmem:[%s3147 + $0xcf] sm:$0xff]
      %v4095 = vld [vmem:[%s3147 + $0xe7] sm:$0xff]
      %v4096 = vld [vmem:[%s3147 + $0xef] sm:$0xff]
      %v4097 = vld [vmem:[%s3147 + $0x107] sm:$0xff]
      %v4098 = vld [vmem:[%s3147 + $0x10f] sm:$0xff]
      %v4099 = vld [vmem:[%s3147 + $0x127] sm:$0xff]
      %v4100 = vld [vmem:[%s3147 + $0x12f] sm:$0xff]
      %v4101 = vld [vmem:[%s3147 + $0x147] sm:$0xff]
      %v4102 = vld [vmem:[%s3147 + $0x14f] sm:$0xff]
      %v4103 = vld [vmem:[%s3147 + $0x167] sm:$0xff]
      %v4104 = vld [vmem:[%s3147 + $0x16f] sm:$0xff]
      %v4105 = vld [vmem:[%s3147 + $0x187] sm:$0xff]
      %v4106 = vld [vmem:[%s3147 + $0x18f] sm:$0xff]
      %v4107 = vld [vmem:[%s3147 + $0x1a7] sm:$0xff]
      %v4108 = vld [vmem:[%s3147 + $0x1af] sm:$0xff]
      %v4109 = vld [vmem:[%s3147 + $0x1c7] sm:$0xff]
      %v4110 = vld [vmem:[%s3147 + $0x1cf] sm:$0xff]
      %v4111 = vld [vmem:[%s3147 + $0x1e7] sm:$0xff]
      %v4112 = vld [vmem:[%s3147 + $0x1ef] sm:$0xff]
      %v4113 = vpack.c.bf16 %v4082, %v4081
      %v4114 = vpack.c.bf16 %v4084, %v4083
      %v4115 = vpack.c.bf16 %v4086, %v4085
      %v4116 = vpack.c.bf16 %v4088, %v4087
      %v4117 = vpack.c.bf16 %v4090, %v4089
      %v4118 = vpack.c.bf16 %v4092, %v4091
      %v4119 = vpack.c.bf16 %v4094, %v4093
      %v4120 = vpack.c.bf16 %v4096, %v4095
      %v4121 = vpack.c.bf16 %v4098, %v4097
      %v4122 = vpack.c.bf16 %v4100, %v4099
      %v4123 = vpack.c.bf16 %v4102, %v4101
      %v4124 = vpack.c.bf16 %v4104, %v4103
      %v4125 = vpack.c.bf16 %v4106, %v4105
      %v4126 = vpack.c.bf16 %v4108, %v4107
      %v4127 = vpack.c.bf16 %v4110, %v4109
      %v4128 = vpack.c.bf16 %v4112, %v4111
      %s4129 = scalar_lea.vmem %s3, 96
      %v4130 = vld [vmem:[%s4129] sm:$0xf]
      %v4131 = vld [vmem:[%s4129 + $0x4] sm:$0xf]
      %v4132 = vld [vmem:[%s4129 + $0x8] sm:$0xf]
      %v4133 = vld [vmem:[%s4129 + $0xc] sm:$0xf]
      %v4134 = vld [vmem:[%s4129 + $0x10] sm:$0xf]
      %v4135 = vld [vmem:[%s4129 + $0x14] sm:$0xf]
      %v4136 = vld [vmem:[%s4129 + $0x18] sm:$0xf]
      %v4137 = vld [vmem:[%s4129 + $0x1c] sm:$0xf]
      %v4146 = vunpack.c.l.b16 %v4130
      %v4147 = vunpack.c.l.b16 %v4131
      %v4148 = vunpack.c.l.b16 %v4132
      %v4149 = vunpack.c.l.b16 %v4133
      %v4150 = vunpack.c.l.b16 %v4134
      %v4151 = vunpack.c.l.b16 %v4135
      %v4152 = vunpack.c.l.b16 %v4136
      %v4153 = vunpack.c.l.b16 %v4137
      %v4154 = vpack.c.b16 %v4147, %v4146
      %v4155 = vpack.c.b16 %v4149, %v4148
      %v4156 = vpack.c.b16 %v4151, %v4150
      %v4157 = vpack.c.b16 %v4153, %v4152
      %v4163 = vsel %vm388, %v4113, 0
      %v4166 = vsel %vm388, %v4114, 0
      %v4169 = vsel %vm388, %v4115, 0
      %v4172 = vsel %vm388, %v4116, 0
      %v4175 = vsel %vm388, %v4117, 0
      %v4178 = vsel %vm388, %v4118, 0
      %v4181 = vsel %vm388, %v4119, 0
      %v4184 = vsel %vm388, %v4120, 0
      %v4187 = vsel %vm388, %v4121, 0
      %v4190 = vsel %vm388, %v4122, 0
      %v4193 = vsel %vm388, %v4123, 0
      %v4196 = vsel %vm388, %v4124, 0
      %v4199 = vsel %vm388, %v4125, 0
      %v4202 = vsel %vm388, %v4126, 0
      %v4205 = vsel %vm388, %v4127, 0
      %v4208 = vsel %vm388, %v4128, 0
      %4210 = vmatprep.subr.bf16.mxu0 0
      %4211 = vmatpush1.bf16.msra.mxu0 0
      %4212 = vmatprep.subr.bf16.mxu0 0
      %4213 = vmatpush1.bf16.msra.mxu0 0
      %4214 = vmatprep.subr.bf16.mxu0 0
      %4215 = vmatpush1.bf16.msra.mxu0 0
      %4216 = vmatprep.subr.bf16.mxu0 0
      %4217 = vmatpush1.bf16.msra.mxu0 0
      %4218 = vmatprep.subr.bf16.mxu0 0
      %4219 = vmatpush1.bf16.msra.mxu0 %v4157
      %4220 = vmatprep.subr.bf16.mxu0 0
      %4221 = vmatpush1.bf16.msra.mxu0 %v4156
      %4222 = vmatprep.subr.bf16.mxu0 0
      %4223 = vmatpush1.bf16.msra.mxu0 %v4155
      %4224 = vmatprep.subr.bf16.mxu0 0
      %4225 = vmatpush1.bf16.msra.mxu0 %v4154
      %4226 = vmatprep.subr.bf16.mxu0 0
      %4227 = vmatpush2.bf16.msra.mxu0 0
      %4228 = vmatprep.subr.bf16.mxu0 0
      %4229 = vmatpush2.bf16.msra.mxu0 0
      %4230 = vmatprep.subr.bf16.mxu0 0
      %4231 = vmatpush2.bf16.msra.mxu0 0
      %4232 = vmatprep.subr.bf16.mxu0 0
      %4233 = vmatpush2.bf16.msra.mxu0 0
      %4234 = vmatprep.subr.bf16.mxu0 0
      %4235 = vmatpush2.bf16.msra.mxu0 0
      %4236 = vmatprep.subr.bf16.mxu0 0
      %4237 = vmatpush2.bf16.msra.mxu0 0
      %4238 = vmatprep.subr.bf16.mxu0 0
      %4239 = vmatpush2.bf16.msra.mxu0 0
      %4240 = vmatprep.subr.bf16.mxu0 0
      %4241 = vmatpush2.bf16.msra.mxu0 0
      %4242 = vmatprep.mubr.bf16.mxu0 0
      %4243 = vmatmul.mubr.bf16.gmra.mxu0 %v4163
      %v4244 = vpop.f32.mrf.mxu0
      %v4245 = vadd.f32 0.0, %v4244
      %v4246 = vpop.f32.mrf.mxu0
      %v4247 = vpop.f32.mrf.mxu0
      %v4248 = vadd.f32 0.0, %v4247
      %v4249 = vpop.f32.mrf.mxu0
      %4250 = vmatprep.mubr.bf16.mxu0 0
      %4251 = vmatmul.mubr.bf16.gmra.mxu0 %v4166
      %v4252 = vpop.f32.mrf.mxu0
      %v4253 = vadd.f32 0.0, %v4252
      %v4254 = vpop.f32.mrf.mxu0
      %v4255 = vpop.f32.mrf.mxu0
      %v4256 = vadd.f32 0.0, %v4255
      %v4257 = vpop.f32.mrf.mxu0
      %4258 = vmatprep.mubr.bf16.mxu0 0
      %4259 = vmatmul.mubr.bf16.gmra.mxu0 %v4169
      %v4260 = vpop.f32.mrf.mxu0
      %v4261 = vadd.f32 0.0, %v4260
      %v4262 = vpop.f32.mrf.mxu0
      %v4263 = vpop.f32.mrf.mxu0
      %v4264 = vadd.f32 0.0, %v4263
      %v4265 = vpop.f32.mrf.mxu0
      %4266 = vmatprep.mubr.bf16.mxu0 0
      %4267 = vmatmul.mubr.bf16.gmra.mxu0 %v4172
      %v4268 = vpop.f32.mrf.mxu0
      %v4269 = vadd.f32 0.0, %v4268
      %v4270 = vpop.f32.mrf.mxu0
      %v4271 = vpop.f32.mrf.mxu0
      %v4272 = vadd.f32 0.0, %v4271
      %v4273 = vpop.f32.mrf.mxu0
      %4274 = vmatprep.mubr.bf16.mxu0 0
      %4275 = vmatmul.mubr.bf16.gmra.mxu0 %v4175
      %v4276 = vpop.f32.mrf.mxu0
      %v4277 = vadd.f32 0.0, %v4276
      %v4278 = vpop.f32.mrf.mxu0
      %v4279 = vpop.f32.mrf.mxu0
      %v4280 = vadd.f32 0.0, %v4279
      %v4281 = vpop.f32.mrf.mxu0
      %4282 = vmatprep.mubr.bf16.mxu0 0
      %4283 = vmatmul.mubr.bf16.gmra.mxu0 %v4178
      %v4284 = vpop.f32.mrf.mxu0
      %v4285 = vadd.f32 0.0, %v4284
      %v4286 = vpop.f32.mrf.mxu0
      %v4287 = vpop.f32.mrf.mxu0
      %v4288 = vadd.f32 0.0, %v4287
      %v4289 = vpop.f32.mrf.mxu0
      %4290 = vmatprep.mubr.bf16.mxu0 0
      %4291 = vmatmul.mubr.bf16.gmra.mxu0 %v4181
      %v4292 = vpop.f32.mrf.mxu0
      %v4293 = vadd.f32 0.0, %v4292
      %v4294 = vpop.f32.mrf.mxu0
      %v4295 = vpop.f32.mrf.mxu0
      %v4296 = vadd.f32 0.0, %v4295
      %v4297 = vpop.f32.mrf.mxu0
      %4298 = vmatprep.mubr.bf16.mxu0 0
      %4299 = vmatmul.mubr.bf16.gmra.mxu0 %v4184
      %v4300 = vpop.f32.mrf.mxu0
      %v4301 = vadd.f32 0.0, %v4300
      %v4302 = vpop.f32.mrf.mxu0
      %v4303 = vpop.f32.mrf.mxu0
      %v4304 = vadd.f32 0.0, %v4303
      %v4305 = vpop.f32.mrf.mxu0
      %4306 = vmatprep.mubr.bf16.mxu0 0
      %4307 = vmatmul.mubr.bf16.gmra.mxu0 %v4187
      %v4308 = vpop.f32.mrf.mxu0
      %v4309 = vadd.f32 0.0, %v4308
      %v4310 = vpop.f32.mrf.mxu0
      %v4311 = vpop.f32.mrf.mxu0
      %v4312 = vadd.f32 0.0, %v4311
      %v4313 = vpop.f32.mrf.mxu0
      %4314 = vmatprep.mubr.bf16.mxu0 0
      %4315 = vmatmul.mubr.bf16.gmra.mxu0 %v4190
      %v4316 = vpop.f32.mrf.mxu0
      %v4317 = vadd.f32 0.0, %v4316
      %v4318 = vpop.f32.mrf.mxu0
      %v4319 = vpop.f32.mrf.mxu0
      %v4320 = vadd.f32 0.0, %v4319
      %v4321 = vpop.f32.mrf.mxu0
      %4322 = vmatprep.mubr.bf16.mxu0 0
      %4323 = vmatmul.mubr.bf16.gmra.mxu0 %v4193
      %v4324 = vpop.f32.mrf.mxu0
      %v4325 = vadd.f32 0.0, %v4324
      %v4326 = vpop.f32.mrf.mxu0
      %v4327 = vpop.f32.mrf.mxu0
      %v4328 = vadd.f32 0.0, %v4327
      %v4329 = vpop.f32.mrf.mxu0
      %4330 = vmatprep.mubr.bf16.mxu0 0
      %4331 = vmatmul.mubr.bf16.gmra.mxu0 %v4196
      %v4332 = vpop.f32.mrf.mxu0
      %v4333 = vadd.f32 0.0, %v4332
      %v4334 = vpop.f32.mrf.mxu0
      %v4335 = vpop.f32.mrf.mxu0
      %v4336 = vadd.f32 0.0, %v4335
      %v4337 = vpop.f32.mrf.mxu0
      %4338 = vmatprep.mubr.bf16.mxu0 0
      %4339 = vmatmul.mubr.bf16.gmra.mxu0 %v4199
      %v4340 = vpop.f32.mrf.mxu0
      %v4341 = vadd.f32 0.0, %v4340
      %v4342 = vpop.f32.mrf.mxu0
      %v4343 = vpop.f32.mrf.mxu0
      %v4344 = vadd.f32 0.0, %v4343
      %v4345 = vpop.f32.mrf.mxu0
      %4346 = vmatprep.mubr.bf16.mxu0 0
      %4347 = vmatmul.mubr.bf16.gmra.mxu0 %v4202
      %v4348 = vpop.f32.mrf.mxu0
      %v4349 = vadd.f32 0.0, %v4348
      %v4350 = vpop.f32.mrf.mxu0
      %v4351 = vpop.f32.mrf.mxu0
      %v4352 = vadd.f32 0.0, %v4351
      %v4353 = vpop.f32.mrf.mxu0
      %4354 = vmatprep.mubr.bf16.mxu0 0
      %4355 = vmatmul.mubr.bf16.gmra.mxu0 %v4205
      %v4356 = vpop.f32.mrf.mxu0
      %v4357 = vadd.f32 0.0, %v4356
      %v4358 = vpop.f32.mrf.mxu0
      %v4359 = vpop.f32.mrf.mxu0
      %v4360 = vadd.f32 0.0, %v4359
      %v4361 = vpop.f32.mrf.mxu0
      %4362 = vmatprep.mubr.bf16.mxu0 0
      %4363 = vmatmul.mubr.bf16.gmra.mxu0 %v4208
      %v4364 = vpop.f32.mrf.mxu0
      %v4365 = vadd.f32 0.0, %v4364
      %v4366 = vpop.f32.mrf.mxu0
      %v4367 = vpop.f32.mrf.mxu0
      %v4368 = vadd.f32 0.0, %v4367
      %v4369 = vpop.f32.mrf.mxu0
      %4370 = vdwg.mxu0
      %v4371 = vadd.f32 %v4049, %v4245
      %v4372 = vadd.f32 %v4050, %v4248
      %v4373 = vadd.f32 %v4051, %v4253
      %v4374 = vadd.f32 %v4052, %v4256
      %v4375 = vadd.f32 %v4053, %v4261
      %v4376 = vadd.f32 %v4054, %v4264
      %v4377 = vadd.f32 %v4055, %v4269
      %v4378 = vadd.f32 %v4056, %v4272
      %v4379 = vadd.f32 %v4057, %v4277
      %v4380 = vadd.f32 %v4058, %v4280
      %v4381 = vadd.f32 %v4059, %v4285
      %v4382 = vadd.f32 %v4060, %v4288
      %v4383 = vadd.f32 %v4061, %v4293
      %v4384 = vadd.f32 %v4062, %v4296
      %v4385 = vadd.f32 %v4063, %v4301
      %v4386 = vadd.f32 %v4064, %v4304
      %v4387 = vadd.f32 %v4065, %v4309
      %v4388 = vadd.f32 %v4066, %v4312
      %v4389 = vadd.f32 %v4067, %v4317
      %v4390 = vadd.f32 %v4068, %v4320
      %v4391 = vadd.f32 %v4069, %v4325
      %v4392 = vadd.f32 %v4070, %v4328
      %v4393 = vadd.f32 %v4071, %v4333
      %v4394 = vadd.f32 %v4072, %v4336
      %v4395 = vadd.f32 %v4073, %v4341
      %v4396 = vadd.f32 %v4074, %v4344
      %v4397 = vadd.f32 %v4075, %v4349
      %v4398 = vadd.f32 %v4076, %v4352
      %v4399 = vadd.f32 %v4077, %v4357
      %v4400 = vadd.f32 %v4078, %v4360
      %v4401 = vadd.f32 %v4079, %v4365
      %v4402 = vadd.f32 %v4080, %v4368
      %v4403 = vld [vmem:[%s3147 + $0x8] sm:$0xff]
      %v4404 = vld [vmem:[%s3147 + $0x10] sm:$0xff]
      %v4405 = vld [vmem:[%s3147 + $0x28] sm:$0xff]
      %v4406 = vld [vmem:[%s3147 + $0x30] sm:$0xff]
      %v4407 = vld [vmem:[%s3147 + $0x48] sm:$0xff]
      %v4408 = vld [vmem:[%s3147 + $0x50] sm:$0xff]
      %v4409 = vld [vmem:[%s3147 + $0x68] sm:$0xff]
      %v4410 = vld [vmem:[%s3147 + $0x70] sm:$0xff]
      %v4411 = vld [vmem:[%s3147 + $0x88] sm:$0xff]
      %v4412 = vld [vmem:[%s3147 + $0x90] sm:$0xff]
      %v4413 = vld [vmem:[%s3147 + $0xa8] sm:$0xff]
      %v4414 = vld [vmem:[%s3147 + $0xb0] sm:$0xff]
      %v4415 = vld [vmem:[%s3147 + $0xc8] sm:$0xff]
      %v4416 = vld [vmem:[%s3147 + $0xd0] sm:$0xff]
      %v4417 = vld [vmem:[%s3147 + $0xe8] sm:$0xff]
      %v4418 = vld [vmem:[%s3147 + $0xf0] sm:$0xff]
      %v4419 = vld [vmem:[%s3147 + $0x108] sm:$0xff]
      %v4420 = vld [vmem:[%s3147 + $0x110] sm:$0xff]
      %v4421 = vld [vmem:[%s3147 + $0x128] sm:$0xff]
      %v4422 = vld [vmem:[%s3147 + $0x130] sm:$0xff]
      %v4423 = vld [vmem:[%s3147 + $0x148] sm:$0xff]
      %v4424 = vld [vmem:[%s3147 + $0x150] sm:$0xff]
      %v4425 = vld [vmem:[%s3147 + $0x168] sm:$0xff]
      %v4426 = vld [vmem:[%s3147 + $0x170] sm:$0xff]
      %v4427 = vld [vmem:[%s3147 + $0x188] sm:$0xff]
      %v4428 = vld [vmem:[%s3147 + $0x190] sm:$0xff]
      %v4429 = vld [vmem:[%s3147 + $0x1a8] sm:$0xff]
      %v4430 = vld [vmem:[%s3147 + $0x1b0] sm:$0xff]
      %v4431 = vld [vmem:[%s3147 + $0x1c8] sm:$0xff]
      %v4432 = vld [vmem:[%s3147 + $0x1d0] sm:$0xff]
      %v4433 = vld [vmem:[%s3147 + $0x1e8] sm:$0xff]
      %v4434 = vld [vmem:[%s3147 + $0x1f0] sm:$0xff]
      %v4435 = vpack.c.bf16 %v4404, %v4403
      %v4436 = vpack.c.bf16 %v4406, %v4405
      %v4437 = vpack.c.bf16 %v4408, %v4407
      %v4438 = vpack.c.bf16 %v4410, %v4409
      %v4439 = vpack.c.bf16 %v4412, %v4411
      %v4440 = vpack.c.bf16 %v4414, %v4413
      %v4441 = vpack.c.bf16 %v4416, %v4415
      %v4442 = vpack.c.bf16 %v4418, %v4417
      %v4443 = vpack.c.bf16 %v4420, %v4419
      %v4444 = vpack.c.bf16 %v4422, %v4421
      %v4445 = vpack.c.bf16 %v4424, %v4423
      %v4446 = vpack.c.bf16 %v4426, %v4425
      %v4447 = vpack.c.bf16 %v4428, %v4427
      %v4448 = vpack.c.bf16 %v4430, %v4429
      %v4449 = vpack.c.bf16 %v4432, %v4431
      %v4450 = vpack.c.bf16 %v4434, %v4433
      %s4451 = scalar_lea.vmem %s3, 128
      %v4452 = vld [vmem:[%s4451] sm:$0xf]
      %v4453 = vld [vmem:[%s4451 + $0x4] sm:$0xf]
      %v4454 = vld [vmem:[%s4451 + $0x8] sm:$0xf]
      %v4455 = vld [vmem:[%s4451 + $0xc] sm:$0xf]
      %v4456 = vld [vmem:[%s4451 + $0x10] sm:$0xf]
      %v4457 = vld [vmem:[%s4451 + $0x14] sm:$0xf]
      %v4458 = vld [vmem:[%s4451 + $0x18] sm:$0xf]
      %v4459 = vld [vmem:[%s4451 + $0x1c] sm:$0xf]
      %v4468 = vunpack.c.l.b16 %v4452
      %v4469 = vunpack.c.l.b16 %v4453
      %v4470 = vunpack.c.l.b16 %v4454
      %v4471 = vunpack.c.l.b16 %v4455
      %v4472 = vunpack.c.l.b16 %v4456
      %v4473 = vunpack.c.l.b16 %v4457
      %v4474 = vunpack.c.l.b16 %v4458
      %v4475 = vunpack.c.l.b16 %v4459
      %v4476 = vpack.c.b16 %v4469, %v4468
      %v4477 = vpack.c.b16 %v4471, %v4470
      %v4478 = vpack.c.b16 %v4473, %v4472
      %v4479 = vpack.c.b16 %v4475, %v4474
      %v4485 = vsel %vm388, %v4435, 0
      %v4488 = vsel %vm388, %v4436, 0
      %v4491 = vsel %vm388, %v4437, 0
      %v4494 = vsel %vm388, %v4438, 0
      %v4497 = vsel %vm388, %v4439, 0
      %v4500 = vsel %vm388, %v4440, 0
      %v4503 = vsel %vm388, %v4441, 0
      %v4506 = vsel %vm388, %v4442, 0
      %v4509 = vsel %vm388, %v4443, 0
      %v4512 = vsel %vm388, %v4444, 0
      %v4515 = vsel %vm388, %v4445, 0
      %v4518 = vsel %vm388, %v4446, 0
      %v4521 = vsel %vm388, %v4447, 0
      %v4524 = vsel %vm388, %v4448, 0
      %v4527 = vsel %vm388, %v4449, 0
      %v4530 = vsel %vm388, %v4450, 0
      %4532 = vmatprep.subr.bf16.mxu0 0
      %4533 = vmatpush1.bf16.msra.mxu0 0
      %4534 = vmatprep.subr.bf16.mxu0 0
      %4535 = vmatpush1.bf16.msra.mxu0 0
      %4536 = vmatprep.subr.bf16.mxu0 0
      %4537 = vmatpush1.bf16.msra.mxu0 0
      %4538 = vmatprep.subr.bf16.mxu0 0
      %4539 = vmatpush1.bf16.msra.mxu0 0
      %4540 = vmatprep.subr.bf16.mxu0 0
      %4541 = vmatpush1.bf16.msra.mxu0 %v4479
      %4542 = vmatprep.subr.bf16.mxu0 0
      %4543 = vmatpush1.bf16.msra.mxu0 %v4478
      %4544 = vmatprep.subr.bf16.mxu0 0
      %4545 = vmatpush1.bf16.msra.mxu0 %v4477
      %4546 = vmatprep.subr.bf16.mxu0 0
      %4547 = vmatpush1.bf16.msra.mxu0 %v4476
      %4548 = vmatprep.subr.bf16.mxu0 0
      %4549 = vmatpush2.bf16.msra.mxu0 0
      %4550 = vmatprep.subr.bf16.mxu0 0
      %4551 = vmatpush2.bf16.msra.mxu0 0
      %4552 = vmatprep.subr.bf16.mxu0 0
      %4553 = vmatpush2.bf16.msra.mxu0 0
      %4554 = vmatprep.subr.bf16.mxu0 0
      %4555 = vmatpush2.bf16.msra.mxu0 0
      %4556 = vmatprep.subr.bf16.mxu0 0
      %4557 = vmatpush2.bf16.msra.mxu0 0
      %4558 = vmatprep.subr.bf16.mxu0 0
      %4559 = vmatpush2.bf16.msra.mxu0 0
      %4560 = vmatprep.subr.bf16.mxu0 0
      %4561 = vmatpush2.bf16.msra.mxu0 0
      %4562 = vmatprep.subr.bf16.mxu0 0
      %4563 = vmatpush2.bf16.msra.mxu0 0
      %4564 = vmatprep.mubr.bf16.mxu0 0
      %4565 = vmatmul.mubr.bf16.gmra.mxu0 %v4485
      %v4566 = vpop.f32.mrf.mxu0
      %v4567 = vadd.f32 0.0, %v4566
      %v4568 = vpop.f32.mrf.mxu0
      %v4569 = vpop.f32.mrf.mxu0
      %v4570 = vadd.f32 0.0, %v4569
      %v4571 = vpop.f32.mrf.mxu0
      %4572 = vmatprep.mubr.bf16.mxu0 0
      %4573 = vmatmul.mubr.bf16.gmra.mxu0 %v4488
      %v4574 = vpop.f32.mrf.mxu0
      %v4575 = vadd.f32 0.0, %v4574
      %v4576 = vpop.f32.mrf.mxu0
      %v4577 = vpop.f32.mrf.mxu0
      %v4578 = vadd.f32 0.0, %v4577
      %v4579 = vpop.f32.mrf.mxu0
      %4580 = vmatprep.mubr.bf16.mxu0 0
      %4581 = vmatmul.mubr.bf16.gmra.mxu0 %v4491
      %v4582 = vpop.f32.mrf.mxu0
      %v4583 = vadd.f32 0.0, %v4582
      %v4584 = vpop.f32.mrf.mxu0
      %v4585 = vpop.f32.mrf.mxu0
      %v4586 = vadd.f32 0.0, %v4585
      %v4587 = vpop.f32.mrf.mxu0
      %4588 = vmatprep.mubr.bf16.mxu0 0
      %4589 = vmatmul.mubr.bf16.gmra.mxu0 %v4494
      %v4590 = vpop.f32.mrf.mxu0
      %v4591 = vadd.f32 0.0, %v4590
      %v4592 = vpop.f32.mrf.mxu0
      %v4593 = vpop.f32.mrf.mxu0
      %v4594 = vadd.f32 0.0, %v4593
      %v4595 = vpop.f32.mrf.mxu0
      %4596 = vmatprep.mubr.bf16.mxu0 0
      %4597 = vmatmul.mubr.bf16.gmra.mxu0 %v4497
      %v4598 = vpop.f32.mrf.mxu0
      %v4599 = vadd.f32 0.0, %v4598
      %v4600 = vpop.f32.mrf.mxu0
      %v4601 = vpop.f32.mrf.mxu0
      %v4602 = vadd.f32 0.0, %v4601
      %v4603 = vpop.f32.mrf.mxu0
      %4604 = vmatprep.mubr.bf16.mxu0 0
      %4605 = vmatmul.mubr.bf16.gmra.mxu0 %v4500
      %v4606 = vpop.f32.mrf.mxu0
      %v4607 = vadd.f32 0.0, %v4606
      %v4608 = vpop.f32.mrf.mxu0
      %v4609 = vpop.f32.mrf.mxu0
      %v4610 = vadd.f32 0.0, %v4609
      %v4611 = vpop.f32.mrf.mxu0
      %4612 = vmatprep.mubr.bf16.mxu0 0
      %4613 = vmatmul.mubr.bf16.gmra.mxu0 %v4503
      %v4614 = vpop.f32.mrf.mxu0
      %v4615 = vadd.f32 0.0, %v4614
      %v4616 = vpop.f32.mrf.mxu0
      %v4617 = vpop.f32.mrf.mxu0
      %v4618 = vadd.f32 0.0, %v4617
      %v4619 = vpop.f32.mrf.mxu0
      %4620 = vmatprep.mubr.bf16.mxu0 0
      %4621 = vmatmul.mubr.bf16.gmra.mxu0 %v4506
      %v4622 = vpop.f32.mrf.mxu0
      %v4623 = vadd.f32 0.0, %v4622
      %v4624 = vpop.f32.mrf.mxu0
      %v4625 = vpop.f32.mrf.mxu0
      %v4626 = vadd.f32 0.0, %v4625
      %v4627 = vpop.f32.mrf.mxu0
      %4628 = vmatprep.mubr.bf16.mxu0 0
      %4629 = vmatmul.mubr.bf16.gmra.mxu0 %v4509
      %v4630 = vpop.f32.mrf.mxu0
      %v4631 = vadd.f32 0.0, %v4630
      %v4632 = vpop.f32.mrf.mxu0
      %v4633 = vpop.f32.mrf.mxu0
      %v4634 = vadd.f32 0.0, %v4633
      %v4635 = vpop.f32.mrf.mxu0
      %4636 = vmatprep.mubr.bf16.mxu0 0
      %4637 = vmatmul.mubr.bf16.gmra.mxu0 %v4512
      %v4638 = vpop.f32.mrf.mxu0
      %v4639 = vadd.f32 0.0, %v4638
      %v4640 = vpop.f32.mrf.mxu0
      %v4641 = vpop.f32.mrf.mxu0
      %v4642 = vadd.f32 0.0, %v4641
      %v4643 = vpop.f32.mrf.mxu0
      %4644 = vmatprep.mubr.bf16.mxu0 0
      %4645 = vmatmul.mubr.bf16.gmra.mxu0 %v4515
      %v4646 = vpop.f32.mrf.mxu0
      %v4647 = vadd.f32 0.0, %v4646
      %v4648 = vpop.f32.mrf.mxu0
      %v4649 = vpop.f32.mrf.mxu0
      %v4650 = vadd.f32 0.0, %v4649
      %v4651 = vpop.f32.mrf.mxu0
      %4652 = vmatprep.mubr.bf16.mxu0 0
      %4653 = vmatmul.mubr.bf16.gmra.mxu0 %v4518
      %v4654 = vpop.f32.mrf.mxu0
      %v4655 = vadd.f32 0.0, %v4654
      %v4656 = vpop.f32.mrf.mxu0
      %v4657 = vpop.f32.mrf.mxu0
      %v4658 = vadd.f32 0.0, %v4657
      %v4659 = vpop.f32.mrf.mxu0
      %4660 = vmatprep.mubr.bf16.mxu0 0
      %4661 = vmatmul.mubr.bf16.gmra.mxu0 %v4521
      %v4662 = vpop.f32.mrf.mxu0
      %v4663 = vadd.f32 0.0, %v4662
      %v4664 = vpop.f32.mrf.mxu0
      %v4665 = vpop.f32.mrf.mxu0
      %v4666 = vadd.f32 0.0, %v4665
      %v4667 = vpop.f32.mrf.mxu0
      %4668 = vmatprep.mubr.bf16.mxu0 0
      %4669 = vmatmul.mubr.bf16.gmra.mxu0 %v4524
      %v4670 = vpop.f32.mrf.mxu0
      %v4671 = vadd.f32 0.0, %v4670
      %v4672 = vpop.f32.mrf.mxu0
      %v4673 = vpop.f32.mrf.mxu0
      %v4674 = vadd.f32 0.0, %v4673
      %v4675 = vpop.f32.mrf.mxu0
      %4676 = vmatprep.mubr.bf16.mxu0 0
      %4677 = vmatmul.mubr.bf16.gmra.mxu0 %v4527
      %v4678 = vpop.f32.mrf.mxu0
      %v4679 = vadd.f32 0.0, %v4678
      %v4680 = vpop.f32.mrf.mxu0
      %v4681 = vpop.f32.mrf.mxu0
      %v4682 = vadd.f32 0.0, %v4681
      %v4683 = vpop.f32.mrf.mxu0
      %4684 = vmatprep.mubr.bf16.mxu0 0
      %4685 = vmatmul.mubr.bf16.gmra.mxu0 %v4530
      %v4686 = vpop.f32.mrf.mxu0
      %v4687 = vadd.f32 0.0, %v4686
      %v4688 = vpop.f32.mrf.mxu0
      %v4689 = vpop.f32.mrf.mxu0
      %v4690 = vadd.f32 0.0, %v4689
      %v4691 = vpop.f32.mrf.mxu0
      %4692 = vdwg.mxu0
      %v4693 = vadd.f32 %v4371, %v4567
      %v4694 = vadd.f32 %v4372, %v4570
      %v4695 = vadd.f32 %v4373, %v4575
      %v4696 = vadd.f32 %v4374, %v4578
      %v4697 = vadd.f32 %v4375, %v4583
      %v4698 = vadd.f32 %v4376, %v4586
      %v4699 = vadd.f32 %v4377, %v4591
      %v4700 = vadd.f32 %v4378, %v4594
      %v4701 = vadd.f32 %v4379, %v4599
      %v4702 = vadd.f32 %v4380, %v4602
      %v4703 = vadd.f32 %v4381, %v4607
      %v4704 = vadd.f32 %v4382, %v4610
      %v4705 = vadd.f32 %v4383, %v4615
      %v4706 = vadd.f32 %v4384, %v4618
      %v4707 = vadd.f32 %v4385, %v4623
      %v4708 = vadd.f32 %v4386, %v4626
      %v4709 = vadd.f32 %v4387, %v4631
      %v4710 = vadd.f32 %v4388, %v4634
      %v4711 = vadd.f32 %v4389, %v4639
      %v4712 = vadd.f32 %v4390, %v4642
      %v4713 = vadd.f32 %v4391, %v4647
      %v4714 = vadd.f32 %v4392, %v4650
      %v4715 = vadd.f32 %v4393, %v4655
      %v4716 = vadd.f32 %v4394, %v4658
      %v4717 = vadd.f32 %v4395, %v4663
      %v4718 = vadd.f32 %v4396, %v4666
      %v4719 = vadd.f32 %v4397, %v4671
      %v4720 = vadd.f32 %v4398, %v4674
      %v4721 = vadd.f32 %v4399, %v4679
      %v4722 = vadd.f32 %v4400, %v4682
      %v4723 = vadd.f32 %v4401, %v4687
      %v4724 = vadd.f32 %v4402, %v4690
      %v4725 = vld [vmem:[%s3147 + $0x9] sm:$0xff]
      %v4726 = vld [vmem:[%s3147 + $0x11] sm:$0xff]
      %v4727 = vld [vmem:[%s3147 + $0x29] sm:$0xff]
      %v4728 = vld [vmem:[%s3147 + $0x31] sm:$0xff]
      %v4729 = vld [vmem:[%s3147 + $0x49] sm:$0xff]
      %v4730 = vld [vmem:[%s3147 + $0x51] sm:$0xff]
      %v4731 = vld [vmem:[%s3147 + $0x69] sm:$0xff]
      %v4732 = vld [vmem:[%s3147 + $0x71] sm:$0xff]
      %v4733 = vld [vmem:[%s3147 + $0x89] sm:$0xff]
      %v4734 = vld [vmem:[%s3147 + $0x91] sm:$0xff]
      %v4735 = vld [vmem:[%s3147 + $0xa9] sm:$0xff]
      %v4736 = vld [vmem:[%s3147 + $0xb1] sm:$0xff]
      %v4737 = vld [vmem:[%s3147 + $0xc9] sm:$0xff]
      %v4738 = vld [vmem:[%s3147 + $0xd1] sm:$0xff]
      %v4739 = vld [vmem:[%s3147 + $0xe9] sm:$0xff]
      %v4740 = vld [vmem:[%s3147 + $0xf1] sm:$0xff]
      %v4741 = vld [vmem:[%s3147 + $0x109] sm:$0xff]
      %v4742 = vld [vmem:[%s3147 + $0x111] sm:$0xff]
      %v4743 = vld [vmem:[%s3147 + $0x129] sm:$0xff]
      %v4744 = vld [vmem:[%s3147 + $0x131] sm:$0xff]
      %v4745 = vld [vmem:[%s3147 + $0x149] sm:$0xff]
      %v4746 = vld [vmem:[%s3147 + $0x151] sm:$0xff]
      %v4747 = vld [vmem:[%s3147 + $0x169] sm:$0xff]
      %v4748 = vld [vmem:[%s3147 + $0x171] sm:$0xff]
      %v4749 = vld [vmem:[%s3147 + $0x189] sm:$0xff]
      %v4750 = vld [vmem:[%s3147 + $0x191] sm:$0xff]
      %v4751 = vld [vmem:[%s3147 + $0x1a9] sm:$0xff]
      %v4752 = vld [vmem:[%s3147 + $0x1b1] sm:$0xff]
      %v4753 = vld [vmem:[%s3147 + $0x1c9] sm:$0xff]
      %v4754 = vld [vmem:[%s3147 + $0x1d1] sm:$0xff]
      %v4755 = vld [vmem:[%s3147 + $0x1e9] sm:$0xff]
      %v4756 = vld [vmem:[%s3147 + $0x1f1] sm:$0xff]
      %v4757 = vpack.c.bf16 %v4726, %v4725
      %v4758 = vpack.c.bf16 %v4728, %v4727
      %v4759 = vpack.c.bf16 %v4730, %v4729
      %v4760 = vpack.c.bf16 %v4732, %v4731
      %v4761 = vpack.c.bf16 %v4734, %v4733
      %v4762 = vpack.c.bf16 %v4736, %v4735
      %v4763 = vpack.c.bf16 %v4738, %v4737
      %v4764 = vpack.c.bf16 %v4740, %v4739
      %v4765 = vpack.c.bf16 %v4742, %v4741
      %v4766 = vpack.c.bf16 %v4744, %v4743
      %v4767 = vpack.c.bf16 %v4746, %v4745
      %v4768 = vpack.c.bf16 %v4748, %v4747
      %v4769 = vpack.c.bf16 %v4750, %v4749
      %v4770 = vpack.c.bf16 %v4752, %v4751
      %v4771 = vpack.c.bf16 %v4754, %v4753
      %v4772 = vpack.c.bf16 %v4756, %v4755
      %s4773 = scalar_lea.vmem %s3, 160
      %v4774 = vld [vmem:[%s4773] sm:$0xf]
      %v4775 = vld [vmem:[%s4773 + $0x4] sm:$0xf]
      %v4776 = vld [vmem:[%s4773 + $0x8] sm:$0xf]
      %v4777 = vld [vmem:[%s4773 + $0xc] sm:$0xf]
      %v4778 = vld [vmem:[%s4773 + $0x10] sm:$0xf]
      %v4779 = vld [vmem:[%s4773 + $0x14] sm:$0xf]
      %v4780 = vld [vmem:[%s4773 + $0x18] sm:$0xf]
      %v4781 = vld [vmem:[%s4773 + $0x1c] sm:$0xf]
      %v4790 = vunpack.c.l.b16 %v4774
      %v4791 = vunpack.c.l.b16 %v4775
      %v4792 = vunpack.c.l.b16 %v4776
      %v4793 = vunpack.c.l.b16 %v4777
      %v4794 = vunpack.c.l.b16 %v4778
      %v4795 = vunpack.c.l.b16 %v4779
      %v4796 = vunpack.c.l.b16 %v4780
      %v4797 = vunpack.c.l.b16 %v4781
      %v4798 = vpack.c.b16 %v4791, %v4790
      %v4799 = vpack.c.b16 %v4793, %v4792
      %v4800 = vpack.c.b16 %v4795, %v4794
      %v4801 = vpack.c.b16 %v4797, %v4796
      %v4807 = vsel %vm388, %v4757, 0
      %v4810 = vsel %vm388, %v4758, 0
      %v4813 = vsel %vm388, %v4759, 0
      %v4816 = vsel %vm388, %v4760, 0
      %v4819 = vsel %vm388, %v4761, 0
      %v4822 = vsel %vm388, %v4762, 0
      %v4825 = vsel %vm388, %v4763, 0
      %v4828 = vsel %vm388, %v4764, 0
      %v4831 = vsel %vm388, %v4765, 0
      %v4834 = vsel %vm388, %v4766, 0
      %v4837 = vsel %vm388, %v4767, 0
      %v4840 = vsel %vm388, %v4768, 0
      %v4843 = vsel %vm388, %v4769, 0
      %v4846 = vsel %vm388, %v4770, 0
      %v4849 = vsel %vm388, %v4771, 0
      %v4852 = vsel %vm388, %v4772, 0
      %4854 = vmatprep.subr.bf16.mxu0 0
      %4855 = vmatpush1.bf16.msra.mxu0 0
      %4856 = vmatprep.subr.bf16.mxu0 0
      %4857 = vmatpush1.bf16.msra.mxu0 0
      %4858 = vmatprep.subr.bf16.mxu0 0
      %4859 = vmatpush1.bf16.msra.mxu0 0
      %4860 = vmatprep.subr.bf16.mxu0 0
      %4861 = vmatpush1.bf16.msra.mxu0 0
      %4862 = vmatprep.subr.bf16.mxu0 0
      %4863 = vmatpush1.bf16.msra.mxu0 %v4801
      %4864 = vmatprep.subr.bf16.mxu0 0
      %4865 = vmatpush1.bf16.msra.mxu0 %v4800
      %4866 = vmatprep.subr.bf16.mxu0 0
      %4867 = vmatpush1.bf16.msra.mxu0 %v4799
      %4868 = vmatprep.subr.bf16.mxu0 0
      %4869 = vmatpush1.bf16.msra.mxu0 %v4798
      %4870 = vmatprep.subr.bf16.mxu0 0
      %4871 = vmatpush2.bf16.msra.mxu0 0
      %4872 = vmatprep.subr.bf16.mxu0 0
      %4873 = vmatpush2.bf16.msra.mxu0 0
      %4874 = vmatprep.subr.bf16.mxu0 0
      %4875 = vmatpush2.bf16.msra.mxu0 0
      %4876 = vmatprep.subr.bf16.mxu0 0
      %4877 = vmatpush2.bf16.msra.mxu0 0
      %4878 = vmatprep.subr.bf16.mxu0 0
      %4879 = vmatpush2.bf16.msra.mxu0 0
      %4880 = vmatprep.subr.bf16.mxu0 0
      %4881 = vmatpush2.bf16.msra.mxu0 0
      %4882 = vmatprep.subr.bf16.mxu0 0
      %4883 = vmatpush2.bf16.msra.mxu0 0
      %4884 = vmatprep.subr.bf16.mxu0 0
      %4885 = vmatpush2.bf16.msra.mxu0 0
      %4886 = vmatprep.mubr.bf16.mxu0 0
      %4887 = vmatmul.mubr.bf16.gmra.mxu0 %v4807
      %v4888 = vpop.f32.mrf.mxu0
      %v4889 = vadd.f32 0.0, %v4888
      %v4890 = vpop.f32.mrf.mxu0
      %v4891 = vpop.f32.mrf.mxu0
      %v4892 = vadd.f32 0.0, %v4891
      %v4893 = vpop.f32.mrf.mxu0
      %4894 = vmatprep.mubr.bf16.mxu0 0
      %4895 = vmatmul.mubr.bf16.gmra.mxu0 %v4810
      %v4896 = vpop.f32.mrf.mxu0
      %v4897 = vadd.f32 0.0, %v4896
      %v4898 = vpop.f32.mrf.mxu0
      %v4899 = vpop.f32.mrf.mxu0
      %v4900 = vadd.f32 0.0, %v4899
      %v4901 = vpop.f32.mrf.mxu0
      %4902 = vmatprep.mubr.bf16.mxu0 0
      %4903 = vmatmul.mubr.bf16.gmra.mxu0 %v4813
      %v4904 = vpop.f32.mrf.mxu0
      %v4905 = vadd.f32 0.0, %v4904
      %v4906 = vpop.f32.mrf.mxu0
      %v4907 = vpop.f32.mrf.mxu0
      %v4908 = vadd.f32 0.0, %v4907
      %v4909 = vpop.f32.mrf.mxu0
      %4910 = vmatprep.mubr.bf16.mxu0 0
      %4911 = vmatmul.mubr.bf16.gmra.mxu0 %v4816
      %v4912 = vpop.f32.mrf.mxu0
      %v4913 = vadd.f32 0.0, %v4912
      %v4914 = vpop.f32.mrf.mxu0
      %v4915 = vpop.f32.mrf.mxu0
      %v4916 = vadd.f32 0.0, %v4915
      %v4917 = vpop.f32.mrf.mxu0
      %4918 = vmatprep.mubr.bf16.mxu0 0
      %4919 = vmatmul.mubr.bf16.gmra.mxu0 %v4819
      %v4920 = vpop.f32.mrf.mxu0
      %v4921 = vadd.f32 0.0, %v4920
      %v4922 = vpop.f32.mrf.mxu0
      %v4923 = vpop.f32.mrf.mxu0
      %v4924 = vadd.f32 0.0, %v4923
      %v4925 = vpop.f32.mrf.mxu0
      %4926 = vmatprep.mubr.bf16.mxu0 0
      %4927 = vmatmul.mubr.bf16.gmra.mxu0 %v4822
      %v4928 = vpop.f32.mrf.mxu0
      %v4929 = vadd.f32 0.0, %v4928
      %v4930 = vpop.f32.mrf.mxu0
      %v4931 = vpop.f32.mrf.mxu0
      %v4932 = vadd.f32 0.0, %v4931
      %v4933 = vpop.f32.mrf.mxu0
      %4934 = vmatprep.mubr.bf16.mxu0 0
      %4935 = vmatmul.mubr.bf16.gmra.mxu0 %v4825
      %v4936 = vpop.f32.mrf.mxu0
      %v4937 = vadd.f32 0.0, %v4936
      %v4938 = vpop.f32.mrf.mxu0
      %v4939 = vpop.f32.mrf.mxu0
      %v4940 = vadd.f32 0.0, %v4939
      %v4941 = vpop.f32.mrf.mxu0
      %4942 = vmatprep.mubr.bf16.mxu0 0
      %4943 = vmatmul.mubr.bf16.gmra.mxu0 %v4828
      %v4944 = vpop.f32.mrf.mxu0
      %v4945 = vadd.f32 0.0, %v4944
      %v4946 = vpop.f32.mrf.mxu0
      %v4947 = vpop.f32.mrf.mxu0
      %v4948 = vadd.f32 0.0, %v4947
      %v4949 = vpop.f32.mrf.mxu0
      %4950 = vmatprep.mubr.bf16.mxu0 0
      %4951 = vmatmul.mubr.bf16.gmra.mxu0 %v4831
      %v4952 = vpop.f32.mrf.mxu0
      %v4953 = vadd.f32 0.0, %v4952
      %v4954 = vpop.f32.mrf.mxu0
      %v4955 = vpop.f32.mrf.mxu0
      %v4956 = vadd.f32 0.0, %v4955
      %v4957 = vpop.f32.mrf.mxu0
      %4958 = vmatprep.mubr.bf16.mxu0 0
      %4959 = vmatmul.mubr.bf16.gmra.mxu0 %v4834
      %v4960 = vpop.f32.mrf.mxu0
      %v4961 = vadd.f32 0.0, %v4960
      %v4962 = vpop.f32.mrf.mxu0
      %v4963 = vpop.f32.mrf.mxu0
      %v4964 = vadd.f32 0.0, %v4963
      %v4965 = vpop.f32.mrf.mxu0
      %4966 = vmatprep.mubr.bf16.mxu0 0
      %4967 = vmatmul.mubr.bf16.gmra.mxu0 %v4837
      %v4968 = vpop.f32.mrf.mxu0
      %v4969 = vadd.f32 0.0, %v4968
      %v4970 = vpop.f32.mrf.mxu0
      %v4971 = vpop.f32.mrf.mxu0
      %v4972 = vadd.f32 0.0, %v4971
      %v4973 = vpop.f32.mrf.mxu0
      %4974 = vmatprep.mubr.bf16.mxu0 0
      %4975 = vmatmul.mubr.bf16.gmra.mxu0 %v4840
      %v4976 = vpop.f32.mrf.mxu0
      %v4977 = vadd.f32 0.0, %v4976
      %v4978 = vpop.f32.mrf.mxu0
      %v4979 = vpop.f32.mrf.mxu0
      %v4980 = vadd.f32 0.0, %v4979
      %v4981 = vpop.f32.mrf.mxu0
      %4982 = vmatprep.mubr.bf16.mxu0 0
      %4983 = vmatmul.mubr.bf16.gmra.mxu0 %v4843
      %v4984 = vpop.f32.mrf.mxu0
      %v4985 = vadd.f32 0.0, %v4984
      %v4986 = vpop.f32.mrf.mxu0
      %v4987 = vpop.f32.mrf.mxu0
      %v4988 = vadd.f32 0.0, %v4987
      %v4989 = vpop.f32.mrf.mxu0
      %4990 = vmatprep.mubr.bf16.mxu0 0
      %4991 = vmatmul.mubr.bf16.gmra.mxu0 %v4846
      %v4992 = vpop.f32.mrf.mxu0
      %v4993 = vadd.f32 0.0, %v4992
      %v4994 = vpop.f32.mrf.mxu0
      %v4995 = vpop.f32.mrf.mxu0
      %v4996 = vadd.f32 0.0, %v4995
      %v4997 = vpop.f32.mrf.mxu0
      %4998 = vmatprep.mubr.bf16.mxu0 0
      %4999 = vmatmul.mubr.bf16.gmra.mxu0 %v4849
      %v5000 = vpop.f32.mrf.mxu0
      %v5001 = vadd.f32 0.0, %v5000
      %v5002 = vpop.f32.mrf.mxu0
      %v5003 = vpop.f32.mrf.mxu0
      %v5004 = vadd.f32 0.0, %v5003
      %v5005 = vpop.f32.mrf.mxu0
      %5006 = vmatprep.mubr.bf16.mxu0 0
      %5007 = vmatmul.mubr.bf16.gmra.mxu0 %v4852
      %v5008 = vpop.f32.mrf.mxu0
      %v5009 = vadd.f32 0.0, %v5008
      %v5010 = vpop.f32.mrf.mxu0
      %v5011 = vpop.f32.mrf.mxu0
      %v5012 = vadd.f32 0.0, %v5011
      %v5013 = vpop.f32.mrf.mxu0
      %5014 = vdwg.mxu0
      %v5015 = vadd.f32 %v4693, %v4889
      %v5016 = vadd.f32 %v4694, %v4892
      %v5017 = vadd.f32 %v4695, %v4897
      %v5018 = vadd.f32 %v4696, %v4900
      %v5019 = vadd.f32 %v4697, %v4905
      %v5020 = vadd.f32 %v4698, %v4908
      %v5021 = vadd.f32 %v4699, %v4913
      %v5022 = vadd.f32 %v4700, %v4916
      %v5023 = vadd.f32 %v4701, %v4921
      %v5024 = vadd.f32 %v4702, %v4924
      %v5025 = vadd.f32 %v4703, %v4929
      %v5026 = vadd.f32 %v4704, %v4932
      %v5027 = vadd.f32 %v4705, %v4937
      %v5028 = vadd.f32 %v4706, %v4940
      %v5029 = vadd.f32 %v4707, %v4945
      %v5030 = vadd.f32 %v4708, %v4948
      %v5031 = vadd.f32 %v4709, %v4953
      %v5032 = vadd.f32 %v4710, %v4956
      %v5033 = vadd.f32 %v4711, %v4961
      %v5034 = vadd.f32 %v4712, %v4964
      %v5035 = vadd.f32 %v4713, %v4969
      %v5036 = vadd.f32 %v4714, %v4972
      %v5037 = vadd.f32 %v4715, %v4977
      %v5038 = vadd.f32 %v4716, %v4980
      %v5039 = vadd.f32 %v4717, %v4985
      %v5040 = vadd.f32 %v4718, %v4988
      %v5041 = vadd.f32 %v4719, %v4993
      %v5042 = vadd.f32 %v4720, %v4996
      %v5043 = vadd.f32 %v4721, %v5001
      %v5044 = vadd.f32 %v4722, %v5004
      %v5045 = vadd.f32 %v4723, %v5009
      %v5046 = vadd.f32 %v4724, %v5012
      %s5047 = scalar_lea.vmem [#allocation2], 64
      %v5048 = vld [vmem:[%s5047 + $0x7] sm:$0xff]
      %v5049 = vld [vmem:[%s5047 + $0xf] sm:$0xff]
      %v5050 = vld [vmem:[%s5047 + $0x27] sm:$0xff]
      %v5051 = vld [vmem:[%s5047 + $0x2f] sm:$0xff]
      %v5052 = vld [vmem:[%s5047 + $0x47] sm:$0xff]
      %v5053 = vld [vmem:[%s5047 + $0x4f] sm:$0xff]
      %v5054 = vld [vmem:[%s5047 + $0x67] sm:$0xff]
      %v5055 = vld [vmem:[%s5047 + $0x6f] sm:$0xff]
      %v5056 = vld [vmem:[%s5047 + $0x87] sm:$0xff]
      %v5057 = vld [vmem:[%s5047 + $0x8f] sm:$0xff]
      %v5058 = vld [vmem:[%s5047 + $0xa7] sm:$0xff]
      %v5059 = vld [vmem:[%s5047 + $0xaf] sm:$0xff]
      %v5060 = vld [vmem:[%s5047 + $0xc7] sm:$0xff]
      %v5061 = vld [vmem:[%s5047 + $0xcf] sm:$0xff]
      %v5062 = vld [vmem:[%s5047 + $0xe7] sm:$0xff]
      %v5063 = vld [vmem:[%s5047 + $0xef] sm:$0xff]
      %v5064 = vld [vmem:[%s5047 + $0x107] sm:$0xff]
      %v5065 = vld [vmem:[%s5047 + $0x10f] sm:$0xff]
      %v5066 = vld [vmem:[%s5047 + $0x127] sm:$0xff]
      %v5067 = vld [vmem:[%s5047 + $0x12f] sm:$0xff]
      %v5068 = vld [vmem:[%s5047 + $0x147] sm:$0xff]
      %v5069 = vld [vmem:[%s5047 + $0x14f] sm:$0xff]
      %v5070 = vld [vmem:[%s5047 + $0x167] sm:$0xff]
      %v5071 = vld [vmem:[%s5047 + $0x16f] sm:$0xff]
      %v5072 = vld [vmem:[%s5047 + $0x187] sm:$0xff]
      %v5073 = vld [vmem:[%s5047 + $0x18f] sm:$0xff]
      %v5074 = vld [vmem:[%s5047 + $0x1a7] sm:$0xff]
      %v5075 = vld [vmem:[%s5047 + $0x1af] sm:$0xff]
      %v5076 = vld [vmem:[%s5047 + $0x1c7] sm:$0xff]
      %v5077 = vld [vmem:[%s5047 + $0x1cf] sm:$0xff]
      %v5078 = vld [vmem:[%s5047 + $0x1e7] sm:$0xff]
      %v5079 = vld [vmem:[%s5047 + $0x1ef] sm:$0xff]
      %v5080 = vpack.c.bf16 %v5049, %v5048
      %v5081 = vpack.c.bf16 %v5051, %v5050
      %v5082 = vpack.c.bf16 %v5053, %v5052
      %v5083 = vpack.c.bf16 %v5055, %v5054
      %v5084 = vpack.c.bf16 %v5057, %v5056
      %v5085 = vpack.c.bf16 %v5059, %v5058
      %v5086 = vpack.c.bf16 %v5061, %v5060
      %v5087 = vpack.c.bf16 %v5063, %v5062
      %v5088 = vpack.c.bf16 %v5065, %v5064
      %v5089 = vpack.c.bf16 %v5067, %v5066
      %v5090 = vpack.c.bf16 %v5069, %v5068
      %v5091 = vpack.c.bf16 %v5071, %v5070
      %v5092 = vpack.c.bf16 %v5073, %v5072
      %v5093 = vpack.c.bf16 %v5075, %v5074
      %v5094 = vpack.c.bf16 %v5077, %v5076
      %v5095 = vpack.c.bf16 %v5079, %v5078
      %s5096 = scalar_lea.vmem %s3, 192
      %v5097 = vld [vmem:[%s5096] sm:$0xf]
      %v5098 = vld [vmem:[%s5096 + $0x4] sm:$0xf]
      %v5099 = vld [vmem:[%s5096 + $0x8] sm:$0xf]
      %v5100 = vld [vmem:[%s5096 + $0xc] sm:$0xf]
      %v5101 = vld [vmem:[%s5096 + $0x10] sm:$0xf]
      %v5102 = vld [vmem:[%s5096 + $0x14] sm:$0xf]
      %v5103 = vld [vmem:[%s5096 + $0x18] sm:$0xf]
      %v5104 = vld [vmem:[%s5096 + $0x1c] sm:$0xf]
      %v5113 = vunpack.c.l.b16 %v5097
      %v5114 = vunpack.c.l.b16 %v5098
      %v5115 = vunpack.c.l.b16 %v5099
      %v5116 = vunpack.c.l.b16 %v5100
      %v5117 = vunpack.c.l.b16 %v5101
      %v5118 = vunpack.c.l.b16 %v5102
      %v5119 = vunpack.c.l.b16 %v5103
      %v5120 = vunpack.c.l.b16 %v5104
      %v5121 = vpack.c.b16 %v5114, %v5113
      %v5122 = vpack.c.b16 %v5116, %v5115
      %v5123 = vpack.c.b16 %v5118, %v5117
      %v5124 = vpack.c.b16 %v5120, %v5119
      %v5130 = vsel %vm388, %v5080, 0
      %v5133 = vsel %vm388, %v5081, 0
      %v5136 = vsel %vm388, %v5082, 0
      %v5139 = vsel %vm388, %v5083, 0
      %v5142 = vsel %vm388, %v5084, 0
      %v5145 = vsel %vm388, %v5085, 0
      %v5148 = vsel %vm388, %v5086, 0
      %v5151 = vsel %vm388, %v5087, 0
      %v5154 = vsel %vm388, %v5088, 0
      %v5157 = vsel %vm388, %v5089, 0
      %v5160 = vsel %vm388, %v5090, 0
      %v5163 = vsel %vm388, %v5091, 0
      %v5166 = vsel %vm388, %v5092, 0
      %v5169 = vsel %vm388, %v5093, 0
      %v5172 = vsel %vm388, %v5094, 0
      %v5175 = vsel %vm388, %v5095, 0
      %5177 = vmatprep.subr.bf16.mxu0 0
      %5178 = vmatpush1.bf16.msra.mxu0 0
      %5179 = vmatprep.subr.bf16.mxu0 0
      %5180 = vmatpush1.bf16.msra.mxu0 0
      %5181 = vmatprep.subr.bf16.mxu0 0
      %5182 = vmatpush1.bf16.msra.mxu0 0
      %5183 = vmatprep.subr.bf16.mxu0 0
      %5184 = vmatpush1.bf16.msra.mxu0 0
      %5185 = vmatprep.subr.bf16.mxu0 0
      %5186 = vmatpush1.bf16.msra.mxu0 %v5124
      %5187 = vmatprep.subr.bf16.mxu0 0
      %5188 = vmatpush1.bf16.msra.mxu0 %v5123
      %5189 = vmatprep.subr.bf16.mxu0 0
      %5190 = vmatpush1.bf16.msra.mxu0 %v5122
      %5191 = vmatprep.subr.bf16.mxu0 0
      %5192 = vmatpush1.bf16.msra.mxu0 %v5121
      %5193 = vmatprep.subr.bf16.mxu0 0
      %5194 = vmatpush2.bf16.msra.mxu0 0
      %5195 = vmatprep.subr.bf16.mxu0 0
      %5196 = vmatpush2.bf16.msra.mxu0 0
      %5197 = vmatprep.subr.bf16.mxu0 0
      %5198 = vmatpush2.bf16.msra.mxu0 0
      %5199 = vmatprep.subr.bf16.mxu0 0
      %5200 = vmatpush2.bf16.msra.mxu0 0
      %5201 = vmatprep.subr.bf16.mxu0 0
      %5202 = vmatpush2.bf16.msra.mxu0 0
      %5203 = vmatprep.subr.bf16.mxu0 0
      %5204 = vmatpush2.bf16.msra.mxu0 0
      %5205 = vmatprep.subr.bf16.mxu0 0
      %5206 = vmatpush2.bf16.msra.mxu0 0
      %5207 = vmatprep.subr.bf16.mxu0 0
      %5208 = vmatpush2.bf16.msra.mxu0 0
      %5209 = vmatprep.mubr.bf16.mxu0 0
      %5210 = vmatmul.mubr.bf16.gmra.mxu0 %v5130
      %v5211 = vpop.f32.mrf.mxu0
      %v5212 = vadd.f32 0.0, %v5211
      %v5213 = vpop.f32.mrf.mxu0
      %v5214 = vpop.f32.mrf.mxu0
      %v5215 = vadd.f32 0.0, %v5214
      %v5216 = vpop.f32.mrf.mxu0
      %5217 = vmatprep.mubr.bf16.mxu0 0
      %5218 = vmatmul.mubr.bf16.gmra.mxu0 %v5133
      %v5219 = vpop.f32.mrf.mxu0
      %v5220 = vadd.f32 0.0, %v5219
      %v5221 = vpop.f32.mrf.mxu0
      %v5222 = vpop.f32.mrf.mxu0
      %v5223 = vadd.f32 0.0, %v5222
      %v5224 = vpop.f32.mrf.mxu0
      %5225 = vmatprep.mubr.bf16.mxu0 0
      %5226 = vmatmul.mubr.bf16.gmra.mxu0 %v5136
      %v5227 = vpop.f32.mrf.mxu0
      %v5228 = vadd.f32 0.0, %v5227
      %v5229 = vpop.f32.mrf.mxu0
      %v5230 = vpop.f32.mrf.mxu0
      %v5231 = vadd.f32 0.0, %v5230
      %v5232 = vpop.f32.mrf.mxu0
      %5233 = vmatprep.mubr.bf16.mxu0 0
      %5234 = vmatmul.mubr.bf16.gmra.mxu0 %v5139
      %v5235 = vpop.f32.mrf.mxu0
      %v5236 = vadd.f32 0.0, %v5235
      %v5237 = vpop.f32.mrf.mxu0
      %v5238 = vpop.f32.mrf.mxu0
      %v5239 = vadd.f32 0.0, %v5238
      %v5240 = vpop.f32.mrf.mxu0
      %5241 = vmatprep.mubr.bf16.mxu0 0
      %5242 = vmatmul.mubr.bf16.gmra.mxu0 %v5142
      %v5243 = vpop.f32.mrf.mxu0
      %v5244 = vadd.f32 0.0, %v5243
      %v5245 = vpop.f32.mrf.mxu0
      %v5246 = vpop.f32.mrf.mxu0
      %v5247 = vadd.f32 0.0, %v5246
      %v5248 = vpop.f32.mrf.mxu0
      %5249 = vmatprep.mubr.bf16.mxu0 0
      %5250 = vmatmul.mubr.bf16.gmra.mxu0 %v5145
      %v5251 = vpop.f32.mrf.mxu0
      %v5252 = vadd.f32 0.0, %v5251
      %v5253 = vpop.f32.mrf.mxu0
      %v5254 = vpop.f32.mrf.mxu0
      %v5255 = vadd.f32 0.0, %v5254
      %v5256 = vpop.f32.mrf.mxu0
      %5257 = vmatprep.mubr.bf16.mxu0 0
      %5258 = vmatmul.mubr.bf16.gmra.mxu0 %v5148
      %v5259 = vpop.f32.mrf.mxu0
      %v5260 = vadd.f32 0.0, %v5259
      %v5261 = vpop.f32.mrf.mxu0
      %v5262 = vpop.f32.mrf.mxu0
      %v5263 = vadd.f32 0.0, %v5262
      %v5264 = vpop.f32.mrf.mxu0
      %5265 = vmatprep.mubr.bf16.mxu0 0
      %5266 = vmatmul.mubr.bf16.gmra.mxu0 %v5151
      %v5267 = vpop.f32.mrf.mxu0
      %v5268 = vadd.f32 0.0, %v5267
      %v5269 = vpop.f32.mrf.mxu0
      %v5270 = vpop.f32.mrf.mxu0
      %v5271 = vadd.f32 0.0, %v5270
      %v5272 = vpop.f32.mrf.mxu0
      %5273 = vmatprep.mubr.bf16.mxu0 0
      %5274 = vmatmul.mubr.bf16.gmra.mxu0 %v5154
      %v5275 = vpop.f32.mrf.mxu0
      %v5276 = vadd.f32 0.0, %v5275
      %v5277 = vpop.f32.mrf.mxu0
      %v5278 = vpop.f32.mrf.mxu0
      %v5279 = vadd.f32 0.0, %v5278
      %v5280 = vpop.f32.mrf.mxu0
      %5281 = vmatprep.mubr.bf16.mxu0 0
      %5282 = vmatmul.mubr.bf16.gmra.mxu0 %v5157
      %v5283 = vpop.f32.mrf.mxu0
      %v5284 = vadd.f32 0.0, %v5283
      %v5285 = vpop.f32.mrf.mxu0
      %v5286 = vpop.f32.mrf.mxu0
      %v5287 = vadd.f32 0.0, %v5286
      %v5288 = vpop.f32.mrf.mxu0
      %5289 = vmatprep.mubr.bf16.mxu0 0
      %5290 = vmatmul.mubr.bf16.gmra.mxu0 %v5160
      %v5291 = vpop.f32.mrf.mxu0
      %v5292 = vadd.f32 0.0, %v5291
      %v5293 = vpop.f32.mrf.mxu0
      %v5294 = vpop.f32.mrf.mxu0
      %v5295 = vadd.f32 0.0, %v5294
      %v5296 = vpop.f32.mrf.mxu0
      %5297 = vmatprep.mubr.bf16.mxu0 0
      %5298 = vmatmul.mubr.bf16.gmra.mxu0 %v5163
      %v5299 = vpop.f32.mrf.mxu0
      %v5300 = vadd.f32 0.0, %v5299
      %v5301 = vpop.f32.mrf.mxu0
      %v5302 = vpop.f32.mrf.mxu0
      %v5303 = vadd.f32 0.0, %v5302
      %v5304 = vpop.f32.mrf.mxu0
      %5305 = vmatprep.mubr.bf16.mxu0 0
      %5306 = vmatmul.mubr.bf16.gmra.mxu0 %v5166
      %v5307 = vpop.f32.mrf.mxu0
      %v5308 = vadd.f32 0.0, %v5307
      %v5309 = vpop.f32.mrf.mxu0
      %v5310 = vpop.f32.mrf.mxu0
      %v5311 = vadd.f32 0.0, %v5310
      %v5312 = vpop.f32.mrf.mxu0
      %5313 = vmatprep.mubr.bf16.mxu0 0
      %5314 = vmatmul.mubr.bf16.gmra.mxu0 %v5169
      %v5315 = vpop.f32.mrf.mxu0
      %v5316 = vadd.f32 0.0, %v5315
      %v5317 = vpop.f32.mrf.mxu0
      %v5318 = vpop.f32.mrf.mxu0
      %v5319 = vadd.f32 0.0, %v5318
      %v5320 = vpop.f32.mrf.mxu0
      %5321 = vmatprep.mubr.bf16.mxu0 0
      %5322 = vmatmul.mubr.bf16.gmra.mxu0 %v5172
      %v5323 = vpop.f32.mrf.mxu0
      %v5324 = vadd.f32 0.0, %v5323
      %v5325 = vpop.f32.mrf.mxu0
      %v5326 = vpop.f32.mrf.mxu0
      %v5327 = vadd.f32 0.0, %v5326
      %v5328 = vpop.f32.mrf.mxu0
      %5329 = vmatprep.mubr.bf16.mxu0 0
      %5330 = vmatmul.mubr.bf16.gmra.mxu0 %v5175
      %v5331 = vpop.f32.mrf.mxu0
      %v5332 = vadd.f32 0.0, %v5331
      %v5333 = vpop.f32.mrf.mxu0
      %v5334 = vpop.f32.mrf.mxu0
      %v5335 = vadd.f32 0.0, %v5334
      %v5336 = vpop.f32.mrf.mxu0
      %5337 = vdwg.mxu0
      %v5338 = vadd.f32 %v5015, %v5212
      %v5339 = vadd.f32 %v5016, %v5215
      %v5340 = vadd.f32 %v5017, %v5220
      %v5341 = vadd.f32 %v5018, %v5223
      %v5342 = vadd.f32 %v5019, %v5228
      %v5343 = vadd.f32 %v5020, %v5231
      %v5344 = vadd.f32 %v5021, %v5236
      %v5345 = vadd.f32 %v5022, %v5239
      %v5346 = vadd.f32 %v5023, %v5244
      %v5347 = vadd.f32 %v5024, %v5247
      %v5348 = vadd.f32 %v5025, %v5252
      %v5349 = vadd.f32 %v5026, %v5255
      %v5350 = vadd.f32 %v5027, %v5260
      %v5351 = vadd.f32 %v5028, %v5263
      %v5352 = vadd.f32 %v5029, %v5268
      %v5353 = vadd.f32 %v5030, %v5271
      %v5354 = vadd.f32 %v5031, %v5276
      %v5355 = vadd.f32 %v5032, %v5279
      %v5356 = vadd.f32 %v5033, %v5284
      %v5357 = vadd.f32 %v5034, %v5287
      %v5358 = vadd.f32 %v5035, %v5292
      %v5359 = vadd.f32 %v5036, %v5295
      %v5360 = vadd.f32 %v5037, %v5300
      %v5361 = vadd.f32 %v5038, %v5303
      %v5362 = vadd.f32 %v5039, %v5308
      %v5363 = vadd.f32 %v5040, %v5311
      %v5364 = vadd.f32 %v5041, %v5316
      %v5365 = vadd.f32 %v5042, %v5319
      %v5366 = vadd.f32 %v5043, %v5324
      %v5367 = vadd.f32 %v5044, %v5327
      %v5368 = vadd.f32 %v5045, %v5332
      %v5369 = vadd.f32 %v5046, %v5335
      %v5370 = vld [vmem:[%s5047 + $0x8] sm:$0xff]
      %v5371 = vld [vmem:[%s5047 + $0x10] sm:$0xff]
      %v5372 = vld [vmem:[%s5047 + $0x28] sm:$0xff]
      %v5373 = vld [vmem:[%s5047 + $0x30] sm:$0xff]
      %v5374 = vld [vmem:[%s5047 + $0x48] sm:$0xff]
      %v5375 = vld [vmem:[%s5047 + $0x50] sm:$0xff]
      %v5376 = vld [vmem:[%s5047 + $0x68] sm:$0xff]
      %v5377 = vld [vmem:[%s5047 + $0x70] sm:$0xff]
      %v5378 = vld [vmem:[%s5047 + $0x88] sm:$0xff]
      %v5379 = vld [vmem:[%s5047 + $0x90] sm:$0xff]
      %v5380 = vld [vmem:[%s5047 + $0xa8] sm:$0xff]
      %v5381 = vld [vmem:[%s5047 + $0xb0] sm:$0xff]
      %v5382 = vld [vmem:[%s5047 + $0xc8] sm:$0xff]
      %v5383 = vld [vmem:[%s5047 + $0xd0] sm:$0xff]
      %v5384 = vld [vmem:[%s5047 + $0xe8] sm:$0xff]
      %v5385 = vld [vmem:[%s5047 + $0xf0] sm:$0xff]
      %v5386 = vld [vmem:[%s5047 + $0x108] sm:$0xff]
      %v5387 = vld [vmem:[%s5047 + $0x110] sm:$0xff]
      %v5388 = vld [vmem:[%s5047 + $0x128] sm:$0xff]
      %v5389 = vld [vmem:[%s5047 + $0x130] sm:$0xff]
      %v5390 = vld [vmem:[%s5047 + $0x148] sm:$0xff]
      %v5391 = vld [vmem:[%s5047 + $0x150] sm:$0xff]
      %v5392 = vld [vmem:[%s5047 + $0x168] sm:$0xff]
      %v5393 = vld [vmem:[%s5047 + $0x170] sm:$0xff]
      %v5394 = vld [vmem:[%s5047 + $0x188] sm:$0xff]
      %v5395 = vld [vmem:[%s5047 + $0x190] sm:$0xff]
      %v5396 = vld [vmem:[%s5047 + $0x1a8] sm:$0xff]
      %v5397 = vld [vmem:[%s5047 + $0x1b0] sm:$0xff]
      %v5398 = vld [vmem:[%s5047 + $0x1c8] sm:$0xff]
      %v5399 = vld [vmem:[%s5047 + $0x1d0] sm:$0xff]
      %v5400 = vld [vmem:[%s5047 + $0x1e8] sm:$0xff]
      %v5401 = vld [vmem:[%s5047 + $0x1f0] sm:$0xff]
      %v5402 = vpack.c.bf16 %v5371, %v5370
      %v5403 = vpack.c.bf16 %v5373, %v5372
      %v5404 = vpack.c.bf16 %v5375, %v5374
      %v5405 = vpack.c.bf16 %v5377, %v5376
      %v5406 = vpack.c.bf16 %v5379, %v5378
      %v5407 = vpack.c.bf16 %v5381, %v5380
      %v5408 = vpack.c.bf16 %v5383, %v5382
      %v5409 = vpack.c.bf16 %v5385, %v5384
      %v5410 = vpack.c.bf16 %v5387, %v5386
      %v5411 = vpack.c.bf16 %v5389, %v5388
      %v5412 = vpack.c.bf16 %v5391, %v5390
      %v5413 = vpack.c.bf16 %v5393, %v5392
      %v5414 = vpack.c.bf16 %v5395, %v5394
      %v5415 = vpack.c.bf16 %v5397, %v5396
      %v5416 = vpack.c.bf16 %v5399, %v5398
      %v5417 = vpack.c.bf16 %v5401, %v5400
      %s5418 = scalar_lea.vmem %s3, 224
      %v5419 = vld [vmem:[%s5418] sm:$0xf]
      %v5420 = vld [vmem:[%s5418 + $0x4] sm:$0xf]
      %v5421 = vld [vmem:[%s5418 + $0x8] sm:$0xf]
      %v5422 = vld [vmem:[%s5418 + $0xc] sm:$0xf]
      %v5423 = vld [vmem:[%s5418 + $0x10] sm:$0xf]
      %v5424 = vld [vmem:[%s5418 + $0x14] sm:$0xf]
      %v5425 = vld [vmem:[%s5418 + $0x18] sm:$0xf]
      %v5426 = vld [vmem:[%s5418 + $0x1c] sm:$0xf]
      %v5435 = vunpack.c.l.b16 %v5419
      %v5436 = vunpack.c.l.b16 %v5420
      %v5437 = vunpack.c.l.b16 %v5421
      %v5438 = vunpack.c.l.b16 %v5422
      %v5439 = vunpack.c.l.b16 %v5423
      %v5440 = vunpack.c.l.b16 %v5424
      %v5441 = vunpack.c.l.b16 %v5425
      %v5442 = vunpack.c.l.b16 %v5426
      %v5443 = vpack.c.b16 %v5436, %v5435
      %v5444 = vpack.c.b16 %v5438, %v5437
      %v5445 = vpack.c.b16 %v5440, %v5439
      %v5446 = vpack.c.b16 %v5442, %v5441
      %v5452 = vsel %vm388, %v5402, 0
      %v5455 = vsel %vm388, %v5403, 0
      %v5458 = vsel %vm388, %v5404, 0
      %v5461 = vsel %vm388, %v5405, 0
      %v5464 = vsel %vm388, %v5406, 0
      %v5467 = vsel %vm388, %v5407, 0
      %v5470 = vsel %vm388, %v5408, 0
      %v5473 = vsel %vm388, %v5409, 0
      %v5476 = vsel %vm388, %v5410, 0
      %v5479 = vsel %vm388, %v5411, 0
      %v5482 = vsel %vm388, %v5412, 0
      %v5485 = vsel %vm388, %v5413, 0
      %v5488 = vsel %vm388, %v5414, 0
      %v5491 = vsel %vm388, %v5415, 0
      %v5494 = vsel %vm388, %v5416, 0
      %v5497 = vsel %vm388, %v5417, 0
      %5499 = vmatprep.subr.bf16.mxu0 0
      %5500 = vmatpush1.bf16.msra.mxu0 0
      %5501 = vmatprep.subr.bf16.mxu0 0
      %5502 = vmatpush1.bf16.msra.mxu0 0
      %5503 = vmatprep.subr.bf16.mxu0 0
      %5504 = vmatpush1.bf16.msra.mxu0 0
      %5505 = vmatprep.subr.bf16.mxu0 0
      %5506 = vmatpush1.bf16.msra.mxu0 0
      %5507 = vmatprep.subr.bf16.mxu0 0
      %5508 = vmatpush1.bf16.msra.mxu0 %v5446
      %5509 = vmatprep.subr.bf16.mxu0 0
      %5510 = vmatpush1.bf16.msra.mxu0 %v5445
      %5511 = vmatprep.subr.bf16.mxu0 0
      %5512 = vmatpush1.bf16.msra.mxu0 %v5444
      %5513 = vmatprep.subr.bf16.mxu0 0
      %5514 = vmatpush1.bf16.msra.mxu0 %v5443
      %5515 = vmatprep.subr.bf16.mxu0 0
      %5516 = vmatpush2.bf16.msra.mxu0 0
      %5517 = vmatprep.subr.bf16.mxu0 0
      %5518 = vmatpush2.bf16.msra.mxu0 0
      %5519 = vmatprep.subr.bf16.mxu0 0
      %5520 = vmatpush2.bf16.msra.mxu0 0
      %5521 = vmatprep.subr.bf16.mxu0 0
      %5522 = vmatpush2.bf16.msra.mxu0 0
      %5523 = vmatprep.subr.bf16.mxu0 0
      %5524 = vmatpush2.bf16.msra.mxu0 0
      %5525 = vmatprep.subr.bf16.mxu0 0
      %5526 = vmatpush2.bf16.msra.mxu0 0
      %5527 = vmatprep.subr.bf16.mxu0 0
      %5528 = vmatpush2.bf16.msra.mxu0 0
      %5529 = vmatprep.subr.bf16.mxu0 0
      %5530 = vmatpush2.bf16.msra.mxu0 0
      %5531 = vmatprep.mubr.bf16.mxu0 0
      %5532 = vmatmul.mubr.bf16.gmra.mxu0 %v5452
      %v5533 = vpop.f32.mrf.mxu0
      %v5534 = vadd.f32 0.0, %v5533
      %v5535 = vpop.f32.mrf.mxu0
      %v5536 = vpop.f32.mrf.mxu0
      %v5537 = vadd.f32 0.0, %v5536
      %v5538 = vpop.f32.mrf.mxu0
      %5539 = vmatprep.mubr.bf16.mxu0 0
      %5540 = vmatmul.mubr.bf16.gmra.mxu0 %v5455
      %v5541 = vpop.f32.mrf.mxu0
      %v5542 = vadd.f32 0.0, %v5541
      %v5543 = vpop.f32.mrf.mxu0
      %v5544 = vpop.f32.mrf.mxu0
      %v5545 = vadd.f32 0.0, %v5544
      %v5546 = vpop.f32.mrf.mxu0
      %5547 = vmatprep.mubr.bf16.mxu0 0
      %5548 = vmatmul.mubr.bf16.gmra.mxu0 %v5458
      %v5549 = vpop.f32.mrf.mxu0
      %v5550 = vadd.f32 0.0, %v5549
      %v5551 = vpop.f32.mrf.mxu0
      %v5552 = vpop.f32.mrf.mxu0
      %v5553 = vadd.f32 0.0, %v5552
      %v5554 = vpop.f32.mrf.mxu0
      %5555 = vmatprep.mubr.bf16.mxu0 0
      %5556 = vmatmul.mubr.bf16.gmra.mxu0 %v5461
      %v5557 = vpop.f32.mrf.mxu0
      %v5558 = vadd.f32 0.0, %v5557
      %v5559 = vpop.f32.mrf.mxu0
      %v5560 = vpop.f32.mrf.mxu0
      %v5561 = vadd.f32 0.0, %v5560
      %v5562 = vpop.f32.mrf.mxu0
      %5563 = vmatprep.mubr.bf16.mxu0 0
      %5564 = vmatmul.mubr.bf16.gmra.mxu0 %v5464
      %v5565 = vpop.f32.mrf.mxu0
      %v5566 = vadd.f32 0.0, %v5565
      %v5567 = vpop.f32.mrf.mxu0
      %v5568 = vpop.f32.mrf.mxu0
      %v5569 = vadd.f32 0.0, %v5568
      %v5570 = vpop.f32.mrf.mxu0
      %5571 = vmatprep.mubr.bf16.mxu0 0
      %5572 = vmatmul.mubr.bf16.gmra.mxu0 %v5467
      %v5573 = vpop.f32.mrf.mxu0
      %v5574 = vadd.f32 0.0, %v5573
      %v5575 = vpop.f32.mrf.mxu0
      %v5576 = vpop.f32.mrf.mxu0
      %v5577 = vadd.f32 0.0, %v5576
      %v5578 = vpop.f32.mrf.mxu0
      %5579 = vmatprep.mubr.bf16.mxu0 0
      %5580 = vmatmul.mubr.bf16.gmra.mxu0 %v5470
      %v5581 = vpop.f32.mrf.mxu0
      %v5582 = vadd.f32 0.0, %v5581
      %v5583 = vpop.f32.mrf.mxu0
      %v5584 = vpop.f32.mrf.mxu0
      %v5585 = vadd.f32 0.0, %v5584
      %v5586 = vpop.f32.mrf.mxu0
      %5587 = vmatprep.mubr.bf16.mxu0 0
      %5588 = vmatmul.mubr.bf16.gmra.mxu0 %v5473
      %v5589 = vpop.f32.mrf.mxu0
      %v5590 = vadd.f32 0.0, %v5589
      %v5591 = vpop.f32.mrf.mxu0
      %v5592 = vpop.f32.mrf.mxu0
      %v5593 = vadd.f32 0.0, %v5592
      %v5594 = vpop.f32.mrf.mxu0
      %5595 = vmatprep.mubr.bf16.mxu0 0
      %5596 = vmatmul.mubr.bf16.gmra.mxu0 %v5476
      %v5597 = vpop.f32.mrf.mxu0
      %v5598 = vadd.f32 0.0, %v5597
      %v5599 = vpop.f32.mrf.mxu0
      %v5600 = vpop.f32.mrf.mxu0
      %v5601 = vadd.f32 0.0, %v5600
      %v5602 = vpop.f32.mrf.mxu0
      %5603 = vmatprep.mubr.bf16.mxu0 0
      %5604 = vmatmul.mubr.bf16.gmra.mxu0 %v5479
      %v5605 = vpop.f32.mrf.mxu0
      %v5606 = vadd.f32 0.0, %v5605
      %v5607 = vpop.f32.mrf.mxu0
      %v5608 = vpop.f32.mrf.mxu0
      %v5609 = vadd.f32 0.0, %v5608
      %v5610 = vpop.f32.mrf.mxu0
      %5611 = vmatprep.mubr.bf16.mxu0 0
      %5612 = vmatmul.mubr.bf16.gmra.mxu0 %v5482
      %v5613 = vpop.f32.mrf.mxu0
      %v5614 = vadd.f32 0.0, %v5613
      %v5615 = vpop.f32.mrf.mxu0
      %v5616 = vpop.f32.mrf.mxu0
      %v5617 = vadd.f32 0.0, %v5616
      %v5618 = vpop.f32.mrf.mxu0
      %5619 = vmatprep.mubr.bf16.mxu0 0
      %5620 = vmatmul.mubr.bf16.gmra.mxu0 %v5485
      %v5621 = vpop.f32.mrf.mxu0
      %v5622 = vadd.f32 0.0, %v5621
      %v5623 = vpop.f32.mrf.mxu0
      %v5624 = vpop.f32.mrf.mxu0
      %v5625 = vadd.f32 0.0, %v5624
      %v5626 = vpop.f32.mrf.mxu0
      %5627 = vmatprep.mubr.bf16.mxu0 0
      %5628 = vmatmul.mubr.bf16.gmra.mxu0 %v5488
      %v5629 = vpop.f32.mrf.mxu0
      %v5630 = vadd.f32 0.0, %v5629
      %v5631 = vpop.f32.mrf.mxu0
      %v5632 = vpop.f32.mrf.mxu0
      %v5633 = vadd.f32 0.0, %v5632
      %v5634 = vpop.f32.mrf.mxu0
      %5635 = vmatprep.mubr.bf16.mxu0 0
      %5636 = vmatmul.mubr.bf16.gmra.mxu0 %v5491
      %v5637 = vpop.f32.mrf.mxu0
      %v5638 = vadd.f32 0.0, %v5637
      %v5639 = vpop.f32.mrf.mxu0
      %v5640 = vpop.f32.mrf.mxu0
      %v5641 = vadd.f32 0.0, %v5640
      %v5642 = vpop.f32.mrf.mxu0
      %5643 = vmatprep.mubr.bf16.mxu0 0
      %5644 = vmatmul.mubr.bf16.gmra.mxu0 %v5494
      %v5645 = vpop.f32.mrf.mxu0
      %v5646 = vadd.f32 0.0, %v5645
      %v5647 = vpop.f32.mrf.mxu0
      %v5648 = vpop.f32.mrf.mxu0
      %v5649 = vadd.f32 0.0, %v5648
      %v5650 = vpop.f32.mrf.mxu0
      %5651 = vmatprep.mubr.bf16.mxu0 0
      %5652 = vmatmul.mubr.bf16.gmra.mxu0 %v5497
      %v5653 = vpop.f32.mrf.mxu0
      %v5654 = vadd.f32 0.0, %v5653
      %v5655 = vpop.f32.mrf.mxu0
      %v5656 = vpop.f32.mrf.mxu0
      %v5657 = vadd.f32 0.0, %v5656
      %v5658 = vpop.f32.mrf.mxu0
      %5659 = vdwg.mxu0
      %v5660 = vadd.f32 %v5338, %v5534
      %v5661 = vadd.f32 %v5339, %v5537
      %v5662 = vadd.f32 %v5340, %v5542
      %v5663 = vadd.f32 %v5341, %v5545
      %v5664 = vadd.f32 %v5342, %v5550
      %v5665 = vadd.f32 %v5343, %v5553
      %v5666 = vadd.f32 %v5344, %v5558
      %v5667 = vadd.f32 %v5345, %v5561
      %v5668 = vadd.f32 %v5346, %v5566
      %v5669 = vadd.f32 %v5347, %v5569
      %v5670 = vadd.f32 %v5348, %v5574
      %v5671 = vadd.f32 %v5349, %v5577
      %v5672 = vadd.f32 %v5350, %v5582
      %v5673 = vadd.f32 %v5351, %v5585
      %v5674 = vadd.f32 %v5352, %v5590
      %v5675 = vadd.f32 %v5353, %v5593
      %v5676 = vadd.f32 %v5354, %v5598
      %v5677 = vadd.f32 %v5355, %v5601
      %v5678 = vadd.f32 %v5356, %v5606
      %v5679 = vadd.f32 %v5357, %v5609
      %v5680 = vadd.f32 %v5358, %v5614
      %v5681 = vadd.f32 %v5359, %v5617
      %v5682 = vadd.f32 %v5360, %v5622
      %v5683 = vadd.f32 %v5361, %v5625
      %v5684 = vadd.f32 %v5362, %v5630
      %v5685 = vadd.f32 %v5363, %v5633
      %v5686 = vadd.f32 %v5364, %v5638
      %v5687 = vadd.f32 %v5365, %v5641
      %v5688 = vadd.f32 %v5366, %v5646
      %v5689 = vadd.f32 %v5367, %v5649
      %v5690 = vadd.f32 %v5368, %v5654
      %v5691 = vadd.f32 %v5369, %v5657
      %v5692 = vld [vmem:[%s5047 + $0x9] sm:$0xff]
      %v5693 = vld [vmem:[%s5047 + $0x11] sm:$0xff]
      %v5694 = vld [vmem:[%s5047 + $0x29] sm:$0xff]
      %v5695 = vld [vmem:[%s5047 + $0x31] sm:$0xff]
      %v5696 = vld [vmem:[%s5047 + $0x49] sm:$0xff]
      %v5697 = vld [vmem:[%s5047 + $0x51] sm:$0xff]
      %v5698 = vld [vmem:[%s5047 + $0x69] sm:$0xff]
      %v5699 = vld [vmem:[%s5047 + $0x71] sm:$0xff]
      %v5700 = vld [vmem:[%s5047 + $0x89] sm:$0xff]
      %v5701 = vld [vmem:[%s5047 + $0x91] sm:$0xff]
      %v5702 = vld [vmem:[%s5047 + $0xa9] sm:$0xff]
      %v5703 = vld [vmem:[%s5047 + $0xb1] sm:$0xff]
      %v5704 = vld [vmem:[%s5047 + $0xc9] sm:$0xff]
      %v5705 = vld [vmem:[%s5047 + $0xd1] sm:$0xff]
      %v5706 = vld [vmem:[%s5047 + $0xe9] sm:$0xff]
      %v5707 = vld [vmem:[%s5047 + $0xf1] sm:$0xff]
      %v5708 = vld [vmem:[%s5047 + $0x109] sm:$0xff]
      %v5709 = vld [vmem:[%s5047 + $0x111] sm:$0xff]
      %v5710 = vld [vmem:[%s5047 + $0x129] sm:$0xff]
      %v5711 = vld [vmem:[%s5047 + $0x131] sm:$0xff]
      %v5712 = vld [vmem:[%s5047 + $0x149] sm:$0xff]
      %v5713 = vld [vmem:[%s5047 + $0x151] sm:$0xff]
      %v5714 = vld [vmem:[%s5047 + $0x169] sm:$0xff]
      %v5715 = vld [vmem:[%s5047 + $0x171] sm:$0xff]
      %v5716 = vld [vmem:[%s5047 + $0x189] sm:$0xff]
      %v5717 = vld [vmem:[%s5047 + $0x191] sm:$0xff]
      %v5718 = vld [vmem:[%s5047 + $0x1a9] sm:$0xff]
      %v5719 = vld [vmem:[%s5047 + $0x1b1] sm:$0xff]
      %v5720 = vld [vmem:[%s5047 + $0x1c9] sm:$0xff]
      %v5721 = vld [vmem:[%s5047 + $0x1d1] sm:$0xff]
      %v5722 = vld [vmem:[%s5047 + $0x1e9] sm:$0xff]
      %v5723 = vld [vmem:[%s5047 + $0x1f1] sm:$0xff]
      %v5724 = vpack.c.bf16 %v5693, %v5692
      %v5725 = vpack.c.bf16 %v5695, %v5694
      %v5726 = vpack.c.bf16 %v5697, %v5696
      %v5727 = vpack.c.bf16 %v5699, %v5698
      %v5728 = vpack.c.bf16 %v5701, %v5700
      %v5729 = vpack.c.bf16 %v5703, %v5702
      %v5730 = vpack.c.bf16 %v5705, %v5704
      %v5731 = vpack.c.bf16 %v5707, %v5706
      %v5732 = vpack.c.bf16 %v5709, %v5708
      %v5733 = vpack.c.bf16 %v5711, %v5710
      %v5734 = vpack.c.bf16 %v5713, %v5712
      %v5735 = vpack.c.bf16 %v5715, %v5714
      %v5736 = vpack.c.bf16 %v5717, %v5716
      %v5737 = vpack.c.bf16 %v5719, %v5718
      %v5738 = vpack.c.bf16 %v5721, %v5720
      %v5739 = vpack.c.bf16 %v5723, %v5722
      %s5740 = scalar_lea.vmem %s3, 256
      %v5741 = vld [vmem:[%s5740] sm:$0xf]
      %v5742 = vld [vmem:[%s5740 + $0x4] sm:$0xf]
      %v5743 = vld [vmem:[%s5740 + $0x8] sm:$0xf]
      %v5744 = vld [vmem:[%s5740 + $0xc] sm:$0xf]
      %v5745 = vld [vmem:[%s5740 + $0x10] sm:$0xf]
      %v5746 = vld [vmem:[%s5740 + $0x14] sm:$0xf]
      %v5747 = vld [vmem:[%s5740 + $0x18] sm:$0xf]
      %v5748 = vld [vmem:[%s5740 + $0x1c] sm:$0xf]
      %v5757 = vunpack.c.l.b16 %v5741
      %v5758 = vunpack.c.l.b16 %v5742
      %v5759 = vunpack.c.l.b16 %v5743
      %v5760 = vunpack.c.l.b16 %v5744
      %v5761 = vunpack.c.l.b16 %v5745
      %v5762 = vunpack.c.l.b16 %v5746
      %v5763 = vunpack.c.l.b16 %v5747
      %v5764 = vunpack.c.l.b16 %v5748
      %v5765 = vpack.c.b16 %v5758, %v5757
      %v5766 = vpack.c.b16 %v5760, %v5759
      %v5767 = vpack.c.b16 %v5762, %v5761
      %v5768 = vpack.c.b16 %v5764, %v5763
      %v5774 = vsel %vm388, %v5724, 0
      %v5777 = vsel %vm388, %v5725, 0
      %v5780 = vsel %vm388, %v5726, 0
      %v5783 = vsel %vm388, %v5727, 0
      %v5786 = vsel %vm388, %v5728, 0
      %v5789 = vsel %vm388, %v5729, 0
      %v5792 = vsel %vm388, %v5730, 0
      %v5795 = vsel %vm388, %v5731, 0
      %v5798 = vsel %vm388, %v5732, 0
      %v5801 = vsel %vm388, %v5733, 0
      %v5804 = vsel %vm388, %v5734, 0
      %v5807 = vsel %vm388, %v5735, 0
      %v5810 = vsel %vm388, %v5736, 0
      %v5813 = vsel %vm388, %v5737, 0
      %v5816 = vsel %vm388, %v5738, 0
      %v5819 = vsel %vm388, %v5739, 0
      %5821 = vmatprep.subr.bf16.mxu0 0
      %5822 = vmatpush1.bf16.msra.mxu0 0
      %5823 = vmatprep.subr.bf16.mxu0 0
      %5824 = vmatpush1.bf16.msra.mxu0 0
      %5825 = vmatprep.subr.bf16.mxu0 0
      %5826 = vmatpush1.bf16.msra.mxu0 0
      %5827 = vmatprep.subr.bf16.mxu0 0
      %5828 = vmatpush1.bf16.msra.mxu0 0
      %5829 = vmatprep.subr.bf16.mxu0 0
      %5830 = vmatpush1.bf16.msra.mxu0 %v5768
      %5831 = vmatprep.subr.bf16.mxu0 0
      %5832 = vmatpush1.bf16.msra.mxu0 %v5767
      %5833 = vmatprep.subr.bf16.mxu0 0
      %5834 = vmatpush1.bf16.msra.mxu0 %v5766
      %5835 = vmatprep.subr.bf16.mxu0 0
      %5836 = vmatpush1.bf16.msra.mxu0 %v5765
      %5837 = vmatprep.subr.bf16.mxu0 0
      %5838 = vmatpush2.bf16.msra.mxu0 0
      %5839 = vmatprep.subr.bf16.mxu0 0
      %5840 = vmatpush2.bf16.msra.mxu0 0
      %5841 = vmatprep.subr.bf16.mxu0 0
      %5842 = vmatpush2.bf16.msra.mxu0 0
      %5843 = vmatprep.subr.bf16.mxu0 0
      %5844 = vmatpush2.bf16.msra.mxu0 0
      %5845 = vmatprep.subr.bf16.mxu0 0
      %5846 = vmatpush2.bf16.msra.mxu0 0
      %5847 = vmatprep.subr.bf16.mxu0 0
      %5848 = vmatpush2.bf16.msra.mxu0 0
      %5849 = vmatprep.subr.bf16.mxu0 0
      %5850 = vmatpush2.bf16.msra.mxu0 0
      %5851 = vmatprep.subr.bf16.mxu0 0
      %5852 = vmatpush2.bf16.msra.mxu0 0
      %5853 = vmatprep.mubr.bf16.mxu0 0
      %5854 = vmatmul.mubr.bf16.gmra.mxu0 %v5774
      %v5855 = vpop.f32.mrf.mxu0
      %v5856 = vadd.f32 0.0, %v5855
      %v5857 = vpop.f32.mrf.mxu0
      %v5858 = vpop.f32.mrf.mxu0
      %v5859 = vadd.f32 0.0, %v5858
      %v5860 = vpop.f32.mrf.mxu0
      %5861 = vmatprep.mubr.bf16.mxu0 0
      %5862 = vmatmul.mubr.bf16.gmra.mxu0 %v5777
      %v5863 = vpop.f32.mrf.mxu0
      %v5864 = vadd.f32 0.0, %v5863
      %v5865 = vpop.f32.mrf.mxu0
      %v5866 = vpop.f32.mrf.mxu0
      %v5867 = vadd.f32 0.0, %v5866
      %v5868 = vpop.f32.mrf.mxu0
      %5869 = vmatprep.mubr.bf16.mxu0 0
      %5870 = vmatmul.mubr.bf16.gmra.mxu0 %v5780
      %v5871 = vpop.f32.mrf.mxu0
      %v5872 = vadd.f32 0.0, %v5871
      %v5873 = vpop.f32.mrf.mxu0
      %v5874 = vpop.f32.mrf.mxu0
      %v5875 = vadd.f32 0.0, %v5874
      %v5876 = vpop.f32.mrf.mxu0
      %5877 = vmatprep.mubr.bf16.mxu0 0
      %5878 = vmatmul.mubr.bf16.gmra.mxu0 %v5783
      %v5879 = vpop.f32.mrf.mxu0
      %v5880 = vadd.f32 0.0, %v5879
      %v5881 = vpop.f32.mrf.mxu0
      %v5882 = vpop.f32.mrf.mxu0
      %v5883 = vadd.f32 0.0, %v5882
      %v5884 = vpop.f32.mrf.mxu0
      %5885 = vmatprep.mubr.bf16.mxu0 0
      %5886 = vmatmul.mubr.bf16.gmra.mxu0 %v5786
      %v5887 = vpop.f32.mrf.mxu0
      %v5888 = vadd.f32 0.0, %v5887
      %v5889 = vpop.f32.mrf.mxu0
      %v5890 = vpop.f32.mrf.mxu0
      %v5891 = vadd.f32 0.0, %v5890
      %v5892 = vpop.f32.mrf.mxu0
      %5893 = vmatprep.mubr.bf16.mxu0 0
      %5894 = vmatmul.mubr.bf16.gmra.mxu0 %v5789
      %v5895 = vpop.f32.mrf.mxu0
      %v5896 = vadd.f32 0.0, %v5895
      %v5897 = vpop.f32.mrf.mxu0
      %v5898 = vpop.f32.mrf.mxu0
      %v5899 = vadd.f32 0.0, %v5898
      %v5900 = vpop.f32.mrf.mxu0
      %5901 = vmatprep.mubr.bf16.mxu0 0
      %5902 = vmatmul.mubr.bf16.gmra.mxu0 %v5792
      %v5903 = vpop.f32.mrf.mxu0
      %v5904 = vadd.f32 0.0, %v5903
      %v5905 = vpop.f32.mrf.mxu0
      %v5906 = vpop.f32.mrf.mxu0
      %v5907 = vadd.f32 0.0, %v5906
      %v5908 = vpop.f32.mrf.mxu0
      %5909 = vmatprep.mubr.bf16.mxu0 0
      %5910 = vmatmul.mubr.bf16.gmra.mxu0 %v5795
      %v5911 = vpop.f32.mrf.mxu0
      %v5912 = vadd.f32 0.0, %v5911
      %v5913 = vpop.f32.mrf.mxu0
      %v5914 = vpop.f32.mrf.mxu0
      %v5915 = vadd.f32 0.0, %v5914
      %v5916 = vpop.f32.mrf.mxu0
      %5917 = vmatprep.mubr.bf16.mxu0 0
      %5918 = vmatmul.mubr.bf16.gmra.mxu0 %v5798
      %v5919 = vpop.f32.mrf.mxu0
      %v5920 = vadd.f32 0.0, %v5919
      %v5921 = vpop.f32.mrf.mxu0
      %v5922 = vpop.f32.mrf.mxu0
      %v5923 = vadd.f32 0.0, %v5922
      %v5924 = vpop.f32.mrf.mxu0
      %5925 = vmatprep.mubr.bf16.mxu0 0
      %5926 = vmatmul.mubr.bf16.gmra.mxu0 %v5801
      %v5927 = vpop.f32.mrf.mxu0
      %v5928 = vadd.f32 0.0, %v5927
      %v5929 = vpop.f32.mrf.mxu0
      %v5930 = vpop.f32.mrf.mxu0
      %v5931 = vadd.f32 0.0, %v5930
      %v5932 = vpop.f32.mrf.mxu0
      %5933 = vmatprep.mubr.bf16.mxu0 0
      %5934 = vmatmul.mubr.bf16.gmra.mxu0 %v5804
      %v5935 = vpop.f32.mrf.mxu0
      %v5936 = vadd.f32 0.0, %v5935
      %v5937 = vpop.f32.mrf.mxu0
      %v5938 = vpop.f32.mrf.mxu0
      %v5939 = vadd.f32 0.0, %v5938
      %v5940 = vpop.f32.mrf.mxu0
      %5941 = vmatprep.mubr.bf16.mxu0 0
      %5942 = vmatmul.mubr.bf16.gmra.mxu0 %v5807
      %v5943 = vpop.f32.mrf.mxu0
      %v5944 = vadd.f32 0.0, %v5943
      %v5945 = vpop.f32.mrf.mxu0
      %v5946 = vpop.f32.mrf.mxu0
      %v5947 = vadd.f32 0.0, %v5946
      %v5948 = vpop.f32.mrf.mxu0
      %5949 = vmatprep.mubr.bf16.mxu0 0
      %5950 = vmatmul.mubr.bf16.gmra.mxu0 %v5810
      %v5951 = vpop.f32.mrf.mxu0
      %v5952 = vadd.f32 0.0, %v5951
      %v5953 = vpop.f32.mrf.mxu0
      %v5954 = vpop.f32.mrf.mxu0
      %v5955 = vadd.f32 0.0, %v5954
      %v5956 = vpop.f32.mrf.mxu0
      %5957 = vmatprep.mubr.bf16.mxu0 0
      %5958 = vmatmul.mubr.bf16.gmra.mxu0 %v5813
      %v5959 = vpop.f32.mrf.mxu0
      %v5960 = vadd.f32 0.0, %v5959
      %v5961 = vpop.f32.mrf.mxu0
      %v5962 = vpop.f32.mrf.mxu0
      %v5963 = vadd.f32 0.0, %v5962
      %v5964 = vpop.f32.mrf.mxu0
      %5965 = vmatprep.mubr.bf16.mxu0 0
      %5966 = vmatmul.mubr.bf16.gmra.mxu0 %v5816
      %v5967 = vpop.f32.mrf.mxu0
      %v5968 = vadd.f32 0.0, %v5967
      %v5969 = vpop.f32.mrf.mxu0
      %v5970 = vpop.f32.mrf.mxu0
      %v5971 = vadd.f32 0.0, %v5970
      %v5972 = vpop.f32.mrf.mxu0
      %5973 = vmatprep.mubr.bf16.mxu0 0
      %5974 = vmatmul.mubr.bf16.gmra.mxu0 %v5819
      %v5975 = vpop.f32.mrf.mxu0
      %v5976 = vadd.f32 0.0, %v5975
      %v5977 = vpop.f32.mrf.mxu0
      %v5978 = vpop.f32.mrf.mxu0
      %v5979 = vadd.f32 0.0, %v5978
      %v5980 = vpop.f32.mrf.mxu0
      %5981 = vdwg.mxu0
      %v5982 = vadd.f32 %v5660, %v5856
      %v5983 = vadd.f32 %v5661, %v5859
      %v5984 = vadd.f32 %v5662, %v5864
      %v5985 = vadd.f32 %v5663, %v5867
      %v5986 = vadd.f32 %v5664, %v5872
      %v5987 = vadd.f32 %v5665, %v5875
      %v5988 = vadd.f32 %v5666, %v5880
      %v5989 = vadd.f32 %v5667, %v5883
      %v5990 = vadd.f32 %v5668, %v5888
      %v5991 = vadd.f32 %v5669, %v5891
      %v5992 = vadd.f32 %v5670, %v5896
      %v5993 = vadd.f32 %v5671, %v5899
      %v5994 = vadd.f32 %v5672, %v5904
      %v5995 = vadd.f32 %v5673, %v5907
      %v5996 = vadd.f32 %v5674, %v5912
      %v5997 = vadd.f32 %v5675, %v5915
      %v5998 = vadd.f32 %v5676, %v5920
      %v5999 = vadd.f32 %v5677, %v5923
      %v6000 = vadd.f32 %v5678, %v5928
      %v6001 = vadd.f32 %v5679, %v5931
      %v6002 = vadd.f32 %v5680, %v5936
      %v6003 = vadd.f32 %v5681, %v5939
      %v6004 = vadd.f32 %v5682, %v5944
      %v6005 = vadd.f32 %v5683, %v5947
      %v6006 = vadd.f32 %v5684, %v5952
      %v6007 = vadd.f32 %v5685, %v5955
      %v6008 = vadd.f32 %v5686, %v5960
      %v6009 = vadd.f32 %v5687, %v5963
      %v6010 = vadd.f32 %v5688, %v5968
      %v6011 = vadd.f32 %v5689, %v5971
      %v6012 = vadd.f32 %v5690, %v5976
      %v6013 = vadd.f32 %v5691, %v5979
      %v6014 = vld [vmem:[%s4] sm:$0x1]
      %v6016 = vlaneseq
      %v6017 = vshrl.u32 %v6016, 7
      %v6018 = vsub.s32 0, %v6017
      %v6019 = vrot.slane %v6014, %v6018
      %v6021 = vadd.f32 %v5982, %v6019
      %v6022 = vadd.f32 %v5983, %v6019
      %v6023 = vadd.f32 %v5984, %v6019
      %v6024 = vadd.f32 %v5985, %v6019
      %v6025 = vadd.f32 %v5986, %v6019
      %v6026 = vadd.f32 %v5987, %v6019
      %v6027 = vadd.f32 %v5988, %v6019
      %v6028 = vadd.f32 %v5989, %v6019
      %v6029 = vadd.f32 %v5990, %v6019
      %v6030 = vadd.f32 %v5991, %v6019
      %v6031 = vadd.f32 %v5992, %v6019
      %v6032 = vadd.f32 %v5993, %v6019
      %v6033 = vadd.f32 %v5994, %v6019
      %v6034 = vadd.f32 %v5995, %v6019
      %v6035 = vadd.f32 %v5996, %v6019
      %v6036 = vadd.f32 %v5997, %v6019
      %v6037 = vadd.f32 %v5998, %v6019
      %v6038 = vadd.f32 %v5999, %v6019
      %v6039 = vadd.f32 %v6000, %v6019
      %v6040 = vadd.f32 %v6001, %v6019
      %v6041 = vadd.f32 %v6002, %v6019
      %v6042 = vadd.f32 %v6003, %v6019
      %v6043 = vadd.f32 %v6004, %v6019
      %v6044 = vadd.f32 %v6005, %v6019
      %v6045 = vadd.f32 %v6006, %v6019
      %v6046 = vadd.f32 %v6007, %v6019
      %v6047 = vadd.f32 %v6008, %v6019
      %v6048 = vadd.f32 %v6009, %v6019
      %v6049 = vadd.f32 %v6010, %v6019
      %v6050 = vadd.f32 %v6011, %v6019
      %v6051 = vadd.f32 %v6012, %v6019
      %v6052 = vadd.f32 %v6013, %v6019
      %v6053 = vmax.f32 %v6021, 0.0
      %v6054 = vmax.f32 %v6022, 0.0
      %v6055 = vmax.f32 %v6023, 0.0
      %v6056 = vmax.f32 %v6024, 0.0
      %v6057 = vmax.f32 %v6025, 0.0
      %v6058 = vmax.f32 %v6026, 0.0
      %v6059 = vmax.f32 %v6027, 0.0
      %v6060 = vmax.f32 %v6028, 0.0
      %v6061 = vmax.f32 %v6029, 0.0
      %v6062 = vmax.f32 %v6030, 0.0
      %v6063 = vmax.f32 %v6031, 0.0
      %v6064 = vmax.f32 %v6032, 0.0
      %v6065 = vmax.f32 %v6033, 0.0
      %v6066 = vmax.f32 %v6034, 0.0
      %v6067 = vmax.f32 %v6035, 0.0
      %v6068 = vmax.f32 %v6036, 0.0
      %v6069 = vmax.f32 %v6037, 0.0
      %v6070 = vmax.f32 %v6038, 0.0
      %v6071 = vmax.f32 %v6039, 0.0
      %v6072 = vmax.f32 %v6040, 0.0
      %v6073 = vmax.f32 %v6041, 0.0
      %v6074 = vmax.f32 %v6042, 0.0
      %v6075 = vmax.f32 %v6043, 0.0
      %v6076 = vmax.f32 %v6044, 0.0
      %v6077 = vmax.f32 %v6045, 0.0
      %v6078 = vmax.f32 %v6046, 0.0
      %v6079 = vmax.f32 %v6047, 0.0
      %v6080 = vmax.f32 %v6048, 0.0
      %v6081 = vmax.f32 %v6049, 0.0
      %v6082 = vmax.f32 %v6050, 0.0
      %v6083 = vmax.f32 %v6051, 0.0
      %v6084 = vmax.f32 %v6052, 0.0
      %v6085 = vmax.f32 %v6053, %v6055
      %v6086 = vmax.f32 %v6054, %v6056
      %v6087 = vmax.f32 %v6057, %v6059
      %v6088 = vmax.f32 %v6058, %v6060
      %v6089 = vmax.f32 %v6061, %v6063
      %v6090 = vmax.f32 %v6062, %v6064
      %v6091 = vmax.f32 %v6065, %v6067
      %v6092 = vmax.f32 %v6066, %v6068
      %v6093 = vmax.f32 %v6069, %v6071
      %v6094 = vmax.f32 %v6070, %v6072
      %v6095 = vmax.f32 %v6073, %v6075
      %v6096 = vmax.f32 %v6074, %v6076
      %v6097 = vmax.f32 %v6077, %v6079
      %v6098 = vmax.f32 %v6078, %v6080
      %v6099 = vmax.f32 %v6081, %v6083
      %v6100 = vmax.f32 %v6082, %v6084
      %v6101 = vld [vmem:[%s5] sm:$0xf]
      %v6102 = vld [vmem:[%s5 + $0x4] sm:$0xf]
      %v6103 = vld [vmem:[%s5 + $0x8] sm:$0xf]
      %v6104 = vld [vmem:[%s5 + $0xc] sm:$0xf]
      %v6105 = vld [vmem:[%s5 + $0x10] sm:$0xf]
      %v6106 = vld [vmem:[%s5 + $0x14] sm:$0xf]
      %v6107 = vld [vmem:[%s5 + $0x18] sm:$0xf]
      %v6108 = vld [vmem:[%s5 + $0x1c] sm:$0xf]
      %v6109 = vld [vmem:[%s5 + $0x20] sm:$0xf]
      %v6110 = vld [vmem:[%s5 + $0x24] sm:$0xf]
      %v6111 = vld [vmem:[%s5 + $0x28] sm:$0xf]
      %v6112 = vld [vmem:[%s5 + $0x2c] sm:$0xf]
      %v6113 = vld [vmem:[%s5 + $0x30] sm:$0xf]
      %v6114 = vld [vmem:[%s5 + $0x34] sm:$0xf]
      %v6115 = vld [vmem:[%s5 + $0x38] sm:$0xf]
      %v6116 = vld [vmem:[%s5 + $0x3c] sm:$0xf]
      %v6117 = vpack.c.bf16 %v6086, %v6085
      %v6118 = vpack.c.bf16 %v6088, %v6087
      %v6119 = vpack.c.bf16 %v6090, %v6089
      %v6120 = vpack.c.bf16 %v6092, %v6091
      %v6121 = vpack.c.bf16 %v6094, %v6093
      %v6122 = vpack.c.bf16 %v6096, %v6095
      %v6123 = vpack.c.bf16 %v6098, %v6097
      %v6124 = vpack.c.bf16 %v6100, %v6099
      %v6141 = vunpack.c.l.b16 %v6101
      %v6142 = vunpack.c.l.b16 %v6102
      %v6143 = vunpack.c.l.b16 %v6103
      %v6144 = vunpack.c.l.b16 %v6104
      %v6145 = vunpack.c.l.b16 %v6105
      %v6146 = vunpack.c.l.b16 %v6106
      %v6147 = vunpack.c.l.b16 %v6107
      %v6148 = vunpack.c.l.b16 %v6108
      %v6149 = vunpack.c.l.b16 %v6109
      %v6150 = vunpack.c.l.b16 %v6110
      %v6151 = vunpack.c.l.b16 %v6111
      %v6152 = vunpack.c.l.b16 %v6112
      %v6153 = vunpack.c.l.b16 %v6113
      %v6154 = vunpack.c.l.b16 %v6114
      %v6155 = vunpack.c.l.b16 %v6115
      %v6156 = vunpack.c.l.b16 %v6116
      %v6157 = vpack.c.b16 %v6142, %v6141
      %v6158 = vpack.c.b16 %v6144, %v6143
      %v6159 = vpack.c.b16 %v6146, %v6145
      %v6160 = vpack.c.b16 %v6148, %v6147
      %v6161 = vpack.c.b16 %v6150, %v6149
      %v6162 = vpack.c.b16 %v6152, %v6151
      %v6163 = vpack.c.b16 %v6154, %v6153
      %v6164 = vpack.c.b16 %v6156, %v6155
      %6173 = vmatprep.subr.bf16.mxu0 0
      %6174 = vmatpush1.bf16.msra.mxu0 %v6124
      %6175 = vmatprep.subr.bf16.mxu0 0
      %6176 = vmatpush1.bf16.msra.mxu0 %v6123
      %6177 = vmatprep.subr.bf16.mxu0 0
      %6178 = vmatpush1.bf16.msra.mxu0 %v6122
      %6179 = vmatprep.subr.bf16.mxu0 0
      %6180 = vmatpush1.bf16.msra.mxu0 %v6121
      %6181 = vmatprep.subr.bf16.mxu0 0
      %6182 = vmatpush1.bf16.msra.mxu0 %v6120
      %6183 = vmatprep.subr.bf16.mxu0 0
      %6184 = vmatpush1.bf16.msra.mxu0 %v6119
      %6185 = vmatprep.subr.bf16.mxu0 0
      %6186 = vmatpush1.bf16.msra.mxu0 %v6118
      %6187 = vmatprep.subr.bf16.mxu0 0
      %6188 = vmatpush1.bf16.msra.mxu0 %v6117
      %6189 = vmatprep.subr.bf16.mxu0 0
      %6190 = vmatpush2.bf16.msra.mxu0 0
      %6191 = vmatprep.subr.bf16.mxu0 0
      %6192 = vmatpush2.bf16.msra.mxu0 0
      %6193 = vmatprep.subr.bf16.mxu0 0
      %6194 = vmatpush2.bf16.msra.mxu0 0
      %6195 = vmatprep.subr.bf16.mxu0 0
      %6196 = vmatpush2.bf16.msra.mxu0 0
      %6197 = vmatprep.subr.bf16.mxu0 0
      %6198 = vmatpush2.bf16.msra.mxu0 0
      %6199 = vmatprep.subr.bf16.mxu0 0
      %6200 = vmatpush2.bf16.msra.mxu0 0
      %6201 = vmatprep.subr.bf16.mxu0 0
      %6202 = vmatpush2.bf16.msra.mxu0 0
      %6203 = vmatprep.subr.bf16.mxu0 0
      %6204 = vmatpush2.bf16.msra.mxu0 0
      %6205 = vmatprep.mubr.bf16.mxu0 0
      %6206 = vmatmul.mubr.bf16.gmra.mxu0 %v6157
      %v6207 = vpop.f32.mrf.mxu0
      %v6208 = vadd.f32 0.0, %v6207
      %v6209 = vpop.f32.mrf.mxu0
      %v6210 = vpop.f32.mrf.mxu0
      %v6211 = vadd.f32 0.0, %v6210
      %v6212 = vpop.f32.mrf.mxu0
      %6213 = vmatprep.mubr.bf16.mxu0 0
      %6214 = vmatmul.mubr.bf16.gmra.mxu0 %v6158
      %v6215 = vpop.f32.mrf.mxu0
      %v6216 = vadd.f32 0.0, %v6215
      %v6217 = vpop.f32.mrf.mxu0
      %v6218 = vpop.f32.mrf.mxu0
      %v6219 = vadd.f32 0.0, %v6218
      %v6220 = vpop.f32.mrf.mxu0
      %6221 = vmatprep.mubr.bf16.mxu0 0
      %6222 = vmatmul.mubr.bf16.gmra.mxu0 %v6159
      %v6223 = vpop.f32.mrf.mxu0
      %v6224 = vadd.f32 0.0, %v6223
      %v6225 = vpop.f32.mrf.mxu0
      %v6226 = vpop.f32.mrf.mxu0
      %v6227 = vadd.f32 0.0, %v6226
      %v6228 = vpop.f32.mrf.mxu0
      %6229 = vmatprep.mubr.bf16.mxu0 0
      %6230 = vmatmul.mubr.bf16.gmra.mxu0 %v6160
      %v6231 = vpop.f32.mrf.mxu0
      %v6232 = vadd.f32 0.0, %v6231
      %v6233 = vpop.f32.mrf.mxu0
      %v6234 = vpop.f32.mrf.mxu0
      %v6235 = vadd.f32 0.0, %v6234
      %v6236 = vpop.f32.mrf.mxu0
      %6237 = vmatprep.mubr.bf16.mxu0 0
      %6238 = vmatmul.mubr.bf16.gmra.mxu0 %v6161
      %v6239 = vpop.f32.mrf.mxu0
      %v6240 = vadd.f32 0.0, %v6239
      %v6241 = vpop.f32.mrf.mxu0
      %v6242 = vpop.f32.mrf.mxu0
      %v6243 = vadd.f32 0.0, %v6242
      %v6244 = vpop.f32.mrf.mxu0
      %6245 = vmatprep.mubr.bf16.mxu0 0
      %6246 = vmatmul.mubr.bf16.gmra.mxu0 %v6162
      %v6247 = vpop.f32.mrf.mxu0
      %v6248 = vadd.f32 0.0, %v6247
      %v6249 = vpop.f32.mrf.mxu0
      %v6250 = vpop.f32.mrf.mxu0
      %v6251 = vadd.f32 0.0, %v6250
      %v6252 = vpop.f32.mrf.mxu0
      %6253 = vmatprep.mubr.bf16.mxu0 0
      %6254 = vmatmul.mubr.bf16.gmra.mxu0 %v6163
      %v6255 = vpop.f32.mrf.mxu0
      %v6256 = vadd.f32 0.0, %v6255
      %v6257 = vpop.f32.mrf.mxu0
      %v6258 = vpop.f32.mrf.mxu0
      %v6259 = vadd.f32 0.0, %v6258
      %v6260 = vpop.f32.mrf.mxu0
      %6261 = vmatprep.mubr.bf16.mxu0 0
      %6262 = vmatmul.mubr.bf16.gmra.mxu0 %v6164
      %v6263 = vpop.f32.mrf.mxu0
      %v6264 = vadd.f32 0.0, %v6263
      %v6265 = vpop.f32.mrf.mxu0
      %v6266 = vpop.f32.mrf.mxu0
      %v6267 = vadd.f32 0.0, %v6266
      %v6268 = vpop.f32.mrf.mxu0
      %6269 = vdwg.mxu0
      %v6270 = vmax.f32 %v6208, %v6240
      %v6271 = vmax.f32 %v6211, %v6243
      %v6272 = vmax.f32 %v6216, %v6248
      %v6273 = vmax.f32 %v6219, %v6251
      %v6274 = vmax.f32 %v6224, %v6256
      %v6275 = vmax.f32 %v6227, %v6259
      %v6276 = vmax.f32 %v6232, %v6264
      %v6277 = vmax.f32 %v6235, %v6267
      %s6278 = scalar_lea.vmem [#allocation3], 24
      %6279 = vst.msk [vmem:[%s6278 + $0x8] sm:$0xff] %vm388, %v6270
      %6280 = vst.msk [vmem:[%s6278 + $0x20] sm:$0xff] %vm388, %v6271
      %6281 = vst.msk [vmem:[%s6278 + $0x38] sm:$0xff] %vm388, %v6272
      %6282 = vst.msk [vmem:[%s6278 + $0x50] sm:$0xff] %vm388, %v6273
      %6283 = vst.msk [vmem:[%s6278 + $0x68] sm:$0xff] %vm388, %v6274
      %6284 = vst.msk [vmem:[%s6278 + $0x80] sm:$0xff] %vm388, %v6275
      %6285 = vst.msk [vmem:[%s6278 + $0x98] sm:$0xff] %vm388, %v6276
      %6286 = vst.msk [vmem:[%s6278 + $0xb0] sm:$0xff] %vm388, %v6277
      %v6287 = vld [vmem:[#allocation3 + $0x7] sm:$0xff]
      %v6288 = vld [vmem:[#allocation3 + $0x1f] sm:$0xff]
      %v6289 = vld [vmem:[#allocation3 + $0x37] sm:$0xff]
      %v6290 = vld [vmem:[#allocation3 + $0x4f] sm:$0xff]
      %v6291 = vld [vmem:[#allocation3 + $0x67] sm:$0xff]
      %v6292 = vld [vmem:[#allocation3 + $0x7f] sm:$0xff]
      %v6293 = vld [vmem:[#allocation3 + $0x97] sm:$0xff]
      %v6294 = vld [vmem:[#allocation3 + $0xaf] sm:$0xff]
      %v6295 = vpack.c.bf16 %v6288, %v6287
      %v6296 = vpack.c.bf16 %v6290, %v6289
      %v6297 = vpack.c.bf16 %v6292, %v6291
      %v6298 = vpack.c.bf16 %v6294, %v6293
      %v6299 = vld [vmem:[%s6] sm:$0xf]
      %v6300 = vld [vmem:[%s6 + $0x4] sm:$0xf]
      %v6301 = vld [vmem:[%s6 + $0x8] sm:$0xf]
      %v6302 = vld [vmem:[%s6 + $0xc] sm:$0xf]
      %v6303 = vld [vmem:[%s6 + $0x10] sm:$0xf]
      %v6304 = vld [vmem:[%s6 + $0x14] sm:$0xf]
      %v6305 = vld [vmem:[%s6 + $0x18] sm:$0xf]
      %v6306 = vld [vmem:[%s6 + $0x1c] sm:$0xf]
      %v6307 = vld [vmem:[#allocation3 + $0x8] sm:$0xff]
      %v6308 = vld [vmem:[#allocation3 + $0x20] sm:$0xff]
      %v6309 = vld [vmem:[#allocation3 + $0x38] sm:$0xff]
      %v6310 = vld [vmem:[#allocation3 + $0x50] sm:$0xff]
      %v6311 = vld [vmem:[#allocation3 + $0x68] sm:$0xff]
      %v6312 = vld [vmem:[#allocation3 + $0x80] sm:$0xff]
      %v6313 = vld [vmem:[#allocation3 + $0x98] sm:$0xff]
      %v6314 = vld [vmem:[#allocation3 + $0xb0] sm:$0xff]
      %v6315 = vpack.c.bf16 %v6308, %v6307
      %v6316 = vpack.c.bf16 %v6310, %v6309
      %v6317 = vpack.c.bf16 %v6312, %v6311
      %v6318 = vpack.c.bf16 %v6314, %v6313
      %s6319 = scalar_lea.vmem %s6, 32
      %v6320 = vld [vmem:[%s6319] sm:$0xf]
      %v6321 = vld [vmem:[%s6319 + $0x4] sm:$0xf]
      %v6322 = vld [vmem:[%s6319 + $0x8] sm:$0xf]
      %v6323 = vld [vmem:[%s6319 + $0xc] sm:$0xf]
      %v6324 = vld [vmem:[%s6319 + $0x10] sm:$0xf]
      %v6325 = vld [vmem:[%s6319 + $0x14] sm:$0xf]
      %v6326 = vld [vmem:[%s6319 + $0x18] sm:$0xf]
      %v6327 = vld [vmem:[%s6319 + $0x1c] sm:$0xf]
      %v6336 = vunpack.c.l.b16 %v6320
      %v6337 = vunpack.c.l.b16 %v6321
      %v6338 = vunpack.c.l.b16 %v6322
      %v6339 = vunpack.c.l.b16 %v6323
      %v6340 = vunpack.c.l.b16 %v6324
      %v6341 = vunpack.c.l.b16 %v6325
      %v6342 = vunpack.c.l.b16 %v6326
      %v6343 = vunpack.c.l.b16 %v6327
      %v6344 = vpack.c.b16 %v6337, %v6336
      %v6345 = vpack.c.b16 %v6339, %v6338
      %v6346 = vpack.c.b16 %v6341, %v6340
      %v6347 = vpack.c.b16 %v6343, %v6342
      %v6353 = vsel %vm388, %v6315, 0
      %v6356 = vsel %vm388, %v6316, 0
      %v6359 = vsel %vm388, %v6317, 0
      %v6362 = vsel %vm388, %v6318, 0
      %6364 = vmatprep.subr.bf16.mxu0 0
      %6365 = vmatpush1.bf16.msra.mxu0 0
      %6366 = vmatprep.subr.bf16.mxu0 0
      %6367 = vmatpush1.bf16.msra.mxu0 0
      %6368 = vmatprep.subr.bf16.mxu0 0
      %6369 = vmatpush1.bf16.msra.mxu0 0
      %6370 = vmatprep.subr.bf16.mxu0 0
      %6371 = vmatpush1.bf16.msra.mxu0 0
      %6372 = vmatprep.subr.bf16.mxu0 0
      %6373 = vmatpush1.bf16.msra.mxu0 %v6347
      %6374 = vmatprep.subr.bf16.mxu0 0
      %6375 = vmatpush1.bf16.msra.mxu0 %v6346
      %6376 = vmatprep.subr.bf16.mxu0 0
      %6377 = vmatpush1.bf16.msra.mxu0 %v6345
      %6378 = vmatprep.subr.bf16.mxu0 0
      %6379 = vmatpush1.bf16.msra.mxu0 %v6344
      %6380 = vmatprep.subr.bf16.mxu0 0
      %6381 = vmatpush2.bf16.msra.mxu0 0
      %6382 = vmatprep.subr.bf16.mxu0 0
      %6383 = vmatpush2.bf16.msra.mxu0 0
      %6384 = vmatprep.subr.bf16.mxu0 0
      %6385 = vmatpush2.bf16.msra.mxu0 0
      %6386 = vmatprep.subr.bf16.mxu0 0
      %6387 = vmatpush2.bf16.msra.mxu0 0
      %6388 = vmatprep.subr.bf16.mxu0 0
      %6389 = vmatpush2.bf16.msra.mxu0 0
      %6390 = vmatprep.subr.bf16.mxu0 0
      %6391 = vmatpush2.bf16.msra.mxu0 0
      %6392 = vmatprep.subr.bf16.mxu0 0
      %6393 = vmatpush2.bf16.msra.mxu0 0
      %6394 = vmatprep.subr.bf16.mxu0 0
      %6395 = vmatpush2.bf16.msra.mxu0 0
      %6396 = vmatprep.mubr.bf16.mxu0 0
      %6397 = vmatmul.mubr.bf16.gmra.mxu0 %v6353
      %v6398 = vpop.f32.mrf.mxu0
      %v6399 = vadd.f32 0.0, %v6398
      %v6400 = vpop.f32.mrf.mxu0
      %v6401 = vpop.f32.mrf.mxu0
      %v6402 = vadd.f32 0.0, %v6401
      %v6403 = vpop.f32.mrf.mxu0
      %6404 = vmatprep.mubr.bf16.mxu0 0
      %6405 = vmatmul.mubr.bf16.gmra.mxu0 %v6356
      %v6406 = vpop.f32.mrf.mxu0
      %v6407 = vadd.f32 0.0, %v6406
      %v6408 = vpop.f32.mrf.mxu0
      %v6409 = vpop.f32.mrf.mxu0
      %v6410 = vadd.f32 0.0, %v6409
      %v6411 = vpop.f32.mrf.mxu0
      %6412 = vmatprep.mubr.bf16.mxu0 0
      %6413 = vmatmul.mubr.bf16.gmra.mxu0 %v6359
      %v6414 = vpop.f32.mrf.mxu0
      %v6415 = vadd.f32 0.0, %v6414
      %v6416 = vpop.f32.mrf.mxu0
      %v6417 = vpop.f32.mrf.mxu0
      %v6418 = vadd.f32 0.0, %v6417
      %v6419 = vpop.f32.mrf.mxu0
      %6420 = vmatprep.mubr.bf16.mxu0 0
      %6421 = vmatmul.mubr.bf16.gmra.mxu0 %v6362
      %v6422 = vpop.f32.mrf.mxu0
      %v6423 = vadd.f32 0.0, %v6422
      %v6424 = vpop.f32.mrf.mxu0
      %v6425 = vpop.f32.mrf.mxu0
      %v6426 = vadd.f32 0.0, %v6425
      %v6427 = vpop.f32.mrf.mxu0
      %6428 = vdwg.mxu0
      %v6437 = vunpack.c.l.b16 %v6299
      %v6438 = vunpack.c.l.b16 %v6300
      %v6439 = vunpack.c.l.b16 %v6301
      %v6440 = vunpack.c.l.b16 %v6302
      %v6441 = vunpack.c.l.b16 %v6303
      %v6442 = vunpack.c.l.b16 %v6304
      %v6443 = vunpack.c.l.b16 %v6305
      %v6444 = vunpack.c.l.b16 %v6306
      %v6445 = vpack.c.b16 %v6438, %v6437
      %v6446 = vpack.c.b16 %v6440, %v6439
      %v6447 = vpack.c.b16 %v6442, %v6441
      %v6448 = vpack.c.b16 %v6444, %v6443
      %v6454 = vsel %vm388, %v6295, 0
      %v6457 = vsel %vm388, %v6296, 0
      %v6460 = vsel %vm388, %v6297, 0
      %v6463 = vsel %vm388, %v6298, 0
      %6465 = vmatprep.subr.bf16.mxu0 0
      %6466 = vmatpush1.bf16.msra.mxu0 0
      %6467 = vmatprep.subr.bf16.mxu0 0
      %6468 = vmatpush1.bf16.msra.mxu0 0
      %6469 = vmatprep.subr.bf16.mxu0 0
      %6470 = vmatpush1.bf16.msra.mxu0 0
      %6471 = vmatprep.subr.bf16.mxu0 0
      %6472 = vmatpush1.bf16.msra.mxu0 0
      %6473 = vmatprep.subr.bf16.mxu0 0
      %6474 = vmatpush1.bf16.msra.mxu0 %v6448
      %6475 = vmatprep.subr.bf16.mxu0 0
      %6476 = vmatpush1.bf16.msra.mxu0 %v6447
      %6477 = vmatprep.subr.bf16.mxu0 0
      %6478 = vmatpush1.bf16.msra.mxu0 %v6446
      %6479 = vmatprep.subr.bf16.mxu0 0
      %6480 = vmatpush1.bf16.msra.mxu0 %v6445
      %6481 = vmatprep.subr.bf16.mxu0 0
      %6482 = vmatpush2.bf16.msra.mxu0 0
      %6483 = vmatprep.subr.bf16.mxu0 0
      %6484 = vmatpush2.bf16.msra.mxu0 0
      %6485 = vmatprep.subr.bf16.mxu0 0
      %6486 = vmatpush2.bf16.msra.mxu0 0
      %6487 = vmatprep.subr.bf16.mxu0 0
      %6488 = vmatpush2.bf16.msra.mxu0 0
      %6489 = vmatprep.subr.bf16.mxu0 0
      %6490 = vmatpush2.bf16.msra.mxu0 0
      %6491 = vmatprep.subr.bf16.mxu0 0
      %6492 = vmatpush2.bf16.msra.mxu0 0
      %6493 = vmatprep.subr.bf16.mxu0 0
      %6494 = vmatpush2.bf16.msra.mxu0 0
      %6495 = vmatprep.subr.bf16.mxu0 0
      %6496 = vmatpush2.bf16.msra.mxu0 0
      %6497 = vmatprep.mubr.bf16.mxu0 0
      %6498 = vmatmul.mubr.bf16.gmra.mxu0 %v6454
      %v6499 = vpop.f32.mrf.mxu0
      %v6500 = vadd.f32 %v6399, %v6499
      %v6501 = vpop.f32.mrf.mxu0
      %v6502 = vpop.f32.mrf.mxu0
      %v6503 = vadd.f32 %v6402, %v6502
      %v6504 = vpop.f32.mrf.mxu0
      %6505 = vmatprep.mubr.bf16.mxu0 0
      %6506 = vmatmul.mubr.bf16.gmra.mxu0 %v6457
      %v6507 = vpop.f32.mrf.mxu0
      %v6508 = vadd.f32 %v6407, %v6507
      %v6509 = vpop.f32.mrf.mxu0
      %v6510 = vpop.f32.mrf.mxu0
      %v6511 = vadd.f32 %v6410, %v6510
      %v6512 = vpop.f32.mrf.mxu0
      %6513 = vmatprep.mubr.bf16.mxu0 0
      %6514 = vmatmul.mubr.bf16.gmra.mxu0 %v6460
      %v6515 = vpop.f32.mrf.mxu0
      %v6516 = vadd.f32 %v6415, %v6515
      %v6517 = vpop.f32.mrf.mxu0
      %v6518 = vpop.f32.mrf.mxu0
      %v6519 = vadd.f32 %v6418, %v6518
      %v6520 = vpop.f32.mrf.mxu0
      %6521 = vmatprep.mubr.bf16.mxu0 0
      %6522 = vmatmul.mubr.bf16.gmra.mxu0 %v6463
      %v6523 = vpop.f32.mrf.mxu0
      %v6524 = vadd.f32 %v6423, %v6523
      %v6525 = vpop.f32.mrf.mxu0
      %v6526 = vpop.f32.mrf.mxu0
      %v6527 = vadd.f32 %v6426, %v6526
      %v6528 = vpop.f32.mrf.mxu0
      %6529 = vdwg.mxu0
      %v6530 = vld [vmem:[#allocation3 + $0x9] sm:$0xff]
      %v6531 = vld [vmem:[#allocation3 + $0x21] sm:$0xff]
      %v6532 = vld [vmem:[#allocation3 + $0x39] sm:$0xff]
      %v6533 = vld [vmem:[#allocation3 + $0x51] sm:$0xff]
      %v6534 = vld [vmem:[#allocation3 + $0x69] sm:$0xff]
      %v6535 = vld [vmem:[#allocation3 + $0x81] sm:$0xff]
      %v6536 = vld [vmem:[#allocation3 + $0x99] sm:$0xff]
      %v6537 = vld [vmem:[#allocation3 + $0xb1] sm:$0xff]
      %v6538 = vpack.c.bf16 %v6531, %v6530
      %v6539 = vpack.c.bf16 %v6533, %v6532
      %v6540 = vpack.c.bf16 %v6535, %v6534
      %v6541 = vpack.c.bf16 %v6537, %v6536
      %s6542 = scalar_lea.vmem %s6, 64
      %v6543 = vld [vmem:[%s6542] sm:$0xf]
      %v6544 = vld [vmem:[%s6542 + $0x4] sm:$0xf]
      %v6545 = vld [vmem:[%s6542 + $0x8] sm:$0xf]
      %v6546 = vld [vmem:[%s6542 + $0xc] sm:$0xf]
      %v6547 = vld [vmem:[%s6542 + $0x10] sm:$0xf]
      %v6548 = vld [vmem:[%s6542 + $0x14] sm:$0xf]
      %v6549 = vld [vmem:[%s6542 + $0x18] sm:$0xf]
      %v6550 = vld [vmem:[%s6542 + $0x1c] sm:$0xf]
      %v6559 = vunpack.c.l.b16 %v6543
      %v6560 = vunpack.c.l.b16 %v6544
      %v6561 = vunpack.c.l.b16 %v6545
      %v6562 = vunpack.c.l.b16 %v6546
      %v6563 = vunpack.c.l.b16 %v6547
      %v6564 = vunpack.c.l.b16 %v6548
      %v6565 = vunpack.c.l.b16 %v6549
      %v6566 = vunpack.c.l.b16 %v6550
      %v6567 = vpack.c.b16 %v6560, %v6559
      %v6568 = vpack.c.b16 %v6562, %v6561
      %v6569 = vpack.c.b16 %v6564, %v6563
      %v6570 = vpack.c.b16 %v6566, %v6565
      %v6576 = vsel %vm388, %v6538, 0
      %v6579 = vsel %vm388, %v6539, 0
      %v6582 = vsel %vm388, %v6540, 0
      %v6585 = vsel %vm388, %v6541, 0
      %6587 = vmatprep.subr.bf16.mxu0 0
      %6588 = vmatpush1.bf16.msra.mxu0 0
      %6589 = vmatprep.subr.bf16.mxu0 0
      %6590 = vmatpush1.bf16.msra.mxu0 0
      %6591 = vmatprep.subr.bf16.mxu0 0
      %6592 = vmatpush1.bf16.msra.mxu0 0
      %6593 = vmatprep.subr.bf16.mxu0 0
      %6594 = vmatpush1.bf16.msra.mxu0 0
      %6595 = vmatprep.subr.bf16.mxu0 0
      %6596 = vmatpush1.bf16.msra.mxu0 %v6570
      %6597 = vmatprep.subr.bf16.mxu0 0
      %6598 = vmatpush1.bf16.msra.mxu0 %v6569
      %6599 = vmatprep.subr.bf16.mxu0 0
      %6600 = vmatpush1.bf16.msra.mxu0 %v6568
      %6601 = vmatprep.subr.bf16.mxu0 0
      %6602 = vmatpush1.bf16.msra.mxu0 %v6567
      %6603 = vmatprep.subr.bf16.mxu0 0
      %6604 = vmatpush2.bf16.msra.mxu0 0
      %6605 = vmatprep.subr.bf16.mxu0 0
      %6606 = vmatpush2.bf16.msra.mxu0 0
      %6607 = vmatprep.subr.bf16.mxu0 0
      %6608 = vmatpush2.bf16.msra.mxu0 0
      %6609 = vmatprep.subr.bf16.mxu0 0
      %6610 = vmatpush2.bf16.msra.mxu0 0
      %6611 = vmatprep.subr.bf16.mxu0 0
      %6612 = vmatpush2.bf16.msra.mxu0 0
      %6613 = vmatprep.subr.bf16.mxu0 0
      %6614 = vmatpush2.bf16.msra.mxu0 0
      %6615 = vmatprep.subr.bf16.mxu0 0
      %6616 = vmatpush2.bf16.msra.mxu0 0
      %6617 = vmatprep.subr.bf16.mxu0 0
      %6618 = vmatpush2.bf16.msra.mxu0 0
      %6619 = vmatprep.mubr.bf16.mxu0 0
      %6620 = vmatmul.mubr.bf16.gmra.mxu0 %v6576
      %v6621 = vpop.f32.mrf.mxu0
      %v6622 = vadd.f32 0.0, %v6621
      %v6623 = vpop.f32.mrf.mxu0
      %v6624 = vpop.f32.mrf.mxu0
      %v6625 = vadd.f32 0.0, %v6624
      %v6626 = vpop.f32.mrf.mxu0
      %6627 = vmatprep.mubr.bf16.mxu0 0
      %6628 = vmatmul.mubr.bf16.gmra.mxu0 %v6579
      %v6629 = vpop.f32.mrf.mxu0
      %v6630 = vadd.f32 0.0, %v6629
      %v6631 = vpop.f32.mrf.mxu0
      %v6632 = vpop.f32.mrf.mxu0
      %v6633 = vadd.f32 0.0, %v6632
      %v6634 = vpop.f32.mrf.mxu0
      %6635 = vmatprep.mubr.bf16.mxu0 0
      %6636 = vmatmul.mubr.bf16.gmra.mxu0 %v6582
      %v6637 = vpop.f32.mrf.mxu0
      %v6638 = vadd.f32 0.0, %v6637
      %v6639 = vpop.f32.mrf.mxu0
      %v6640 = vpop.f32.mrf.mxu0
      %v6641 = vadd.f32 0.0, %v6640
      %v6642 = vpop.f32.mrf.mxu0
      %6643 = vmatprep.mubr.bf16.mxu0 0
      %6644 = vmatmul.mubr.bf16.gmra.mxu0 %v6585
      %v6645 = vpop.f32.mrf.mxu0
      %v6646 = vadd.f32 0.0, %v6645
      %v6647 = vpop.f32.mrf.mxu0
      %v6648 = vpop.f32.mrf.mxu0
      %v6649 = vadd.f32 0.0, %v6648
      %v6650 = vpop.f32.mrf.mxu0
      %6651 = vdwg.mxu0
      %v6652 = vadd.f32 %v6500, %v6622
      %v6653 = vadd.f32 %v6503, %v6625
      %v6654 = vadd.f32 %v6508, %v6630
      %v6655 = vadd.f32 %v6511, %v6633
      %v6656 = vadd.f32 %v6516, %v6638
      %v6657 = vadd.f32 %v6519, %v6641
      %v6658 = vadd.f32 %v6524, %v6646
      %v6659 = vadd.f32 %v6527, %v6649
      %v6660 = vld [vmem:[%s6278 + $0x7] sm:$0xff]
      %v6661 = vld [vmem:[%s6278 + $0x1f] sm:$0xff]
      %v6662 = vld [vmem:[%s6278 + $0x37] sm:$0xff]
      %v6663 = vld [vmem:[%s6278 + $0x4f] sm:$0xff]
      %v6664 = vld [vmem:[%s6278 + $0x67] sm:$0xff]
      %v6665 = vld [vmem:[%s6278 + $0x7f] sm:$0xff]
      %v6666 = vld [vmem:[%s6278 + $0x97] sm:$0xff]
      %v6667 = vld [vmem:[%s6278 + $0xaf] sm:$0xff]
      %v6668 = vpack.c.bf16 %v6661, %v6660
      %v6669 = vpack.c.bf16 %v6663, %v6662
      %v6670 = vpack.c.bf16 %v6665, %v6664
      %v6671 = vpack.c.bf16 %v6667, %v6666
      %s6672 = scalar_lea.vmem %s6, 96
      %v6673 = vld [vmem:[%s6672] sm:$0xf]
      %v6674 = vld [vmem:[%s6672 + $0x4] sm:$0xf]
      %v6675 = vld [vmem:[%s6672 + $0x8] sm:$0xf]
      %v6676 = vld [vmem:[%s6672 + $0xc] sm:$0xf]
      %v6677 = vld [vmem:[%s6672 + $0x10] sm:$0xf]
      %v6678 = vld [vmem:[%s6672 + $0x14] sm:$0xf]
      %v6679 = vld [vmem:[%s6672 + $0x18] sm:$0xf]
      %v6680 = vld [vmem:[%s6672 + $0x1c] sm:$0xf]
      %v6689 = vunpack.c.l.b16 %v6673
      %v6690 = vunpack.c.l.b16 %v6674
      %v6691 = vunpack.c.l.b16 %v6675
      %v6692 = vunpack.c.l.b16 %v6676
      %v6693 = vunpack.c.l.b16 %v6677
      %v6694 = vunpack.c.l.b16 %v6678
      %v6695 = vunpack.c.l.b16 %v6679
      %v6696 = vunpack.c.l.b16 %v6680
      %v6697 = vpack.c.b16 %v6690, %v6689
      %v6698 = vpack.c.b16 %v6692, %v6691
      %v6699 = vpack.c.b16 %v6694, %v6693
      %v6700 = vpack.c.b16 %v6696, %v6695
      %v6706 = vsel %vm388, %v6668, 0
      %v6709 = vsel %vm388, %v6669, 0
      %v6712 = vsel %vm388, %v6670, 0
      %v6715 = vsel %vm388, %v6671, 0
      %6717 = vmatprep.subr.bf16.mxu0 0
      %6718 = vmatpush1.bf16.msra.mxu0 0
      %6719 = vmatprep.subr.bf16.mxu0 0
      %6720 = vmatpush1.bf16.msra.mxu0 0
      %6721 = vmatprep.subr.bf16.mxu0 0
      %6722 = vmatpush1.bf16.msra.mxu0 0
      %6723 = vmatprep.subr.bf16.mxu0 0
      %6724 = vmatpush1.bf16.msra.mxu0 0
      %6725 = vmatprep.subr.bf16.mxu0 0
      %6726 = vmatpush1.bf16.msra.mxu0 %v6700
      %6727 = vmatprep.subr.bf16.mxu0 0
      %6728 = vmatpush1.bf16.msra.mxu0 %v6699
      %6729 = vmatprep.subr.bf16.mxu0 0
      %6730 = vmatpush1.bf16.msra.mxu0 %v6698
      %6731 = vmatprep.subr.bf16.mxu0 0
      %6732 = vmatpush1.bf16.msra.mxu0 %v6697
      %6733 = vmatprep.subr.bf16.mxu0 0
      %6734 = vmatpush2.bf16.msra.mxu0 0
      %6735 = vmatprep.subr.bf16.mxu0 0
      %6736 = vmatpush2.bf16.msra.mxu0 0
      %6737 = vmatprep.subr.bf16.mxu0 0
      %6738 = vmatpush2.bf16.msra.mxu0 0
      %6739 = vmatprep.subr.bf16.mxu0 0
      %6740 = vmatpush2.bf16.msra.mxu0 0
      %6741 = vmatprep.subr.bf16.mxu0 0
      %6742 = vmatpush2.bf16.msra.mxu0 0
      %6743 = vmatprep.subr.bf16.mxu0 0
      %6744 = vmatpush2.bf16.msra.mxu0 0
      %6745 = vmatprep.subr.bf16.mxu0 0
      %6746 = vmatpush2.bf16.msra.mxu0 0
      %6747 = vmatprep.subr.bf16.mxu0 0
      %6748 = vmatpush2.bf16.msra.mxu0 0
      %6749 = vmatprep.mubr.bf16.mxu0 0
      %6750 = vmatmul.mubr.bf16.gmra.mxu0 %v6706
      %v6751 = vpop.f32.mrf.mxu0
      %v6752 = vadd.f32 0.0, %v6751
      %v6753 = vpop.f32.mrf.mxu0
      %v6754 = vpop.f32.mrf.mxu0
      %v6755 = vadd.f32 0.0, %v6754
      %v6756 = vpop.f32.mrf.mxu0
      %6757 = vmatprep.mubr.bf16.mxu0 0
      %6758 = vmatmul.mubr.bf16.gmra.mxu0 %v6709
      %v6759 = vpop.f32.mrf.mxu0
      %v6760 = vadd.f32 0.0, %v6759
      %v6761 = vpop.f32.mrf.mxu0
      %v6762 = vpop.f32.mrf.mxu0
      %v6763 = vadd.f32 0.0, %v6762
      %v6764 = vpop.f32.mrf.mxu0
      %6765 = vmatprep.mubr.bf16.mxu0 0
      %6766 = vmatmul.mubr.bf16.gmra.mxu0 %v6712
      %v6767 = vpop.f32.mrf.mxu0
      %v6768 = vadd.f32 0.0, %v6767
      %v6769 = vpop.f32.mrf.mxu0
      %v6770 = vpop.f32.mrf.mxu0
      %v6771 = vadd.f32 0.0, %v6770
      %v6772 = vpop.f32.mrf.mxu0
      %6773 = vmatprep.mubr.bf16.mxu0 0
      %6774 = vmatmul.mubr.bf16.gmra.mxu0 %v6715
      %v6775 = vpop.f32.mrf.mxu0
      %v6776 = vadd.f32 0.0, %v6775
      %v6777 = vpop.f32.mrf.mxu0
      %v6778 = vpop.f32.mrf.mxu0
      %v6779 = vadd.f32 0.0, %v6778
      %v6780 = vpop.f32.mrf.mxu0
      %6781 = vdwg.mxu0
      %v6782 = vadd.f32 %v6652, %v6752
      %v6783 = vadd.f32 %v6653, %v6755
      %v6784 = vadd.f32 %v6654, %v6760
      %v6785 = vadd.f32 %v6655, %v6763
      %v6786 = vadd.f32 %v6656, %v6768
      %v6787 = vadd.f32 %v6657, %v6771
      %v6788 = vadd.f32 %v6658, %v6776
      %v6789 = vadd.f32 %v6659, %v6779
      %v6790 = vld [vmem:[%s6278 + $0x8] sm:$0xff]
      %v6791 = vld [vmem:[%s6278 + $0x20] sm:$0xff]
      %v6792 = vld [vmem:[%s6278 + $0x38] sm:$0xff]
      %v6793 = vld [vmem:[%s6278 + $0x50] sm:$0xff]
      %v6794 = vld [vmem:[%s6278 + $0x68] sm:$0xff]
      %v6795 = vld [vmem:[%s6278 + $0x80] sm:$0xff]
      %v6796 = vld [vmem:[%s6278 + $0x98] sm:$0xff]
      %v6797 = vld [vmem:[%s6278 + $0xb0] sm:$0xff]
      %v6798 = vpack.c.bf16 %v6791, %v6790
      %v6799 = vpack.c.bf16 %v6793, %v6792
      %v6800 = vpack.c.bf16 %v6795, %v6794
      %v6801 = vpack.c.bf16 %v6797, %v6796
      %s6802 = scalar_lea.vmem %s6, 128
      %v6803 = vld [vmem:[%s6802] sm:$0xf]
      %v6804 = vld [vmem:[%s6802 + $0x4] sm:$0xf]
      %v6805 = vld [vmem:[%s6802 + $0x8] sm:$0xf]
      %v6806 = vld [vmem:[%s6802 + $0xc] sm:$0xf]
      %v6807 = vld [vmem:[%s6802 + $0x10] sm:$0xf]
      %v6808 = vld [vmem:[%s6802 + $0x14] sm:$0xf]
      %v6809 = vld [vmem:[%s6802 + $0x18] sm:$0xf]
      %v6810 = vld [vmem:[%s6802 + $0x1c] sm:$0xf]
      %v6819 = vunpack.c.l.b16 %v6803
      %v6820 = vunpack.c.l.b16 %v6804
      %v6821 = vunpack.c.l.b16 %v6805
      %v6822 = vunpack.c.l.b16 %v6806
      %v6823 = vunpack.c.l.b16 %v6807
      %v6824 = vunpack.c.l.b16 %v6808
      %v6825 = vunpack.c.l.b16 %v6809
      %v6826 = vunpack.c.l.b16 %v6810
      %v6827 = vpack.c.b16 %v6820, %v6819
      %v6828 = vpack.c.b16 %v6822, %v6821
      %v6829 = vpack.c.b16 %v6824, %v6823
      %v6830 = vpack.c.b16 %v6826, %v6825
      %v6836 = vsel %vm388, %v6798, 0
      %v6839 = vsel %vm388, %v6799, 0
      %v6842 = vsel %vm388, %v6800, 0
      %v6845 = vsel %vm388, %v6801, 0
      %6847 = vmatprep.subr.bf16.mxu0 0
      %6848 = vmatpush1.bf16.msra.mxu0 0
      %6849 = vmatprep.subr.bf16.mxu0 0
      %6850 = vmatpush1.bf16.msra.mxu0 0
      %6851 = vmatprep.subr.bf16.mxu0 0
      %6852 = vmatpush1.bf16.msra.mxu0 0
      %6853 = vmatprep.subr.bf16.mxu0 0
      %6854 = vmatpush1.bf16.msra.mxu0 0
      %6855 = vmatprep.subr.bf16.mxu0 0
      %6856 = vmatpush1.bf16.msra.mxu0 %v6830
      %6857 = vmatprep.subr.bf16.mxu0 0
      %6858 = vmatpush1.bf16.msra.mxu0 %v6829
      %6859 = vmatprep.subr.bf16.mxu0 0
      %6860 = vmatpush1.bf16.msra.mxu0 %v6828
      %6861 = vmatprep.subr.bf16.mxu0 0
      %6862 = vmatpush1.bf16.msra.mxu0 %v6827
      %6863 = vmatprep.subr.bf16.mxu0 0
      %6864 = vmatpush2.bf16.msra.mxu0 0
      %6865 = vmatprep.subr.bf16.mxu0 0
      %6866 = vmatpush2.bf16.msra.mxu0 0
      %6867 = vmatprep.subr.bf16.mxu0 0
      %6868 = vmatpush2.bf16.msra.mxu0 0
      %6869 = vmatprep.subr.bf16.mxu0 0
      %6870 = vmatpush2.bf16.msra.mxu0 0
      %6871 = vmatprep.subr.bf16.mxu0 0
      %6872 = vmatpush2.bf16.msra.mxu0 0
      %6873 = vmatprep.subr.bf16.mxu0 0
      %6874 = vmatpush2.bf16.msra.mxu0 0
      %6875 = vmatprep.subr.bf16.mxu0 0
      %6876 = vmatpush2.bf16.msra.mxu0 0
      %6877 = vmatprep.subr.bf16.mxu0 0
      %6878 = vmatpush2.bf16.msra.mxu0 0
      %6879 = vmatprep.mubr.bf16.mxu0 0
      %6880 = vmatmul.mubr.bf16.gmra.mxu0 %v6836
      %v6881 = vpop.f32.mrf.mxu0
      %v6882 = vadd.f32 0.0, %v6881
      %v6883 = vpop.f32.mrf.mxu0
      %v6884 = vpop.f32.mrf.mxu0
      %v6885 = vadd.f32 0.0, %v6884
      %v6886 = vpop.f32.mrf.mxu0
      %6887 = vmatprep.mubr.bf16.mxu0 0
      %6888 = vmatmul.mubr.bf16.gmra.mxu0 %v6839
      %v6889 = vpop.f32.mrf.mxu0
      %v6890 = vadd.f32 0.0, %v6889
      %v6891 = vpop.f32.mrf.mxu0
      %v6892 = vpop.f32.mrf.mxu0
      %v6893 = vadd.f32 0.0, %v6892
      %v6894 = vpop.f32.mrf.mxu0
      %6895 = vmatprep.mubr.bf16.mxu0 0
      %6896 = vmatmul.mubr.bf16.gmra.mxu0 %v6842
      %v6897 = vpop.f32.mrf.mxu0
      %v6898 = vadd.f32 0.0, %v6897
      %v6899 = vpop.f32.mrf.mxu0
      %v6900 = vpop.f32.mrf.mxu0
      %v6901 = vadd.f32 0.0, %v6900
      %v6902 = vpop.f32.mrf.mxu0
      %6903 = vmatprep.mubr.bf16.mxu0 0
      %6904 = vmatmul.mubr.bf16.gmra.mxu0 %v6845
      %v6905 = vpop.f32.mrf.mxu0
      %v6906 = vadd.f32 0.0, %v6905
      %v6907 = vpop.f32.mrf.mxu0
      %v6908 = vpop.f32.mrf.mxu0
      %v6909 = vadd.f32 0.0, %v6908
      %v6910 = vpop.f32.mrf.mxu0
      %6911 = vdwg.mxu0
      %v6912 = vadd.f32 %v6782, %v6882
      %v6913 = vadd.f32 %v6783, %v6885
      %v6914 = vadd.f32 %v6784, %v6890
      %v6915 = vadd.f32 %v6785, %v6893
      %v6916 = vadd.f32 %v6786, %v6898
      %v6917 = vadd.f32 %v6787, %v6901
      %v6918 = vadd.f32 %v6788, %v6906
      %v6919 = vadd.f32 %v6789, %v6909
      %v6920 = vld [vmem:[%s6278 + $0x9] sm:$0xff]
      %v6921 = vld [vmem:[%s6278 + $0x21] sm:$0xff]
      %v6922 = vld [vmem:[%s6278 + $0x39] sm:$0xff]
      %v6923 = vld [vmem:[%s6278 + $0x51] sm:$0xff]
      %v6924 = vld [vmem:[%s6278 + $0x69] sm:$0xff]
      %v6925 = vld [vmem:[%s6278 + $0x81] sm:$0xff]
      %v6926 = vld [vmem:[%s6278 + $0x99] sm:$0xff]
      %v6927 = vld [vmem:[%s6278 + $0xb1] sm:$0xff]
      %v6928 = vpack.c.bf16 %v6921, %v6920
      %v6929 = vpack.c.bf16 %v6923, %v6922
      %v6930 = vpack.c.bf16 %v6925, %v6924
      %v6931 = vpack.c.bf16 %v6927, %v6926
      %s6932 = scalar_lea.vmem %s6, 160
      %v6933 = vld [vmem:[%s6932] sm:$0xf]
      %v6934 = vld [vmem:[%s6932 + $0x4] sm:$0xf]
      %v6935 = vld [vmem:[%s6932 + $0x8] sm:$0xf]
      %v6936 = vld [vmem:[%s6932 + $0xc] sm:$0xf]
      %v6937 = vld [vmem:[%s6932 + $0x10] sm:$0xf]
      %v6938 = vld [vmem:[%s6932 + $0x14] sm:$0xf]
      %v6939 = vld [vmem:[%s6932 + $0x18] sm:$0xf]
      %v6940 = vld [vmem:[%s6932 + $0x1c] sm:$0xf]
      %v6949 = vunpack.c.l.b16 %v6933
      %v6950 = vunpack.c.l.b16 %v6934
      %v6951 = vunpack.c.l.b16 %v6935
      %v6952 = vunpack.c.l.b16 %v6936
      %v6953 = vunpack.c.l.b16 %v6937
      %v6954 = vunpack.c.l.b16 %v6938
      %v6955 = vunpack.c.l.b16 %v6939
      %v6956 = vunpack.c.l.b16 %v6940
      %v6957 = vpack.c.b16 %v6950, %v6949
      %v6958 = vpack.c.b16 %v6952, %v6951
      %v6959 = vpack.c.b16 %v6954, %v6953
      %v6960 = vpack.c.b16 %v6956, %v6955
      %v6966 = vsel %vm388, %v6928, 0
      %v6969 = vsel %vm388, %v6929, 0
      %v6972 = vsel %vm388, %v6930, 0
      %v6975 = vsel %vm388, %v6931, 0
      %6977 = vmatprep.subr.bf16.mxu0 0
      %6978 = vmatpush1.bf16.msra.mxu0 0
      %6979 = vmatprep.subr.bf16.mxu0 0
      %6980 = vmatpush1.bf16.msra.mxu0 0
      %6981 = vmatprep.subr.bf16.mxu0 0
      %6982 = vmatpush1.bf16.msra.mxu0 0
      %6983 = vmatprep.subr.bf16.mxu0 0
      %6984 = vmatpush1.bf16.msra.mxu0 0
      %6985 = vmatprep.subr.bf16.mxu0 0
      %6986 = vmatpush1.bf16.msra.mxu0 %v6960
      %6987 = vmatprep.subr.bf16.mxu0 0
      %6988 = vmatpush1.bf16.msra.mxu0 %v6959
      %6989 = vmatprep.subr.bf16.mxu0 0
      %6990 = vmatpush1.bf16.msra.mxu0 %v6958
      %6991 = vmatprep.subr.bf16.mxu0 0
      %6992 = vmatpush1.bf16.msra.mxu0 %v6957
      %6993 = vmatprep.subr.bf16.mxu0 0
      %6994 = vmatpush2.bf16.msra.mxu0 0
      %6995 = vmatprep.subr.bf16.mxu0 0
      %6996 = vmatpush2.bf16.msra.mxu0 0
      %6997 = vmatprep.subr.bf16.mxu0 0
      %6998 = vmatpush2.bf16.msra.mxu0 0
      %6999 = vmatprep.subr.bf16.mxu0 0
      %7000 = vmatpush2.bf16.msra.mxu0 0
      %7001 = vmatprep.subr.bf16.mxu0 0
      %7002 = vmatpush2.bf16.msra.mxu0 0
      %7003 = vmatprep.subr.bf16.mxu0 0
      %7004 = vmatpush2.bf16.msra.mxu0 0
      %7005 = vmatprep.subr.bf16.mxu0 0
      %7006 = vmatpush2.bf16.msra.mxu0 0
      %7007 = vmatprep.subr.bf16.mxu0 0
      %7008 = vmatpush2.bf16.msra.mxu0 0
      %7009 = vmatprep.mubr.bf16.mxu0 0
      %7010 = vmatmul.mubr.bf16.gmra.mxu0 %v6966
      %v7011 = vpop.f32.mrf.mxu0
      %v7012 = vadd.f32 0.0, %v7011
      %v7013 = vpop.f32.mrf.mxu0
      %v7014 = vpop.f32.mrf.mxu0
      %v7015 = vadd.f32 0.0, %v7014
      %v7016 = vpop.f32.mrf.mxu0
      %7017 = vmatprep.mubr.bf16.mxu0 0
      %7018 = vmatmul.mubr.bf16.gmra.mxu0 %v6969
      %v7019 = vpop.f32.mrf.mxu0
      %v7020 = vadd.f32 0.0, %v7019
      %v7021 = vpop.f32.mrf.mxu0
      %v7022 = vpop.f32.mrf.mxu0
      %v7023 = vadd.f32 0.0, %v7022
      %v7024 = vpop.f32.mrf.mxu0
      %7025 = vmatprep.mubr.bf16.mxu0 0
      %7026 = vmatmul.mubr.bf16.gmra.mxu0 %v6972
      %v7027 = vpop.f32.mrf.mxu0
      %v7028 = vadd.f32 0.0, %v7027
      %v7029 = vpop.f32.mrf.mxu0
      %v7030 = vpop.f32.mrf.mxu0
      %v7031 = vadd.f32 0.0, %v7030
      %v7032 = vpop.f32.mrf.mxu0
      %7033 = vmatprep.mubr.bf16.mxu0 0
      %7034 = vmatmul.mubr.bf16.gmra.mxu0 %v6975
      %v7035 = vpop.f32.mrf.mxu0
      %v7036 = vadd.f32 0.0, %v7035
      %v7037 = vpop.f32.mrf.mxu0
      %v7038 = vpop.f32.mrf.mxu0
      %v7039 = vadd.f32 0.0, %v7038
      %v7040 = vpop.f32.mrf.mxu0
      %7041 = vdwg.mxu0
      %v7042 = vadd.f32 %v6912, %v7012
      %v7043 = vadd.f32 %v6913, %v7015
      %v7044 = vadd.f32 %v6914, %v7020
      %v7045 = vadd.f32 %v6915, %v7023
      %v7046 = vadd.f32 %v6916, %v7028
      %v7047 = vadd.f32 %v6917, %v7031
      %v7048 = vadd.f32 %v6918, %v7036
      %v7049 = vadd.f32 %v6919, %v7039
      %s7050 = scalar_lea.vmem [#allocation3], 48
      %v7051 = vld [vmem:[%s7050 + $0x7] sm:$0xff]
      %v7052 = vld [vmem:[%s7050 + $0x1f] sm:$0xff]
      %v7053 = vld [vmem:[%s7050 + $0x37] sm:$0xff]
      %v7054 = vld [vmem:[%s7050 + $0x4f] sm:$0xff]
      %v7055 = vld [vmem:[%s7050 + $0x67] sm:$0xff]
      %v7056 = vld [vmem:[%s7050 + $0x7f] sm:$0xff]
      %v7057 = vld [vmem:[%s7050 + $0x97] sm:$0xff]
      %v7058 = vld [vmem:[%s7050 + $0xaf] sm:$0xff]
      %v7059 = vpack.c.bf16 %v7052, %v7051
      %v7060 = vpack.c.bf16 %v7054, %v7053
      %v7061 = vpack.c.bf16 %v7056, %v7055
      %v7062 = vpack.c.bf16 %v7058, %v7057
      %s7063 = scalar_lea.vmem %s6, 192
      %v7064 = vld [vmem:[%s7063] sm:$0xf]
      %v7065 = vld [vmem:[%s7063 + $0x4] sm:$0xf]
      %v7066 = vld [vmem:[%s7063 + $0x8] sm:$0xf]
      %v7067 = vld [vmem:[%s7063 + $0xc] sm:$0xf]
      %v7068 = vld [vmem:[%s7063 + $0x10] sm:$0xf]
      %v7069 = vld [vmem:[%s7063 + $0x14] sm:$0xf]
      %v7070 = vld [vmem:[%s7063 + $0x18] sm:$0xf]
      %v7071 = vld [vmem:[%s7063 + $0x1c] sm:$0xf]
      %v7080 = vunpack.c.l.b16 %v7064
      %v7081 = vunpack.c.l.b16 %v7065
      %v7082 = vunpack.c.l.b16 %v7066
      %v7083 = vunpack.c.l.b16 %v7067
      %v7084 = vunpack.c.l.b16 %v7068
      %v7085 = vunpack.c.l.b16 %v7069
      %v7086 = vunpack.c.l.b16 %v7070
      %v7087 = vunpack.c.l.b16 %v7071
      %v7088 = vpack.c.b16 %v7081, %v7080
      %v7089 = vpack.c.b16 %v7083, %v7082
      %v7090 = vpack.c.b16 %v7085, %v7084
      %v7091 = vpack.c.b16 %v7087, %v7086
      %v7097 = vsel %vm388, %v7059, 0
      %v7100 = vsel %vm388, %v7060, 0
      %v7103 = vsel %vm388, %v7061, 0
      %v7106 = vsel %vm388, %v7062, 0
      %7108 = vmatprep.subr.bf16.mxu0 0
      %7109 = vmatpush1.bf16.msra.mxu0 0
      %7110 = vmatprep.subr.bf16.mxu0 0
      %7111 = vmatpush1.bf16.msra.mxu0 0
      %7112 = vmatprep.subr.bf16.mxu0 0
      %7113 = vmatpush1.bf16.msra.mxu0 0
      %7114 = vmatprep.subr.bf16.mxu0 0
      %7115 = vmatpush1.bf16.msra.mxu0 0
      %7116 = vmatprep.subr.bf16.mxu0 0
      %7117 = vmatpush1.bf16.msra.mxu0 %v7091
      %7118 = vmatprep.subr.bf16.mxu0 0
      %7119 = vmatpush1.bf16.msra.mxu0 %v7090
      %7120 = vmatprep.subr.bf16.mxu0 0
      %7121 = vmatpush1.bf16.msra.mxu0 %v7089
      %7122 = vmatprep.subr.bf16.mxu0 0
      %7123 = vmatpush1.bf16.msra.mxu0 %v7088
      %7124 = vmatprep.subr.bf16.mxu0 0
      %7125 = vmatpush2.bf16.msra.mxu0 0
      %7126 = vmatprep.subr.bf16.mxu0 0
      %7127 = vmatpush2.bf16.msra.mxu0 0
      %7128 = vmatprep.subr.bf16.mxu0 0
      %7129 = vmatpush2.bf16.msra.mxu0 0
      %7130 = vmatprep.subr.bf16.mxu0 0
      %7131 = vmatpush2.bf16.msra.mxu0 0
      %7132 = vmatprep.subr.bf16.mxu0 0
      %7133 = vmatpush2.bf16.msra.mxu0 0
      %7134 = vmatprep.subr.bf16.mxu0 0
      %7135 = vmatpush2.bf16.msra.mxu0 0
      %7136 = vmatprep.subr.bf16.mxu0 0
      %7137 = vmatpush2.bf16.msra.mxu0 0
      %7138 = vmatprep.subr.bf16.mxu0 0
      %7139 = vmatpush2.bf16.msra.mxu0 0
      %7140 = vmatprep.mubr.bf16.mxu0 0
      %7141 = vmatmul.mubr.bf16.gmra.mxu0 %v7097
      %v7142 = vpop.f32.mrf.mxu0
      %v7143 = vadd.f32 0.0, %v7142
      %v7144 = vpop.f32.mrf.mxu0
      %v7145 = vpop.f32.mrf.mxu0
      %v7146 = vadd.f32 0.0, %v7145
      %v7147 = vpop.f32.mrf.mxu0
      %7148 = vmatprep.mubr.bf16.mxu0 0
      %7149 = vmatmul.mubr.bf16.gmra.mxu0 %v7100
      %v7150 = vpop.f32.mrf.mxu0
      %v7151 = vadd.f32 0.0, %v7150
      %v7152 = vpop.f32.mrf.mxu0
      %v7153 = vpop.f32.mrf.mxu0
      %v7154 = vadd.f32 0.0, %v7153
      %v7155 = vpop.f32.mrf.mxu0
      %7156 = vmatprep.mubr.bf16.mxu0 0
      %7157 = vmatmul.mubr.bf16.gmra.mxu0 %v7103
      %v7158 = vpop.f32.mrf.mxu0
      %v7159 = vadd.f32 0.0, %v7158
      %v7160 = vpop.f32.mrf.mxu0
      %v7161 = vpop.f32.mrf.mxu0
      %v7162 = vadd.f32 0.0, %v7161
      %v7163 = vpop.f32.mrf.mxu0
      %7164 = vmatprep.mubr.bf16.mxu0 0
      %7165 = vmatmul.mubr.bf16.gmra.mxu0 %v7106
      %v7166 = vpop.f32.mrf.mxu0
      %v7167 = vadd.f32 0.0, %v7166
      %v7168 = vpop.f32.mrf.mxu0
      %v7169 = vpop.f32.mrf.mxu0
      %v7170 = vadd.f32 0.0, %v7169
      %v7171 = vpop.f32.mrf.mxu0
      %7172 = vdwg.mxu0
      %v7173 = vadd.f32 %v7042, %v7143
      %v7174 = vadd.f32 %v7043, %v7146
      %v7175 = vadd.f32 %v7044, %v7151
      %v7176 = vadd.f32 %v7045, %v7154
      %v7177 = vadd.f32 %v7046, %v7159
      %v7178 = vadd.f32 %v7047, %v7162
      %v7179 = vadd.f32 %v7048, %v7167
      %v7180 = vadd.f32 %v7049, %v7170
      %v7181 = vld [vmem:[%s7050 + $0x8] sm:$0xff]
      %v7182 = vld [vmem:[%s7050 + $0x20] sm:$0xff]
      %v7183 = vld [vmem:[%s7050 + $0x38] sm:$0xff]
      %v7184 = vld [vmem:[%s7050 + $0x50] sm:$0xff]
      %v7185 = vld [vmem:[%s7050 + $0x68] sm:$0xff]
      %v7186 = vld [vmem:[%s7050 + $0x80] sm:$0xff]
      %v7187 = vld [vmem:[%s7050 + $0x98] sm:$0xff]
      %v7188 = vld [vmem:[%s7050 + $0xb0] sm:$0xff]
      %v7189 = vpack.c.bf16 %v7182, %v7181
      %v7190 = vpack.c.bf16 %v7184, %v7183
      %v7191 = vpack.c.bf16 %v7186, %v7185
      %v7192 = vpack.c.bf16 %v7188, %v7187
      %s7193 = scalar_lea.vmem %s6, 224
      %v7194 = vld [vmem:[%s7193] sm:$0xf]
      %v7195 = vld [vmem:[%s7193 + $0x4] sm:$0xf]
      %v7196 = vld [vmem:[%s7193 + $0x8] sm:$0xf]
      %v7197 = vld [vmem:[%s7193 + $0xc] sm:$0xf]
      %v7198 = vld [vmem:[%s7193 + $0x10] sm:$0xf]
      %v7199 = vld [vmem:[%s7193 + $0x14] sm:$0xf]
      %v7200 = vld [vmem:[%s7193 + $0x18] sm:$0xf]
      %v7201 = vld [vmem:[%s7193 + $0x1c] sm:$0xf]
      %v7210 = vunpack.c.l.b16 %v7194
      %v7211 = vunpack.c.l.b16 %v7195
      %v7212 = vunpack.c.l.b16 %v7196
      %v7213 = vunpack.c.l.b16 %v7197
      %v7214 = vunpack.c.l.b16 %v7198
      %v7215 = vunpack.c.l.b16 %v7199
      %v7216 = vunpack.c.l.b16 %v7200
      %v7217 = vunpack.c.l.b16 %v7201
      %v7218 = vpack.c.b16 %v7211, %v7210
      %v7219 = vpack.c.b16 %v7213, %v7212
      %v7220 = vpack.c.b16 %v7215, %v7214
      %v7221 = vpack.c.b16 %v7217, %v7216
      %v7227 = vsel %vm388, %v7189, 0
      %v7230 = vsel %vm388, %v7190, 0
      %v7233 = vsel %vm388, %v7191, 0
      %v7236 = vsel %vm388, %v7192, 0
      %7238 = vmatprep.subr.bf16.mxu0 0
      %7239 = vmatpush1.bf16.msra.mxu0 0
      %7240 = vmatprep.subr.bf16.mxu0 0
      %7241 = vmatpush1.bf16.msra.mxu0 0
      %7242 = vmatprep.subr.bf16.mxu0 0
      %7243 = vmatpush1.bf16.msra.mxu0 0
      %7244 = vmatprep.subr.bf16.mxu0 0
      %7245 = vmatpush1.bf16.msra.mxu0 0
      %7246 = vmatprep.subr.bf16.mxu0 0
      %7247 = vmatpush1.bf16.msra.mxu0 %v7221
      %7248 = vmatprep.subr.bf16.mxu0 0
      %7249 = vmatpush1.bf16.msra.mxu0 %v7220
      %7250 = vmatprep.subr.bf16.mxu0 0
      %7251 = vmatpush1.bf16.msra.mxu0 %v7219
      %7252 = vmatprep.subr.bf16.mxu0 0
      %7253 = vmatpush1.bf16.msra.mxu0 %v7218
      %7254 = vmatprep.subr.bf16.mxu0 0
      %7255 = vmatpush2.bf16.msra.mxu0 0
      %7256 = vmatprep.subr.bf16.mxu0 0
      %7257 = vmatpush2.bf16.msra.mxu0 0
      %7258 = vmatprep.subr.bf16.mxu0 0
      %7259 = vmatpush2.bf16.msra.mxu0 0
      %7260 = vmatprep.subr.bf16.mxu0 0
      %7261 = vmatpush2.bf16.msra.mxu0 0
      %7262 = vmatprep.subr.bf16.mxu0 0
      %7263 = vmatpush2.bf16.msra.mxu0 0
      %7264 = vmatprep.subr.bf16.mxu0 0
      %7265 = vmatpush2.bf16.msra.mxu0 0
      %7266 = vmatprep.subr.bf16.mxu0 0
      %7267 = vmatpush2.bf16.msra.mxu0 0
      %7268 = vmatprep.subr.bf16.mxu0 0
      %7269 = vmatpush2.bf16.msra.mxu0 0
      %7270 = vmatprep.mubr.bf16.mxu0 0
      %7271 = vmatmul.mubr.bf16.gmra.mxu0 %v7227
      %v7272 = vpop.f32.mrf.mxu0
      %v7273 = vadd.f32 0.0, %v7272
      %v7274 = vpop.f32.mrf.mxu0
      %v7275 = vpop.f32.mrf.mxu0
      %v7276 = vadd.f32 0.0, %v7275
      %v7277 = vpop.f32.mrf.mxu0
      %7278 = vmatprep.mubr.bf16.mxu0 0
      %7279 = vmatmul.mubr.bf16.gmra.mxu0 %v7230
      %v7280 = vpop.f32.mrf.mxu0
      %v7281 = vadd.f32 0.0, %v7280
      %v7282 = vpop.f32.mrf.mxu0
      %v7283 = vpop.f32.mrf.mxu0
      %v7284 = vadd.f32 0.0, %v7283
      %v7285 = vpop.f32.mrf.mxu0
      %7286 = vmatprep.mubr.bf16.mxu0 0
      %7287 = vmatmul.mubr.bf16.gmra.mxu0 %v7233
      %v7288 = vpop.f32.mrf.mxu0
      %v7289 = vadd.f32 0.0, %v7288
      %v7290 = vpop.f32.mrf.mxu0
      %v7291 = vpop.f32.mrf.mxu0
      %v7292 = vadd.f32 0.0, %v7291
      %v7293 = vpop.f32.mrf.mxu0
      %7294 = vmatprep.mubr.bf16.mxu0 0
      %7295 = vmatmul.mubr.bf16.gmra.mxu0 %v7236
      %v7296 = vpop.f32.mrf.mxu0
      %v7297 = vadd.f32 0.0, %v7296
      %v7298 = vpop.f32.mrf.mxu0
      %v7299 = vpop.f32.mrf.mxu0
      %v7300 = vadd.f32 0.0, %v7299
      %v7301 = vpop.f32.mrf.mxu0
      %7302 = vdwg.mxu0
      %v7303 = vadd.f32 %v7173, %v7273
      %v7304 = vadd.f32 %v7174, %v7276
      %v7305 = vadd.f32 %v7175, %v7281
      %v7306 = vadd.f32 %v7176, %v7284
      %v7307 = vadd.f32 %v7177, %v7289
      %v7308 = vadd.f32 %v7178, %v7292
      %v7309 = vadd.f32 %v7179, %v7297
      %v7310 = vadd.f32 %v7180, %v7300
      %v7311 = vld [vmem:[%s7050 + $0x9] sm:$0xff]
      %v7312 = vld [vmem:[%s7050 + $0x21] sm:$0xff]
      %v7313 = vld [vmem:[%s7050 + $0x39] sm:$0xff]
      %v7314 = vld [vmem:[%s7050 + $0x51] sm:$0xff]
      %v7315 = vld [vmem:[%s7050 + $0x69] sm:$0xff]
      %v7316 = vld [vmem:[%s7050 + $0x81] sm:$0xff]
      %v7317 = vld [vmem:[%s7050 + $0x99] sm:$0xff]
      %v7318 = vld [vmem:[%s7050 + $0xb1] sm:$0xff]
      %v7319 = vpack.c.bf16 %v7312, %v7311
      %v7320 = vpack.c.bf16 %v7314, %v7313
      %v7321 = vpack.c.bf16 %v7316, %v7315
      %v7322 = vpack.c.bf16 %v7318, %v7317
      %s7323 = scalar_lea.vmem %s6, 256
      %v7324 = vld [vmem:[%s7323] sm:$0xf]
      %v7325 = vld [vmem:[%s7323 + $0x4] sm:$0xf]
      %v7326 = vld [vmem:[%s7323 + $0x8] sm:$0xf]
      %v7327 = vld [vmem:[%s7323 + $0xc] sm:$0xf]
      %v7328 = vld [vmem:[%s7323 + $0x10] sm:$0xf]
      %v7329 = vld [vmem:[%s7323 + $0x14] sm:$0xf]
      %v7330 = vld [vmem:[%s7323 + $0x18] sm:$0xf]
      %v7331 = vld [vmem:[%s7323 + $0x1c] sm:$0xf]
      %v7340 = vunpack.c.l.b16 %v7324
      %v7341 = vunpack.c.l.b16 %v7325
      %v7342 = vunpack.c.l.b16 %v7326
      %v7343 = vunpack.c.l.b16 %v7327
      %v7344 = vunpack.c.l.b16 %v7328
      %v7345 = vunpack.c.l.b16 %v7329
      %v7346 = vunpack.c.l.b16 %v7330
      %v7347 = vunpack.c.l.b16 %v7331
      %v7348 = vpack.c.b16 %v7341, %v7340
      %v7349 = vpack.c.b16 %v7343, %v7342
      %v7350 = vpack.c.b16 %v7345, %v7344
      %v7351 = vpack.c.b16 %v7347, %v7346
      %v7357 = vsel %vm388, %v7319, 0
      %v7360 = vsel %vm388, %v7320, 0
      %v7363 = vsel %vm388, %v7321, 0
      %v7366 = vsel %vm388, %v7322, 0
      %7368 = vmatprep.subr.bf16.mxu0 0
      %7369 = vmatpush1.bf16.msra.mxu0 0
      %7370 = vmatprep.subr.bf16.mxu0 0
      %7371 = vmatpush1.bf16.msra.mxu0 0
      %7372 = vmatprep.subr.bf16.mxu0 0
      %7373 = vmatpush1.bf16.msra.mxu0 0
      %7374 = vmatprep.subr.bf16.mxu0 0
      %7375 = vmatpush1.bf16.msra.mxu0 0
      %7376 = vmatprep.subr.bf16.mxu0 0
      %7377 = vmatpush1.bf16.msra.mxu0 %v7351
      %7378 = vmatprep.subr.bf16.mxu0 0
      %7379 = vmatpush1.bf16.msra.mxu0 %v7350
      %7380 = vmatprep.subr.bf16.mxu0 0
      %7381 = vmatpush1.bf16.msra.mxu0 %v7349
      %7382 = vmatprep.subr.bf16.mxu0 0
      %7383 = vmatpush1.bf16.msra.mxu0 %v7348
      %7384 = vmatprep.subr.bf16.mxu0 0
      %7385 = vmatpush2.bf16.msra.mxu0 0
      %7386 = vmatprep.subr.bf16.mxu0 0
      %7387 = vmatpush2.bf16.msra.mxu0 0
      %7388 = vmatprep.subr.bf16.mxu0 0
      %7389 = vmatpush2.bf16.msra.mxu0 0
      %7390 = vmatprep.subr.bf16.mxu0 0
      %7391 = vmatpush2.bf16.msra.mxu0 0
      %7392 = vmatprep.subr.bf16.mxu0 0
      %7393 = vmatpush2.bf16.msra.mxu0 0
      %7394 = vmatprep.subr.bf16.mxu0 0
      %7395 = vmatpush2.bf16.msra.mxu0 0
      %7396 = vmatprep.subr.bf16.mxu0 0
      %7397 = vmatpush2.bf16.msra.mxu0 0
      %7398 = vmatprep.subr.bf16.mxu0 0
      %7399 = vmatpush2.bf16.msra.mxu0 0
      %7400 = vmatprep.mubr.bf16.mxu0 0
      %7401 = vmatmul.mubr.bf16.gmra.mxu0 %v7357
      %v7402 = vpop.f32.mrf.mxu0
      %v7403 = vadd.f32 0.0, %v7402
      %v7404 = vpop.f32.mrf.mxu0
      %v7405 = vpop.f32.mrf.mxu0
      %v7406 = vadd.f32 0.0, %v7405
      %v7407 = vpop.f32.mrf.mxu0
      %7408 = vmatprep.mubr.bf16.mxu0 0
      %7409 = vmatmul.mubr.bf16.gmra.mxu0 %v7360
      %v7410 = vpop.f32.mrf.mxu0
      %v7411 = vadd.f32 0.0, %v7410
      %v7412 = vpop.f32.mrf.mxu0
      %v7413 = vpop.f32.mrf.mxu0
      %v7414 = vadd.f32 0.0, %v7413
      %v7415 = vpop.f32.mrf.mxu0
      %7416 = vmatprep.mubr.bf16.mxu0 0
      %7417 = vmatmul.mubr.bf16.gmra.mxu0 %v7363
      %v7418 = vpop.f32.mrf.mxu0
      %v7419 = vadd.f32 0.0, %v7418
      %v7420 = vpop.f32.mrf.mxu0
      %v7421 = vpop.f32.mrf.mxu0
      %v7422 = vadd.f32 0.0, %v7421
      %v7423 = vpop.f32.mrf.mxu0
      %7424 = vmatprep.mubr.bf16.mxu0 0
      %7425 = vmatmul.mubr.bf16.gmra.mxu0 %v7366
      %v7426 = vpop.f32.mrf.mxu0
      %v7427 = vadd.f32 0.0, %v7426
      %v7428 = vpop.f32.mrf.mxu0
      %v7429 = vpop.f32.mrf.mxu0
      %v7430 = vadd.f32 0.0, %v7429
      %v7431 = vpop.f32.mrf.mxu0
      %7432 = vdwg.mxu0
      %v7433 = vadd.f32 %v7303, %v7403
      %v7434 = vadd.f32 %v7304, %v7406
      %v7435 = vadd.f32 %v7305, %v7411
      %v7436 = vadd.f32 %v7306, %v7414
      %v7437 = vadd.f32 %v7307, %v7419
      %v7438 = vadd.f32 %v7308, %v7422
      %v7439 = vadd.f32 %v7309, %v7427
      %v7440 = vadd.f32 %v7310, %v7430
      %v7441 = vld [vmem:[%s7] sm:$0x1]
      %v7443 = vlaneseq
      %v7444 = vshrl.u32 %v7443, 7
      %v7445 = vsub.s32 0, %v7444
      %v7446 = vrot.slane %v7441, %v7445
      %v7448 = vadd.f32 %v7433, %v7446
      %v7449 = vadd.f32 %v7434, %v7446
      %v7450 = vadd.f32 %v7435, %v7446
      %v7451 = vadd.f32 %v7436, %v7446
      %v7452 = vadd.f32 %v7437, %v7446
      %v7453 = vadd.f32 %v7438, %v7446
      %v7454 = vadd.f32 %v7439, %v7446
      %v7455 = vadd.f32 %v7440, %v7446
      %v7456 = vmax.f32 %v7448, 0.0
      %v7457 = vmax.f32 %v7449, 0.0
      %v7458 = vmax.f32 %v7450, 0.0
      %v7459 = vmax.f32 %v7451, 0.0
      %v7460 = vmax.f32 %v7452, 0.0
      %v7461 = vmax.f32 %v7453, 0.0
      %v7462 = vmax.f32 %v7454, 0.0
      %v7463 = vmax.f32 %v7455, 0.0
      %7464 = vst.msk [vmem:[%s6278 + $0x8] sm:$0xff] %vm388, %v7456
      %7465 = vst.msk [vmem:[%s6278 + $0x20] sm:$0xff] %vm388, %v7457
      %7466 = vst.msk [vmem:[%s6278 + $0x38] sm:$0xff] %vm388, %v7458
      %7467 = vst.msk [vmem:[%s6278 + $0x50] sm:$0xff] %vm388, %v7459
      %7468 = vst.msk [vmem:[%s6278 + $0x68] sm:$0xff] %vm388, %v7460
      %7469 = vst.msk [vmem:[%s6278 + $0x80] sm:$0xff] %vm388, %v7461
      %7470 = vst.msk [vmem:[%s6278 + $0x98] sm:$0xff] %vm388, %v7462
      %7471 = vst.msk [vmem:[%s6278 + $0xb0] sm:$0xff] %vm388, %v7463
      %v7472 = vld [vmem:[#allocation3 + $0x7] sm:$0xff]
      %v7473 = vld [vmem:[#allocation3 + $0x1f] sm:$0xff]
      %v7474 = vld [vmem:[#allocation3 + $0x37] sm:$0xff]
      %v7475 = vld [vmem:[#allocation3 + $0x4f] sm:$0xff]
      %v7476 = vld [vmem:[#allocation3 + $0x67] sm:$0xff]
      %v7477 = vld [vmem:[#allocation3 + $0x7f] sm:$0xff]
      %v7478 = vld [vmem:[#allocation3 + $0x97] sm:$0xff]
      %v7479 = vld [vmem:[#allocation3 + $0xaf] sm:$0xff]
      %v7480 = vpack.c.bf16 %v7473, %v7472
      %v7481 = vpack.c.bf16 %v7475, %v7474
      %v7482 = vpack.c.bf16 %v7477, %v7476
      %v7483 = vpack.c.bf16 %v7479, %v7478
      %v7484 = vld [vmem:[%s8] sm:$0xf]
      %v7485 = vld [vmem:[%s8 + $0x4] sm:$0xf]
      %v7486 = vld [vmem:[%s8 + $0x8] sm:$0xf]
      %v7487 = vld [vmem:[%s8 + $0xc] sm:$0xf]
      %v7488 = vld [vmem:[%s8 + $0x10] sm:$0xf]
      %v7489 = vld [vmem:[%s8 + $0x14] sm:$0xf]
      %v7490 = vld [vmem:[%s8 + $0x18] sm:$0xf]
      %v7491 = vld [vmem:[%s8 + $0x1c] sm:$0xf]
      %v7492 = vld [vmem:[#allocation3 + $0x8] sm:$0xff]
      %v7493 = vld [vmem:[#allocation3 + $0x20] sm:$0xff]
      %v7494 = vld [vmem:[#allocation3 + $0x38] sm:$0xff]
      %v7495 = vld [vmem:[#allocation3 + $0x50] sm:$0xff]
      %v7496 = vld [vmem:[#allocation3 + $0x68] sm:$0xff]
      %v7497 = vld [vmem:[#allocation3 + $0x80] sm:$0xff]
      %v7498 = vld [vmem:[#allocation3 + $0x98] sm:$0xff]
      %v7499 = vld [vmem:[#allocation3 + $0xb0] sm:$0xff]
      %v7500 = vpack.c.bf16 %v7493, %v7492
      %v7501 = vpack.c.bf16 %v7495, %v7494
      %v7502 = vpack.c.bf16 %v7497, %v7496
      %v7503 = vpack.c.bf16 %v7499, %v7498
      %s7504 = scalar_lea.vmem %s8, 32
      %v7505 = vld [vmem:[%s7504] sm:$0xf]
      %v7506 = vld [vmem:[%s7504 + $0x4] sm:$0xf]
      %v7507 = vld [vmem:[%s7504 + $0x8] sm:$0xf]
      %v7508 = vld [vmem:[%s7504 + $0xc] sm:$0xf]
      %v7509 = vld [vmem:[%s7504 + $0x10] sm:$0xf]
      %v7510 = vld [vmem:[%s7504 + $0x14] sm:$0xf]
      %v7511 = vld [vmem:[%s7504 + $0x18] sm:$0xf]
      %v7512 = vld [vmem:[%s7504 + $0x1c] sm:$0xf]
      %v7521 = vunpack.c.l.b16 %v7505
      %v7522 = vunpack.c.l.b16 %v7506
      %v7523 = vunpack.c.l.b16 %v7507
      %v7524 = vunpack.c.l.b16 %v7508
      %v7525 = vunpack.c.l.b16 %v7509
      %v7526 = vunpack.c.l.b16 %v7510
      %v7527 = vunpack.c.l.b16 %v7511
      %v7528 = vunpack.c.l.b16 %v7512
      %v7529 = vpack.c.b16 %v7522, %v7521
      %v7530 = vpack.c.b16 %v7524, %v7523
      %v7531 = vpack.c.b16 %v7526, %v7525
      %v7532 = vpack.c.b16 %v7528, %v7527
      %v7538 = vsel %vm388, %v7500, 0
      %v7541 = vsel %vm388, %v7501, 0
      %v7544 = vsel %vm388, %v7502, 0
      %v7547 = vsel %vm388, %v7503, 0
      %7549 = vmatprep.subr.bf16.mxu0 0
      %7550 = vmatpush1.bf16.msra.mxu0 0
      %7551 = vmatprep.subr.bf16.mxu0 0
      %7552 = vmatpush1.bf16.msra.mxu0 0
      %7553 = vmatprep.subr.bf16.mxu0 0
      %7554 = vmatpush1.bf16.msra.mxu0 0
      %7555 = vmatprep.subr.bf16.mxu0 0
      %7556 = vmatpush1.bf16.msra.mxu0 0
      %7557 = vmatprep.subr.bf16.mxu0 0
      %7558 = vmatpush1.bf16.msra.mxu0 %v7532
      %7559 = vmatprep.subr.bf16.mxu0 0
      %7560 = vmatpush1.bf16.msra.mxu0 %v7531
      %7561 = vmatprep.subr.bf16.mxu0 0
      %7562 = vmatpush1.bf16.msra.mxu0 %v7530
      %7563 = vmatprep.subr.bf16.mxu0 0
      %7564 = vmatpush1.bf16.msra.mxu0 %v7529
      %7565 = vmatprep.subr.bf16.mxu0 0
      %7566 = vmatpush2.bf16.msra.mxu0 0
      %7567 = vmatprep.subr.bf16.mxu0 0
      %7568 = vmatpush2.bf16.msra.mxu0 0
      %7569 = vmatprep.subr.bf16.mxu0 0
      %7570 = vmatpush2.bf16.msra.mxu0 0
      %7571 = vmatprep.subr.bf16.mxu0 0
      %7572 = vmatpush2.bf16.msra.mxu0 0
      %7573 = vmatprep.subr.bf16.mxu0 0
      %7574 = vmatpush2.bf16.msra.mxu0 0
      %7575 = vmatprep.subr.bf16.mxu0 0
      %7576 = vmatpush2.bf16.msra.mxu0 0
      %7577 = vmatprep.subr.bf16.mxu0 0
      %7578 = vmatpush2.bf16.msra.mxu0 0
      %7579 = vmatprep.subr.bf16.mxu0 0
      %7580 = vmatpush2.bf16.msra.mxu0 0
      %7581 = vmatprep.mubr.bf16.mxu0 0
      %7582 = vmatmul.mubr.bf16.gmra.mxu0 %v7538
      %v7583 = vpop.f32.mrf.mxu0
      %v7584 = vadd.f32 0.0, %v7583
      %v7585 = vpop.f32.mrf.mxu0
      %v7586 = vpop.f32.mrf.mxu0
      %v7587 = vadd.f32 0.0, %v7586
      %v7588 = vpop.f32.mrf.mxu0
      %7589 = vmatprep.mubr.bf16.mxu0 0
      %7590 = vmatmul.mubr.bf16.gmra.mxu0 %v7541
      %v7591 = vpop.f32.mrf.mxu0
      %v7592 = vadd.f32 0.0, %v7591
      %v7593 = vpop.f32.mrf.mxu0
      %v7594 = vpop.f32.mrf.mxu0
      %v7595 = vadd.f32 0.0, %v7594
      %v7596 = vpop.f32.mrf.mxu0
      %7597 = vmatprep.mubr.bf16.mxu0 0
      %7598 = vmatmul.mubr.bf16.gmra.mxu0 %v7544
      %v7599 = vpop.f32.mrf.mxu0
      %v7600 = vadd.f32 0.0, %v7599
      %v7601 = vpop.f32.mrf.mxu0
      %v7602 = vpop.f32.mrf.mxu0
      %v7603 = vadd.f32 0.0, %v7602
      %v7604 = vpop.f32.mrf.mxu0
      %7605 = vmatprep.mubr.bf16.mxu0 0
      %7606 = vmatmul.mubr.bf16.gmra.mxu0 %v7547
      %v7607 = vpop.f32.mrf.mxu0
      %v7608 = vadd.f32 0.0, %v7607
      %v7609 = vpop.f32.mrf.mxu0
      %v7610 = vpop.f32.mrf.mxu0
      %v7611 = vadd.f32 0.0, %v7610
      %v7612 = vpop.f32.mrf.mxu0
      %7613 = vdwg.mxu0
      %v7622 = vunpack.c.l.b16 %v7484
      %v7623 = vunpack.c.l.b16 %v7485
      %v7624 = vunpack.c.l.b16 %v7486
      %v7625 = vunpack.c.l.b16 %v7487
      %v7626 = vunpack.c.l.b16 %v7488
      %v7627 = vunpack.c.l.b16 %v7489
      %v7628 = vunpack.c.l.b16 %v7490
      %v7629 = vunpack.c.l.b16 %v7491
      %v7630 = vpack.c.b16 %v7623, %v7622
      %v7631 = vpack.c.b16 %v7625, %v7624
      %v7632 = vpack.c.b16 %v7627, %v7626
      %v7633 = vpack.c.b16 %v7629, %v7628
      %v7639 = vsel %vm388, %v7480, 0
      %v7642 = vsel %vm388, %v7481, 0
      %v7645 = vsel %vm388, %v7482, 0
      %v7648 = vsel %vm388, %v7483, 0
      %7650 = vmatprep.subr.bf16.mxu0 0
      %7651 = vmatpush1.bf16.msra.mxu0 0
      %7652 = vmatprep.subr.bf16.mxu0 0
      %7653 = vmatpush1.bf16.msra.mxu0 0
      %7654 = vmatprep.subr.bf16.mxu0 0
      %7655 = vmatpush1.bf16.msra.mxu0 0
      %7656 = vmatprep.subr.bf16.mxu0 0
      %7657 = vmatpush1.bf16.msra.mxu0 0
      %7658 = vmatprep.subr.bf16.mxu0 0
      %7659 = vmatpush1.bf16.msra.mxu0 %v7633
      %7660 = vmatprep.subr.bf16.mxu0 0
      %7661 = vmatpush1.bf16.msra.mxu0 %v7632
      %7662 = vmatprep.subr.bf16.mxu0 0
      %7663 = vmatpush1.bf16.msra.mxu0 %v7631
      %7664 = vmatprep.subr.bf16.mxu0 0
      %7665 = vmatpush1.bf16.msra.mxu0 %v7630
      %7666 = vmatprep.subr.bf16.mxu0 0
      %7667 = vmatpush2.bf16.msra.mxu0 0
      %7668 = vmatprep.subr.bf16.mxu0 0
      %7669 = vmatpush2.bf16.msra.mxu0 0
      %7670 = vmatprep.subr.bf16.mxu0 0
      %7671 = vmatpush2.bf16.msra.mxu0 0
      %7672 = vmatprep.subr.bf16.mxu0 0
      %7673 = vmatpush2.bf16.msra.mxu0 0
      %7674 = vmatprep.subr.bf16.mxu0 0
      %7675 = vmatpush2.bf16.msra.mxu0 0
      %7676 = vmatprep.subr.bf16.mxu0 0
      %7677 = vmatpush2.bf16.msra.mxu0 0
      %7678 = vmatprep.subr.bf16.mxu0 0
      %7679 = vmatpush2.bf16.msra.mxu0 0
      %7680 = vmatprep.subr.bf16.mxu0 0
      %7681 = vmatpush2.bf16.msra.mxu0 0
      %7682 = vmatprep.mubr.bf16.mxu0 0
      %7683 = vmatmul.mubr.bf16.gmra.mxu0 %v7639
      %v7684 = vpop.f32.mrf.mxu0
      %v7685 = vadd.f32 %v7584, %v7684
      %v7686 = vpop.f32.mrf.mxu0
      %v7687 = vpop.f32.mrf.mxu0
      %v7688 = vadd.f32 %v7587, %v7687
      %v7689 = vpop.f32.mrf.mxu0
      %7690 = vmatprep.mubr.bf16.mxu0 0
      %7691 = vmatmul.mubr.bf16.gmra.mxu0 %v7642
      %v7692 = vpop.f32.mrf.mxu0
      %v7693 = vadd.f32 %v7592, %v7692
      %v7694 = vpop.f32.mrf.mxu0
      %v7695 = vpop.f32.mrf.mxu0
      %v7696 = vadd.f32 %v7595, %v7695
      %v7697 = vpop.f32.mrf.mxu0
      %7698 = vmatprep.mubr.bf16.mxu0 0
      %7699 = vmatmul.mubr.bf16.gmra.mxu0 %v7645
      %v7700 = vpop.f32.mrf.mxu0
      %v7701 = vadd.f32 %v7600, %v7700
      %v7702 = vpop.f32.mrf.mxu0
      %v7703 = vpop.f32.mrf.mxu0
      %v7704 = vadd.f32 %v7603, %v7703
      %v7705 = vpop.f32.mrf.mxu0
      %7706 = vmatprep.mubr.bf16.mxu0 0
      %7707 = vmatmul.mubr.bf16.gmra.mxu0 %v7648
      %v7708 = vpop.f32.mrf.mxu0
      %v7709 = vadd.f32 %v7608, %v7708
      %v7710 = vpop.f32.mrf.mxu0
      %v7711 = vpop.f32.mrf.mxu0
      %v7712 = vadd.f32 %v7611, %v7711
      %v7713 = vpop.f32.mrf.mxu0
      %7714 = vdwg.mxu0
      %v7715 = vld [vmem:[#allocation3 + $0x9] sm:$0xff]
      %v7716 = vld [vmem:[#allocation3 + $0x21] sm:$0xff]
      %v7717 = vld [vmem:[#allocation3 + $0x39] sm:$0xff]
      %v7718 = vld [vmem:[#allocation3 + $0x51] sm:$0xff]
      %v7719 = vld [vmem:[#allocation3 + $0x69] sm:$0xff]
      %v7720 = vld [vmem:[#allocation3 + $0x81] sm:$0xff]
      %v7721 = vld [vmem:[#allocation3 + $0x99] sm:$0xff]
      %v7722 = vld [vmem:[#allocation3 + $0xb1] sm:$0xff]
      %v7723 = vpack.c.bf16 %v7716, %v7715
      %v7724 = vpack.c.bf16 %v7718, %v7717
      %v7725 = vpack.c.bf16 %v7720, %v7719
      %v7726 = vpack.c.bf16 %v7722, %v7721
      %s7727 = scalar_lea.vmem %s8, 64
      %v7728 = vld [vmem:[%s7727] sm:$0xf]
      %v7729 = vld [vmem:[%s7727 + $0x4] sm:$0xf]
      %v7730 = vld [vmem:[%s7727 + $0x8] sm:$0xf]
      %v7731 = vld [vmem:[%s7727 + $0xc] sm:$0xf]
      %v7732 = vld [vmem:[%s7727 + $0x10] sm:$0xf]
      %v7733 = vld [vmem:[%s7727 + $0x14] sm:$0xf]
      %v7734 = vld [vmem:[%s7727 + $0x18] sm:$0xf]
      %v7735 = vld [vmem:[%s7727 + $0x1c] sm:$0xf]
      %v7744 = vunpack.c.l.b16 %v7728
      %v7745 = vunpack.c.l.b16 %v7729
      %v7746 = vunpack.c.l.b16 %v7730
      %v7747 = vunpack.c.l.b16 %v7731
      %v7748 = vunpack.c.l.b16 %v7732
      %v7749 = vunpack.c.l.b16 %v7733
      %v7750 = vunpack.c.l.b16 %v7734
      %v7751 = vunpack.c.l.b16 %v7735
      %v7752 = vpack.c.b16 %v7745, %v7744
      %v7753 = vpack.c.b16 %v7747, %v7746
      %v7754 = vpack.c.b16 %v7749, %v7748
      %v7755 = vpack.c.b16 %v7751, %v7750
      %v7761 = vsel %vm388, %v7723, 0
      %v7764 = vsel %vm388, %v7724, 0
      %v7767 = vsel %vm388, %v7725, 0
      %v7770 = vsel %vm388, %v7726, 0
      %7772 = vmatprep.subr.bf16.mxu0 0
      %7773 = vmatpush1.bf16.msra.mxu0 0
      %7774 = vmatprep.subr.bf16.mxu0 0
      %7775 = vmatpush1.bf16.msra.mxu0 0
      %7776 = vmatprep.subr.bf16.mxu0 0
      %7777 = vmatpush1.bf16.msra.mxu0 0
      %7778 = vmatprep.subr.bf16.mxu0 0
      %7779 = vmatpush1.bf16.msra.mxu0 0
      %7780 = vmatprep.subr.bf16.mxu0 0
      %7781 = vmatpush1.bf16.msra.mxu0 %v7755
      %7782 = vmatprep.subr.bf16.mxu0 0
      %7783 = vmatpush1.bf16.msra.mxu0 %v7754
      %7784 = vmatprep.subr.bf16.mxu0 0
      %7785 = vmatpush1.bf16.msra.mxu0 %v7753
      %7786 = vmatprep.subr.bf16.mxu0 0
      %7787 = vmatpush1.bf16.msra.mxu0 %v7752
      %7788 = vmatprep.subr.bf16.mxu0 0
      %7789 = vmatpush2.bf16.msra.mxu0 0
      %7790 = vmatprep.subr.bf16.mxu0 0
      %7791 = vmatpush2.bf16.msra.mxu0 0
      %7792 = vmatprep.subr.bf16.mxu0 0
      %7793 = vmatpush2.bf16.msra.mxu0 0
      %7794 = vmatprep.subr.bf16.mxu0 0
      %7795 = vmatpush2.bf16.msra.mxu0 0
      %7796 = vmatprep.subr.bf16.mxu0 0
      %7797 = vmatpush2.bf16.msra.mxu0 0
      %7798 = vmatprep.subr.bf16.mxu0 0
      %7799 = vmatpush2.bf16.msra.mxu0 0
      %7800 = vmatprep.subr.bf16.mxu0 0
      %7801 = vmatpush2.bf16.msra.mxu0 0
      %7802 = vmatprep.subr.bf16.mxu0 0
      %7803 = vmatpush2.bf16.msra.mxu0 0
      %7804 = vmatprep.mubr.bf16.mxu0 0
      %7805 = vmatmul.mubr.bf16.gmra.mxu0 %v7761
      %v7806 = vpop.f32.mrf.mxu0
      %v7807 = vadd.f32 0.0, %v7806
      %v7808 = vpop.f32.mrf.mxu0
      %v7809 = vpop.f32.mrf.mxu0
      %v7810 = vadd.f32 0.0, %v7809
      %v7811 = vpop.f32.mrf.mxu0
      %7812 = vmatprep.mubr.bf16.mxu0 0
      %7813 = vmatmul.mubr.bf16.gmra.mxu0 %v7764
      %v7814 = vpop.f32.mrf.mxu0
      %v7815 = vadd.f32 0.0, %v7814
      %v7816 = vpop.f32.mrf.mxu0
      %v7817 = vpop.f32.mrf.mxu0
      %v7818 = vadd.f32 0.0, %v7817
      %v7819 = vpop.f32.mrf.mxu0
      %7820 = vmatprep.mubr.bf16.mxu0 0
      %7821 = vmatmul.mubr.bf16.gmra.mxu0 %v7767
      %v7822 = vpop.f32.mrf.mxu0
      %v7823 = vadd.f32 0.0, %v7822
      %v7824 = vpop.f32.mrf.mxu0
      %v7825 = vpop.f32.mrf.mxu0
      %v7826 = vadd.f32 0.0, %v7825
      %v7827 = vpop.f32.mrf.mxu0
      %7828 = vmatprep.mubr.bf16.mxu0 0
      %7829 = vmatmul.mubr.bf16.gmra.mxu0 %v7770
      %v7830 = vpop.f32.mrf.mxu0
      %v7831 = vadd.f32 0.0, %v7830
      %v7832 = vpop.f32.mrf.mxu0
      %v7833 = vpop.f32.mrf.mxu0
      %v7834 = vadd.f32 0.0, %v7833
      %v7835 = vpop.f32.mrf.mxu0
      %7836 = vdwg.mxu0
      %v7837 = vadd.f32 %v7685, %v7807
      %v7838 = vadd.f32 %v7688, %v7810
      %v7839 = vadd.f32 %v7693, %v7815
      %v7840 = vadd.f32 %v7696, %v7818
      %v7841 = vadd.f32 %v7701, %v7823
      %v7842 = vadd.f32 %v7704, %v7826
      %v7843 = vadd.f32 %v7709, %v7831
      %v7844 = vadd.f32 %v7712, %v7834
      %v7845 = vld [vmem:[%s6278 + $0x7] sm:$0xff]
      %v7846 = vld [vmem:[%s6278 + $0x1f] sm:$0xff]
      %v7847 = vld [vmem:[%s6278 + $0x37] sm:$0xff]
      %v7848 = vld [vmem:[%s6278 + $0x4f] sm:$0xff]
      %v7849 = vld [vmem:[%s6278 + $0x67] sm:$0xff]
      %v7850 = vld [vmem:[%s6278 + $0x7f] sm:$0xff]
      %v7851 = vld [vmem:[%s6278 + $0x97] sm:$0xff]
      %v7852 = vld [vmem:[%s6278 + $0xaf] sm:$0xff]
      %v7853 = vpack.c.bf16 %v7846, %v7845
      %v7854 = vpack.c.bf16 %v7848, %v7847
      %v7855 = vpack.c.bf16 %v7850, %v7849
      %v7856 = vpack.c.bf16 %v7852, %v7851
      %s7857 = scalar_lea.vmem %s8, 96
      %v7858 = vld [vmem:[%s7857] sm:$0xf]
      %v7859 = vld [vmem:[%s7857 + $0x4] sm:$0xf]
      %v7860 = vld [vmem:[%s7857 + $0x8] sm:$0xf]
      %v7861 = vld [vmem:[%s7857 + $0xc] sm:$0xf]
      %v7862 = vld [vmem:[%s7857 + $0x10] sm:$0xf]
      %v7863 = vld [vmem:[%s7857 + $0x14] sm:$0xf]
      %v7864 = vld [vmem:[%s7857 + $0x18] sm:$0xf]
      %v7865 = vld [vmem:[%s7857 + $0x1c] sm:$0xf]
      %v7874 = vunpack.c.l.b16 %v7858
      %v7875 = vunpack.c.l.b16 %v7859
      %v7876 = vunpack.c.l.b16 %v7860
      %v7877 = vunpack.c.l.b16 %v7861
      %v7878 = vunpack.c.l.b16 %v7862
      %v7879 = vunpack.c.l.b16 %v7863
      %v7880 = vunpack.c.l.b16 %v7864
      %v7881 = vunpack.c.l.b16 %v7865
      %v7882 = vpack.c.b16 %v7875, %v7874
      %v7883 = vpack.c.b16 %v7877, %v7876
      %v7884 = vpack.c.b16 %v7879, %v7878
      %v7885 = vpack.c.b16 %v7881, %v7880
      %v7891 = vsel %vm388, %v7853, 0
      %v7894 = vsel %vm388, %v7854, 0
      %v7897 = vsel %vm388, %v7855, 0
      %v7900 = vsel %vm388, %v7856, 0
      %7902 = vmatprep.subr.bf16.mxu0 0
      %7903 = vmatpush1.bf16.msra.mxu0 0
      %7904 = vmatprep.subr.bf16.mxu0 0
      %7905 = vmatpush1.bf16.msra.mxu0 0
      %7906 = vmatprep.subr.bf16.mxu0 0
      %7907 = vmatpush1.bf16.msra.mxu0 0
      %7908 = vmatprep.subr.bf16.mxu0 0
      %7909 = vmatpush1.bf16.msra.mxu0 0
      %7910 = vmatprep.subr.bf16.mxu0 0
      %7911 = vmatpush1.bf16.msra.mxu0 %v7885
      %7912 = vmatprep.subr.bf16.mxu0 0
      %7913 = vmatpush1.bf16.msra.mxu0 %v7884
      %7914 = vmatprep.subr.bf16.mxu0 0
      %7915 = vmatpush1.bf16.msra.mxu0 %v7883
      %7916 = vmatprep.subr.bf16.mxu0 0
      %7917 = vmatpush1.bf16.msra.mxu0 %v7882
      %7918 = vmatprep.subr.bf16.mxu0 0
      %7919 = vmatpush2.bf16.msra.mxu0 0
      %7920 = vmatprep.subr.bf16.mxu0 0
      %7921 = vmatpush2.bf16.msra.mxu0 0
      %7922 = vmatprep.subr.bf16.mxu0 0
      %7923 = vmatpush2.bf16.msra.mxu0 0
      %7924 = vmatprep.subr.bf16.mxu0 0
      %7925 = vmatpush2.bf16.msra.mxu0 0
      %7926 = vmatprep.subr.bf16.mxu0 0
      %7927 = vmatpush2.bf16.msra.mxu0 0
      %7928 = vmatprep.subr.bf16.mxu0 0
      %7929 = vmatpush2.bf16.msra.mxu0 0
      %7930 = vmatprep.subr.bf16.mxu0 0
      %7931 = vmatpush2.bf16.msra.mxu0 0
      %7932 = vmatprep.subr.bf16.mxu0 0
      %7933 = vmatpush2.bf16.msra.mxu0 0
      %7934 = vmatprep.mubr.bf16.mxu0 0
      %7935 = vmatmul.mubr.bf16.gmra.mxu0 %v7891
      %v7936 = vpop.f32.mrf.mxu0
      %v7937 = vadd.f32 0.0, %v7936
      %v7938 = vpop.f32.mrf.mxu0
      %v7939 = vpop.f32.mrf.mxu0
      %v7940 = vadd.f32 0.0, %v7939
      %v7941 = vpop.f32.mrf.mxu0
      %7942 = vmatprep.mubr.bf16.mxu0 0
      %7943 = vmatmul.mubr.bf16.gmra.mxu0 %v7894
      %v7944 = vpop.f32.mrf.mxu0
      %v7945 = vadd.f32 0.0, %v7944
      %v7946 = vpop.f32.mrf.mxu0
      %v7947 = vpop.f32.mrf.mxu0
      %v7948 = vadd.f32 0.0, %v7947
      %v7949 = vpop.f32.mrf.mxu0
      %7950 = vmatprep.mubr.bf16.mxu0 0
      %7951 = vmatmul.mubr.bf16.gmra.mxu0 %v7897
      %v7952 = vpop.f32.mrf.mxu0
      %v7953 = vadd.f32 0.0, %v7952
      %v7954 = vpop.f32.mrf.mxu0
      %v7955 = vpop.f32.mrf.mxu0
      %v7956 = vadd.f32 0.0, %v7955
      %v7957 = vpop.f32.mrf.mxu0
      %7958 = vmatprep.mubr.bf16.mxu0 0
      %7959 = vmatmul.mubr.bf16.gmra.mxu0 %v7900
      %v7960 = vpop.f32.mrf.mxu0
      %v7961 = vadd.f32 0.0, %v7960
      %v7962 = vpop.f32.mrf.mxu0
      %v7963 = vpop.f32.mrf.mxu0
      %v7964 = vadd.f32 0.0, %v7963
      %v7965 = vpop.f32.mrf.mxu0
      %7966 = vdwg.mxu0
      %v7967 = vadd.f32 %v7837, %v7937
      %v7968 = vadd.f32 %v7838, %v7940
      %v7969 = vadd.f32 %v7839, %v7945
      %v7970 = vadd.f32 %v7840, %v7948
      %v7971 = vadd.f32 %v7841, %v7953
      %v7972 = vadd.f32 %v7842, %v7956
      %v7973 = vadd.f32 %v7843, %v7961
      %v7974 = vadd.f32 %v7844, %v7964
      %v7975 = vld [vmem:[%s6278 + $0x8] sm:$0xff]
      %v7976 = vld [vmem:[%s6278 + $0x20] sm:$0xff]
      %v7977 = vld [vmem:[%s6278 + $0x38] sm:$0xff]
      %v7978 = vld [vmem:[%s6278 + $0x50] sm:$0xff]
      %v7979 = vld [vmem:[%s6278 + $0x68] sm:$0xff]
      %v7980 = vld [vmem:[%s6278 + $0x80] sm:$0xff]
      %v7981 = vld [vmem:[%s6278 + $0x98] sm:$0xff]
      %v7982 = vld [vmem:[%s6278 + $0xb0] sm:$0xff]
      %v7983 = vpack.c.bf16 %v7976, %v7975
      %v7984 = vpack.c.bf16 %v7978, %v7977
      %v7985 = vpack.c.bf16 %v7980, %v7979
      %v7986 = vpack.c.bf16 %v7982, %v7981
      %s7987 = scalar_lea.vmem %s8, 128
      %v7988 = vld [vmem:[%s7987] sm:$0xf]
      %v7989 = vld [vmem:[%s7987 + $0x4] sm:$0xf]
      %v7990 = vld [vmem:[%s7987 + $0x8] sm:$0xf]
      %v7991 = vld [vmem:[%s7987 + $0xc] sm:$0xf]
      %v7992 = vld [vmem:[%s7987 + $0x10] sm:$0xf]
      %v7993 = vld [vmem:[%s7987 + $0x14] sm:$0xf]
      %v7994 = vld [vmem:[%s7987 + $0x18] sm:$0xf]
      %v7995 = vld [vmem:[%s7987 + $0x1c] sm:$0xf]
      %v8004 = vunpack.c.l.b16 %v7988
      %v8005 = vunpack.c.l.b16 %v7989
      %v8006 = vunpack.c.l.b16 %v7990
      %v8007 = vunpack.c.l.b16 %v7991
      %v8008 = vunpack.c.l.b16 %v7992
      %v8009 = vunpack.c.l.b16 %v7993
      %v8010 = vunpack.c.l.b16 %v7994
      %v8011 = vunpack.c.l.b16 %v7995
      %v8012 = vpack.c.b16 %v8005, %v8004
      %v8013 = vpack.c.b16 %v8007, %v8006
      %v8014 = vpack.c.b16 %v8009, %v8008
      %v8015 = vpack.c.b16 %v8011, %v8010
      %v8021 = vsel %vm388, %v7983, 0
      %v8024 = vsel %vm388, %v7984, 0
      %v8027 = vsel %vm388, %v7985, 0
      %v8030 = vsel %vm388, %v7986, 0
      %8032 = vmatprep.subr.bf16.mxu0 0
      %8033 = vmatpush1.bf16.msra.mxu0 0
      %8034 = vmatprep.subr.bf16.mxu0 0
      %8035 = vmatpush1.bf16.msra.mxu0 0
      %8036 = vmatprep.subr.bf16.mxu0 0
      %8037 = vmatpush1.bf16.msra.mxu0 0
      %8038 = vmatprep.subr.bf16.mxu0 0
      %8039 = vmatpush1.bf16.msra.mxu0 0
      %8040 = vmatprep.subr.bf16.mxu0 0
      %8041 = vmatpush1.bf16.msra.mxu0 %v8015
      %8042 = vmatprep.subr.bf16.mxu0 0
      %8043 = vmatpush1.bf16.msra.mxu0 %v8014
      %8044 = vmatprep.subr.bf16.mxu0 0
      %8045 = vmatpush1.bf16.msra.mxu0 %v8013
      %8046 = vmatprep.subr.bf16.mxu0 0
      %8047 = vmatpush1.bf16.msra.mxu0 %v8012
      %8048 = vmatprep.subr.bf16.mxu0 0
      %8049 = vmatpush2.bf16.msra.mxu0 0
      %8050 = vmatprep.subr.bf16.mxu0 0
      %8051 = vmatpush2.bf16.msra.mxu0 0
      %8052 = vmatprep.subr.bf16.mxu0 0
      %8053 = vmatpush2.bf16.msra.mxu0 0
      %8054 = vmatprep.subr.bf16.mxu0 0
      %8055 = vmatpush2.bf16.msra.mxu0 0
      %8056 = vmatprep.subr.bf16.mxu0 0
      %8057 = vmatpush2.bf16.msra.mxu0 0
      %8058 = vmatprep.subr.bf16.mxu0 0
      %8059 = vmatpush2.bf16.msra.mxu0 0
      %8060 = vmatprep.subr.bf16.mxu0 0
      %8061 = vmatpush2.bf16.msra.mxu0 0
      %8062 = vmatprep.subr.bf16.mxu0 0
      %8063 = vmatpush2.bf16.msra.mxu0 0
      %8064 = vmatprep.mubr.bf16.mxu0 0
      %8065 = vmatmul.mubr.bf16.gmra.mxu0 %v8021
      %v8066 = vpop.f32.mrf.mxu0
      %v8067 = vadd.f32 0.0, %v8066
      %v8068 = vpop.f32.mrf.mxu0
      %v8069 = vpop.f32.mrf.mxu0
      %v8070 = vadd.f32 0.0, %v8069
      %v8071 = vpop.f32.mrf.mxu0
      %8072 = vmatprep.mubr.bf16.mxu0 0
      %8073 = vmatmul.mubr.bf16.gmra.mxu0 %v8024
      %v8074 = vpop.f32.mrf.mxu0
      %v8075 = vadd.f32 0.0, %v8074
      %v8076 = vpop.f32.mrf.mxu0
      %v8077 = vpop.f32.mrf.mxu0
      %v8078 = vadd.f32 0.0, %v8077
      %v8079 = vpop.f32.mrf.mxu0
      %8080 = vmatprep.mubr.bf16.mxu0 0
      %8081 = vmatmul.mubr.bf16.gmra.mxu0 %v8027
      %v8082 = vpop.f32.mrf.mxu0
      %v8083 = vadd.f32 0.0, %v8082
      %v8084 = vpop.f32.mrf.mxu0
      %v8085 = vpop.f32.mrf.mxu0
      %v8086 = vadd.f32 0.0, %v8085
      %v8087 = vpop.f32.mrf.mxu0
      %8088 = vmatprep.mubr.bf16.mxu0 0
      %8089 = vmatmul.mubr.bf16.gmra.mxu0 %v8030
      %v8090 = vpop.f32.mrf.mxu0
      %v8091 = vadd.f32 0.0, %v8090
      %v8092 = vpop.f32.mrf.mxu0
      %v8093 = vpop.f32.mrf.mxu0
      %v8094 = vadd.f32 0.0, %v8093
      %v8095 = vpop.f32.mrf.mxu0
      %8096 = vdwg.mxu0
      %v8097 = vadd.f32 %v7967, %v8067
      %v8098 = vadd.f32 %v7968, %v8070
      %v8099 = vadd.f32 %v7969, %v8075
      %v8100 = vadd.f32 %v7970, %v8078
      %v8101 = vadd.f32 %v7971, %v8083
      %v8102 = vadd.f32 %v7972, %v8086
      %v8103 = vadd.f32 %v7973, %v8091
      %v8104 = vadd.f32 %v7974, %v8094
      %v8105 = vld [vmem:[%s6278 + $0x9] sm:$0xff]
      %v8106 = vld [vmem:[%s6278 + $0x21] sm:$0xff]
      %v8107 = vld [vmem:[%s6278 + $0x39] sm:$0xff]
      %v8108 = vld [vmem:[%s6278 + $0x51] sm:$0xff]
      %v8109 = vld [vmem:[%s6278 + $0x69] sm:$0xff]
      %v8110 = vld [vmem:[%s6278 + $0x81] sm:$0xff]
      %v8111 = vld [vmem:[%s6278 + $0x99] sm:$0xff]
      %v8112 = vld [vmem:[%s6278 + $0xb1] sm:$0xff]
      %v8113 = vpack.c.bf16 %v8106, %v8105
      %v8114 = vpack.c.bf16 %v8108, %v8107
      %v8115 = vpack.c.bf16 %v8110, %v8109
      %v8116 = vpack.c.bf16 %v8112, %v8111
      %s8117 = scalar_lea.vmem %s8, 160
      %v8118 = vld [vmem:[%s8117] sm:$0xf]
      %v8119 = vld [vmem:[%s8117 + $0x4] sm:$0xf]
      %v8120 = vld [vmem:[%s8117 + $0x8] sm:$0xf]
      %v8121 = vld [vmem:[%s8117 + $0xc] sm:$0xf]
      %v8122 = vld [vmem:[%s8117 + $0x10] sm:$0xf]
      %v8123 = vld [vmem:[%s8117 + $0x14] sm:$0xf]
      %v8124 = vld [vmem:[%s8117 + $0x18] sm:$0xf]
      %v8125 = vld [vmem:[%s8117 + $0x1c] sm:$0xf]
      %v8134 = vunpack.c.l.b16 %v8118
      %v8135 = vunpack.c.l.b16 %v8119
      %v8136 = vunpack.c.l.b16 %v8120
      %v8137 = vunpack.c.l.b16 %v8121
      %v8138 = vunpack.c.l.b16 %v8122
      %v8139 = vunpack.c.l.b16 %v8123
      %v8140 = vunpack.c.l.b16 %v8124
      %v8141 = vunpack.c.l.b16 %v8125
      %v8142 = vpack.c.b16 %v8135, %v8134
      %v8143 = vpack.c.b16 %v8137, %v8136
      %v8144 = vpack.c.b16 %v8139, %v8138
      %v8145 = vpack.c.b16 %v8141, %v8140
      %v8151 = vsel %vm388, %v8113, 0
      %v8154 = vsel %vm388, %v8114, 0
      %v8157 = vsel %vm388, %v8115, 0
      %v8160 = vsel %vm388, %v8116, 0
      %8162 = vmatprep.subr.bf16.mxu0 0
      %8163 = vmatpush1.bf16.msra.mxu0 0
      %8164 = vmatprep.subr.bf16.mxu0 0
      %8165 = vmatpush1.bf16.msra.mxu0 0
      %8166 = vmatprep.subr.bf16.mxu0 0
      %8167 = vmatpush1.bf16.msra.mxu0 0
      %8168 = vmatprep.subr.bf16.mxu0 0
      %8169 = vmatpush1.bf16.msra.mxu0 0
      %8170 = vmatprep.subr.bf16.mxu0 0
      %8171 = vmatpush1.bf16.msra.mxu0 %v8145
      %8172 = vmatprep.subr.bf16.mxu0 0
      %8173 = vmatpush1.bf16.msra.mxu0 %v8144
      %8174 = vmatprep.subr.bf16.mxu0 0
      %8175 = vmatpush1.bf16.msra.mxu0 %v8143
      %8176 = vmatprep.subr.bf16.mxu0 0
      %8177 = vmatpush1.bf16.msra.mxu0 %v8142
      %8178 = vmatprep.subr.bf16.mxu0 0
      %8179 = vmatpush2.bf16.msra.mxu0 0
      %8180 = vmatprep.subr.bf16.mxu0 0
      %8181 = vmatpush2.bf16.msra.mxu0 0
      %8182 = vmatprep.subr.bf16.mxu0 0
      %8183 = vmatpush2.bf16.msra.mxu0 0
      %8184 = vmatprep.subr.bf16.mxu0 0
      %8185 = vmatpush2.bf16.msra.mxu0 0
      %8186 = vmatprep.subr.bf16.mxu0 0
      %8187 = vmatpush2.bf16.msra.mxu0 0
      %8188 = vmatprep.subr.bf16.mxu0 0
      %8189 = vmatpush2.bf16.msra.mxu0 0
      %8190 = vmatprep.subr.bf16.mxu0 0
      %8191 = vmatpush2.bf16.msra.mxu0 0
      %8192 = vmatprep.subr.bf16.mxu0 0
      %8193 = vmatpush2.bf16.msra.mxu0 0
      %8194 = vmatprep.mubr.bf16.mxu0 0
      %8195 = vmatmul.mubr.bf16.gmra.mxu0 %v8151
      %v8196 = vpop.f32.mrf.mxu0
      %v8197 = vadd.f32 0.0, %v8196
      %v8198 = vpop.f32.mrf.mxu0
      %v8199 = vpop.f32.mrf.mxu0
      %v8200 = vadd.f32 0.0, %v8199
      %v8201 = vpop.f32.mrf.mxu0
      %8202 = vmatprep.mubr.bf16.mxu0 0
      %8203 = vmatmul.mubr.bf16.gmra.mxu0 %v8154
      %v8204 = vpop.f32.mrf.mxu0
      %v8205 = vadd.f32 0.0, %v8204
      %v8206 = vpop.f32.mrf.mxu0
      %v8207 = vpop.f32.mrf.mxu0
      %v8208 = vadd.f32 0.0, %v8207
      %v8209 = vpop.f32.mrf.mxu0
      %8210 = vmatprep.mubr.bf16.mxu0 0
      %8211 = vmatmul.mubr.bf16.gmra.mxu0 %v8157
      %v8212 = vpop.f32.mrf.mxu0
      %v8213 = vadd.f32 0.0, %v8212
      %v8214 = vpop.f32.mrf.mxu0
      %v8215 = vpop.f32.mrf.mxu0
      %v8216 = vadd.f32 0.0, %v8215
      %v8217 = vpop.f32.mrf.mxu0
      %8218 = vmatprep.mubr.bf16.mxu0 0
      %8219 = vmatmul.mubr.bf16.gmra.mxu0 %v8160
      %v8220 = vpop.f32.mrf.mxu0
      %v8221 = vadd.f32 0.0, %v8220
      %v8222 = vpop.f32.mrf.mxu0
      %v8223 = vpop.f32.mrf.mxu0
      %v8224 = vadd.f32 0.0, %v8223
      %v8225 = vpop.f32.mrf.mxu0
      %8226 = vdwg.mxu0
      %v8227 = vadd.f32 %v8097, %v8197
      %v8228 = vadd.f32 %v8098, %v8200
      %v8229 = vadd.f32 %v8099, %v8205
      %v8230 = vadd.f32 %v8100, %v8208
      %v8231 = vadd.f32 %v8101, %v8213
      %v8232 = vadd.f32 %v8102, %v8216
      %v8233 = vadd.f32 %v8103, %v8221
      %v8234 = vadd.f32 %v8104, %v8224
      %v8235 = vld [vmem:[%s7050 + $0x7] sm:$0xff]
      %v8236 = vld [vmem:[%s7050 + $0x1f] sm:$0xff]
      %v8237 = vld [vmem:[%s7050 + $0x37] sm:$0xff]
      %v8238 = vld [vmem:[%s7050 + $0x4f] sm:$0xff]
      %v8239 = vld [vmem:[%s7050 + $0x67] sm:$0xff]
      %v8240 = vld [vmem:[%s7050 + $0x7f] sm:$0xff]
      %v8241 = vld [vmem:[%s7050 + $0x97] sm:$0xff]
      %v8242 = vld [vmem:[%s7050 + $0xaf] sm:$0xff]
      %v8243 = vpack.c.bf16 %v8236, %v8235
      %v8244 = vpack.c.bf16 %v8238, %v8237
      %v8245 = vpack.c.bf16 %v8240, %v8239
      %v8246 = vpack.c.bf16 %v8242, %v8241
      %s8247 = scalar_lea.vmem %s8, 192
      %v8248 = vld [vmem:[%s8247] sm:$0xf]
      %v8249 = vld [vmem:[%s8247 + $0x4] sm:$0xf]
      %v8250 = vld [vmem:[%s8247 + $0x8] sm:$0xf]
      %v8251 = vld [vmem:[%s8247 + $0xc] sm:$0xf]
      %v8252 = vld [vmem:[%s8247 + $0x10] sm:$0xf]
      %v8253 = vld [vmem:[%s8247 + $0x14] sm:$0xf]
      %v8254 = vld [vmem:[%s8247 + $0x18] sm:$0xf]
      %v8255 = vld [vmem:[%s8247 + $0x1c] sm:$0xf]
      %v8264 = vunpack.c.l.b16 %v8248
      %v8265 = vunpack.c.l.b16 %v8249
      %v8266 = vunpack.c.l.b16 %v8250
      %v8267 = vunpack.c.l.b16 %v8251
      %v8268 = vunpack.c.l.b16 %v8252
      %v8269 = vunpack.c.l.b16 %v8253
      %v8270 = vunpack.c.l.b16 %v8254
      %v8271 = vunpack.c.l.b16 %v8255
      %v8272 = vpack.c.b16 %v8265, %v8264
      %v8273 = vpack.c.b16 %v8267, %v8266
      %v8274 = vpack.c.b16 %v8269, %v8268
      %v8275 = vpack.c.b16 %v8271, %v8270
      %v8281 = vsel %vm388, %v8243, 0
      %v8284 = vsel %vm388, %v8244, 0
      %v8287 = vsel %vm388, %v8245, 0
      %v8290 = vsel %vm388, %v8246, 0
      %8292 = vmatprep.subr.bf16.mxu0 0
      %8293 = vmatpush1.bf16.msra.mxu0 0
      %8294 = vmatprep.subr.bf16.mxu0 0
      %8295 = vmatpush1.bf16.msra.mxu0 0
      %8296 = vmatprep.subr.bf16.mxu0 0
      %8297 = vmatpush1.bf16.msra.mxu0 0
      %8298 = vmatprep.subr.bf16.mxu0 0
      %8299 = vmatpush1.bf16.msra.mxu0 0
      %8300 = vmatprep.subr.bf16.mxu0 0
      %8301 = vmatpush1.bf16.msra.mxu0 %v8275
      %8302 = vmatprep.subr.bf16.mxu0 0
      %8303 = vmatpush1.bf16.msra.mxu0 %v8274
      %8304 = vmatprep.subr.bf16.mxu0 0
      %8305 = vmatpush1.bf16.msra.mxu0 %v8273
      %8306 = vmatprep.subr.bf16.mxu0 0
      %8307 = vmatpush1.bf16.msra.mxu0 %v8272
      %8308 = vmatprep.subr.bf16.mxu0 0
      %8309 = vmatpush2.bf16.msra.mxu0 0
      %8310 = vmatprep.subr.bf16.mxu0 0
      %8311 = vmatpush2.bf16.msra.mxu0 0
      %8312 = vmatprep.subr.bf16.mxu0 0
      %8313 = vmatpush2.bf16.msra.mxu0 0
      %8314 = vmatprep.subr.bf16.mxu0 0
      %8315 = vmatpush2.bf16.msra.mxu0 0
      %8316 = vmatprep.subr.bf16.mxu0 0
      %8317 = vmatpush2.bf16.msra.mxu0 0
      %8318 = vmatprep.subr.bf16.mxu0 0
      %8319 = vmatpush2.bf16.msra.mxu0 0
      %8320 = vmatprep.subr.bf16.mxu0 0
      %8321 = vmatpush2.bf16.msra.mxu0 0
      %8322 = vmatprep.subr.bf16.mxu0 0
      %8323 = vmatpush2.bf16.msra.mxu0 0
      %8324 = vmatprep.mubr.bf16.mxu0 0
      %8325 = vmatmul.mubr.bf16.gmra.mxu0 %v8281
      %v8326 = vpop.f32.mrf.mxu0
      %v8327 = vadd.f32 0.0, %v8326
      %v8328 = vpop.f32.mrf.mxu0
      %v8329 = vpop.f32.mrf.mxu0
      %v8330 = vadd.f32 0.0, %v8329
      %v8331 = vpop.f32.mrf.mxu0
      %8332 = vmatprep.mubr.bf16.mxu0 0
      %8333 = vmatmul.mubr.bf16.gmra.mxu0 %v8284
      %v8334 = vpop.f32.mrf.mxu0
      %v8335 = vadd.f32 0.0, %v8334
      %v8336 = vpop.f32.mrf.mxu0
      %v8337 = vpop.f32.mrf.mxu0
      %v8338 = vadd.f32 0.0, %v8337
      %v8339 = vpop.f32.mrf.mxu0
      %8340 = vmatprep.mubr.bf16.mxu0 0
      %8341 = vmatmul.mubr.bf16.gmra.mxu0 %v8287
      %v8342 = vpop.f32.mrf.mxu0
      %v8343 = vadd.f32 0.0, %v8342
      %v8344 = vpop.f32.mrf.mxu0
      %v8345 = vpop.f32.mrf.mxu0
      %v8346 = vadd.f32 0.0, %v8345
      %v8347 = vpop.f32.mrf.mxu0
      %8348 = vmatprep.mubr.bf16.mxu0 0
      %8349 = vmatmul.mubr.bf16.gmra.mxu0 %v8290
      %v8350 = vpop.f32.mrf.mxu0
      %v8351 = vadd.f32 0.0, %v8350
      %v8352 = vpop.f32.mrf.mxu0
      %v8353 = vpop.f32.mrf.mxu0
      %v8354 = vadd.f32 0.0, %v8353
      %v8355 = vpop.f32.mrf.mxu0
      %8356 = vdwg.mxu0
      %v8357 = vadd.f32 %v8227, %v8327
      %v8358 = vadd.f32 %v8228, %v8330
      %v8359 = vadd.f32 %v8229, %v8335
      %v8360 = vadd.f32 %v8230, %v8338
      %v8361 = vadd.f32 %v8231, %v8343
      %v8362 = vadd.f32 %v8232, %v8346
      %v8363 = vadd.f32 %v8233, %v8351
      %v8364 = vadd.f32 %v8234, %v8354
      %v8365 = vld [vmem:[%s7050 + $0x8] sm:$0xff]
      %v8366 = vld [vmem:[%s7050 + $0x20] sm:$0xff]
      %v8367 = vld [vmem:[%s7050 + $0x38] sm:$0xff]
      %v8368 = vld [vmem:[%s7050 + $0x50] sm:$0xff]
      %v8369 = vld [vmem:[%s7050 + $0x68] sm:$0xff]
      %v8370 = vld [vmem:[%s7050 + $0x80] sm:$0xff]
      %v8371 = vld [vmem:[%s7050 + $0x98] sm:$0xff]
      %v8372 = vld [vmem:[%s7050 + $0xb0] sm:$0xff]
      %v8373 = vpack.c.bf16 %v8366, %v8365
      %v8374 = vpack.c.bf16 %v8368, %v8367
      %v8375 = vpack.c.bf16 %v8370, %v8369
      %v8376 = vpack.c.bf16 %v8372, %v8371
      %s8377 = scalar_lea.vmem %s8, 224
      %v8378 = vld [vmem:[%s8377] sm:$0xf]
      %v8379 = vld [vmem:[%s8377 + $0x4] sm:$0xf]
      %v8380 = vld [vmem:[%s8377 + $0x8] sm:$0xf]
      %v8381 = vld [vmem:[%s8377 + $0xc] sm:$0xf]
      %v8382 = vld [vmem:[%s8377 + $0x10] sm:$0xf]
      %v8383 = vld [vmem:[%s8377 + $0x14] sm:$0xf]
      %v8384 = vld [vmem:[%s8377 + $0x18] sm:$0xf]
      %v8385 = vld [vmem:[%s8377 + $0x1c] sm:$0xf]
      %v8394 = vunpack.c.l.b16 %v8378
      %v8395 = vunpack.c.l.b16 %v8379
      %v8396 = vunpack.c.l.b16 %v8380
      %v8397 = vunpack.c.l.b16 %v8381
      %v8398 = vunpack.c.l.b16 %v8382
      %v8399 = vunpack.c.l.b16 %v8383
      %v8400 = vunpack.c.l.b16 %v8384
      %v8401 = vunpack.c.l.b16 %v8385
      %v8402 = vpack.c.b16 %v8395, %v8394
      %v8403 = vpack.c.b16 %v8397, %v8396
      %v8404 = vpack.c.b16 %v8399, %v8398
      %v8405 = vpack.c.b16 %v8401, %v8400
      %v8411 = vsel %vm388, %v8373, 0
      %v8414 = vsel %vm388, %v8374, 0
      %v8417 = vsel %vm388, %v8375, 0
      %v8420 = vsel %vm388, %v8376, 0
      %8422 = vmatprep.subr.bf16.mxu0 0
      %8423 = vmatpush1.bf16.msra.mxu0 0
      %8424 = vmatprep.subr.bf16.mxu0 0
      %8425 = vmatpush1.bf16.msra.mxu0 0
      %8426 = vmatprep.subr.bf16.mxu0 0
      %8427 = vmatpush1.bf16.msra.mxu0 0
      %8428 = vmatprep.subr.bf16.mxu0 0
      %8429 = vmatpush1.bf16.msra.mxu0 0
      %8430 = vmatprep.subr.bf16.mxu0 0
      %8431 = vmatpush1.bf16.msra.mxu0 %v8405
      %8432 = vmatprep.subr.bf16.mxu0 0
      %8433 = vmatpush1.bf16.msra.mxu0 %v8404
      %8434 = vmatprep.subr.bf16.mxu0 0
      %8435 = vmatpush1.bf16.msra.mxu0 %v8403
      %8436 = vmatprep.subr.bf16.mxu0 0
      %8437 = vmatpush1.bf16.msra.mxu0 %v8402
      %8438 = vmatprep.subr.bf16.mxu0 0
      %8439 = vmatpush2.bf16.msra.mxu0 0
      %8440 = vmatprep.subr.bf16.mxu0 0
      %8441 = vmatpush2.bf16.msra.mxu0 0
      %8442 = vmatprep.subr.bf16.mxu0 0
      %8443 = vmatpush2.bf16.msra.mxu0 0
      %8444 = vmatprep.subr.bf16.mxu0 0
      %8445 = vmatpush2.bf16.msra.mxu0 0
      %8446 = vmatprep.subr.bf16.mxu0 0
      %8447 = vmatpush2.bf16.msra.mxu0 0
      %8448 = vmatprep.subr.bf16.mxu0 0
      %8449 = vmatpush2.bf16.msra.mxu0 0
      %8450 = vmatprep.subr.bf16.mxu0 0
      %8451 = vmatpush2.bf16.msra.mxu0 0
      %8452 = vmatprep.subr.bf16.mxu0 0
      %8453 = vmatpush2.bf16.msra.mxu0 0
      %8454 = vmatprep.mubr.bf16.mxu0 0
      %8455 = vmatmul.mubr.bf16.gmra.mxu0 %v8411
      %v8456 = vpop.f32.mrf.mxu0
      %v8457 = vadd.f32 0.0, %v8456
      %v8458 = vpop.f32.mrf.mxu0
      %v8459 = vpop.f32.mrf.mxu0
      %v8460 = vadd.f32 0.0, %v8459
      %v8461 = vpop.f32.mrf.mxu0
      %8462 = vmatprep.mubr.bf16.mxu0 0
      %8463 = vmatmul.mubr.bf16.gmra.mxu0 %v8414
      %v8464 = vpop.f32.mrf.mxu0
      %v8465 = vadd.f32 0.0, %v8464
      %v8466 = vpop.f32.mrf.mxu0
      %v8467 = vpop.f32.mrf.mxu0
      %v8468 = vadd.f32 0.0, %v8467
      %v8469 = vpop.f32.mrf.mxu0
      %8470 = vmatprep.mubr.bf16.mxu0 0
      %8471 = vmatmul.mubr.bf16.gmra.mxu0 %v8417
      %v8472 = vpop.f32.mrf.mxu0
      %v8473 = vadd.f32 0.0, %v8472
      %v8474 = vpop.f32.mrf.mxu0
      %v8475 = vpop.f32.mrf.mxu0
      %v8476 = vadd.f32 0.0, %v8475
      %v8477 = vpop.f32.mrf.mxu0
      %8478 = vmatprep.mubr.bf16.mxu0 0
      %8479 = vmatmul.mubr.bf16.gmra.mxu0 %v8420
      %v8480 = vpop.f32.mrf.mxu0
      %v8481 = vadd.f32 0.0, %v8480
      %v8482 = vpop.f32.mrf.mxu0
      %v8483 = vpop.f32.mrf.mxu0
      %v8484 = vadd.f32 0.0, %v8483
      %v8485 = vpop.f32.mrf.mxu0
      %8486 = vdwg.mxu0
      %v8487 = vadd.f32 %v8357, %v8457
      %v8488 = vadd.f32 %v8358, %v8460
      %v8489 = vadd.f32 %v8359, %v8465
      %v8490 = vadd.f32 %v8360, %v8468
      %v8491 = vadd.f32 %v8361, %v8473
      %v8492 = vadd.f32 %v8362, %v8476
      %v8493 = vadd.f32 %v8363, %v8481
      %v8494 = vadd.f32 %v8364, %v8484
      %v8495 = vld [vmem:[%s7050 + $0x9] sm:$0xff]
      %v8496 = vld [vmem:[%s7050 + $0x21] sm:$0xff]
      %v8497 = vld [vmem:[%s7050 + $0x39] sm:$0xff]
      %v8498 = vld [vmem:[%s7050 + $0x51] sm:$0xff]
      %v8499 = vld [vmem:[%s7050 + $0x69] sm:$0xff]
      %v8500 = vld [vmem:[%s7050 + $0x81] sm:$0xff]
      %v8501 = vld [vmem:[%s7050 + $0x99] sm:$0xff]
      %v8502 = vld [vmem:[%s7050 + $0xb1] sm:$0xff]
      %v8503 = vpack.c.bf16 %v8496, %v8495
      %v8504 = vpack.c.bf16 %v8498, %v8497
      %v8505 = vpack.c.bf16 %v8500, %v8499
      %v8506 = vpack.c.bf16 %v8502, %v8501
      %s8507 = scalar_lea.vmem %s8, 256
      %v8508 = vld [vmem:[%s8507] sm:$0xf]
      %v8509 = vld [vmem:[%s8507 + $0x4] sm:$0xf]
      %v8510 = vld [vmem:[%s8507 + $0x8] sm:$0xf]
      %v8511 = vld [vmem:[%s8507 + $0xc] sm:$0xf]
      %v8512 = vld [vmem:[%s8507 + $0x10] sm:$0xf]
      %v8513 = vld [vmem:[%s8507 + $0x14] sm:$0xf]
      %v8514 = vld [vmem:[%s8507 + $0x18] sm:$0xf]
      %v8515 = vld [vmem:[%s8507 + $0x1c] sm:$0xf]
      %v8524 = vunpack.c.l.b16 %v8508
      %v8525 = vunpack.c.l.b16 %v8509
      %v8526 = vunpack.c.l.b16 %v8510
      %v8527 = vunpack.c.l.b16 %v8511
      %v8528 = vunpack.c.l.b16 %v8512
      %v8529 = vunpack.c.l.b16 %v8513
      %v8530 = vunpack.c.l.b16 %v8514
      %v8531 = vunpack.c.l.b16 %v8515
      %v8532 = vpack.c.b16 %v8525, %v8524
      %v8533 = vpack.c.b16 %v8527, %v8526
      %v8534 = vpack.c.b16 %v8529, %v8528
      %v8535 = vpack.c.b16 %v8531, %v8530
      %v8541 = vsel %vm388, %v8503, 0
      %v8544 = vsel %vm388, %v8504, 0
      %v8547 = vsel %vm388, %v8505, 0
      %v8550 = vsel %vm388, %v8506, 0
      %8552 = vmatprep.subr.bf16.mxu0 0
      %8553 = vmatpush1.bf16.msra.mxu0 0
      %8554 = vmatprep.subr.bf16.mxu0 0
      %8555 = vmatpush1.bf16.msra.mxu0 0
      %8556 = vmatprep.subr.bf16.mxu0 0
      %8557 = vmatpush1.bf16.msra.mxu0 0
      %8558 = vmatprep.subr.bf16.mxu0 0
      %8559 = vmatpush1.bf16.msra.mxu0 0
      %8560 = vmatprep.subr.bf16.mxu0 0
      %8561 = vmatpush1.bf16.msra.mxu0 %v8535
      %8562 = vmatprep.subr.bf16.mxu0 0
      %8563 = vmatpush1.bf16.msra.mxu0 %v8534
      %8564 = vmatprep.subr.bf16.mxu0 0
      %8565 = vmatpush1.bf16.msra.mxu0 %v8533
      %8566 = vmatprep.subr.bf16.mxu0 0
      %8567 = vmatpush1.bf16.msra.mxu0 %v8532
      %8568 = vmatprep.subr.bf16.mxu0 0
      %8569 = vmatpush2.bf16.msra.mxu0 0
      %8570 = vmatprep.subr.bf16.mxu0 0
      %8571 = vmatpush2.bf16.msra.mxu0 0
      %8572 = vmatprep.subr.bf16.mxu0 0
      %8573 = vmatpush2.bf16.msra.mxu0 0
      %8574 = vmatprep.subr.bf16.mxu0 0
      %8575 = vmatpush2.bf16.msra.mxu0 0
      %8576 = vmatprep.subr.bf16.mxu0 0
      %8577 = vmatpush2.bf16.msra.mxu0 0
      %8578 = vmatprep.subr.bf16.mxu0 0
      %8579 = vmatpush2.bf16.msra.mxu0 0
      %8580 = vmatprep.subr.bf16.mxu0 0
      %8581 = vmatpush2.bf16.msra.mxu0 0
      %8582 = vmatprep.subr.bf16.mxu0 0
      %8583 = vmatpush2.bf16.msra.mxu0 0
      %8584 = vmatprep.mubr.bf16.mxu0 0
      %8585 = vmatmul.mubr.bf16.gmra.mxu0 %v8541
      %v8586 = vpop.f32.mrf.mxu0
      %v8587 = vadd.f32 0.0, %v8586
      %v8588 = vpop.f32.mrf.mxu0
      %v8589 = vpop.f32.mrf.mxu0
      %v8590 = vadd.f32 0.0, %v8589
      %v8591 = vpop.f32.mrf.mxu0
      %8592 = vmatprep.mubr.bf16.mxu0 0
      %8593 = vmatmul.mubr.bf16.gmra.mxu0 %v8544
      %v8594 = vpop.f32.mrf.mxu0
      %v8595 = vadd.f32 0.0, %v8594
      %v8596 = vpop.f32.mrf.mxu0
      %v8597 = vpop.f32.mrf.mxu0
      %v8598 = vadd.f32 0.0, %v8597
      %v8599 = vpop.f32.mrf.mxu0
      %8600 = vmatprep.mubr.bf16.mxu0 0
      %8601 = vmatmul.mubr.bf16.gmra.mxu0 %v8547
      %v8602 = vpop.f32.mrf.mxu0
      %v8603 = vadd.f32 0.0, %v8602
      %v8604 = vpop.f32.mrf.mxu0
      %v8605 = vpop.f32.mrf.mxu0
      %v8606 = vadd.f32 0.0, %v8605
      %v8607 = vpop.f32.mrf.mxu0
      %8608 = vmatprep.mubr.bf16.mxu0 0
      %8609 = vmatmul.mubr.bf16.gmra.mxu0 %v8550
      %v8610 = vpop.f32.mrf.mxu0
      %v8611 = vadd.f32 0.0, %v8610
      %v8612 = vpop.f32.mrf.mxu0
      %v8613 = vpop.f32.mrf.mxu0
      %v8614 = vadd.f32 0.0, %v8613
      %v8615 = vpop.f32.mrf.mxu0
      %8616 = vdwg.mxu0
      %v8617 = vadd.f32 %v8487, %v8587
      %v8618 = vadd.f32 %v8488, %v8590
      %v8619 = vadd.f32 %v8489, %v8595
      %v8620 = vadd.f32 %v8490, %v8598
      %v8621 = vadd.f32 %v8491, %v8603
      %v8622 = vadd.f32 %v8492, %v8606
      %v8623 = vadd.f32 %v8493, %v8611
      %v8624 = vadd.f32 %v8494, %v8614
      %v8625 = vld [vmem:[%s9] sm:$0x1]
      %v8627 = vlaneseq
      %v8628 = vshrl.u32 %v8627, 7
      %v8629 = vsub.s32 0, %v8628
      %v8630 = vrot.slane %v8625, %v8629
      %v8632 = vadd.f32 %v8617, %v8630
      %v8633 = vadd.f32 %v8618, %v8630
      %v8634 = vadd.f32 %v8619, %v8630
      %v8635 = vadd.f32 %v8620, %v8630
      %v8636 = vadd.f32 %v8621, %v8630
      %v8637 = vadd.f32 %v8622, %v8630
      %v8638 = vadd.f32 %v8623, %v8630
      %v8639 = vadd.f32 %v8624, %v8630
      %v8640 = vmax.f32 %v8632, 0.0
      %v8641 = vmax.f32 %v8633, 0.0
      %v8642 = vmax.f32 %v8634, 0.0
      %v8643 = vmax.f32 %v8635, 0.0
      %v8644 = vmax.f32 %v8636, 0.0
      %v8645 = vmax.f32 %v8637, 0.0
      %v8646 = vmax.f32 %v8638, 0.0
      %v8647 = vmax.f32 %v8639, 0.0
      %v8648 = vld [vmem:[%s10] sm:$0xff]
      %v8649 = vld [vmem:[%s10 + $0x8] sm:$0xff]
      %v8650 = vld [vmem:[%s10 + $0x10] sm:$0xff]
      %v8651 = vld [vmem:[%s10 + $0x18] sm:$0xff]
      %v8652 = vld [vmem:[%s10 + $0x20] sm:$0xff]
      %v8653 = vld [vmem:[%s10 + $0x28] sm:$0xff]
      %v8654 = vld [vmem:[%s10 + $0x30] sm:$0xff]
      %v8655 = vld [vmem:[%s10 + $0x38] sm:$0xff]
      %v8656 = vld [vmem:[%s10 + $0x40] sm:$0xff]
      %v8657 = vld [vmem:[%s10 + $0x48] sm:$0xff]
      %v8658 = vld [vmem:[%s10 + $0x50] sm:$0xff]
      %v8659 = vld [vmem:[%s10 + $0x58] sm:$0xff]
      %v8660 = vld [vmem:[%s10 + $0x60] sm:$0xff]
      %v8661 = vld [vmem:[%s10 + $0x68] sm:$0xff]
      %v8662 = vld [vmem:[%s10 + $0x70] sm:$0xff]
      %v8663 = vld [vmem:[%s10 + $0x78] sm:$0xff]
      %v8664 = vld [vmem:[%s10 + $0x80] sm:$0xff]
      %v8665 = vld [vmem:[%s10 + $0x88] sm:$0xff]
      %v8666 = vld [vmem:[%s10 + $0x90] sm:$0xff]
      %v8667 = vld [vmem:[%s10 + $0x98] sm:$0xff]
      %v8668 = vld [vmem:[%s10 + $0xa0] sm:$0xff]
      %v8669 = vld [vmem:[%s10 + $0xa8] sm:$0xff]
      %v8670 = vld [vmem:[%s10 + $0xb0] sm:$0xff]
      %v8671 = vld [vmem:[%s10 + $0xb8] sm:$0xff]
      %v8672 = vld [vmem:[%s10 + $0xc0] sm:$0xff]
      %v8673 = vld [vmem:[%s10 + $0xc8] sm:$0xff]
      %v8674 = vld [vmem:[%s10 + $0xd0] sm:$0xff]
      %v8675 = vld [vmem:[%s10 + $0xd8] sm:$0xff]
      %v8676 = vld [vmem:[%s10 + $0xe0] sm:$0xff]
      %v8677 = vld [vmem:[%s10 + $0xe8] sm:$0xff]
      %v8678 = vld [vmem:[%s10 + $0xf0] sm:$0xff]
      %v8679 = vld [vmem:[%s10 + $0xf8] sm:$0xff]
      %v8681 = vsel %vm388, %v8648, 0
      %v8684 = vsel %vm388, %v8649, 0
      %v8687 = vsel %vm388, %v8650, 0
      %v8690 = vsel %vm388, %v8651, 0
      %v8693 = vsel %vm388, %v8652, 0
      %v8696 = vsel %vm388, %v8653, 0
      %v8699 = vsel %vm388, %v8654, 0
      %v8702 = vsel %vm388, %v8655, 0
      %v8705 = vsel %vm388, %v8656, 0
      %v8708 = vsel %vm388, %v8657, 0
      %v8711 = vsel %vm388, %v8658, 0
      %v8714 = vsel %vm388, %v8659, 0
      %v8717 = vsel %vm388, %v8660, 0
      %v8720 = vsel %vm388, %v8661, 0
      %v8723 = vsel %vm388, %v8662, 0
      %v8726 = vsel %vm388, %v8663, 0
      %v8729 = vsel %vm388, %v8664, 0
      %v8732 = vsel %vm388, %v8665, 0
      %v8735 = vsel %vm388, %v8666, 0
      %v8738 = vsel %vm388, %v8667, 0
      %v8741 = vsel %vm388, %v8668, 0
      %v8744 = vsel %vm388, %v8669, 0
      %v8747 = vsel %vm388, %v8670, 0
      %v8750 = vsel %vm388, %v8671, 0
      %v8753 = vsel %vm388, %v8672, 0
      %v8756 = vsel %vm388, %v8673, 0
      %v8759 = vsel %vm388, %v8674, 0
      %v8762 = vsel %vm388, %v8675, 0
      %v8765 = vsel %vm388, %v8676, 0
      %v8768 = vsel %vm388, %v8677, 0
      %v8771 = vsel %vm388, %v8678, 0
      %v8774 = vsel %vm388, %v8679, 0
      %8776 = vmatprep.subr.mxu0 0.0
      %8777 = vmatpush1.msra.mxu0 0.0
      %8778 = vmatprep.subr.mxu0 0.0
      %8779 = vmatpush1.msra.mxu0 0.0
      %8780 = vmatprep.subr.mxu0 0.0
      %8781 = vmatpush1.msra.mxu0 0.0
      %8782 = vmatprep.subr.mxu0 0.0
      %8783 = vmatpush1.msra.mxu0 0.0
      %8784 = vmatprep.subr.mxu0 0.0
      %8785 = vmatpush1.msra.mxu0 0.0
      %8786 = vmatprep.subr.mxu0 0.0
      %8787 = vmatpush1.msra.mxu0 0.0
      %8788 = vmatprep.subr.mxu0 0.0
      %8789 = vmatpush1.msra.mxu0 0.0
      %8790 = vmatprep.subr.mxu0 0.0
      %8791 = vmatpush1.msra.mxu0 0.0
      %8792 = vmatprep.subr.mxu0 0.0
      %8793 = vmatpush1.msra.mxu0 %v8647
      %8794 = vmatprep.subr.mxu0 0.0
      %8795 = vmatpush1.msra.mxu0 %v8646
      %8796 = vmatprep.subr.mxu0 0.0
      %8797 = vmatpush1.msra.mxu0 %v8645
      %8798 = vmatprep.subr.mxu0 0.0
      %8799 = vmatpush1.msra.mxu0 %v8644
      %8800 = vmatprep.subr.mxu0 0.0
      %8801 = vmatpush1.msra.mxu0 %v8643
      %8802 = vmatprep.subr.mxu0 0.0
      %8803 = vmatpush1.msra.mxu0 %v8642
      %8804 = vmatprep.subr.mxu0 0.0
      %8805 = vmatpush1.msra.mxu0 %v8641
      %8806 = vmatprep.subr.mxu0 0.0
      %8807 = vmatpush1.msra.mxu0 %v8640
      %8808 = vmatprep.subr.mxu0 0.0
      %8809 = vmatpush2.msra.mxu0 0.0
      %8810 = vmatprep.subr.mxu0 0.0
      %8811 = vmatpush2.msra.mxu0 0.0
      %8812 = vmatprep.subr.mxu0 0.0
      %8813 = vmatpush2.msra.mxu0 0.0
      %8814 = vmatprep.subr.mxu0 0.0
      %8815 = vmatpush2.msra.mxu0 0.0
      %8816 = vmatprep.subr.mxu0 0.0
      %8817 = vmatpush2.msra.mxu0 0.0
      %8818 = vmatprep.subr.mxu0 0.0
      %8819 = vmatpush2.msra.mxu0 0.0
      %8820 = vmatprep.subr.mxu0 0.0
      %8821 = vmatpush2.msra.mxu0 0.0
      %8822 = vmatprep.subr.mxu0 0.0
      %8823 = vmatpush2.msra.mxu0 0.0
      %8824 = vmatprep.subr.mxu0 0.0
      %8825 = vmatpush2.msra.mxu0 0.0
      %8826 = vmatprep.subr.mxu0 0.0
      %8827 = vmatpush2.msra.mxu0 0.0
      %8828 = vmatprep.subr.mxu0 0.0
      %8829 = vmatpush2.msra.mxu0 0.0
      %8830 = vmatprep.subr.mxu0 0.0
      %8831 = vmatpush2.msra.mxu0 0.0
      %8832 = vmatprep.subr.mxu0 0.0
      %8833 = vmatpush2.msra.mxu0 0.0
      %8834 = vmatprep.subr.mxu0 0.0
      %8835 = vmatpush2.msra.mxu0 0.0
      %8836 = vmatprep.subr.mxu0 0.0
      %8837 = vmatpush2.msra.mxu0 0.0
      %8838 = vmatprep.subr.mxu0 0.0
      %8839 = vmatpush2.msra.mxu0 0.0
      %8840 = vmatprep.mubr.f32.mxu0 0.0
      %8841 = vmatmul.mubr.f32.gmra.mxu0 %v8681
      %v8842 = vpop.f32.mrf.mxu0
      %v8843 = vadd.f32 0.0, %v8842
      %v8844 = vpop.f32.mrf.mxu0
      %8845 = vmatprep.mubr.f32.mxu0 0.0
      %8846 = vmatmul.mubr.f32.gmra.mxu0 %v8684
      %v8847 = vpop.f32.mrf.mxu0
      %v8848 = vadd.f32 0.0, %v8847
      %v8849 = vpop.f32.mrf.mxu0
      %8850 = vmatprep.mubr.f32.mxu0 0.0
      %8851 = vmatmul.mubr.f32.gmra.mxu0 %v8687
      %v8852 = vpop.f32.mrf.mxu0
      %v8853 = vadd.f32 0.0, %v8852
      %v8854 = vpop.f32.mrf.mxu0
      %8855 = vmatprep.mubr.f32.mxu0 0.0
      %8856 = vmatmul.mubr.f32.gmra.mxu0 %v8690
      %v8857 = vpop.f32.mrf.mxu0
      %v8858 = vadd.f32 0.0, %v8857
      %v8859 = vpop.f32.mrf.mxu0
      %8860 = vmatprep.mubr.f32.mxu0 0.0
      %8861 = vmatmul.mubr.f32.gmra.mxu0 %v8693
      %v8862 = vpop.f32.mrf.mxu0
      %v8863 = vadd.f32 0.0, %v8862
      %v8864 = vpop.f32.mrf.mxu0
      %8865 = vmatprep.mubr.f32.mxu0 0.0
      %8866 = vmatmul.mubr.f32.gmra.mxu0 %v8696
      %v8867 = vpop.f32.mrf.mxu0
      %v8868 = vadd.f32 0.0, %v8867
      %v8869 = vpop.f32.mrf.mxu0
      %8870 = vmatprep.mubr.f32.mxu0 0.0
      %8871 = vmatmul.mubr.f32.gmra.mxu0 %v8699
      %v8872 = vpop.f32.mrf.mxu0
      %v8873 = vadd.f32 0.0, %v8872
      %v8874 = vpop.f32.mrf.mxu0
      %8875 = vmatprep.mubr.f32.mxu0 0.0
      %8876 = vmatmul.mubr.f32.gmra.mxu0 %v8702
      %v8877 = vpop.f32.mrf.mxu0
      %v8878 = vadd.f32 0.0, %v8877
      %v8879 = vpop.f32.mrf.mxu0
      %8880 = vmatprep.mubr.f32.mxu0 0.0
      %8881 = vmatmul.mubr.f32.gmra.mxu0 %v8705
      %v8882 = vpop.f32.mrf.mxu0
      %v8883 = vadd.f32 0.0, %v8882
      %v8884 = vpop.f32.mrf.mxu0
      %8885 = vmatprep.mubr.f32.mxu0 0.0
      %8886 = vmatmul.mubr.f32.gmra.mxu0 %v8708
      %v8887 = vpop.f32.mrf.mxu0
      %v8888 = vadd.f32 0.0, %v8887
      %v8889 = vpop.f32.mrf.mxu0
      %8890 = vmatprep.mubr.f32.mxu0 0.0
      %8891 = vmatmul.mubr.f32.gmra.mxu0 %v8711
      %v8892 = vpop.f32.mrf.mxu0
      %v8893 = vadd.f32 0.0, %v8892
      %v8894 = vpop.f32.mrf.mxu0
      %8895 = vmatprep.mubr.f32.mxu0 0.0
      %8896 = vmatmul.mubr.f32.gmra.mxu0 %v8714
      %v8897 = vpop.f32.mrf.mxu0
      %v8898 = vadd.f32 0.0, %v8897
      %v8899 = vpop.f32.mrf.mxu0
      %8900 = vmatprep.mubr.f32.mxu0 0.0
      %8901 = vmatmul.mubr.f32.gmra.mxu0 %v8717
      %v8902 = vpop.f32.mrf.mxu0
      %v8903 = vadd.f32 0.0, %v8902
      %v8904 = vpop.f32.mrf.mxu0
      %8905 = vmatprep.mubr.f32.mxu0 0.0
      %8906 = vmatmul.mubr.f32.gmra.mxu0 %v8720
      %v8907 = vpop.f32.mrf.mxu0
      %v8908 = vadd.f32 0.0, %v8907
      %v8909 = vpop.f32.mrf.mxu0
      %8910 = vmatprep.mubr.f32.mxu0 0.0
      %8911 = vmatmul.mubr.f32.gmra.mxu0 %v8723
      %v8912 = vpop.f32.mrf.mxu0
      %v8913 = vadd.f32 0.0, %v8912
      %v8914 = vpop.f32.mrf.mxu0
      %8915 = vmatprep.mubr.f32.mxu0 0.0
      %8916 = vmatmul.mubr.f32.gmra.mxu0 %v8726
      %v8917 = vpop.f32.mrf.mxu0
      %v8918 = vadd.f32 0.0, %v8917
      %v8919 = vpop.f32.mrf.mxu0
      %8920 = vmatprep.mubr.f32.mxu0 0.0
      %8921 = vmatmul.mubr.f32.gmra.mxu0 %v8729
      %v8922 = vpop.f32.mrf.mxu0
      %v8923 = vadd.f32 0.0, %v8922
      %v8924 = vpop.f32.mrf.mxu0
      %8925 = vmatprep.mubr.f32.mxu0 0.0
      %8926 = vmatmul.mubr.f32.gmra.mxu0 %v8732
      %v8927 = vpop.f32.mrf.mxu0
      %v8928 = vadd.f32 0.0, %v8927
      %v8929 = vpop.f32.mrf.mxu0
      %8930 = vmatprep.mubr.f32.mxu0 0.0
      %8931 = vmatmul.mubr.f32.gmra.mxu0 %v8735
      %v8932 = vpop.f32.mrf.mxu0
      %v8933 = vadd.f32 0.0, %v8932
      %v8934 = vpop.f32.mrf.mxu0
      %8935 = vmatprep.mubr.f32.mxu0 0.0
      %8936 = vmatmul.mubr.f32.gmra.mxu0 %v8738
      %v8937 = vpop.f32.mrf.mxu0
      %v8938 = vadd.f32 0.0, %v8937
      %v8939 = vpop.f32.mrf.mxu0
      %8940 = vmatprep.mubr.f32.mxu0 0.0
      %8941 = vmatmul.mubr.f32.gmra.mxu0 %v8741
      %v8942 = vpop.f32.mrf.mxu0
      %v8943 = vadd.f32 0.0, %v8942
      %v8944 = vpop.f32.mrf.mxu0
      %8945 = vmatprep.mubr.f32.mxu0 0.0
      %8946 = vmatmul.mubr.f32.gmra.mxu0 %v8744
      %v8947 = vpop.f32.mrf.mxu0
      %v8948 = vadd.f32 0.0, %v8947
      %v8949 = vpop.f32.mrf.mxu0
      %8950 = vmatprep.mubr.f32.mxu0 0.0
      %8951 = vmatmul.mubr.f32.gmra.mxu0 %v8747
      %v8952 = vpop.f32.mrf.mxu0
      %v8953 = vadd.f32 0.0, %v8952
      %v8954 = vpop.f32.mrf.mxu0
      %8955 = vmatprep.mubr.f32.mxu0 0.0
      %8956 = vmatmul.mubr.f32.gmra.mxu0 %v8750
      %v8957 = vpop.f32.mrf.mxu0
      %v8958 = vadd.f32 0.0, %v8957
      %v8959 = vpop.f32.mrf.mxu0
      %8960 = vmatprep.mubr.f32.mxu0 0.0
      %8961 = vmatmul.mubr.f32.gmra.mxu0 %v8753
      %v8962 = vpop.f32.mrf.mxu0
      %v8963 = vadd.f32 0.0, %v8962
      %v8964 = vpop.f32.mrf.mxu0
      %8965 = vmatprep.mubr.f32.mxu0 0.0
      %8966 = vmatmul.mubr.f32.gmra.mxu0 %v8756
      %v8967 = vpop.f32.mrf.mxu0
      %v8968 = vadd.f32 0.0, %v8967
      %v8969 = vpop.f32.mrf.mxu0
      %8970 = vmatprep.mubr.f32.mxu0 0.0
      %8971 = vmatmul.mubr.f32.gmra.mxu0 %v8759
      %v8972 = vpop.f32.mrf.mxu0
      %v8973 = vadd.f32 0.0, %v8972
      %v8974 = vpop.f32.mrf.mxu0
      %8975 = vmatprep.mubr.f32.mxu0 0.0
      %8976 = vmatmul.mubr.f32.gmra.mxu0 %v8762
      %v8977 = vpop.f32.mrf.mxu0
      %v8978 = vadd.f32 0.0, %v8977
      %v8979 = vpop.f32.mrf.mxu0
      %8980 = vmatprep.mubr.f32.mxu0 0.0
      %8981 = vmatmul.mubr.f32.gmra.mxu0 %v8765
      %v8982 = vpop.f32.mrf.mxu0
      %v8983 = vadd.f32 0.0, %v8982
      %v8984 = vpop.f32.mrf.mxu0
      %8985 = vmatprep.mubr.f32.mxu0 0.0
      %8986 = vmatmul.mubr.f32.gmra.mxu0 %v8768
      %v8987 = vpop.f32.mrf.mxu0
      %v8988 = vadd.f32 0.0, %v8987
      %v8989 = vpop.f32.mrf.mxu0
      %8990 = vmatprep.mubr.f32.mxu0 0.0
      %8991 = vmatmul.mubr.f32.gmra.mxu0 %v8771
      %v8992 = vpop.f32.mrf.mxu0
      %v8993 = vadd.f32 0.0, %v8992
      %v8994 = vpop.f32.mrf.mxu0
      %8995 = vmatprep.mubr.f32.mxu0 0.0
      %8996 = vmatmul.mubr.f32.gmra.mxu0 %v8774
      %v8997 = vpop.f32.mrf.mxu0
      %v8998 = vadd.f32 0.0, %v8997
      %v8999 = vpop.f32.mrf.mxu0
      %9000 = vdwg.mxu0
      %vm9001 = vcmask 23552
      %9002 = vst.msk [vmem:[%s386] sm:$0xff] %vm9001, %v8843
      %9003 = vst.msk [vmem:[%s386 + $0x8] sm:$0xff] %vm9001, %v8848
      %9004 = vst.msk [vmem:[%s386 + $0x10] sm:$0xff] %vm9001, %v8853
      %9005 = vst.msk [vmem:[%s386 + $0x18] sm:$0xff] %vm9001, %v8858
      %9006 = vst.msk [vmem:[%s386 + $0x20] sm:$0xff] %vm9001, %v8863
      %9007 = vst.msk [vmem:[%s386 + $0x28] sm:$0xff] %vm9001, %v8868
      %9008 = vst.msk [vmem:[%s386 + $0x30] sm:$0xff] %vm9001, %v8873
      %9009 = vst.msk [vmem:[%s386 + $0x38] sm:$0xff] %vm9001, %v8878
      %9010 = vst.msk [vmem:[%s386 + $0x40] sm:$0xff] %vm9001, %v8883
      %9011 = vst.msk [vmem:[%s386 + $0x48] sm:$0xff] %vm9001, %v8888
      %9012 = vst.msk [vmem:[%s386 + $0x50] sm:$0xff] %vm9001, %v8893
      %9013 = vst.msk [vmem:[%s386 + $0x58] sm:$0xff] %vm9001, %v8898
      %9014 = vst.msk [vmem:[%s386 + $0x60] sm:$0xff] %vm9001, %v8903
      %9015 = vst.msk [vmem:[%s386 + $0x68] sm:$0xff] %vm9001, %v8908
      %9016 = vst.msk [vmem:[%s386 + $0x70] sm:$0xff] %vm9001, %v8913
      %9017 = vst.msk [vmem:[%s386 + $0x78] sm:$0xff] %vm9001, %v8918
      %9018 = vst.msk [vmem:[%s386 + $0x80] sm:$0xff] %vm9001, %v8923
      %9019 = vst.msk [vmem:[%s386 + $0x88] sm:$0xff] %vm9001, %v8928
      %9020 = vst.msk [vmem:[%s386 + $0x90] sm:$0xff] %vm9001, %v8933
      %9021 = vst.msk [vmem:[%s386 + $0x98] sm:$0xff] %vm9001, %v8938
      %9022 = vst.msk [vmem:[%s386 + $0xa0] sm:$0xff] %vm9001, %v8943
      %9023 = vst.msk [vmem:[%s386 + $0xa8] sm:$0xff] %vm9001, %v8948
      %9024 = vst.msk [vmem:[%s386 + $0xb0] sm:$0xff] %vm9001, %v8953
      %9025 = vst.msk [vmem:[%s386 + $0xb8] sm:$0xff] %vm9001, %v8958
      %9026 = vst.msk [vmem:[%s386 + $0xc0] sm:$0xff] %vm9001, %v8963
      %9027 = vst.msk [vmem:[%s386 + $0xc8] sm:$0xff] %vm9001, %v8968
      %9028 = vst.msk [vmem:[%s386 + $0xd0] sm:$0xff] %vm9001, %v8973
      %9029 = vst.msk [vmem:[%s386 + $0xd8] sm:$0xff] %vm9001, %v8978
      %9030 = vst.msk [vmem:[%s386 + $0xe0] sm:$0xff] %vm9001, %v8983
      %9031 = vst.msk [vmem:[%s386 + $0xe8] sm:$0xff] %vm9001, %v8988
      %9032 = vst.msk [vmem:[%s386 + $0xf0] sm:$0xff] %vm9001, %v8993
      %9033 = vst.msk [vmem:[%s386 + $0xf8] sm:$0xff] %vm9001, %v8998
      %p9034 = scmp.lt.s32.totalorder %s22, 1
      %s9035 = scalar_select %p9034, %s22, 1
      %s9036 = smul.addr %s9035, 32
      %s9037 = smul.addr %s9036, 8
      %s9038 = scalar_lea.vmem %s11, %s9037
      // Predicated region
      $region65: #{unet_noskip_forward.1} parent=63 // pred_check
        %p9039 = pneg %p276
      $region66: #{unet_noskip_forward.1} parent=63 // pred_check_branch
        %9041 = sbr.rel (%p9039) target = $region68
      $region67: #{unet_noskip_forward.1} parent=63 // pred_region
        _
      $region68: #{unet_noskip_forward.1} parent=63 // pred_fallthru
        _
    $region64: #{unet_noskip_forward.1} parent=5 // pred_fallthru
      _
    %p9042 = scmp.le.s32.totalorder 2, %s17
    // Predicated region
    $region69: #{unet_noskip_forward.1} parent=5 // pred_check
      %p9043 = pneg %p9042
    $region70: #{unet_noskip_forward.1} parent=5 // pred_check_branch
      %9045 = sbr.rel (%p9043) target = $region72
    $region71: #{unet_noskip_forward.1} parent=5 // pred_region
      %s9046 = ssub.s32 %s17, 2
      // Predicated region
      $region73: #{unet_noskip_forward.1} parent=71 // pred_check
        %p9047 = pneg %p282
      $region74: #{unet_noskip_forward.1} parent=71 // pred_check_branch
        %9049 = sbr.rel (%p9047) target = $region76
      $region75: #{unet_noskip_forward.1} parent=71 // pred_region
        %p9050 = scmp.lt.s32.totalorder %s23, 1
        %s9051 = scalar_select %p9050, %s23, 1
        %s9052 = smul.addr %s9051, 32
        %s9053 = smul.addr %s9052, 8
        %s9054 = scalar_lea.vmem %s11, %s9053
      $region76: #{unet_noskip_forward.1} parent=71 // pred_fallthru
        _
    $region72: #{unet_noskip_forward.1} parent=5 // pred_fallthru
      _
  $region6: #{unet_noskip_forward.1} parent=0 // loop_footer
    %s21 = sadd.s32 1, %s17
  $region7: #{unet_noskip_forward.1} parent=0 // loop_footer_branch
    %16 = sbr.rel target = $region3
  $region8: #{unet_noskip_forward.1} parent=0 // loop_exit
    _

</llo_original>
